<compile_context>
chip_gen: v7x
topology: tpu7x:2x2x1
jax: 0.10.0
libtpu: 0.0.40
codegen_flags: <defaults>
</compile_context>

<pallas_src>
import functools

import jax
import jax.numpy as jnp
from jax import lax
from jax.experimental import pallas as pl
from jax.experimental.pallas import tpu as pltpu  # noqa: F401  (TPU backend)

EPS = 1e-5  # PyTorch BatchNorm1d default eps

GC_DIMS = [(20, 32), (32, 32), (32, 48), (48, 64), (64, 64), (64, 80),
           (80, 96), (96, 96), (96, 102), (102, 128), (128, 128), (128, 144)]
ALIGN_DIMS = {"2_3": (32, 48), "3_4": (48, 64), "5_6": (64, 80),
              "6_7": (80, 96), "8_9": (96, 102), "9_10": (102, 128)}
ALIGN_FOR_LAYER = {3: "2_3", 4: "3_4", 6: "5_6", 7: "6_7", 9: "8_9", 10: "9_10"}
IDENTITY_RES = {5, 8, 11}


def _param_order():
    names = ["conv0_wt", "bn0_g", "bn0_b",
             "gc1_wt_shape", "gc1_wt_skel", "gc1_b", "bn1_g", "bn1_b"]
    for i in range(2, 13):
        names += [f"gc{i}_wt", f"gc{i}_b"]
        if i <= 11:
            names += [f"bn{i}_g", f"bn{i}_b"]
    for nm in ALIGN_DIMS:
        names += [f"al{nm}_wt", f"al{nm}_g", f"al{nm}_b"]
    return names


PARAM_ORDER = _param_order()


# ---------------------------------------------------------------------------
# Fused Pallas kernel: whole LinkPredNet forward in one launch
# ---------------------------------------------------------------------------

def _link_pred_kernel(x_shape_ref, x_skel_ref, at_ref, *rest, B, N):
    # x_shape: (B*N, 512), x_skel: (B*N, 4), at: (B*N, B*N) block-diagonal A^T.
    # rest = (<params in PARAM_ORDER>, o_ref) ; o_ref: (B, N, N).
    o_ref = rest[-1]
    prm = dict(zip(PARAM_ORDER, rest[:-1]))
    f32 = jnp.float32

    def bn(y, name, relu):
        # BatchNorm1d(track_running_stats=False): batch stats over all (B*N) rows,
        # biased variance (PyTorch normalization semantics).
        g = prm[f"{name}_g"][...]
        b = prm[f"{name}_b"][...]
        mean = jnp.mean(y, axis=0, keepdims=True)
        d = y - mean
        var = jnp.mean(d * d, axis=0, keepdims=True)
        out = d * lax.rsqrt(var + EPS) * g + b
        return jnp.maximum(out, 0.0) if relu else out

    at = at_ref[...]                                            # (B*N, B*N)

    def gconv(x, i):
        # y = W . (x . A) + b  in NC layout:  (A^T @ x) @ W^T + b
        agg = jnp.dot(at, x, preferred_element_type=f32)
        return (jnp.dot(agg, prm[f"gc{i}_wt"][...], preferred_element_type=f32)
                + prm[f"gc{i}_b"][...])

    def align(x, name):
        y = jnp.dot(x, prm[f"al{name}_wt"][...], preferred_element_type=f32)
        return bn(y, f"al{name}", relu=False)

    # --- stem: x_shape = bn0(relu(conv0(x_shape))) ---
    h = jnp.dot(x_shape_ref[...], prm["conv0_wt"][...], preferred_element_type=f32)
    h = jnp.maximum(h, 0.0)
    h = bn(h, "bn0", relu=False)                                # (B*N, 16)

    # --- layer 1 acts on concat([h, x_skel]); weights pre-split to avoid a lane concat ---
    skel = x_skel_ref[...]                                      # (B*N, 4)
    agg_h = jnp.dot(at, h, preferred_element_type=f32)
    agg_s = jnp.dot(at, skel, preferred_element_type=f32)
    y1 = (jnp.dot(agg_h, prm["gc1_wt_shape"][...], preferred_element_type=f32)
          + jnp.dot(agg_s, prm["gc1_wt_skel"][...], preferred_element_type=f32)
          + prm["gc1_b"][...])
    xk = bn(y1, "bn1", relu=True)                               # (B*N, 32)

    # --- layers 2..11 with align / identity residuals ---
    for i in range(2, 12):
        y = bn(gconv(xk, i), f"bn{i}", relu=False)
        if i in ALIGN_FOR_LAYER:
            y = y + align(xk, ALIGN_FOR_LAYER[i])
        elif i in IDENTITY_RES:
            y = y + xk
        xk = jnp.maximum(y, 0.0)

    # --- layer 12: GraphConv only (no bn / relu) ---
    z = gconv(xk, 12)                                           # (B*N, 144)

    # --- inner-product decoder (identity act): adj[b] = z_b @ z_b^T ---
    for b in range(B):
        zb = z[b * N:(b + 1) * N, :]
        o_ref[b] = lax.dot_general(zb, zb, (((1,), (1,)), ((), ())),
                                   preferred_element_type=f32)


# ---------------------------------------------------------------------------
# Parameters (deterministic synthetic init, stored pre-transposed / lane-dense)
# ---------------------------------------------------------------------------

def init_params(key):
    keys = iter(jax.random.split(key, 128))

    def nrm(shape, scale=0.05):
        return scale * jax.random.normal(next(keys), shape, dtype=jnp.float32)

    p = {}
    # conv0: Conv1d(512 -> 16, k=1, bias=False) + bn0 ; weight stored as (Cin, Cout)
    p["conv0_wt"] = nrm((512, 16))
    p["bn0_g"] = jnp.ones((1, 16), jnp.float32)
    p["bn0_b"] = jnp.zeros((1, 16), jnp.float32)
    # GraphConv stack + bn1..bn11 (conv12 has no bn)
    for i, (ci, co) in enumerate(GC_DIMS, start=1):
        if i == 1:
            p["gc1_wt_shape"] = nrm((16, co))   # weight rows for the bn0 features
            p["gc1_wt_skel"] = nrm((4, co))     # weight rows for the skeleton features
        else:
            p[f"gc{i}_wt"] = nrm((ci, co))
        p[f"gc{i}_b"] = nrm((1, co), scale=0.01)
        if i <= 11:
            p[f"bn{i}_g"] = jnp.ones((1, co), jnp.float32)
            p[f"bn{i}_b"] = jnp.zeros((1, co), jnp.float32)
    # align branches: Conv1d(k=1, bias=False) + BatchNorm1d
    for name, (ci, co) in ALIGN_DIMS.items():
        p[f"al{name}_wt"] = nrm((ci, co))
        p[f"al{name}_g"] = jnp.ones((1, co), jnp.float32)
        p[f"al{name}_b"] = jnp.zeros((1, co), jnp.float32)
    return p


# ---------------------------------------------------------------------------
# Forward pass: all layout plumbing in JAX, all compute in ONE pallas_call
# ---------------------------------------------------------------------------

def link_pred_net_forward(params, x, A):
    # x: (B, N, 516), A: (B, N, N)
    B, N, feat = x.shape
    assert feat == 516

    x_flat = x.reshape(B * N, feat).astype(jnp.float32)         # lane-dense (rows, channels)
    x_shape = x_flat[:, :512]
    x_skel = x_flat[:, 512:516]

    # Block-diagonal A^T of shape (B*N, B*N): turns the per-batch bmm(x, A)
    # into a single lane-dense matmul inside the kernel.
    At = jnp.transpose(A, (0, 2, 1)).astype(jnp.float32)
    eye = jnp.eye(B, dtype=jnp.float32)
    at_bd = jnp.einsum("bc,bij->bicj", eye, At).reshape(B * N, B * N)

    args = [x_shape, x_skel, at_bd] + [params[name] for name in PARAM_ORDER]

    kernel = functools.partial(_link_pred_kernel, B=B, N=N)
    # No grid: single invocation; all inputs (weights + activations, ~1 MB padded)
    # land in VMEM once and stay resident for the whole network.
    return pl.pallas_call(
        kernel,
        out_shape=jax.ShapeDtypeStruct((B, N, N), jnp.float32),
    )(*args)


# ---------------------------------------------------------------------------
# Main
# ---------------------------------------------------------------------------

if __name__ == "__main__":
    key = jax.random.PRNGKey(0)
    kp, kx, ka = jax.random.split(key, 3)

    B, N = 2, 16
    params = init_params(kp)

    x = jax.random.normal(kx, (B, N, 516), dtype=jnp.float32)
    A = (jax.random.uniform(ka, (B, N, N)) > 0.7).astype(jnp.float32)
    A = jnp.minimum(A + jnp.transpose(A, (0, 2, 1)) + jnp.eye(N, dtype=jnp.float32)[None], 1.0)

    fwd = jax.jit(functools.partial(link_pred_net_forward, params))
    out = fwd(x, A)
    jax.block_until_ready(out)

    assert out.shape == (B, N, N)
    assert out.dtype == jnp.float32
    print("KERNEL_OK")
</pallas_src>

<mosaic_0001>
module attributes {stable_mosaic.version = 11 : i64} {
  func.func @_link_pred_kernel(%arg0: memref<32x512xf32, #tpu.memory_space<vmem>>, %arg1: memref<32x4xf32, #tpu.memory_space<vmem>>, %arg2: memref<32x32xf32, #tpu.memory_space<vmem>>, %arg3: memref<512x16xf32, #tpu.memory_space<vmem>>, %arg4: memref<1x16xf32, #tpu.memory_space<vmem>>, %arg5: memref<1x16xf32, #tpu.memory_space<vmem>>, %arg6: memref<16x32xf32, #tpu.memory_space<vmem>>, %arg7: memref<4x32xf32, #tpu.memory_space<vmem>>, %arg8: memref<1x32xf32, #tpu.memory_space<vmem>>, %arg9: memref<1x32xf32, #tpu.memory_space<vmem>>, %arg10: memref<1x32xf32, #tpu.memory_space<vmem>>, %arg11: memref<32x32xf32, #tpu.memory_space<vmem>>, %arg12: memref<1x32xf32, #tpu.memory_space<vmem>>, %arg13: memref<1x32xf32, #tpu.memory_space<vmem>>, %arg14: memref<1x32xf32, #tpu.memory_space<vmem>>, %arg15: memref<32x48xf32, #tpu.memory_space<vmem>>, %arg16: memref<1x48xf32, #tpu.memory_space<vmem>>, %arg17: memref<1x48xf32, #tpu.memory_space<vmem>>, %arg18: memref<1x48xf32, #tpu.memory_space<vmem>>, %arg19: memref<48x64xf32, #tpu.memory_space<vmem>>, %arg20: memref<1x64xf32, #tpu.memory_space<vmem>>, %arg21: memref<1x64xf32, #tpu.memory_space<vmem>>, %arg22: memref<1x64xf32, #tpu.memory_space<vmem>>, %arg23: memref<64x64xf32, #tpu.memory_space<vmem>>, %arg24: memref<1x64xf32, #tpu.memory_space<vmem>>, %arg25: memref<1x64xf32, #tpu.memory_space<vmem>>, %arg26: memref<1x64xf32, #tpu.memory_space<vmem>>, %arg27: memref<64x80xf32, #tpu.memory_space<vmem>>, %arg28: memref<1x80xf32, #tpu.memory_space<vmem>>, %arg29: memref<1x80xf32, #tpu.memory_space<vmem>>, %arg30: memref<1x80xf32, #tpu.memory_space<vmem>>, %arg31: memref<80x96xf32, #tpu.memory_space<vmem>>, %arg32: memref<1x96xf32, #tpu.memory_space<vmem>>, %arg33: memref<1x96xf32, #tpu.memory_space<vmem>>, %arg34: memref<1x96xf32, #tpu.memory_space<vmem>>, %arg35: memref<96x96xf32, #tpu.memory_space<vmem>>, %arg36: memref<1x96xf32, #tpu.memory_space<vmem>>, %arg37: memref<1x96xf32, #tpu.memory_space<vmem>>, %arg38: memref<1x96xf32, #tpu.memory_space<vmem>>, %arg39: memref<96x102xf32, #tpu.memory_space<vmem>>, %arg40: memref<1x102xf32, #tpu.memory_space<vmem>>, %arg41: memref<1x102xf32, #tpu.memory_space<vmem>>, %arg42: memref<1x102xf32, #tpu.memory_space<vmem>>, %arg43: memref<102x128xf32, #tpu.memory_space<vmem>>, %arg44: memref<1x128xf32, #tpu.memory_space<vmem>>, %arg45: memref<1x128xf32, #tpu.memory_space<vmem>>, %arg46: memref<1x128xf32, #tpu.memory_space<vmem>>, %arg47: memref<128x128xf32, #tpu.memory_space<vmem>>, %arg48: memref<1x128xf32, #tpu.memory_space<vmem>>, %arg49: memref<1x128xf32, #tpu.memory_space<vmem>>, %arg50: memref<1x128xf32, #tpu.memory_space<vmem>>, %arg51: memref<128x144xf32, #tpu.memory_space<vmem>>, %arg52: memref<1x144xf32, #tpu.memory_space<vmem>>, %arg53: memref<32x48xf32, #tpu.memory_space<vmem>>, %arg54: memref<1x48xf32, #tpu.memory_space<vmem>>, %arg55: memref<1x48xf32, #tpu.memory_space<vmem>>, %arg56: memref<48x64xf32, #tpu.memory_space<vmem>>, %arg57: memref<1x64xf32, #tpu.memory_space<vmem>>, %arg58: memref<1x64xf32, #tpu.memory_space<vmem>>, %arg59: memref<64x80xf32, #tpu.memory_space<vmem>>, %arg60: memref<1x80xf32, #tpu.memory_space<vmem>>, %arg61: memref<1x80xf32, #tpu.memory_space<vmem>>, %arg62: memref<80x96xf32, #tpu.memory_space<vmem>>, %arg63: memref<1x96xf32, #tpu.memory_space<vmem>>, %arg64: memref<1x96xf32, #tpu.memory_space<vmem>>, %arg65: memref<96x102xf32, #tpu.memory_space<vmem>>, %arg66: memref<1x102xf32, #tpu.memory_space<vmem>>, %arg67: memref<1x102xf32, #tpu.memory_space<vmem>>, %arg68: memref<102x128xf32, #tpu.memory_space<vmem>>, %arg69: memref<1x128xf32, #tpu.memory_space<vmem>>, %arg70: memref<1x128xf32, #tpu.memory_space<vmem>>, %arg71: memref<2x16x16xf32, #tpu.memory_space<vmem>>) attributes {dimension_semantics = [], scalar_prefetch = 0 : i64, scratch_operands = 0 : i64, tpu.core_type = #tpu.core_type<tc>} {
    %c0 = arith.constant 0 : index
    %c0_0 = arith.constant 0 : index
    %0 = vector.load %arg2[%c0, %c0_0] : memref<32x32xf32, #tpu.memory_space<vmem>>, vector<32x32xf32>
    %c0_1 = arith.constant 0 : index
    %c0_2 = arith.constant 0 : index
    %1 = vector.load %arg0[%c0_1, %c0_2] : memref<32x512xf32, #tpu.memory_space<vmem>>, vector<32x512xf32>
    %c0_3 = arith.constant 0 : index
    %c0_4 = arith.constant 0 : index
    %2 = vector.load %arg3[%c0_3, %c0_4] : memref<512x16xf32, #tpu.memory_space<vmem>>, vector<512x16xf32>
    %cst = arith.constant dense<0.000000e+00> : vector<32x16xf32>
    %3 = tpu.matmul %1, %2, %cst {dimension_numbers = #tpu.dot_dimension_numbers<[1], [0], [0], [1], [0, 0, 1, 1], [], []>} : vector<32x512xf32>, vector<512x16xf32>, vector<32x16xf32> -> vector<32x16xf32>
    %cst_5 = arith.constant 0.000000e+00 : f32
    %4 = vector.broadcast %cst_5 : f32 to vector<32x16xf32>
    %5 = arith.maximumf %3, %4 : vector<32x16xf32>
    %c0_6 = arith.constant 0 : index
    %c0_7 = arith.constant 0 : index
    %6 = vector.load %arg4[%c0_6, %c0_7] : memref<1x16xf32, #tpu.memory_space<vmem>>, vector<1x16xf32>
    %c0_8 = arith.constant 0 : index
    %c0_9 = arith.constant 0 : index
    %7 = vector.load %arg5[%c0_8, %c0_9] : memref<1x16xf32, #tpu.memory_space<vmem>>, vector<1x16xf32>
    %cst_10 = arith.constant dense<0.000000e+00> : vector<16xf32>
    %8 = vector.multi_reduction <add>, %5, %cst_10 [0] : vector<32x16xf32> to vector<16xf32>
    %9 = vector.shape_cast %8 : vector<16xf32> to vector<1x16xf32>
    %cst_11 = arith.constant 3.200000e+01 : f32
    %10 = vector.broadcast %cst_11 : f32 to vector<1x16xf32>
    %11 = arith.divf %9, %10 : vector<1x16xf32>
    %12 = vector.broadcast %11 : vector<1x16xf32> to vector<32x16xf32>
    %13 = arith.subf %5, %12 : vector<32x16xf32>
    %14 = arith.mulf %13, %13 : vector<32x16xf32>
    %cst_12 = arith.constant dense<0.000000e+00> : vector<16xf32>
    %15 = vector.multi_reduction <add>, %14, %cst_12 [0] : vector<32x16xf32> to vector<16xf32>
    %16 = vector.shape_cast %15 : vector<16xf32> to vector<1x16xf32>
    %cst_13 = arith.constant 3.200000e+01 : f32
    %17 = vector.broadcast %cst_13 : f32 to vector<1x16xf32>
    %18 = arith.divf %16, %17 : vector<1x16xf32>
    %cst_14 = arith.constant 9.99999974E-6 : f32
    %19 = vector.broadcast %cst_14 : f32 to vector<1x16xf32>
    %20 = arith.addf %18, %19 : vector<1x16xf32>
    %21 = math.rsqrt %20 : vector<1x16xf32>
    %22 = vector.broadcast %21 : vector<1x16xf32> to vector<32x16xf32>
    %23 = arith.mulf %13, %22 : vector<32x16xf32>
    %24 = vector.broadcast %6 : vector<1x16xf32> to vector<32x16xf32>
    %25 = arith.mulf %23, %24 : vector<32x16xf32>
    %26 = vector.broadcast %7 : vector<1x16xf32> to vector<32x16xf32>
    %27 = arith.addf %25, %26 : vector<32x16xf32>
    %c0_15 = arith.constant 0 : index
    %c0_16 = arith.constant 0 : index
    %28 = vector.load %arg1[%c0_15, %c0_16] : memref<32x4xf32, #tpu.memory_space<vmem>>, vector<32x4xf32>
    %cst_17 = arith.constant dense<0.000000e+00> : vector<32x16xf32>
    %29 = tpu.matmul %0, %27, %cst_17 {dimension_numbers = #tpu.dot_dimension_numbers<[1], [0], [0], [1], [0, 0, 1, 1], [], []>} : vector<32x32xf32>, vector<32x16xf32>, vector<32x16xf32> -> vector<32x16xf32>
    %cst_18 = arith.constant dense<0.000000e+00> : vector<32x4xf32>
    %30 = tpu.matmul %0, %28, %cst_18 {dimension_numbers = #tpu.dot_dimension_numbers<[1], [0], [0], [1], [0, 0, 1, 1], [], []>} : vector<32x32xf32>, vector<32x4xf32>, vector<32x4xf32> -> vector<32x4xf32>
    %c0_19 = arith.constant 0 : index
    %c0_20 = arith.constant 0 : index
    %31 = vector.load %arg6[%c0_19, %c0_20] : memref<16x32xf32, #tpu.memory_space<vmem>>, vector<16x32xf32>
    %cst_21 = arith.constant dense<0.000000e+00> : vector<32x32xf32>
    %32 = tpu.matmul %29, %31, %cst_21 {dimension_numbers = #tpu.dot_dimension_numbers<[1], [0], [0], [1], [0, 0, 1, 1], [], []>} : vector<32x16xf32>, vector<16x32xf32>, vector<32x32xf32> -> vector<32x32xf32>
    %c0_22 = arith.constant 0 : index
    %c0_23 = arith.constant 0 : index
    %33 = vector.load %arg7[%c0_22, %c0_23] : memref<4x32xf32, #tpu.memory_space<vmem>>, vector<4x32xf32>
    %cst_24 = arith.constant dense<0.000000e+00> : vector<32x32xf32>
    %34 = tpu.matmul %30, %33, %cst_24 {dimension_numbers = #tpu.dot_dimension_numbers<[1], [0], [0], [1], [0, 0, 1, 1], [], []>} : vector<32x4xf32>, vector<4x32xf32>, vector<32x32xf32> -> vector<32x32xf32>
    %35 = arith.addf %32, %34 : vector<32x32xf32>
    %c0_25 = arith.constant 0 : index
    %c0_26 = arith.constant 0 : index
    %36 = vector.load %arg8[%c0_25, %c0_26] : memref<1x32xf32, #tpu.memory_space<vmem>>, vector<1x32xf32>
    %37 = vector.broadcast %36 : vector<1x32xf32> to vector<32x32xf32>
    %38 = arith.addf %35, %37 : vector<32x32xf32>
    %c0_27 = arith.constant 0 : index
    %c0_28 = arith.constant 0 : index
    %39 = vector.load %arg9[%c0_27, %c0_28] : memref<1x32xf32, #tpu.memory_space<vmem>>, vector<1x32xf32>
    %c0_29 = arith.constant 0 : index
    %c0_30 = arith.constant 0 : index
    %40 = vector.load %arg10[%c0_29, %c0_30] : memref<1x32xf32, #tpu.memory_space<vmem>>, vector<1x32xf32>
    %cst_31 = arith.constant dense<0.000000e+00> : vector<32xf32>
    %41 = vector.multi_reduction <add>, %38, %cst_31 [0] : vector<32x32xf32> to vector<32xf32>
    %42 = vector.shape_cast %41 : vector<32xf32> to vector<1x32xf32>
    %cst_32 = arith.constant 3.200000e+01 : f32
    %43 = vector.broadcast %cst_32 : f32 to vector<1x32xf32>
    %44 = arith.divf %42, %43 : vector<1x32xf32>
    %45 = vector.broadcast %44 : vector<1x32xf32> to vector<32x32xf32>
    %46 = arith.subf %38, %45 : vector<32x32xf32>
    %47 = arith.mulf %46, %46 : vector<32x32xf32>
    %cst_33 = arith.constant dense<0.000000e+00> : vector<32xf32>
    %48 = vector.multi_reduction <add>, %47, %cst_33 [0] : vector<32x32xf32> to vector<32xf32>
    %49 = vector.shape_cast %48 : vector<32xf32> to vector<1x32xf32>
    %cst_34 = arith.constant 3.200000e+01 : f32
    %50 = vector.broadcast %cst_34 : f32 to vector<1x32xf32>
    %51 = arith.divf %49, %50 : vector<1x32xf32>
    %cst_35 = arith.constant 9.99999974E-6 : f32
    %52 = vector.broadcast %cst_35 : f32 to vector<1x32xf32>
    %53 = arith.addf %51, %52 : vector<1x32xf32>
    %54 = math.rsqrt %53 : vector<1x32xf32>
    %55 = vector.broadcast %54 : vector<1x32xf32> to vector<32x32xf32>
    %56 = arith.mulf %46, %55 : vector<32x32xf32>
    %57 = vector.broadcast %39 : vector<1x32xf32> to vector<32x32xf32>
    %58 = arith.mulf %56, %57 : vector<32x32xf32>
    %59 = vector.broadcast %40 : vector<1x32xf32> to vector<32x32xf32>
    %60 = arith.addf %58, %59 : vector<32x32xf32>
    %cst_36 = arith.constant 0.000000e+00 : f32
    %61 = vector.broadcast %cst_36 : f32 to vector<32x32xf32>
    %62 = arith.maximumf %60, %61 : vector<32x32xf32>
    %cst_37 = arith.constant dense<0.000000e+00> : vector<32x32xf32>
    %63 = tpu.matmul %0, %62, %cst_37 {dimension_numbers = #tpu.dot_dimension_numbers<[1], [0], [0], [1], [0, 0, 1, 1], [], []>} : vector<32x32xf32>, vector<32x32xf32>, vector<32x32xf32> -> vector<32x32xf32>
    %c0_38 = arith.constant 0 : index
    %c0_39 = arith.constant 0 : index
    %64 = vector.load %arg11[%c0_38, %c0_39] : memref<32x32xf32, #tpu.memory_space<vmem>>, vector<32x32xf32>
    %cst_40 = arith.constant dense<0.000000e+00> : vector<32x32xf32>
    %65 = tpu.matmul %63, %64, %cst_40 {dimension_numbers = #tpu.dot_dimension_numbers<[1], [0], [0], [1], [0, 0, 1, 1], [], []>} : vector<32x32xf32>, vector<32x32xf32>, vector<32x32xf32> -> vector<32x32xf32>
    %c0_41 = arith.constant 0 : index
    %c0_42 = arith.constant 0 : index
    %66 = vector.load %arg12[%c0_41, %c0_42] : memref<1x32xf32, #tpu.memory_space<vmem>>, vector<1x32xf32>
    %67 = vector.broadcast %66 : vector<1x32xf32> to vector<32x32xf32>
    %68 = arith.addf %65, %67 : vector<32x32xf32>
    %c0_43 = arith.constant 0 : index
    %c0_44 = arith.constant 0 : index
    %69 = vector.load %arg13[%c0_43, %c0_44] : memref<1x32xf32, #tpu.memory_space<vmem>>, vector<1x32xf32>
    %c0_45 = arith.constant 0 : index
    %c0_46 = arith.constant 0 : index
    %70 = vector.load %arg14[%c0_45, %c0_46] : memref<1x32xf32, #tpu.memory_space<vmem>>, vector<1x32xf32>
    %cst_47 = arith.constant dense<0.000000e+00> : vector<32xf32>
    %71 = vector.multi_reduction <add>, %68, %cst_47 [0] : vector<32x32xf32> to vector<32xf32>
    %72 = vector.shape_cast %71 : vector<32xf32> to vector<1x32xf32>
    %cst_48 = arith.constant 3.200000e+01 : f32
    %73 = vector.broadcast %cst_48 : f32 to vector<1x32xf32>
    %74 = arith.divf %72, %73 : vector<1x32xf32>
    %75 = vector.broadcast %74 : vector<1x32xf32> to vector<32x32xf32>
    %76 = arith.subf %68, %75 : vector<32x32xf32>
    %77 = arith.mulf %76, %76 : vector<32x32xf32>
    %cst_49 = arith.constant dense<0.000000e+00> : vector<32xf32>
    %78 = vector.multi_reduction <add>, %77, %cst_49 [0] : vector<32x32xf32> to vector<32xf32>
    %79 = vector.shape_cast %78 : vector<32xf32> to vector<1x32xf32>
    %cst_50 = arith.constant 3.200000e+01 : f32
    %80 = vector.broadcast %cst_50 : f32 to vector<1x32xf32>
    %81 = arith.divf %79, %80 : vector<1x32xf32>
    %cst_51 = arith.constant 9.99999974E-6 : f32
    %82 = vector.broadcast %cst_51 : f32 to vector<1x32xf32>
    %83 = arith.addf %81, %82 : vector<1x32xf32>
    %84 = math.rsqrt %83 : vector<1x32xf32>
    %85 = vector.broadcast %84 : vector<1x32xf32> to vector<32x32xf32>
    %86 = arith.mulf %76, %85 : vector<32x32xf32>
    %87 = vector.broadcast %69 : vector<1x32xf32> to vector<32x32xf32>
    %88 = arith.mulf %86, %87 : vector<32x32xf32>
    %89 = vector.broadcast %70 : vector<1x32xf32> to vector<32x32xf32>
    %90 = arith.addf %88, %89 : vector<32x32xf32>
    %cst_52 = arith.constant 0.000000e+00 : f32
    %91 = vector.broadcast %cst_52 : f32 to vector<32x32xf32>
    %92 = arith.maximumf %90, %91 : vector<32x32xf32>
    %cst_53 = arith.constant dense<0.000000e+00> : vector<32x32xf32>
    %93 = tpu.matmul %0, %92, %cst_53 {dimension_numbers = #tpu.dot_dimension_numbers<[1], [0], [0], [1], [0, 0, 1, 1], [], []>} : vector<32x32xf32>, vector<32x32xf32>, vector<32x32xf32> -> vector<32x32xf32>
    %c0_54 = arith.constant 0 : index
    %c0_55 = arith.constant 0 : index
    %94 = vector.load %arg15[%c0_54, %c0_55] : memref<32x48xf32, #tpu.memory_space<vmem>>, vector<32x48xf32>
    %cst_56 = arith.constant dense<0.000000e+00> : vector<32x48xf32>
    %95 = tpu.matmul %93, %94, %cst_56 {dimension_numbers = #tpu.dot_dimension_numbers<[1], [0], [0], [1], [0, 0, 1, 1], [], []>} : vector<32x32xf32>, vector<32x48xf32>, vector<32x48xf32> -> vector<32x48xf32>
    %c0_57 = arith.constant 0 : index
    %c0_58 = arith.constant 0 : index
    %96 = vector.load %arg16[%c0_57, %c0_58] : memref<1x48xf32, #tpu.memory_space<vmem>>, vector<1x48xf32>
    %97 = vector.broadcast %96 : vector<1x48xf32> to vector<32x48xf32>
    %98 = arith.addf %95, %97 : vector<32x48xf32>
    %c0_59 = arith.constant 0 : index
    %c0_60 = arith.constant 0 : index
    %99 = vector.load %arg17[%c0_59, %c0_60] : memref<1x48xf32, #tpu.memory_space<vmem>>, vector<1x48xf32>
    %c0_61 = arith.constant 0 : index
    %c0_62 = arith.constant 0 : index
    %100 = vector.load %arg18[%c0_61, %c0_62] : memref<1x48xf32, #tpu.memory_space<vmem>>, vector<1x48xf32>
    %cst_63 = arith.constant dense<0.000000e+00> : vector<48xf32>
    %101 = vector.multi_reduction <add>, %98, %cst_63 [0] : vector<32x48xf32> to vector<48xf32>
    %102 = vector.shape_cast %101 : vector<48xf32> to vector<1x48xf32>
    %cst_64 = arith.constant 3.200000e+01 : f32
    %103 = vector.broadcast %cst_64 : f32 to vector<1x48xf32>
    %104 = arith.divf %102, %103 : vector<1x48xf32>
    %105 = vector.broadcast %104 : vector<1x48xf32> to vector<32x48xf32>
    %106 = arith.subf %98, %105 : vector<32x48xf32>
    %107 = arith.mulf %106, %106 : vector<32x48xf32>
    %cst_65 = arith.constant dense<0.000000e+00> : vector<48xf32>
    %108 = vector.multi_reduction <add>, %107, %cst_65 [0] : vector<32x48xf32> to vector<48xf32>
    %109 = vector.shape_cast %108 : vector<48xf32> to vector<1x48xf32>
    %cst_66 = arith.constant 3.200000e+01 : f32
    %110 = vector.broadcast %cst_66 : f32 to vector<1x48xf32>
    %111 = arith.divf %109, %110 : vector<1x48xf32>
    %cst_67 = arith.constant 9.99999974E-6 : f32
    %112 = vector.broadcast %cst_67 : f32 to vector<1x48xf32>
    %113 = arith.addf %111, %112 : vector<1x48xf32>
    %114 = math.rsqrt %113 : vector<1x48xf32>
    %115 = vector.broadcast %114 : vector<1x48xf32> to vector<32x48xf32>
    %116 = arith.mulf %106, %115 : vector<32x48xf32>
    %117 = vector.broadcast %99 : vector<1x48xf32> to vector<32x48xf32>
    %118 = arith.mulf %116, %117 : vector<32x48xf32>
    %119 = vector.broadcast %100 : vector<1x48xf32> to vector<32x48xf32>
    %120 = arith.addf %118, %119 : vector<32x48xf32>
    %c0_68 = arith.constant 0 : index
    %c0_69 = arith.constant 0 : index
    %121 = vector.load %arg53[%c0_68, %c0_69] : memref<32x48xf32, #tpu.memory_space<vmem>>, vector<32x48xf32>
    %cst_70 = arith.constant dense<0.000000e+00> : vector<32x48xf32>
    %122 = tpu.matmul %92, %121, %cst_70 {dimension_numbers = #tpu.dot_dimension_numbers<[1], [0], [0], [1], [0, 0, 1, 1], [], []>} : vector<32x32xf32>, vector<32x48xf32>, vector<32x48xf32> -> vector<32x48xf32>
    %c0_71 = arith.constant 0 : index
    %c0_72 = arith.constant 0 : index
    %123 = vector.load %arg54[%c0_71, %c0_72] : memref<1x48xf32, #tpu.memory_space<vmem>>, vector<1x48xf32>
    %c0_73 = arith.constant 0 : index
    %c0_74 = arith.constant 0 : index
    %124 = vector.load %arg55[%c0_73, %c0_74] : memref<1x48xf32, #tpu.memory_space<vmem>>, vector<1x48xf32>
    %cst_75 = arith.constant dense<0.000000e+00> : vector<48xf32>
    %125 = vector.multi_reduction <add>, %122, %cst_75 [0] : vector<32x48xf32> to vector<48xf32>
    %126 = vector.shape_cast %125 : vector<48xf32> to vector<1x48xf32>
    %cst_76 = arith.constant 3.200000e+01 : f32
    %127 = vector.broadcast %cst_76 : f32 to vector<1x48xf32>
    %128 = arith.divf %126, %127 : vector<1x48xf32>
    %129 = vector.broadcast %128 : vector<1x48xf32> to vector<32x48xf32>
    %130 = arith.subf %122, %129 : vector<32x48xf32>
    %131 = arith.mulf %130, %130 : vector<32x48xf32>
    %cst_77 = arith.constant dense<0.000000e+00> : vector<48xf32>
    %132 = vector.multi_reduction <add>, %131, %cst_77 [0] : vector<32x48xf32> to vector<48xf32>
    %133 = vector.shape_cast %132 : vector<48xf32> to vector<1x48xf32>
    %cst_78 = arith.constant 3.200000e+01 : f32
    %134 = vector.broadcast %cst_78 : f32 to vector<1x48xf32>
    %135 = arith.divf %133, %134 : vector<1x48xf32>
    %cst_79 = arith.constant 9.99999974E-6 : f32
    %136 = vector.broadcast %cst_79 : f32 to vector<1x48xf32>
    %137 = arith.addf %135, %136 : vector<1x48xf32>
    %138 = math.rsqrt %137 : vector<1x48xf32>
    %139 = vector.broadcast %138 : vector<1x48xf32> to vector<32x48xf32>
    %140 = arith.mulf %130, %139 : vector<32x48xf32>
    %141 = vector.broadcast %123 : vector<1x48xf32> to vector<32x48xf32>
    %142 = arith.mulf %140, %141 : vector<32x48xf32>
    %143 = vector.broadcast %124 : vector<1x48xf32> to vector<32x48xf32>
    %144 = arith.addf %142, %143 : vector<32x48xf32>
    %145 = arith.addf %120, %144 : vector<32x48xf32>
    %cst_80 = arith.constant 0.000000e+00 : f32
    %146 = vector.broadcast %cst_80 : f32 to vector<32x48xf32>
    %147 = arith.maximumf %145, %146 : vector<32x48xf32>
    %cst_81 = arith.constant dense<0.000000e+00> : vector<32x48xf32>
    %148 = tpu.matmul %0, %147, %cst_81 {dimension_numbers = #tpu.dot_dimension_numbers<[1], [0], [0], [1], [0, 0, 1, 1], [], []>} : vector<32x32xf32>, vector<32x48xf32>, vector<32x48xf32> -> vector<32x48xf32>
    %c0_82 = arith.constant 0 : index
    %c0_83 = arith.constant 0 : index
    %149 = vector.load %arg19[%c0_82, %c0_83] : memref<48x64xf32, #tpu.memory_space<vmem>>, vector<48x64xf32>
    %cst_84 = arith.constant dense<0.000000e+00> : vector<32x64xf32>
    %150 = tpu.matmul %148, %149, %cst_84 {dimension_numbers = #tpu.dot_dimension_numbers<[1], [0], [0], [1], [0, 0, 1, 1], [], []>} : vector<32x48xf32>, vector<48x64xf32>, vector<32x64xf32> -> vector<32x64xf32>
    %c0_85 = arith.constant 0 : index
    %c0_86 = arith.constant 0 : index
    %151 = vector.load %arg20[%c0_85, %c0_86] : memref<1x64xf32, #tpu.memory_space<vmem>>, vector<1x64xf32>
    %152 = vector.broadcast %151 : vector<1x64xf32> to vector<32x64xf32>
    %153 = arith.addf %150, %152 : vector<32x64xf32>
    %c0_87 = arith.constant 0 : index
    %c0_88 = arith.constant 0 : index
    %154 = vector.load %arg21[%c0_87, %c0_88] : memref<1x64xf32, #tpu.memory_space<vmem>>, vector<1x64xf32>
    %c0_89 = arith.constant 0 : index
    %c0_90 = arith.constant 0 : index
    %155 = vector.load %arg22[%c0_89, %c0_90] : memref<1x64xf32, #tpu.memory_space<vmem>>, vector<1x64xf32>
    %cst_91 = arith.constant dense<0.000000e+00> : vector<64xf32>
    %156 = vector.multi_reduction <add>, %153, %cst_91 [0] : vector<32x64xf32> to vector<64xf32>
    %157 = vector.shape_cast %156 : vector<64xf32> to vector<1x64xf32>
    %cst_92 = arith.constant 3.200000e+01 : f32
    %158 = vector.broadcast %cst_92 : f32 to vector<1x64xf32>
    %159 = arith.divf %157, %158 : vector<1x64xf32>
    %160 = vector.broadcast %159 : vector<1x64xf32> to vector<32x64xf32>
    %161 = arith.subf %153, %160 : vector<32x64xf32>
    %162 = arith.mulf %161, %161 : vector<32x64xf32>
    %cst_93 = arith.constant dense<0.000000e+00> : vector<64xf32>
    %163 = vector.multi_reduction <add>, %162, %cst_93 [0] : vector<32x64xf32> to vector<64xf32>
    %164 = vector.shape_cast %163 : vector<64xf32> to vector<1x64xf32>
    %cst_94 = arith.constant 3.200000e+01 : f32
    %165 = vector.broadcast %cst_94 : f32 to vector<1x64xf32>
    %166 = arith.divf %164, %165 : vector<1x64xf32>
    %cst_95 = arith.constant 9.99999974E-6 : f32
    %167 = vector.broadcast %cst_95 : f32 to vector<1x64xf32>
    %168 = arith.addf %166, %167 : vector<1x64xf32>
    %169 = math.rsqrt %168 : vector<1x64xf32>
    %170 = vector.broadcast %169 : vector<1x64xf32> to vector<32x64xf32>
    %171 = arith.mulf %161, %170 : vector<32x64xf32>
    %172 = vector.broadcast %154 : vector<1x64xf32> to vector<32x64xf32>
    %173 = arith.mulf %171, %172 : vector<32x64xf32>
    %174 = vector.broadcast %155 : vector<1x64xf32> to vector<32x64xf32>
    %175 = arith.addf %173, %174 : vector<32x64xf32>
    %c0_96 = arith.constant 0 : index
    %c0_97 = arith.constant 0 : index
    %176 = vector.load %arg56[%c0_96, %c0_97] : memref<48x64xf32, #tpu.memory_space<vmem>>, vector<48x64xf32>
    %cst_98 = arith.constant dense<0.000000e+00> : vector<32x64xf32>
    %177 = tpu.matmul %147, %176, %cst_98 {dimension_numbers = #tpu.dot_dimension_numbers<[1], [0], [0], [1], [0, 0, 1, 1], [], []>} : vector<32x48xf32>, vector<48x64xf32>, vector<32x64xf32> -> vector<32x64xf32>
    %c0_99 = arith.constant 0 : index
    %c0_100 = arith.constant 0 : index
    %178 = vector.load %arg57[%c0_99, %c0_100] : memref<1x64xf32, #tpu.memory_space<vmem>>, vector<1x64xf32>
    %c0_101 = arith.constant 0 : index
    %c0_102 = arith.constant 0 : index
    %179 = vector.load %arg58[%c0_101, %c0_102] : memref<1x64xf32, #tpu.memory_space<vmem>>, vector<1x64xf32>
    %cst_103 = arith.constant dense<0.000000e+00> : vector<64xf32>
    %180 = vector.multi_reduction <add>, %177, %cst_103 [0] : vector<32x64xf32> to vector<64xf32>
    %181 = vector.shape_cast %180 : vector<64xf32> to vector<1x64xf32>
    %cst_104 = arith.constant 3.200000e+01 : f32
    %182 = vector.broadcast %cst_104 : f32 to vector<1x64xf32>
    %183 = arith.divf %181, %182 : vector<1x64xf32>
    %184 = vector.broadcast %183 : vector<1x64xf32> to vector<32x64xf32>
    %185 = arith.subf %177, %184 : vector<32x64xf32>
    %186 = arith.mulf %185, %185 : vector<32x64xf32>
    %cst_105 = arith.constant dense<0.000000e+00> : vector<64xf32>
    %187 = vector.multi_reduction <add>, %186, %cst_105 [0] : vector<32x64xf32> to vector<64xf32>
    %188 = vector.shape_cast %187 : vector<64xf32> to vector<1x64xf32>
    %cst_106 = arith.constant 3.200000e+01 : f32
    %189 = vector.broadcast %cst_106 : f32 to vector<1x64xf32>
    %190 = arith.divf %188, %189 : vector<1x64xf32>
    %cst_107 = arith.constant 9.99999974E-6 : f32
    %191 = vector.broadcast %cst_107 : f32 to vector<1x64xf32>
    %192 = arith.addf %190, %191 : vector<1x64xf32>
    %193 = math.rsqrt %192 : vector<1x64xf32>
    %194 = vector.broadcast %193 : vector<1x64xf32> to vector<32x64xf32>
    %195 = arith.mulf %185, %194 : vector<32x64xf32>
    %196 = vector.broadcast %178 : vector<1x64xf32> to vector<32x64xf32>
    %197 = arith.mulf %195, %196 : vector<32x64xf32>
    %198 = vector.broadcast %179 : vector<1x64xf32> to vector<32x64xf32>
    %199 = arith.addf %197, %198 : vector<32x64xf32>
    %200 = arith.addf %175, %199 : vector<32x64xf32>
    %cst_108 = arith.constant 0.000000e+00 : f32
    %201 = vector.broadcast %cst_108 : f32 to vector<32x64xf32>
    %202 = arith.maximumf %200, %201 : vector<32x64xf32>
    %cst_109 = arith.constant dense<0.000000e+00> : vector<32x64xf32>
    %203 = tpu.matmul %0, %202, %cst_109 {dimension_numbers = #tpu.dot_dimension_numbers<[1], [0], [0], [1], [0, 0, 1, 1], [], []>} : vector<32x32xf32>, vector<32x64xf32>, vector<32x64xf32> -> vector<32x64xf32>
    %c0_110 = arith.constant 0 : index
    %c0_111 = arith.constant 0 : index
    %204 = vector.load %arg23[%c0_110, %c0_111] : memref<64x64xf32, #tpu.memory_space<vmem>>, vector<64x64xf32>
    %cst_112 = arith.constant dense<0.000000e+00> : vector<32x64xf32>
    %205 = tpu.matmul %203, %204, %cst_112 {dimension_numbers = #tpu.dot_dimension_numbers<[1], [0], [0], [1], [0, 0, 1, 1], [], []>} : vector<32x64xf32>, vector<64x64xf32>, vector<32x64xf32> -> vector<32x64xf32>
    %c0_113 = arith.constant 0 : index
    %c0_114 = arith.constant 0 : index
    %206 = vector.load %arg24[%c0_113, %c0_114] : memref<1x64xf32, #tpu.memory_space<vmem>>, vector<1x64xf32>
    %207 = vector.broadcast %206 : vector<1x64xf32> to vector<32x64xf32>
    %208 = arith.addf %205, %207 : vector<32x64xf32>
    %c0_115 = arith.constant 0 : index
    %c0_116 = arith.constant 0 : index
    %209 = vector.load %arg25[%c0_115, %c0_116] : memref<1x64xf32, #tpu.memory_space<vmem>>, vector<1x64xf32>
    %c0_117 = arith.constant 0 : index
    %c0_118 = arith.constant 0 : index
    %210 = vector.load %arg26[%c0_117, %c0_118] : memref<1x64xf32, #tpu.memory_space<vmem>>, vector<1x64xf32>
    %cst_119 = arith.constant dense<0.000000e+00> : vector<64xf32>
    %211 = vector.multi_reduction <add>, %208, %cst_119 [0] : vector<32x64xf32> to vector<64xf32>
    %212 = vector.shape_cast %211 : vector<64xf32> to vector<1x64xf32>
    %cst_120 = arith.constant 3.200000e+01 : f32
    %213 = vector.broadcast %cst_120 : f32 to vector<1x64xf32>
    %214 = arith.divf %212, %213 : vector<1x64xf32>
    %215 = vector.broadcast %214 : vector<1x64xf32> to vector<32x64xf32>
    %216 = arith.subf %208, %215 : vector<32x64xf32>
    %217 = arith.mulf %216, %216 : vector<32x64xf32>
    %cst_121 = arith.constant dense<0.000000e+00> : vector<64xf32>
    %218 = vector.multi_reduction <add>, %217, %cst_121 [0] : vector<32x64xf32> to vector<64xf32>
    %219 = vector.shape_cast %218 : vector<64xf32> to vector<1x64xf32>
    %cst_122 = arith.constant 3.200000e+01 : f32
    %220 = vector.broadcast %cst_122 : f32 to vector<1x64xf32>
    %221 = arith.divf %219, %220 : vector<1x64xf32>
    %cst_123 = arith.constant 9.99999974E-6 : f32
    %222 = vector.broadcast %cst_123 : f32 to vector<1x64xf32>
    %223 = arith.addf %221, %222 : vector<1x64xf32>
    %224 = math.rsqrt %223 : vector<1x64xf32>
    %225 = vector.broadcast %224 : vector<1x64xf32> to vector<32x64xf32>
    %226 = arith.mulf %216, %225 : vector<32x64xf32>
    %227 = vector.broadcast %209 : vector<1x64xf32> to vector<32x64xf32>
    %228 = arith.mulf %226, %227 : vector<32x64xf32>
    %229 = vector.broadcast %210 : vector<1x64xf32> to vector<32x64xf32>
    %230 = arith.addf %228, %229 : vector<32x64xf32>
    %231 = arith.addf %230, %202 : vector<32x64xf32>
    %cst_124 = arith.constant 0.000000e+00 : f32
    %232 = vector.broadcast %cst_124 : f32 to vector<32x64xf32>
    %233 = arith.maximumf %231, %232 : vector<32x64xf32>
    %cst_125 = arith.constant dense<0.000000e+00> : vector<32x64xf32>
    %234 = tpu.matmul %0, %233, %cst_125 {dimension_numbers = #tpu.dot_dimension_numbers<[1], [0], [0], [1], [0, 0, 1, 1], [], []>} : vector<32x32xf32>, vector<32x64xf32>, vector<32x64xf32> -> vector<32x64xf32>
    %c0_126 = arith.constant 0 : index
    %c0_127 = arith.constant 0 : index
    %235 = vector.load %arg27[%c0_126, %c0_127] : memref<64x80xf32, #tpu.memory_space<vmem>>, vector<64x80xf32>
    %cst_128 = arith.constant dense<0.000000e+00> : vector<32x80xf32>
    %236 = tpu.matmul %234, %235, %cst_128 {dimension_numbers = #tpu.dot_dimension_numbers<[1], [0], [0], [1], [0, 0, 1, 1], [], []>} : vector<32x64xf32>, vector<64x80xf32>, vector<32x80xf32> -> vector<32x80xf32>
    %c0_129 = arith.constant 0 : index
    %c0_130 = arith.constant 0 : index
    %237 = vector.load %arg28[%c0_129, %c0_130] : memref<1x80xf32, #tpu.memory_space<vmem>>, vector<1x80xf32>
    %238 = vector.broadcast %237 : vector<1x80xf32> to vector<32x80xf32>
    %239 = arith.addf %236, %238 : vector<32x80xf32>
    %c0_131 = arith.constant 0 : index
    %c0_132 = arith.constant 0 : index
    %240 = vector.load %arg29[%c0_131, %c0_132] : memref<1x80xf32, #tpu.memory_space<vmem>>, vector<1x80xf32>
    %c0_133 = arith.constant 0 : index
    %c0_134 = arith.constant 0 : index
    %241 = vector.load %arg30[%c0_133, %c0_134] : memref<1x80xf32, #tpu.memory_space<vmem>>, vector<1x80xf32>
    %cst_135 = arith.constant dense<0.000000e+00> : vector<80xf32>
    %242 = vector.multi_reduction <add>, %239, %cst_135 [0] : vector<32x80xf32> to vector<80xf32>
    %243 = vector.shape_cast %242 : vector<80xf32> to vector<1x80xf32>
    %cst_136 = arith.constant 3.200000e+01 : f32
    %244 = vector.broadcast %cst_136 : f32 to vector<1x80xf32>
    %245 = arith.divf %243, %244 : vector<1x80xf32>
    %246 = vector.broadcast %245 : vector<1x80xf32> to vector<32x80xf32>
    %247 = arith.subf %239, %246 : vector<32x80xf32>
    %248 = arith.mulf %247, %247 : vector<32x80xf32>
    %cst_137 = arith.constant dense<0.000000e+00> : vector<80xf32>
    %249 = vector.multi_reduction <add>, %248, %cst_137 [0] : vector<32x80xf32> to vector<80xf32>
    %250 = vector.shape_cast %249 : vector<80xf32> to vector<1x80xf32>
    %cst_138 = arith.constant 3.200000e+01 : f32
    %251 = vector.broadcast %cst_138 : f32 to vector<1x80xf32>
    %252 = arith.divf %250, %251 : vector<1x80xf32>
    %cst_139 = arith.constant 9.99999974E-6 : f32
    %253 = vector.broadcast %cst_139 : f32 to vector<1x80xf32>
    %254 = arith.addf %252, %253 : vector<1x80xf32>
    %255 = math.rsqrt %254 : vector<1x80xf32>
    %256 = vector.broadcast %255 : vector<1x80xf32> to vector<32x80xf32>
    %257 = arith.mulf %247, %256 : vector<32x80xf32>
    %258 = vector.broadcast %240 : vector<1x80xf32> to vector<32x80xf32>
    %259 = arith.mulf %257, %258 : vector<32x80xf32>
    %260 = vector.broadcast %241 : vector<1x80xf32> to vector<32x80xf32>
    %261 = arith.addf %259, %260 : vector<32x80xf32>
    %c0_140 = arith.constant 0 : index
    %c0_141 = arith.constant 0 : index
    %262 = vector.load %arg59[%c0_140, %c0_141] : memref<64x80xf32, #tpu.memory_space<vmem>>, vector<64x80xf32>
    %cst_142 = arith.constant dense<0.000000e+00> : vector<32x80xf32>
    %263 = tpu.matmul %233, %262, %cst_142 {dimension_numbers = #tpu.dot_dimension_numbers<[1], [0], [0], [1], [0, 0, 1, 1], [], []>} : vector<32x64xf32>, vector<64x80xf32>, vector<32x80xf32> -> vector<32x80xf32>
    %c0_143 = arith.constant 0 : index
    %c0_144 = arith.constant 0 : index
    %264 = vector.load %arg60[%c0_143, %c0_144] : memref<1x80xf32, #tpu.memory_space<vmem>>, vector<1x80xf32>
    %c0_145 = arith.constant 0 : index
    %c0_146 = arith.constant 0 : index
    %265 = vector.load %arg61[%c0_145, %c0_146] : memref<1x80xf32, #tpu.memory_space<vmem>>, vector<1x80xf32>
    %cst_147 = arith.constant dense<0.000000e+00> : vector<80xf32>
    %266 = vector.multi_reduction <add>, %263, %cst_147 [0] : vector<32x80xf32> to vector<80xf32>
    %267 = vector.shape_cast %266 : vector<80xf32> to vector<1x80xf32>
    %cst_148 = arith.constant 3.200000e+01 : f32
    %268 = vector.broadcast %cst_148 : f32 to vector<1x80xf32>
    %269 = arith.divf %267, %268 : vector<1x80xf32>
    %270 = vector.broadcast %269 : vector<1x80xf32> to vector<32x80xf32>
    %271 = arith.subf %263, %270 : vector<32x80xf32>
    %272 = arith.mulf %271, %271 : vector<32x80xf32>
    %cst_149 = arith.constant dense<0.000000e+00> : vector<80xf32>
    %273 = vector.multi_reduction <add>, %272, %cst_149 [0] : vector<32x80xf32> to vector<80xf32>
    %274 = vector.shape_cast %273 : vector<80xf32> to vector<1x80xf32>
    %cst_150 = arith.constant 3.200000e+01 : f32
    %275 = vector.broadcast %cst_150 : f32 to vector<1x80xf32>
    %276 = arith.divf %274, %275 : vector<1x80xf32>
    %cst_151 = arith.constant 9.99999974E-6 : f32
    %277 = vector.broadcast %cst_151 : f32 to vector<1x80xf32>
    %278 = arith.addf %276, %277 : vector<1x80xf32>
    %279 = math.rsqrt %278 : vector<1x80xf32>
    %280 = vector.broadcast %279 : vector<1x80xf32> to vector<32x80xf32>
    %281 = arith.mulf %271, %280 : vector<32x80xf32>
    %282 = vector.broadcast %264 : vector<1x80xf32> to vector<32x80xf32>
    %283 = arith.mulf %281, %282 : vector<32x80xf32>
    %284 = vector.broadcast %265 : vector<1x80xf32> to vector<32x80xf32>
    %285 = arith.addf %283, %284 : vector<32x80xf32>
    %286 = arith.addf %261, %285 : vector<32x80xf32>
    %cst_152 = arith.constant 0.000000e+00 : f32
    %287 = vector.broadcast %cst_152 : f32 to vector<32x80xf32>
    %288 = arith.maximumf %286, %287 : vector<32x80xf32>
    %cst_153 = arith.constant dense<0.000000e+00> : vector<32x80xf32>
    %289 = tpu.matmul %0, %288, %cst_153 {dimension_numbers = #tpu.dot_dimension_numbers<[1], [0], [0], [1], [0, 0, 1, 1], [], []>} : vector<32x32xf32>, vector<32x80xf32>, vector<32x80xf32> -> vector<32x80xf32>
    %c0_154 = arith.constant 0 : index
    %c0_155 = arith.constant 0 : index
    %290 = vector.load %arg31[%c0_154, %c0_155] : memref<80x96xf32, #tpu.memory_space<vmem>>, vector<80x96xf32>
    %cst_156 = arith.constant dense<0.000000e+00> : vector<32x96xf32>
    %291 = tpu.matmul %289, %290, %cst_156 {dimension_numbers = #tpu.dot_dimension_numbers<[1], [0], [0], [1], [0, 0, 1, 1], [], []>} : vector<32x80xf32>, vector<80x96xf32>, vector<32x96xf32> -> vector<32x96xf32>
    %c0_157 = arith.constant 0 : index
    %c0_158 = arith.constant 0 : index
    %292 = vector.load %arg32[%c0_157, %c0_158] : memref<1x96xf32, #tpu.memory_space<vmem>>, vector<1x96xf32>
    %293 = vector.broadcast %292 : vector<1x96xf32> to vector<32x96xf32>
    %294 = arith.addf %291, %293 : vector<32x96xf32>
    %c0_159 = arith.constant 0 : index
    %c0_160 = arith.constant 0 : index
    %295 = vector.load %arg33[%c0_159, %c0_160] : memref<1x96xf32, #tpu.memory_space<vmem>>, vector<1x96xf32>
    %c0_161 = arith.constant 0 : index
    %c0_162 = arith.constant 0 : index
    %296 = vector.load %arg34[%c0_161, %c0_162] : memref<1x96xf32, #tpu.memory_space<vmem>>, vector<1x96xf32>
    %cst_163 = arith.constant dense<0.000000e+00> : vector<96xf32>
    %297 = vector.multi_reduction <add>, %294, %cst_163 [0] : vector<32x96xf32> to vector<96xf32>
    %298 = vector.shape_cast %297 : vector<96xf32> to vector<1x96xf32>
    %cst_164 = arith.constant 3.200000e+01 : f32
    %299 = vector.broadcast %cst_164 : f32 to vector<1x96xf32>
    %300 = arith.divf %298, %299 : vector<1x96xf32>
    %301 = vector.broadcast %300 : vector<1x96xf32> to vector<32x96xf32>
    %302 = arith.subf %294, %301 : vector<32x96xf32>
    %303 = arith.mulf %302, %302 : vector<32x96xf32>
    %cst_165 = arith.constant dense<0.000000e+00> : vector<96xf32>
    %304 = vector.multi_reduction <add>, %303, %cst_165 [0] : vector<32x96xf32> to vector<96xf32>
    %305 = vector.shape_cast %304 : vector<96xf32> to vector<1x96xf32>
    %cst_166 = arith.constant 3.200000e+01 : f32
    %306 = vector.broadcast %cst_166 : f32 to vector<1x96xf32>
    %307 = arith.divf %305, %306 : vector<1x96xf32>
    %cst_167 = arith.constant 9.99999974E-6 : f32
    %308 = vector.broadcast %cst_167 : f32 to vector<1x96xf32>
    %309 = arith.addf %307, %308 : vector<1x96xf32>
    %310 = math.rsqrt %309 : vector<1x96xf32>
    %311 = vector.broadcast %310 : vector<1x96xf32> to vector<32x96xf32>
    %312 = arith.mulf %302, %311 : vector<32x96xf32>
    %313 = vector.broadcast %295 : vector<1x96xf32> to vector<32x96xf32>
    %314 = arith.mulf %312, %313 : vector<32x96xf32>
    %315 = vector.broadcast %296 : vector<1x96xf32> to vector<32x96xf32>
    %316 = arith.addf %314, %315 : vector<32x96xf32>
    %c0_168 = arith.constant 0 : index
    %c0_169 = arith.constant 0 : index
    %317 = vector.load %arg62[%c0_168, %c0_169] : memref<80x96xf32, #tpu.memory_space<vmem>>, vector<80x96xf32>
    %cst_170 = arith.constant dense<0.000000e+00> : vector<32x96xf32>
    %318 = tpu.matmul %288, %317, %cst_170 {dimension_numbers = #tpu.dot_dimension_numbers<[1], [0], [0], [1], [0, 0, 1, 1], [], []>} : vector<32x80xf32>, vector<80x96xf32>, vector<32x96xf32> -> vector<32x96xf32>
    %c0_171 = arith.constant 0 : index
    %c0_172 = arith.constant 0 : index
    %319 = vector.load %arg63[%c0_171, %c0_172] : memref<1x96xf32, #tpu.memory_space<vmem>>, vector<1x96xf32>
    %c0_173 = arith.constant 0 : index
    %c0_174 = arith.constant 0 : index
    %320 = vector.load %arg64[%c0_173, %c0_174] : memref<1x96xf32, #tpu.memory_space<vmem>>, vector<1x96xf32>
    %cst_175 = arith.constant dense<0.000000e+00> : vector<96xf32>
    %321 = vector.multi_reduction <add>, %318, %cst_175 [0] : vector<32x96xf32> to vector<96xf32>
    %322 = vector.shape_cast %321 : vector<96xf32> to vector<1x96xf32>
    %cst_176 = arith.constant 3.200000e+01 : f32
    %323 = vector.broadcast %cst_176 : f32 to vector<1x96xf32>
    %324 = arith.divf %322, %323 : vector<1x96xf32>
    %325 = vector.broadcast %324 : vector<1x96xf32> to vector<32x96xf32>
    %326 = arith.subf %318, %325 : vector<32x96xf32>
    %327 = arith.mulf %326, %326 : vector<32x96xf32>
    %cst_177 = arith.constant dense<0.000000e+00> : vector<96xf32>
    %328 = vector.multi_reduction <add>, %327, %cst_177 [0] : vector<32x96xf32> to vector<96xf32>
    %329 = vector.shape_cast %328 : vector<96xf32> to vector<1x96xf32>
    %cst_178 = arith.constant 3.200000e+01 : f32
    %330 = vector.broadcast %cst_178 : f32 to vector<1x96xf32>
    %331 = arith.divf %329, %330 : vector<1x96xf32>
    %cst_179 = arith.constant 9.99999974E-6 : f32
    %332 = vector.broadcast %cst_179 : f32 to vector<1x96xf32>
    %333 = arith.addf %331, %332 : vector<1x96xf32>
    %334 = math.rsqrt %333 : vector<1x96xf32>
    %335 = vector.broadcast %334 : vector<1x96xf32> to vector<32x96xf32>
    %336 = arith.mulf %326, %335 : vector<32x96xf32>
    %337 = vector.broadcast %319 : vector<1x96xf32> to vector<32x96xf32>
    %338 = arith.mulf %336, %337 : vector<32x96xf32>
    %339 = vector.broadcast %320 : vector<1x96xf32> to vector<32x96xf32>
    %340 = arith.addf %338, %339 : vector<32x96xf32>
    %341 = arith.addf %316, %340 : vector<32x96xf32>
    %cst_180 = arith.constant 0.000000e+00 : f32
    %342 = vector.broadcast %cst_180 : f32 to vector<32x96xf32>
    %343 = arith.maximumf %341, %342 : vector<32x96xf32>
    %cst_181 = arith.constant dense<0.000000e+00> : vector<32x96xf32>
    %344 = tpu.matmul %0, %343, %cst_181 {dimension_numbers = #tpu.dot_dimension_numbers<[1], [0], [0], [1], [0, 0, 1, 1], [], []>} : vector<32x32xf32>, vector<32x96xf32>, vector<32x96xf32> -> vector<32x96xf32>
    %c0_182 = arith.constant 0 : index
    %c0_183 = arith.constant 0 : index
    %345 = vector.load %arg35[%c0_182, %c0_183] : memref<96x96xf32, #tpu.memory_space<vmem>>, vector<96x96xf32>
    %cst_184 = arith.constant dense<0.000000e+00> : vector<32x96xf32>
    %346 = tpu.matmul %344, %345, %cst_184 {dimension_numbers = #tpu.dot_dimension_numbers<[1], [0], [0], [1], [0, 0, 1, 1], [], []>} : vector<32x96xf32>, vector<96x96xf32>, vector<32x96xf32> -> vector<32x96xf32>
    %c0_185 = arith.constant 0 : index
    %c0_186 = arith.constant 0 : index
    %347 = vector.load %arg36[%c0_185, %c0_186] : memref<1x96xf32, #tpu.memory_space<vmem>>, vector<1x96xf32>
    %348 = vector.broadcast %347 : vector<1x96xf32> to vector<32x96xf32>
    %349 = arith.addf %346, %348 : vector<32x96xf32>
    %c0_187 = arith.constant 0 : index
    %c0_188 = arith.constant 0 : index
    %350 = vector.load %arg37[%c0_187, %c0_188] : memref<1x96xf32, #tpu.memory_space<vmem>>, vector<1x96xf32>
    %c0_189 = arith.constant 0 : index
    %c0_190 = arith.constant 0 : index
    %351 = vector.load %arg38[%c0_189, %c0_190] : memref<1x96xf32, #tpu.memory_space<vmem>>, vector<1x96xf32>
    %cst_191 = arith.constant dense<0.000000e+00> : vector<96xf32>
    %352 = vector.multi_reduction <add>, %349, %cst_191 [0] : vector<32x96xf32> to vector<96xf32>
    %353 = vector.shape_cast %352 : vector<96xf32> to vector<1x96xf32>
    %cst_192 = arith.constant 3.200000e+01 : f32
    %354 = vector.broadcast %cst_192 : f32 to vector<1x96xf32>
    %355 = arith.divf %353, %354 : vector<1x96xf32>
    %356 = vector.broadcast %355 : vector<1x96xf32> to vector<32x96xf32>
    %357 = arith.subf %349, %356 : vector<32x96xf32>
    %358 = arith.mulf %357, %357 : vector<32x96xf32>
    %cst_193 = arith.constant dense<0.000000e+00> : vector<96xf32>
    %359 = vector.multi_reduction <add>, %358, %cst_193 [0] : vector<32x96xf32> to vector<96xf32>
    %360 = vector.shape_cast %359 : vector<96xf32> to vector<1x96xf32>
    %cst_194 = arith.constant 3.200000e+01 : f32
    %361 = vector.broadcast %cst_194 : f32 to vector<1x96xf32>
    %362 = arith.divf %360, %361 : vector<1x96xf32>
    %cst_195 = arith.constant 9.99999974E-6 : f32
    %363 = vector.broadcast %cst_195 : f32 to vector<1x96xf32>
    %364 = arith.addf %362, %363 : vector<1x96xf32>
    %365 = math.rsqrt %364 : vector<1x96xf32>
    %366 = vector.broadcast %365 : vector<1x96xf32> to vector<32x96xf32>
    %367 = arith.mulf %357, %366 : vector<32x96xf32>
    %368 = vector.broadcast %350 : vector<1x96xf32> to vector<32x96xf32>
    %369 = arith.mulf %367, %368 : vector<32x96xf32>
    %370 = vector.broadcast %351 : vector<1x96xf32> to vector<32x96xf32>
    %371 = arith.addf %369, %370 : vector<32x96xf32>
    %372 = arith.addf %371, %343 : vector<32x96xf32>
    %cst_196 = arith.constant 0.000000e+00 : f32
    %373 = vector.broadcast %cst_196 : f32 to vector<32x96xf32>
    %374 = arith.maximumf %372, %373 : vector<32x96xf32>
    %cst_197 = arith.constant dense<0.000000e+00> : vector<32x96xf32>
    %375 = tpu.matmul %0, %374, %cst_197 {dimension_numbers = #tpu.dot_dimension_numbers<[1], [0], [0], [1], [0, 0, 1, 1], [], []>} : vector<32x32xf32>, vector<32x96xf32>, vector<32x96xf32> -> vector<32x96xf32>
    %c0_198 = arith.constant 0 : index
    %c0_199 = arith.constant 0 : index
    %376 = vector.load %arg39[%c0_198, %c0_199] : memref<96x102xf32, #tpu.memory_space<vmem>>, vector<96x102xf32>
    %cst_200 = arith.constant dense<0.000000e+00> : vector<32x102xf32>
    %377 = tpu.matmul %375, %376, %cst_200 {dimension_numbers = #tpu.dot_dimension_numbers<[1], [0], [0], [1], [0, 0, 1, 1], [], []>} : vector<32x96xf32>, vector<96x102xf32>, vector<32x102xf32> -> vector<32x102xf32>
    %c0_201 = arith.constant 0 : index
    %c0_202 = arith.constant 0 : index
    %378 = vector.load %arg40[%c0_201, %c0_202] : memref<1x102xf32, #tpu.memory_space<vmem>>, vector<1x102xf32>
    %379 = vector.broadcast %378 : vector<1x102xf32> to vector<32x102xf32>
    %380 = arith.addf %377, %379 : vector<32x102xf32>
    %c0_203 = arith.constant 0 : index
    %c0_204 = arith.constant 0 : index
    %381 = vector.load %arg41[%c0_203, %c0_204] : memref<1x102xf32, #tpu.memory_space<vmem>>, vector<1x102xf32>
    %c0_205 = arith.constant 0 : index
    %c0_206 = arith.constant 0 : index
    %382 = vector.load %arg42[%c0_205, %c0_206] : memref<1x102xf32, #tpu.memory_space<vmem>>, vector<1x102xf32>
    %cst_207 = arith.constant dense<0.000000e+00> : vector<102xf32>
    %383 = vector.multi_reduction <add>, %380, %cst_207 [0] : vector<32x102xf32> to vector<102xf32>
    %384 = vector.shape_cast %383 : vector<102xf32> to vector<1x102xf32>
    %cst_208 = arith.constant 3.200000e+01 : f32
    %385 = vector.broadcast %cst_208 : f32 to vector<1x102xf32>
    %386 = arith.divf %384, %385 : vector<1x102xf32>
    %387 = vector.broadcast %386 : vector<1x102xf32> to vector<32x102xf32>
    %388 = arith.subf %380, %387 : vector<32x102xf32>
    %389 = arith.mulf %388, %388 : vector<32x102xf32>
    %cst_209 = arith.constant dense<0.000000e+00> : vector<102xf32>
    %390 = vector.multi_reduction <add>, %389, %cst_209 [0] : vector<32x102xf32> to vector<102xf32>
    %391 = vector.shape_cast %390 : vector<102xf32> to vector<1x102xf32>
    %cst_210 = arith.constant 3.200000e+01 : f32
    %392 = vector.broadcast %cst_210 : f32 to vector<1x102xf32>
    %393 = arith.divf %391, %392 : vector<1x102xf32>
    %cst_211 = arith.constant 9.99999974E-6 : f32
    %394 = vector.broadcast %cst_211 : f32 to vector<1x102xf32>
    %395 = arith.addf %393, %394 : vector<1x102xf32>
    %396 = math.rsqrt %395 : vector<1x102xf32>
    %397 = vector.broadcast %396 : vector<1x102xf32> to vector<32x102xf32>
    %398 = arith.mulf %388, %397 : vector<32x102xf32>
    %399 = vector.broadcast %381 : vector<1x102xf32> to vector<32x102xf32>
    %400 = arith.mulf %398, %399 : vector<32x102xf32>
    %401 = vector.broadcast %382 : vector<1x102xf32> to vector<32x102xf32>
    %402 = arith.addf %400, %401 : vector<32x102xf32>
    %c0_212 = arith.constant 0 : index
    %c0_213 = arith.constant 0 : index
    %403 = vector.load %arg65[%c0_212, %c0_213] : memref<96x102xf32, #tpu.memory_space<vmem>>, vector<96x102xf32>
    %cst_214 = arith.constant dense<0.000000e+00> : vector<32x102xf32>
    %404 = tpu.matmul %374, %403, %cst_214 {dimension_numbers = #tpu.dot_dimension_numbers<[1], [0], [0], [1], [0, 0, 1, 1], [], []>} : vector<32x96xf32>, vector<96x102xf32>, vector<32x102xf32> -> vector<32x102xf32>
    %c0_215 = arith.constant 0 : index
    %c0_216 = arith.constant 0 : index
    %405 = vector.load %arg66[%c0_215, %c0_216] : memref<1x102xf32, #tpu.memory_space<vmem>>, vector<1x102xf32>
    %c0_217 = arith.constant 0 : index
    %c0_218 = arith.constant 0 : index
    %406 = vector.load %arg67[%c0_217, %c0_218] : memref<1x102xf32, #tpu.memory_space<vmem>>, vector<1x102xf32>
    %cst_219 = arith.constant dense<0.000000e+00> : vector<102xf32>
    %407 = vector.multi_reduction <add>, %404, %cst_219 [0] : vector<32x102xf32> to vector<102xf32>
    %408 = vector.shape_cast %407 : vector<102xf32> to vector<1x102xf32>
    %cst_220 = arith.constant 3.200000e+01 : f32
    %409 = vector.broadcast %cst_220 : f32 to vector<1x102xf32>
    %410 = arith.divf %408, %409 : vector<1x102xf32>
    %411 = vector.broadcast %410 : vector<1x102xf32> to vector<32x102xf32>
    %412 = arith.subf %404, %411 : vector<32x102xf32>
    %413 = arith.mulf %412, %412 : vector<32x102xf32>
    %cst_221 = arith.constant dense<0.000000e+00> : vector<102xf32>
    %414 = vector.multi_reduction <add>, %413, %cst_221 [0] : vector<32x102xf32> to vector<102xf32>
    %415 = vector.shape_cast %414 : vector<102xf32> to vector<1x102xf32>
    %cst_222 = arith.constant 3.200000e+01 : f32
    %416 = vector.broadcast %cst_222 : f32 to vector<1x102xf32>
    %417 = arith.divf %415, %416 : vector<1x102xf32>
    %cst_223 = arith.constant 9.99999974E-6 : f32
    %418 = vector.broadcast %cst_223 : f32 to vector<1x102xf32>
    %419 = arith.addf %417, %418 : vector<1x102xf32>
    %420 = math.rsqrt %419 : vector<1x102xf32>
    %421 = vector.broadcast %420 : vector<1x102xf32> to vector<32x102xf32>
    %422 = arith.mulf %412, %421 : vector<32x102xf32>
    %423 = vector.broadcast %405 : vector<1x102xf32> to vector<32x102xf32>
    %424 = arith.mulf %422, %423 : vector<32x102xf32>
    %425 = vector.broadcast %406 : vector<1x102xf32> to vector<32x102xf32>
    %426 = arith.addf %424, %425 : vector<32x102xf32>
    %427 = arith.addf %402, %426 : vector<32x102xf32>
    %cst_224 = arith.constant 0.000000e+00 : f32
    %428 = vector.broadcast %cst_224 : f32 to vector<32x102xf32>
    %429 = arith.maximumf %427, %428 : vector<32x102xf32>
    %cst_225 = arith.constant dense<0.000000e+00> : vector<32x102xf32>
    %430 = tpu.matmul %0, %429, %cst_225 {dimension_numbers = #tpu.dot_dimension_numbers<[1], [0], [0], [1], [0, 0, 1, 1], [], []>} : vector<32x32xf32>, vector<32x102xf32>, vector<32x102xf32> -> vector<32x102xf32>
    %c0_226 = arith.constant 0 : index
    %c0_227 = arith.constant 0 : index
    %431 = vector.load %arg43[%c0_226, %c0_227] : memref<102x128xf32, #tpu.memory_space<vmem>>, vector<102x128xf32>
    %cst_228 = arith.constant dense<0.000000e+00> : vector<32x128xf32>
    %432 = tpu.matmul %430, %431, %cst_228 {dimension_numbers = #tpu.dot_dimension_numbers<[1], [0], [0], [1], [0, 0, 1, 1], [], []>} : vector<32x102xf32>, vector<102x128xf32>, vector<32x128xf32> -> vector<32x128xf32>
    %c0_229 = arith.constant 0 : index
    %c0_230 = arith.constant 0 : index
    %433 = vector.load %arg44[%c0_229, %c0_230] : memref<1x128xf32, #tpu.memory_space<vmem>>, vector<1x128xf32>
    %434 = vector.broadcast %433 : vector<1x128xf32> to vector<32x128xf32>
    %435 = arith.addf %432, %434 : vector<32x128xf32>
    %c0_231 = arith.constant 0 : index
    %c0_232 = arith.constant 0 : index
    %436 = vector.load %arg45[%c0_231, %c0_232] : memref<1x128xf32, #tpu.memory_space<vmem>>, vector<1x128xf32>
    %c0_233 = arith.constant 0 : index
    %c0_234 = arith.constant 0 : index
    %437 = vector.load %arg46[%c0_233, %c0_234] : memref<1x128xf32, #tpu.memory_space<vmem>>, vector<1x128xf32>
    %cst_235 = arith.constant dense<0.000000e+00> : vector<128xf32>
    %438 = vector.multi_reduction <add>, %435, %cst_235 [0] : vector<32x128xf32> to vector<128xf32>
    %439 = vector.shape_cast %438 : vector<128xf32> to vector<1x128xf32>
    %cst_236 = arith.constant 3.200000e+01 : f32
    %440 = vector.broadcast %cst_236 : f32 to vector<1x128xf32>
    %441 = arith.divf %439, %440 : vector<1x128xf32>
    %442 = vector.broadcast %441 : vector<1x128xf32> to vector<32x128xf32>
    %443 = arith.subf %435, %442 : vector<32x128xf32>
    %444 = arith.mulf %443, %443 : vector<32x128xf32>
    %cst_237 = arith.constant dense<0.000000e+00> : vector<128xf32>
    %445 = vector.multi_reduction <add>, %444, %cst_237 [0] : vector<32x128xf32> to vector<128xf32>
    %446 = vector.shape_cast %445 : vector<128xf32> to vector<1x128xf32>
    %cst_238 = arith.constant 3.200000e+01 : f32
    %447 = vector.broadcast %cst_238 : f32 to vector<1x128xf32>
    %448 = arith.divf %446, %447 : vector<1x128xf32>
    %cst_239 = arith.constant 9.99999974E-6 : f32
    %449 = vector.broadcast %cst_239 : f32 to vector<1x128xf32>
    %450 = arith.addf %448, %449 : vector<1x128xf32>
    %451 = math.rsqrt %450 : vector<1x128xf32>
    %452 = vector.broadcast %451 : vector<1x128xf32> to vector<32x128xf32>
    %453 = arith.mulf %443, %452 : vector<32x128xf32>
    %454 = vector.broadcast %436 : vector<1x128xf32> to vector<32x128xf32>
    %455 = arith.mulf %453, %454 : vector<32x128xf32>
    %456 = vector.broadcast %437 : vector<1x128xf32> to vector<32x128xf32>
    %457 = arith.addf %455, %456 : vector<32x128xf32>
    %c0_240 = arith.constant 0 : index
    %c0_241 = arith.constant 0 : index
    %458 = vector.load %arg68[%c0_240, %c0_241] : memref<102x128xf32, #tpu.memory_space<vmem>>, vector<102x128xf32>
    %cst_242 = arith.constant dense<0.000000e+00> : vector<32x128xf32>
    %459 = tpu.matmul %429, %458, %cst_242 {dimension_numbers = #tpu.dot_dimension_numbers<[1], [0], [0], [1], [0, 0, 1, 1], [], []>} : vector<32x102xf32>, vector<102x128xf32>, vector<32x128xf32> -> vector<32x128xf32>
    %c0_243 = arith.constant 0 : index
    %c0_244 = arith.constant 0 : index
    %460 = vector.load %arg69[%c0_243, %c0_244] : memref<1x128xf32, #tpu.memory_space<vmem>>, vector<1x128xf32>
    %c0_245 = arith.constant 0 : index
    %c0_246 = arith.constant 0 : index
    %461 = vector.load %arg70[%c0_245, %c0_246] : memref<1x128xf32, #tpu.memory_space<vmem>>, vector<1x128xf32>
    %cst_247 = arith.constant dense<0.000000e+00> : vector<128xf32>
    %462 = vector.multi_reduction <add>, %459, %cst_247 [0] : vector<32x128xf32> to vector<128xf32>
    %463 = vector.shape_cast %462 : vector<128xf32> to vector<1x128xf32>
    %cst_248 = arith.constant 3.200000e+01 : f32
    %464 = vector.broadcast %cst_248 : f32 to vector<1x128xf32>
    %465 = arith.divf %463, %464 : vector<1x128xf32>
    %466 = vector.broadcast %465 : vector<1x128xf32> to vector<32x128xf32>
    %467 = arith.subf %459, %466 : vector<32x128xf32>
    %468 = arith.mulf %467, %467 : vector<32x128xf32>
    %cst_249 = arith.constant dense<0.000000e+00> : vector<128xf32>
    %469 = vector.multi_reduction <add>, %468, %cst_249 [0] : vector<32x128xf32> to vector<128xf32>
    %470 = vector.shape_cast %469 : vector<128xf32> to vector<1x128xf32>
    %cst_250 = arith.constant 3.200000e+01 : f32
    %471 = vector.broadcast %cst_250 : f32 to vector<1x128xf32>
    %472 = arith.divf %470, %471 : vector<1x128xf32>
    %cst_251 = arith.constant 9.99999974E-6 : f32
    %473 = vector.broadcast %cst_251 : f32 to vector<1x128xf32>
    %474 = arith.addf %472, %473 : vector<1x128xf32>
    %475 = math.rsqrt %474 : vector<1x128xf32>
    %476 = vector.broadcast %475 : vector<1x128xf32> to vector<32x128xf32>
    %477 = arith.mulf %467, %476 : vector<32x128xf32>
    %478 = vector.broadcast %460 : vector<1x128xf32> to vector<32x128xf32>
    %479 = arith.mulf %477, %478 : vector<32x128xf32>
    %480 = vector.broadcast %461 : vector<1x128xf32> to vector<32x128xf32>
    %481 = arith.addf %479, %480 : vector<32x128xf32>
    %482 = arith.addf %457, %481 : vector<32x128xf32>
    %cst_252 = arith.constant 0.000000e+00 : f32
    %483 = vector.broadcast %cst_252 : f32 to vector<32x128xf32>
    %484 = arith.maximumf %482, %483 : vector<32x128xf32>
    %cst_253 = arith.constant dense<0.000000e+00> : vector<32x128xf32>
    %485 = tpu.matmul %0, %484, %cst_253 {dimension_numbers = #tpu.dot_dimension_numbers<[1], [0], [0], [1], [0, 0, 1, 1], [], []>} : vector<32x32xf32>, vector<32x128xf32>, vector<32x128xf32> -> vector<32x128xf32>
    %c0_254 = arith.constant 0 : index
    %c0_255 = arith.constant 0 : index
    %486 = vector.load %arg47[%c0_254, %c0_255] : memref<128x128xf32, #tpu.memory_space<vmem>>, vector<128x128xf32>
    %cst_256 = arith.constant dense<0.000000e+00> : vector<32x128xf32>
    %487 = tpu.matmul %485, %486, %cst_256 {dimension_numbers = #tpu.dot_dimension_numbers<[1], [0], [0], [1], [0, 0, 1, 1], [], []>} : vector<32x128xf32>, vector<128x128xf32>, vector<32x128xf32> -> vector<32x128xf32>
    %c0_257 = arith.constant 0 : index
    %c0_258 = arith.constant 0 : index
    %488 = vector.load %arg48[%c0_257, %c0_258] : memref<1x128xf32, #tpu.memory_space<vmem>>, vector<1x128xf32>
    %489 = vector.broadcast %488 : vector<1x128xf32> to vector<32x128xf32>
    %490 = arith.addf %487, %489 : vector<32x128xf32>
    %c0_259 = arith.constant 0 : index
    %c0_260 = arith.constant 0 : index
    %491 = vector.load %arg49[%c0_259, %c0_260] : memref<1x128xf32, #tpu.memory_space<vmem>>, vector<1x128xf32>
    %c0_261 = arith.constant 0 : index
    %c0_262 = arith.constant 0 : index
    %492 = vector.load %arg50[%c0_261, %c0_262] : memref<1x128xf32, #tpu.memory_space<vmem>>, vector<1x128xf32>
    %cst_263 = arith.constant dense<0.000000e+00> : vector<128xf32>
    %493 = vector.multi_reduction <add>, %490, %cst_263 [0] : vector<32x128xf32> to vector<128xf32>
    %494 = vector.shape_cast %493 : vector<128xf32> to vector<1x128xf32>
    %cst_264 = arith.constant 3.200000e+01 : f32
    %495 = vector.broadcast %cst_264 : f32 to vector<1x128xf32>
    %496 = arith.divf %494, %495 : vector<1x128xf32>
    %497 = vector.broadcast %496 : vector<1x128xf32> to vector<32x128xf32>
    %498 = arith.subf %490, %497 : vector<32x128xf32>
    %499 = arith.mulf %498, %498 : vector<32x128xf32>
    %cst_265 = arith.constant dense<0.000000e+00> : vector<128xf32>
    %500 = vector.multi_reduction <add>, %499, %cst_265 [0] : vector<32x128xf32> to vector<128xf32>
    %501 = vector.shape_cast %500 : vector<128xf32> to vector<1x128xf32>
    %cst_266 = arith.constant 3.200000e+01 : f32
    %502 = vector.broadcast %cst_266 : f32 to vector<1x128xf32>
    %503 = arith.divf %501, %502 : vector<1x128xf32>
    %cst_267 = arith.constant 9.99999974E-6 : f32
    %504 = vector.broadcast %cst_267 : f32 to vector<1x128xf32>
    %505 = arith.addf %503, %504 : vector<1x128xf32>
    %506 = math.rsqrt %505 : vector<1x128xf32>
    %507 = vector.broadcast %506 : vector<1x128xf32> to vector<32x128xf32>
    %508 = arith.mulf %498, %507 : vector<32x128xf32>
    %509 = vector.broadcast %491 : vector<1x128xf32> to vector<32x128xf32>
    %510 = arith.mulf %508, %509 : vector<32x128xf32>
    %511 = vector.broadcast %492 : vector<1x128xf32> to vector<32x128xf32>
    %512 = arith.addf %510, %511 : vector<32x128xf32>
    %513 = arith.addf %512, %484 : vector<32x128xf32>
    %cst_268 = arith.constant 0.000000e+00 : f32
    %514 = vector.broadcast %cst_268 : f32 to vector<32x128xf32>
    %515 = arith.maximumf %513, %514 : vector<32x128xf32>
    %cst_269 = arith.constant dense<0.000000e+00> : vector<32x128xf32>
    %516 = tpu.matmul %0, %515, %cst_269 {dimension_numbers = #tpu.dot_dimension_numbers<[1], [0], [0], [1], [0, 0, 1, 1], [], []>} : vector<32x32xf32>, vector<32x128xf32>, vector<32x128xf32> -> vector<32x128xf32>
    %c0_270 = arith.constant 0 : index
    %c0_271 = arith.constant 0 : index
    %517 = vector.load %arg51[%c0_270, %c0_271] : memref<128x144xf32, #tpu.memory_space<vmem>>, vector<128x144xf32>
    %cst_272 = arith.constant dense<0.000000e+00> : vector<32x144xf32>
    %518 = tpu.matmul %516, %517, %cst_272 {dimension_numbers = #tpu.dot_dimension_numbers<[1], [0], [0], [1], [0, 0, 1, 1], [], []>} : vector<32x128xf32>, vector<128x144xf32>, vector<32x144xf32> -> vector<32x144xf32>
    %c0_273 = arith.constant 0 : index
    %c0_274 = arith.constant 0 : index
    %519 = vector.load %arg52[%c0_273, %c0_274] : memref<1x144xf32, #tpu.memory_space<vmem>>, vector<1x144xf32>
    %520 = vector.broadcast %519 : vector<1x144xf32> to vector<32x144xf32>
    %521 = arith.addf %518, %520 : vector<32x144xf32>
    %522 = vector.extract_strided_slice %521 {offsets = [0, 0], sizes = [16, 144], strides = [1, 1]} : vector<32x144xf32> to vector<16x144xf32>
    %cst_275 = arith.constant dense<0.000000e+00> : vector<16x16xf32>
    %523 = tpu.matmul %522, %522, %cst_275 {dimension_numbers = #tpu.dot_dimension_numbers<[1], [1], [0], [0], [0, 0, 1, 0], [], []>} : vector<16x144xf32>, vector<16x144xf32>, vector<16x16xf32> -> vector<16x16xf32>
    %c0_276 = arith.constant 0 : index
    %c0_277 = arith.constant 0 : index
    %c0_278 = arith.constant 0 : index
    %524 = vector.load %arg71[%c0_276, %c0_277, %c0_278] : memref<2x16x16xf32, #tpu.memory_space<vmem>>, vector<1x16x16xf32>
    %525 = vector.shape_cast %524 : vector<1x16x16xf32> to vector<16x16xf32>
    %526 = vector.shape_cast %523 : vector<16x16xf32> to vector<1x16x16xf32>
    tpu.vector_store %arg71[%c0_276, %c0_277, %c0_278], %526 {strides = array<i32>} : memref<2x16x16xf32, #tpu.memory_space<vmem>>, vector<1x16x16xf32>,
    %527 = vector.extract_strided_slice %521 {offsets = [16, 0], sizes = [16, 144], strides = [1, 1]} : vector<32x144xf32> to vector<16x144xf32>
    %cst_279 = arith.constant dense<0.000000e+00> : vector<16x16xf32>
    %528 = tpu.matmul %527, %527, %cst_279 {dimension_numbers = #tpu.dot_dimension_numbers<[1], [1], [0], [0], [0, 0, 1, 0], [], []>} : vector<16x144xf32>, vector<16x144xf32>, vector<16x16xf32> -> vector<16x16xf32>
    %c1 = arith.constant 1 : index
    %c0_280 = arith.constant 0 : index
    %c0_281 = arith.constant 0 : index
    %529 = vector.load %arg71[%c1, %c0_280, %c0_281] : memref<2x16x16xf32, #tpu.memory_space<vmem>>, vector<1x16x16xf32>
    %530 = vector.shape_cast %529 : vector<1x16x16xf32> to vector<16x16xf32>
    %531 = vector.shape_cast %528 : vector<16x16xf32> to vector<1x16x16xf32>
    tpu.vector_store %arg71[%c1, %c0_280, %c0_281], %531 {strides = array<i32>} : memref<2x16x16xf32, #tpu.memory_space<vmem>>, vector<1x16x16xf32>,
    return
  }
}

</mosaic_0001>

<llo_original>
// kernel: link_pred_net_forward.1
$region0: #{link_pred_net_forward.1}
  #allocation0 [shape = 'u32[]', space=smem, size = 0x4, offset = 0x4, fixed_abs, tag = 'smem constant byte address 0x4 - core index']
  #allocation1 [shape = 'u32[144,128]{1,0:T(1,128)}', space=vmem, size = 0x12000, scoped, tag = 'internal scratch']
  %s0 = inlined_call_operand.smem [shape: u32[72], index: -1, kind: input, shape index: {}]
  %s1 = sld [smem:[%s0]]
  %s2 = scalar_lea.smem %s0, 1
  %s3 = sld [smem:[%s2]]
  %s4 = scalar_lea.smem %s0, 2
  %s5 = sld [smem:[%s4]]
  %s6 = scalar_lea.smem %s0, 3
  %s7 = sld [smem:[%s6]]
  %s8 = scalar_lea.smem %s0, 4
  %s9 = sld [smem:[%s8]]
  %s10 = scalar_lea.smem %s0, 5
  %s11 = sld [smem:[%s10]]
  %s12 = scalar_lea.smem %s0, 6
  %s13 = sld [smem:[%s12]]
  %s14 = scalar_lea.smem %s0, 7
  %s15 = sld [smem:[%s14]]
  %s16 = scalar_lea.smem %s0, 8
  %s17 = sld [smem:[%s16]]
  %s18 = scalar_lea.smem %s0, 9
  %s19 = sld [smem:[%s18]]
  %s20 = scalar_lea.smem %s0, 10
  %s21 = sld [smem:[%s20]]
  %s22 = scalar_lea.smem %s0, 11
  %s23 = sld [smem:[%s22]]
  %s24 = scalar_lea.smem %s0, 12
  %s25 = sld [smem:[%s24]]
  %s26 = scalar_lea.smem %s0, 13
  %s27 = sld [smem:[%s26]]
  %s28 = scalar_lea.smem %s0, 14
  %s29 = sld [smem:[%s28]]
  %s30 = scalar_lea.smem %s0, 15
  %s31 = sld [smem:[%s30]]
  %s32 = scalar_lea.smem %s0, 16
  %s33 = sld [smem:[%s32]]
  %s34 = scalar_lea.smem %s0, 17
  %s35 = sld [smem:[%s34]]
  %s36 = scalar_lea.smem %s0, 18
  %s37 = sld [smem:[%s36]]
  %s38 = scalar_lea.smem %s0, 19
  %s39 = sld [smem:[%s38]]
  %s40 = scalar_lea.smem %s0, 20
  %s41 = sld [smem:[%s40]]
  %s42 = scalar_lea.smem %s0, 21
  %s43 = sld [smem:[%s42]]
  %s44 = scalar_lea.smem %s0, 22
  %s45 = sld [smem:[%s44]]
  %s46 = scalar_lea.smem %s0, 23
  %s47 = sld [smem:[%s46]]
  %s48 = scalar_lea.smem %s0, 24
  %s49 = sld [smem:[%s48]]
  %s50 = scalar_lea.smem %s0, 25
  %s51 = sld [smem:[%s50]]
  %s52 = scalar_lea.smem %s0, 26
  %s53 = sld [smem:[%s52]]
  %s54 = scalar_lea.smem %s0, 27
  %s55 = sld [smem:[%s54]]
  %s56 = scalar_lea.smem %s0, 28
  %s57 = sld [smem:[%s56]]
  %s58 = scalar_lea.smem %s0, 29
  %s59 = sld [smem:[%s58]]
  %s60 = scalar_lea.smem %s0, 30
  %s61 = sld [smem:[%s60]]
  %s62 = scalar_lea.smem %s0, 31
  %s63 = sld [smem:[%s62]]
  %s64 = scalar_lea.smem %s0, 32
  %s65 = sld [smem:[%s64]]
  %s66 = scalar_lea.smem %s0, 33
  %s67 = sld [smem:[%s66]]
  %s68 = scalar_lea.smem %s0, 34
  %s69 = sld [smem:[%s68]]
  %s70 = scalar_lea.smem %s0, 35
  %s71 = sld [smem:[%s70]]
  %s72 = scalar_lea.smem %s0, 36
  %s73 = sld [smem:[%s72]]
  %s74 = scalar_lea.smem %s0, 37
  %s75 = sld [smem:[%s74]]
  %s76 = scalar_lea.smem %s0, 38
  %s77 = sld [smem:[%s76]]
  %s78 = scalar_lea.smem %s0, 39
  %s79 = sld [smem:[%s78]]
  %s80 = scalar_lea.smem %s0, 40
  %s81 = sld [smem:[%s80]]
  %s82 = scalar_lea.smem %s0, 41
  %s83 = sld [smem:[%s82]]
  %s84 = scalar_lea.smem %s0, 42
  %s85 = sld [smem:[%s84]]
  %s86 = scalar_lea.smem %s0, 43
  %s87 = sld [smem:[%s86]]
  %s88 = scalar_lea.smem %s0, 44
  %s89 = sld [smem:[%s88]]
  %s90 = scalar_lea.smem %s0, 45
  %s91 = sld [smem:[%s90]]
  %s92 = scalar_lea.smem %s0, 46
  %s93 = sld [smem:[%s92]]
  %s94 = scalar_lea.smem %s0, 47
  %s95 = sld [smem:[%s94]]
  %s96 = scalar_lea.smem %s0, 48
  %s97 = sld [smem:[%s96]]
  %s98 = scalar_lea.smem %s0, 49
  %s99 = sld [smem:[%s98]]
  %s100 = scalar_lea.smem %s0, 50
  %s101 = sld [smem:[%s100]]
  %s102 = scalar_lea.smem %s0, 51
  %s103 = sld [smem:[%s102]]
  %s104 = scalar_lea.smem %s0, 52
  %s105 = sld [smem:[%s104]]
  %s106 = scalar_lea.smem %s0, 53
  %s107 = sld [smem:[%s106]]
  %s108 = scalar_lea.smem %s0, 54
  %s109 = sld [smem:[%s108]]
  %s110 = scalar_lea.smem %s0, 55
  %s111 = sld [smem:[%s110]]
  %s112 = scalar_lea.smem %s0, 56
  %s113 = sld [smem:[%s112]]
  %s114 = scalar_lea.smem %s0, 57
  %s115 = sld [smem:[%s114]]
  %s116 = scalar_lea.smem %s0, 58
  %s117 = sld [smem:[%s116]]
  %s118 = scalar_lea.smem %s0, 59
  %s119 = sld [smem:[%s118]]
  %s120 = scalar_lea.smem %s0, 60
  %s121 = sld [smem:[%s120]]
  %s122 = scalar_lea.smem %s0, 61
  %s123 = sld [smem:[%s122]]
  %s124 = scalar_lea.smem %s0, 62
  %s125 = sld [smem:[%s124]]
  %s126 = scalar_lea.smem %s0, 63
  %s127 = sld [smem:[%s126]]
  %s128 = scalar_lea.smem %s0, 64
  %s129 = sld [smem:[%s128]]
  %s130 = scalar_lea.smem %s0, 65
  %s131 = sld [smem:[%s130]]
  %s132 = scalar_lea.smem %s0, 66
  %s133 = sld [smem:[%s132]]
  %s134 = scalar_lea.smem %s0, 67
  %s135 = sld [smem:[%s134]]
  %s136 = scalar_lea.smem %s0, 68
  %s137 = sld [smem:[%s136]]
  %s138 = scalar_lea.smem %s0, 69
  %s139 = sld [smem:[%s138]]
  %s140 = scalar_lea.smem %s0, 70
  %s141 = sld [smem:[%s140]]
  %s142 = scalar_lea.smem %s0, 71
  %s143 = sld [smem:[%s142]]
  %s144 = sld [smem:[#allocation0]]
  $region402: #{link_pred_net_forward.1} parent=0
    _
  %s146 = ssub.s32 1, %s144
  %s147 = scalar_select 0, %s146, %s144
  $region1: #{link_pred_net_forward.1} parent=0
    #allocation2 [shape = 'u8[8192]{0}', space=vmem, size = 0x2000, scoped, tag = 'input window, operand 6, single buffered']
    #allocation3 [shape = 's32[1]{0}', space=sflag, size = 0x4, scoped, tag = 'scoped memory for link_pred_net_forward.1']
    #allocation4 [shape = 's32[1]{0}', space=sflag, size = 0x4, scoped, tag = 'scoped memory for link_pred_net_forward.1']
    #allocation5 [shape = 'u8[2048]{0}', space=vmem, size = 0x800, scoped, tag = 'input window, operand 7, single buffered']
    #allocation6 [shape = 's32[1]{0}', space=sflag, size = 0x4, scoped, tag = 'scoped memory for link_pred_net_forward.1']
    #allocation7 [shape = 'u8[512]{0}', space=vmem, size = 0x400, scoped, tag = 'input window, operand 8, single buffered']
    #allocation8 [shape = 'u8[16384]{0}', space=vmem, size = 0x4000, scoped, tag = 'input window, operand 11, single buffered']
    #allocation9 [shape = 's32[1]{0}', space=sflag, size = 0x4, scoped, tag = 'scoped memory for link_pred_net_forward.1']
    #allocation10 [shape = 'u8[512]{0}', space=vmem, size = 0x400, scoped, tag = 'input window, operand 12, single buffered']
    #allocation11 [shape = 'u8[16384]{0}', space=vmem, size = 0x4000, scoped, tag = 'input window, operand 15, single buffered']
    #allocation12 [shape = 's32[1]{0}', space=sflag, size = 0x4, scoped, tag = 'scoped memory for link_pred_net_forward.1']
    #allocation13 [shape = 'u8[512]{0}', space=vmem, size = 0x400, scoped, tag = 'input window, operand 16, single buffered']
    #allocation14 [shape = 'u8[24576]{0}', space=vmem, size = 0x6000, scoped, tag = 'input window, operand 19, single buffered']
    #allocation15 [shape = 's32[1]{0}', space=sflag, size = 0x4, scoped, tag = 'scoped memory for link_pred_net_forward.1']
    #allocation16 [shape = 'u8[512]{0}', space=vmem, size = 0x400, scoped, tag = 'input window, operand 20, single buffered']
    #allocation17 [shape = 'u8[32768]{0}', space=vmem, size = 0x8000, scoped, tag = 'input window, operand 23, single buffered']
    #allocation18 [shape = 's32[1]{0}', space=sflag, size = 0x4, scoped, tag = 'scoped memory for link_pred_net_forward.1']
    #allocation19 [shape = 'u8[512]{0}', space=vmem, size = 0x400, scoped, tag = 'input window, operand 24, single buffered']
    #allocation20 [shape = 'u8[32768]{0}', space=vmem, size = 0x8000, scoped, tag = 'input window, operand 27, single buffered']
    #allocation21 [shape = 's32[1]{0}', space=sflag, size = 0x4, scoped, tag = 'scoped memory for link_pred_net_forward.1']
    #allocation22 [shape = 'u8[512]{0}', space=vmem, size = 0x400, scoped, tag = 'input window, operand 28, single buffered']
    #allocation23 [shape = 'u8[40960]{0}', space=vmem, size = 0xa000, scoped, tag = 'input window, operand 31, single buffered']
    #allocation24 [shape = 's32[1]{0}', space=sflag, size = 0x4, scoped, tag = 'scoped memory for link_pred_net_forward.1']
    #allocation25 [shape = 'u8[512]{0}', space=vmem, size = 0x400, scoped, tag = 'input window, operand 32, single buffered']
    #allocation26 [shape = 'u8[49152]{0}', space=vmem, size = 0xc000, scoped, tag = 'input window, operand 35, single buffered']
    #allocation27 [shape = 's32[1]{0}', space=sflag, size = 0x4, scoped, tag = 'scoped memory for link_pred_net_forward.1']
    #allocation28 [shape = 'u8[512]{0}', space=vmem, size = 0x400, scoped, tag = 'input window, operand 36, single buffered']
    #allocation29 [shape = 'u8[49152]{0}', space=vmem, size = 0xc000, scoped, tag = 'input window, operand 39, single buffered']
    #allocation30 [shape = 's32[1]{0}', space=sflag, size = 0x4, scoped, tag = 'scoped memory for link_pred_net_forward.1']
    #allocation31 [shape = 'u8[512]{0}', space=vmem, size = 0x400, scoped, tag = 'input window, operand 40, single buffered']
    #allocation32 [shape = 'u8[53248]{0}', space=vmem, size = 0xd000, scoped, tag = 'input window, operand 43, single buffered']
    #allocation33 [shape = 's32[1]{0}', space=sflag, size = 0x4, scoped, tag = 'scoped memory for link_pred_net_forward.1']
    #allocation34 [shape = 'u8[512]{0}', space=vmem, size = 0x400, scoped, tag = 'input window, operand 44, single buffered']
    #allocation35 [shape = 'u8[131072]{0}', space=vmem, size = 0x20000, scoped, tag = 'input window, operand 51, single buffered']
    #allocation36 [shape = 's32[1]{0}', space=sflag, size = 0x4, scoped, tag = 'scoped memory for link_pred_net_forward.1']
    #allocation37 [shape = 'u8[16384]{0}', space=vmem, size = 0x4000, scoped, tag = 'input window, operand 53, single buffered']
    #allocation38 [shape = 'u8[24576]{0}', space=vmem, size = 0x6000, scoped, tag = 'input window, operand 56, single buffered']
    #allocation39 [shape = 's32[1]{0}', space=sflag, size = 0x4, scoped, tag = 'scoped memory for link_pred_net_forward.1']
    #allocation40 [shape = 'u8[32768]{0}', space=vmem, size = 0x8000, scoped, tag = 'input window, operand 59, single buffered']
    #allocation41 [shape = 'u8[40960]{0}', space=vmem, size = 0xa000, scoped, tag = 'input window, operand 62, single buffered']
    #allocation42 [shape = 's32[1]{0}', space=sflag, size = 0x4, scoped, tag = 'scoped memory for link_pred_net_forward.1']
    #allocation43 [shape = 'u8[49152]{0}', space=vmem, size = 0xc000, scoped, tag = 'input window, operand 65, single buffered']
    #allocation44 [shape = 'u8[16384]{0}', space=vmem, size = 0x4000, scoped, tag = 'output window, operand 0, single buffered']
    %148 = vsyncpa [#allocation3], 0
    %149 = vsyncpa [#allocation6], 0
    %150 = vsyncpa [#allocation9], 0
    %151 = vsyncpa [#allocation12], 0
    %152 = vsyncpa [#allocation15], 0
    %153 = vsyncpa [#allocation18], 0
    %154 = vsyncpa [#allocation21], 0
    %155 = vsyncpa [#allocation24], 0
    %156 = vsyncpa [#allocation27], 0
    %157 = vsyncpa [#allocation30], 0
    %158 = vsyncpa [#allocation33], 0
    %159 = vsyncpa [#allocation36], 0
    %160 = vsyncpa [#allocation39], 0
    %161 = vsyncpa [#allocation42], 0
    %162 = vsyncpa [#allocation4], 0
    // Predicated region
    $region2: #{link_pred_net_forward.1} parent=1 // pred_check
      _
    $region3: #{link_pred_net_forward.1} parent=1 // pred_check_branch
      %164 = sbr.rel (0) target = $region5
    $region4: #{link_pred_net_forward.1} parent=1 // pred_region
      _
    $region5: #{link_pred_net_forward.1} parent=1 // pred_fallthru
      _
    // Predicated region
    $region6: #{link_pred_net_forward.1} parent=1 // pred_check
      _
    $region7: #{link_pred_net_forward.1} parent=1 // pred_check_branch
      %166 = sbr.rel (0) target = $region9
    $region8: #{link_pred_net_forward.1} parent=1 // pred_region
      _
    $region9: #{link_pred_net_forward.1} parent=1 // pred_fallthru
      _
    // Predicated region
    $region10: #{link_pred_net_forward.1} parent=1 // pred_check
      _
    $region11: #{link_pred_net_forward.1} parent=1 // pred_check_branch
      %168 = sbr.rel (0) target = $region13
    $region12: #{link_pred_net_forward.1} parent=1 // pred_region
      _
    $region13: #{link_pred_net_forward.1} parent=1 // pred_fallthru
      _
    // Predicated region
    $region14: #{link_pred_net_forward.1} parent=1 // pred_check
      _
    $region15: #{link_pred_net_forward.1} parent=1 // pred_check_branch
      %170 = sbr.rel (0) target = $region17
    $region16: #{link_pred_net_forward.1} parent=1 // pred_region
      _
    $region17: #{link_pred_net_forward.1} parent=1 // pred_fallthru
      _
    // Predicated region
    $region18: #{link_pred_net_forward.1} parent=1 // pred_check
      _
    $region19: #{link_pred_net_forward.1} parent=1 // pred_check_branch
      %172 = sbr.rel (0) target = $region21
    $region20: #{link_pred_net_forward.1} parent=1 // pred_region
      _
    $region21: #{link_pred_net_forward.1} parent=1 // pred_fallthru
      _
    // Predicated region
    $region22: #{link_pred_net_forward.1} parent=1 // pred_check
      _
    $region23: #{link_pred_net_forward.1} parent=1 // pred_check_branch
      %174 = sbr.rel (0) target = $region25
    $region24: #{link_pred_net_forward.1} parent=1 // pred_region
      _
    $region25: #{link_pred_net_forward.1} parent=1 // pred_fallthru
      _
    // Predicated region
    $region26: #{link_pred_net_forward.1} parent=1 // pred_check
      _
    $region27: #{link_pred_net_forward.1} parent=1 // pred_check_branch
      %176 = sbr.rel (0) target = $region29
    $region28: #{link_pred_net_forward.1} parent=1 // pred_region
      %s178 = ssub.s32 256, 256
      %179 = vsyncadd [#allocation3], %s178
      %s180 = sshll.u32 [#allocation2], 4
      %s181 = int_to_ptr.vmem [resolvable:$true] %s180
      %186 = dma.hbm_to_vmem [thread:$0]  %s13, 256, %s181, [#allocation3], 128, 128, 8
    $region29: #{link_pred_net_forward.1} parent=1 // pred_fallthru
      _
    // Predicated region
    $region30: #{link_pred_net_forward.1} parent=1 // pred_check
      _
    $region31: #{link_pred_net_forward.1} parent=1 // pred_check_branch
      %188 = sbr.rel (0) target = $region33
    $region32: #{link_pred_net_forward.1} parent=1 // pred_region
      %s190 = ssub.s32 64, 64
      %191 = vsyncadd [#allocation6], %s190
      %s193 = sshll.u32 [#allocation5], 4
      %s194 = int_to_ptr.vmem [resolvable:$true] %s193
      %196 = dma.hbm_to_vmem [thread:$0]  %s15, 64, %s194, [#allocation6]
    $region33: #{link_pred_net_forward.1} parent=1 // pred_fallthru
      _
    // Predicated region
    $region34: #{link_pred_net_forward.1} parent=1 // pred_check
      _
    $region35: #{link_pred_net_forward.1} parent=1 // pred_check_branch
      %198 = sbr.rel (0) target = $region37
    $region36: #{link_pred_net_forward.1} parent=1 // pred_region
      %s200 = ssub.s32 16, 16
      %201 = vsyncadd [#allocation6], %s200
      %s203 = sshll.u32 [#allocation7], 4
      %s204 = int_to_ptr.vmem [resolvable:$true] %s203
      %206 = dma.hbm_to_vmem [thread:$0]  %s17, 16, %s204, [#allocation6]
    $region37: #{link_pred_net_forward.1} parent=1 // pred_fallthru
      _
    // Predicated region
    $region38: #{link_pred_net_forward.1} parent=1 // pred_check
      _
    $region39: #{link_pred_net_forward.1} parent=1 // pred_check_branch
      %208 = sbr.rel (0) target = $region41
    $region40: #{link_pred_net_forward.1} parent=1 // pred_region
      _
    $region41: #{link_pred_net_forward.1} parent=1 // pred_fallthru
      _
    // Predicated region
    $region42: #{link_pred_net_forward.1} parent=1 // pred_check
      _
    $region43: #{link_pred_net_forward.1} parent=1 // pred_check_branch
      %210 = sbr.rel (0) target = $region45
    $region44: #{link_pred_net_forward.1} parent=1 // pred_region
      _
    $region45: #{link_pred_net_forward.1} parent=1 // pred_fallthru
      _
    // Predicated region
    $region46: #{link_pred_net_forward.1} parent=1 // pred_check
      _
    $region47: #{link_pred_net_forward.1} parent=1 // pred_check_branch
      %212 = sbr.rel (0) target = $region49
    $region48: #{link_pred_net_forward.1} parent=1 // pred_region
      %s214 = ssub.s32 512, 512
      %215 = vsyncadd [#allocation9], %s214
      %s216 = sshll.u32 [#allocation8], 4
      %s217 = int_to_ptr.vmem [resolvable:$true] %s216
      %222 = dma.hbm_to_vmem [thread:$0]  %s23, 512, %s217, [#allocation9], 128, 128, 8
    $region49: #{link_pred_net_forward.1} parent=1 // pred_fallthru
      _
    // Predicated region
    $region50: #{link_pred_net_forward.1} parent=1 // pred_check
      _
    $region51: #{link_pred_net_forward.1} parent=1 // pred_check_branch
      %224 = sbr.rel (0) target = $region53
    $region52: #{link_pred_net_forward.1} parent=1 // pred_region
      %s226 = ssub.s32 16, 16
      %227 = vsyncadd [#allocation9], %s226
      %s229 = sshll.u32 [#allocation10], 4
      %s230 = int_to_ptr.vmem [resolvable:$true] %s229
      %232 = dma.hbm_to_vmem [thread:$0]  %s25, 16, %s230, [#allocation9]
    $region53: #{link_pred_net_forward.1} parent=1 // pred_fallthru
      _
    // Predicated region
    $region54: #{link_pred_net_forward.1} parent=1 // pred_check
      _
    $region55: #{link_pred_net_forward.1} parent=1 // pred_check_branch
      %234 = sbr.rel (0) target = $region57
    $region56: #{link_pred_net_forward.1} parent=1 // pred_region
      _
    $region57: #{link_pred_net_forward.1} parent=1 // pred_fallthru
      _
    // Predicated region
    $region58: #{link_pred_net_forward.1} parent=1 // pred_check
      _
    $region59: #{link_pred_net_forward.1} parent=1 // pred_check_branch
      %236 = sbr.rel (0) target = $region61
    $region60: #{link_pred_net_forward.1} parent=1 // pred_region
      _
    $region61: #{link_pred_net_forward.1} parent=1 // pred_fallthru
      _
    // Predicated region
    $region62: #{link_pred_net_forward.1} parent=1 // pred_check
      _
    $region63: #{link_pred_net_forward.1} parent=1 // pred_check_branch
      %238 = sbr.rel (0) target = $region65
    $region64: #{link_pred_net_forward.1} parent=1 // pred_region
      %s240 = ssub.s32 512, 512
      %241 = vsyncadd [#allocation12], %s240
      %s242 = sshll.u32 [#allocation11], 4
      %s243 = int_to_ptr.vmem [resolvable:$true] %s242
      %248 = dma.hbm_to_vmem [thread:$0]  %s31, 512, %s243, [#allocation12], 128, 128, 8
    $region65: #{link_pred_net_forward.1} parent=1 // pred_fallthru
      _
    // Predicated region
    $region66: #{link_pred_net_forward.1} parent=1 // pred_check
      _
    $region67: #{link_pred_net_forward.1} parent=1 // pred_check_branch
      %250 = sbr.rel (0) target = $region69
    $region68: #{link_pred_net_forward.1} parent=1 // pred_region
      %s252 = ssub.s32 16, 16
      %253 = vsyncadd [#allocation12], %s252
      %s255 = sshll.u32 [#allocation13], 4
      %s256 = int_to_ptr.vmem [resolvable:$true] %s255
      %258 = dma.hbm_to_vmem [thread:$0]  %s33, 16, %s256, [#allocation12]
    $region69: #{link_pred_net_forward.1} parent=1 // pred_fallthru
      _
    // Predicated region
    $region70: #{link_pred_net_forward.1} parent=1 // pred_check
      _
    $region71: #{link_pred_net_forward.1} parent=1 // pred_check_branch
      %260 = sbr.rel (0) target = $region73
    $region72: #{link_pred_net_forward.1} parent=1 // pred_region
      _
    $region73: #{link_pred_net_forward.1} parent=1 // pred_fallthru
      _
    // Predicated region
    $region74: #{link_pred_net_forward.1} parent=1 // pred_check
      _
    $region75: #{link_pred_net_forward.1} parent=1 // pred_check_branch
      %262 = sbr.rel (0) target = $region77
    $region76: #{link_pred_net_forward.1} parent=1 // pred_region
      _
    $region77: #{link_pred_net_forward.1} parent=1 // pred_fallthru
      _
    // Predicated region
    $region78: #{link_pred_net_forward.1} parent=1 // pred_check
      _
    $region79: #{link_pred_net_forward.1} parent=1 // pred_check_branch
      %264 = sbr.rel (0) target = $region81
    $region80: #{link_pred_net_forward.1} parent=1 // pred_region
      %s266 = ssub.s32 768, 768
      %267 = vsyncadd [#allocation15], %s266
      %s268 = sshll.u32 [#allocation14], 4
      %s269 = int_to_ptr.vmem [resolvable:$true] %s268
      %274 = dma.hbm_to_vmem [thread:$0]  %s39, 768, %s269, [#allocation15], 128, 128, 8
    $region81: #{link_pred_net_forward.1} parent=1 // pred_fallthru
      _
    // Predicated region
    $region82: #{link_pred_net_forward.1} parent=1 // pred_check
      _
    $region83: #{link_pred_net_forward.1} parent=1 // pred_check_branch
      %276 = sbr.rel (0) target = $region85
    $region84: #{link_pred_net_forward.1} parent=1 // pred_region
      %s278 = ssub.s32 16, 16
      %279 = vsyncadd [#allocation15], %s278
      %s281 = sshll.u32 [#allocation16], 4
      %s282 = int_to_ptr.vmem [resolvable:$true] %s281
      %284 = dma.hbm_to_vmem [thread:$0]  %s41, 16, %s282, [#allocation15]
    $region85: #{link_pred_net_forward.1} parent=1 // pred_fallthru
      _
    // Predicated region
    $region86: #{link_pred_net_forward.1} parent=1 // pred_check
      _
    $region87: #{link_pred_net_forward.1} parent=1 // pred_check_branch
      %286 = sbr.rel (0) target = $region89
    $region88: #{link_pred_net_forward.1} parent=1 // pred_region
      _
    $region89: #{link_pred_net_forward.1} parent=1 // pred_fallthru
      _
    // Predicated region
    $region90: #{link_pred_net_forward.1} parent=1 // pred_check
      _
    $region91: #{link_pred_net_forward.1} parent=1 // pred_check_branch
      %288 = sbr.rel (0) target = $region93
    $region92: #{link_pred_net_forward.1} parent=1 // pred_region
      _
    $region93: #{link_pred_net_forward.1} parent=1 // pred_fallthru
      _
    // Predicated region
    $region94: #{link_pred_net_forward.1} parent=1 // pred_check
      _
    $region95: #{link_pred_net_forward.1} parent=1 // pred_check_branch
      %290 = sbr.rel (0) target = $region97
    $region96: #{link_pred_net_forward.1} parent=1 // pred_region
      %s292 = ssub.s32 1024, 1024
      %293 = vsyncadd [#allocation18], %s292
      %s294 = sshll.u32 [#allocation17], 4
      %s295 = int_to_ptr.vmem [resolvable:$true] %s294
      %300 = dma.hbm_to_vmem [thread:$0]  %s47, 1024, %s295, [#allocation18], 128, 128, 8
    $region97: #{link_pred_net_forward.1} parent=1 // pred_fallthru
      _
    // Predicated region
    $region98: #{link_pred_net_forward.1} parent=1 // pred_check
      _
    $region99: #{link_pred_net_forward.1} parent=1 // pred_check_branch
      %302 = sbr.rel (0) target = $region101
    $region100: #{link_pred_net_forward.1} parent=1 // pred_region
      %s304 = ssub.s32 16, 16
      %305 = vsyncadd [#allocation18], %s304
      %s307 = sshll.u32 [#allocation19], 4
      %s308 = int_to_ptr.vmem [resolvable:$true] %s307
      %310 = dma.hbm_to_vmem [thread:$0]  %s49, 16, %s308, [#allocation18]
    $region101: #{link_pred_net_forward.1} parent=1 // pred_fallthru
      _
    // Predicated region
    $region102: #{link_pred_net_forward.1} parent=1 // pred_check
      _
    $region103: #{link_pred_net_forward.1} parent=1 // pred_check_branch
      %312 = sbr.rel (0) target = $region105
    $region104: #{link_pred_net_forward.1} parent=1 // pred_region
      _
    $region105: #{link_pred_net_forward.1} parent=1 // pred_fallthru
      _
    // Predicated region
    $region106: #{link_pred_net_forward.1} parent=1 // pred_check
      _
    $region107: #{link_pred_net_forward.1} parent=1 // pred_check_branch
      %314 = sbr.rel (0) target = $region109
    $region108: #{link_pred_net_forward.1} parent=1 // pred_region
      _
    $region109: #{link_pred_net_forward.1} parent=1 // pred_fallthru
      _
    // Predicated region
    $region110: #{link_pred_net_forward.1} parent=1 // pred_check
      _
    $region111: #{link_pred_net_forward.1} parent=1 // pred_check_branch
      %316 = sbr.rel (0) target = $region113
    $region112: #{link_pred_net_forward.1} parent=1 // pred_region
      %s318 = ssub.s32 1024, 1024
      %319 = vsyncadd [#allocation21], %s318
      %s320 = sshll.u32 [#allocation20], 4
      %s321 = int_to_ptr.vmem [resolvable:$true] %s320
      %326 = dma.hbm_to_vmem [thread:$0]  %s55, 1024, %s321, [#allocation21], 128, 128, 8
    $region113: #{link_pred_net_forward.1} parent=1 // pred_fallthru
      _
    // Predicated region
    $region114: #{link_pred_net_forward.1} parent=1 // pred_check
      _
    $region115: #{link_pred_net_forward.1} parent=1 // pred_check_branch
      %328 = sbr.rel (0) target = $region117
    $region116: #{link_pred_net_forward.1} parent=1 // pred_region
      %s330 = ssub.s32 16, 16
      %331 = vsyncadd [#allocation21], %s330
      %s333 = sshll.u32 [#allocation22], 4
      %s334 = int_to_ptr.vmem [resolvable:$true] %s333
      %336 = dma.hbm_to_vmem [thread:$0]  %s57, 16, %s334, [#allocation21]
    $region117: #{link_pred_net_forward.1} parent=1 // pred_fallthru
      _
    // Predicated region
    $region118: #{link_pred_net_forward.1} parent=1 // pred_check
      _
    $region119: #{link_pred_net_forward.1} parent=1 // pred_check_branch
      %338 = sbr.rel (0) target = $region121
    $region120: #{link_pred_net_forward.1} parent=1 // pred_region
      _
    $region121: #{link_pred_net_forward.1} parent=1 // pred_fallthru
      _
    // Predicated region
    $region122: #{link_pred_net_forward.1} parent=1 // pred_check
      _
    $region123: #{link_pred_net_forward.1} parent=1 // pred_check_branch
      %340 = sbr.rel (0) target = $region125
    $region124: #{link_pred_net_forward.1} parent=1 // pred_region
      _
    $region125: #{link_pred_net_forward.1} parent=1 // pred_fallthru
      _
    // Predicated region
    $region126: #{link_pred_net_forward.1} parent=1 // pred_check
      _
    $region127: #{link_pred_net_forward.1} parent=1 // pred_check_branch
      %342 = sbr.rel (0) target = $region129
    $region128: #{link_pred_net_forward.1} parent=1 // pred_region
      %s344 = ssub.s32 1280, 1280
      %345 = vsyncadd [#allocation24], %s344
      %s346 = sshll.u32 [#allocation23], 4
      %s347 = int_to_ptr.vmem [resolvable:$true] %s346
      %352 = dma.hbm_to_vmem [thread:$0]  %s63, 1280, %s347, [#allocation24], 128, 128, 8
    $region129: #{link_pred_net_forward.1} parent=1 // pred_fallthru
      _
    // Predicated region
    $region130: #{link_pred_net_forward.1} parent=1 // pred_check
      _
    $region131: #{link_pred_net_forward.1} parent=1 // pred_check_branch
      %354 = sbr.rel (0) target = $region133
    $region132: #{link_pred_net_forward.1} parent=1 // pred_region
      %s356 = ssub.s32 16, 16
      %357 = vsyncadd [#allocation24], %s356
      %s359 = sshll.u32 [#allocation25], 4
      %s360 = int_to_ptr.vmem [resolvable:$true] %s359
      %362 = dma.hbm_to_vmem [thread:$0]  %s65, 16, %s360, [#allocation24]
    $region133: #{link_pred_net_forward.1} parent=1 // pred_fallthru
      _
    // Predicated region
    $region134: #{link_pred_net_forward.1} parent=1 // pred_check
      _
    $region135: #{link_pred_net_forward.1} parent=1 // pred_check_branch
      %364 = sbr.rel (0) target = $region137
    $region136: #{link_pred_net_forward.1} parent=1 // pred_region
      _
    $region137: #{link_pred_net_forward.1} parent=1 // pred_fallthru
      _
    // Predicated region
    $region138: #{link_pred_net_forward.1} parent=1 // pred_check
      _
    $region139: #{link_pred_net_forward.1} parent=1 // pred_check_branch
      %366 = sbr.rel (0) target = $region141
    $region140: #{link_pred_net_forward.1} parent=1 // pred_region
      _
    $region141: #{link_pred_net_forward.1} parent=1 // pred_fallthru
      _
    // Predicated region
    $region142: #{link_pred_net_forward.1} parent=1 // pred_check
      _
    $region143: #{link_pred_net_forward.1} parent=1 // pred_check_branch
      %368 = sbr.rel (0) target = $region145
    $region144: #{link_pred_net_forward.1} parent=1 // pred_region
      %s370 = ssub.s32 1536, 1536
      %371 = vsyncadd [#allocation27], %s370
      %s372 = sshll.u32 [#allocation26], 4
      %s373 = int_to_ptr.vmem [resolvable:$true] %s372
      %378 = dma.hbm_to_vmem [thread:$0]  %s71, 1536, %s373, [#allocation27], 128, 128, 8
    $region145: #{link_pred_net_forward.1} parent=1 // pred_fallthru
      _
    // Predicated region
    $region146: #{link_pred_net_forward.1} parent=1 // pred_check
      _
    $region147: #{link_pred_net_forward.1} parent=1 // pred_check_branch
      %380 = sbr.rel (0) target = $region149
    $region148: #{link_pred_net_forward.1} parent=1 // pred_region
      %s382 = ssub.s32 16, 16
      %383 = vsyncadd [#allocation27], %s382
      %s385 = sshll.u32 [#allocation28], 4
      %s386 = int_to_ptr.vmem [resolvable:$true] %s385
      %388 = dma.hbm_to_vmem [thread:$0]  %s73, 16, %s386, [#allocation27]
    $region149: #{link_pred_net_forward.1} parent=1 // pred_fallthru
      _
    // Predicated region
    $region150: #{link_pred_net_forward.1} parent=1 // pred_check
      _
    $region151: #{link_pred_net_forward.1} parent=1 // pred_check_branch
      %390 = sbr.rel (0) target = $region153
    $region152: #{link_pred_net_forward.1} parent=1 // pred_region
      _
    $region153: #{link_pred_net_forward.1} parent=1 // pred_fallthru
      _
    // Predicated region
    $region154: #{link_pred_net_forward.1} parent=1 // pred_check
      _
    $region155: #{link_pred_net_forward.1} parent=1 // pred_check_branch
      %392 = sbr.rel (0) target = $region157
    $region156: #{link_pred_net_forward.1} parent=1 // pred_region
      _
    $region157: #{link_pred_net_forward.1} parent=1 // pred_fallthru
      _
    // Predicated region
    $region158: #{link_pred_net_forward.1} parent=1 // pred_check
      _
    $region159: #{link_pred_net_forward.1} parent=1 // pred_check_branch
      %394 = sbr.rel (0) target = $region161
    $region160: #{link_pred_net_forward.1} parent=1 // pred_region
      %s396 = ssub.s32 1536, 1536
      %397 = vsyncadd [#allocation30], %s396
      %s398 = sshll.u32 [#allocation29], 4
      %s399 = int_to_ptr.vmem [resolvable:$true] %s398
      %404 = dma.hbm_to_vmem [thread:$0]  %s79, 1536, %s399, [#allocation30], 128, 128, 8
    $region161: #{link_pred_net_forward.1} parent=1 // pred_fallthru
      _
    // Predicated region
    $region162: #{link_pred_net_forward.1} parent=1 // pred_check
      _
    $region163: #{link_pred_net_forward.1} parent=1 // pred_check_branch
      %406 = sbr.rel (0) target = $region165
    $region164: #{link_pred_net_forward.1} parent=1 // pred_region
      %s408 = ssub.s32 16, 16
      %409 = vsyncadd [#allocation30], %s408
      %s411 = sshll.u32 [#allocation31], 4
      %s412 = int_to_ptr.vmem [resolvable:$true] %s411
      %414 = dma.hbm_to_vmem [thread:$0]  %s81, 16, %s412, [#allocation30]
    $region165: #{link_pred_net_forward.1} parent=1 // pred_fallthru
      _
    // Predicated region
    $region166: #{link_pred_net_forward.1} parent=1 // pred_check
      _
    $region167: #{link_pred_net_forward.1} parent=1 // pred_check_branch
      %416 = sbr.rel (0) target = $region169
    $region168: #{link_pred_net_forward.1} parent=1 // pred_region
      _
    $region169: #{link_pred_net_forward.1} parent=1 // pred_fallthru
      _
    // Predicated region
    $region170: #{link_pred_net_forward.1} parent=1 // pred_check
      _
    $region171: #{link_pred_net_forward.1} parent=1 // pred_check_branch
      %418 = sbr.rel (0) target = $region173
    $region172: #{link_pred_net_forward.1} parent=1 // pred_region
      _
    $region173: #{link_pred_net_forward.1} parent=1 // pred_fallthru
      _
    // Predicated region
    $region174: #{link_pred_net_forward.1} parent=1 // pred_check
      _
    $region175: #{link_pred_net_forward.1} parent=1 // pred_check_branch
      %420 = sbr.rel (0) target = $region177
    $region176: #{link_pred_net_forward.1} parent=1 // pred_region
      %s422 = ssub.s32 1664, 1664
      %423 = vsyncadd [#allocation33], %s422
      %s424 = sshll.u32 [#allocation32], 4
      %s425 = int_to_ptr.vmem [resolvable:$true] %s424
      %430 = dma.hbm_to_vmem [thread:$0]  %s87, 1664, %s425, [#allocation33], 128, 128, 8
    $region177: #{link_pred_net_forward.1} parent=1 // pred_fallthru
      _
    // Predicated region
    $region178: #{link_pred_net_forward.1} parent=1 // pred_check
      _
    $region179: #{link_pred_net_forward.1} parent=1 // pred_check_branch
      %432 = sbr.rel (0) target = $region181
    $region180: #{link_pred_net_forward.1} parent=1 // pred_region
      %s434 = ssub.s32 16, 16
      %435 = vsyncadd [#allocation33], %s434
      %s437 = sshll.u32 [#allocation34], 4
      %s438 = int_to_ptr.vmem [resolvable:$true] %s437
      %440 = dma.hbm_to_vmem [thread:$0]  %s89, 16, %s438, [#allocation33]
    $region181: #{link_pred_net_forward.1} parent=1 // pred_fallthru
      _
    // Predicated region
    $region182: #{link_pred_net_forward.1} parent=1 // pred_check
      _
    $region183: #{link_pred_net_forward.1} parent=1 // pred_check_branch
      %442 = sbr.rel (0) target = $region185
    $region184: #{link_pred_net_forward.1} parent=1 // pred_region
      _
    $region185: #{link_pred_net_forward.1} parent=1 // pred_fallthru
      _
    // Predicated region
    $region186: #{link_pred_net_forward.1} parent=1 // pred_check
      _
    $region187: #{link_pred_net_forward.1} parent=1 // pred_check_branch
      %444 = sbr.rel (0) target = $region189
    $region188: #{link_pred_net_forward.1} parent=1 // pred_region
      _
    $region189: #{link_pred_net_forward.1} parent=1 // pred_fallthru
      _
    // Predicated region
    $region190: #{link_pred_net_forward.1} parent=1 // pred_check
      _
    $region191: #{link_pred_net_forward.1} parent=1 // pred_check_branch
      %446 = sbr.rel (0) target = $region193
    $region192: #{link_pred_net_forward.1} parent=1 // pred_region
      _
    $region193: #{link_pred_net_forward.1} parent=1 // pred_fallthru
      _
    // Predicated region
    $region194: #{link_pred_net_forward.1} parent=1 // pred_check
      _
    $region195: #{link_pred_net_forward.1} parent=1 // pred_check_branch
      %448 = sbr.rel (0) target = $region197
    $region196: #{link_pred_net_forward.1} parent=1 // pred_region
      _
    $region197: #{link_pred_net_forward.1} parent=1 // pred_fallthru
      _
    // Predicated region
    $region198: #{link_pred_net_forward.1} parent=1 // pred_check
      _
    $region199: #{link_pred_net_forward.1} parent=1 // pred_check_branch
      %450 = sbr.rel (0) target = $region201
    $region200: #{link_pred_net_forward.1} parent=1 // pred_region
      _
    $region201: #{link_pred_net_forward.1} parent=1 // pred_fallthru
      _
    // Predicated region
    $region202: #{link_pred_net_forward.1} parent=1 // pred_check
      _
    $region203: #{link_pred_net_forward.1} parent=1 // pred_check_branch
      %452 = sbr.rel (0) target = $region205
    $region204: #{link_pred_net_forward.1} parent=1 // pred_region
      _
    $region205: #{link_pred_net_forward.1} parent=1 // pred_fallthru
      _
    // Predicated region
    $region206: #{link_pred_net_forward.1} parent=1 // pred_check
      _
    $region207: #{link_pred_net_forward.1} parent=1 // pred_check_branch
      %454 = sbr.rel (0) target = $region209
    $region208: #{link_pred_net_forward.1} parent=1 // pred_region
      %s456 = ssub.s32 4096, 4096
      %457 = vsyncadd [#allocation36], %s456
      %s458 = sshll.u32 [#allocation35], 4
      %s459 = int_to_ptr.vmem [resolvable:$true] %s458
      %464 = dma.hbm_to_vmem [thread:$0]  %s103, 4096, %s459, [#allocation36], 256, 256, 16
    $region209: #{link_pred_net_forward.1} parent=1 // pred_fallthru
      _
    // Predicated region
    $region210: #{link_pred_net_forward.1} parent=1 // pred_check
      _
    $region211: #{link_pred_net_forward.1} parent=1 // pred_check_branch
      %466 = sbr.rel (0) target = $region213
    $region212: #{link_pred_net_forward.1} parent=1 // pred_region
      _
    $region213: #{link_pred_net_forward.1} parent=1 // pred_fallthru
      _
    // Predicated region
    $region214: #{link_pred_net_forward.1} parent=1 // pred_check
      _
    $region215: #{link_pred_net_forward.1} parent=1 // pred_check_branch
      %468 = sbr.rel (0) target = $region217
    $region216: #{link_pred_net_forward.1} parent=1 // pred_region
      %s470 = ssub.s32 512, 512
      %471 = vsyncadd [#allocation36], %s470
      %s472 = sshll.u32 [#allocation37], 4
      %s473 = int_to_ptr.vmem [resolvable:$true] %s472
      %478 = dma.hbm_to_vmem [thread:$0]  %s107, 512, %s473, [#allocation36], 128, 128, 8
    $region217: #{link_pred_net_forward.1} parent=1 // pred_fallthru
      _
    // Predicated region
    $region218: #{link_pred_net_forward.1} parent=1 // pred_check
      _
    $region219: #{link_pred_net_forward.1} parent=1 // pred_check_branch
      %480 = sbr.rel (0) target = $region221
    $region220: #{link_pred_net_forward.1} parent=1 // pred_region
      _
    $region221: #{link_pred_net_forward.1} parent=1 // pred_fallthru
      _
    // Predicated region
    $region222: #{link_pred_net_forward.1} parent=1 // pred_check
      _
    $region223: #{link_pred_net_forward.1} parent=1 // pred_check_branch
      %482 = sbr.rel (0) target = $region225
    $region224: #{link_pred_net_forward.1} parent=1 // pred_region
      _
    $region225: #{link_pred_net_forward.1} parent=1 // pred_fallthru
      _
    // Predicated region
    $region226: #{link_pred_net_forward.1} parent=1 // pred_check
      _
    $region227: #{link_pred_net_forward.1} parent=1 // pred_check_branch
      %484 = sbr.rel (0) target = $region229
    $region228: #{link_pred_net_forward.1} parent=1 // pred_region
      %s486 = ssub.s32 768, 768
      %487 = vsyncadd [#allocation39], %s486
      %s488 = sshll.u32 [#allocation38], 4
      %s489 = int_to_ptr.vmem [resolvable:$true] %s488
      %494 = dma.hbm_to_vmem [thread:$0]  %s113, 768, %s489, [#allocation39], 128, 128, 8
    $region229: #{link_pred_net_forward.1} parent=1 // pred_fallthru
      _
    // Predicated region
    $region230: #{link_pred_net_forward.1} parent=1 // pred_check
      _
    $region231: #{link_pred_net_forward.1} parent=1 // pred_check_branch
      %496 = sbr.rel (0) target = $region233
    $region232: #{link_pred_net_forward.1} parent=1 // pred_region
      _
    $region233: #{link_pred_net_forward.1} parent=1 // pred_fallthru
      _
    // Predicated region
    $region234: #{link_pred_net_forward.1} parent=1 // pred_check
      _
    $region235: #{link_pred_net_forward.1} parent=1 // pred_check_branch
      %498 = sbr.rel (0) target = $region237
    $region236: #{link_pred_net_forward.1} parent=1 // pred_region
      _
    $region237: #{link_pred_net_forward.1} parent=1 // pred_fallthru
      _
    // Predicated region
    $region238: #{link_pred_net_forward.1} parent=1 // pred_check
      _
    $region239: #{link_pred_net_forward.1} parent=1 // pred_check_branch
      %500 = sbr.rel (0) target = $region241
    $region240: #{link_pred_net_forward.1} parent=1 // pred_region
      %s502 = ssub.s32 1024, 1024
      %503 = vsyncadd [#allocation39], %s502
      %s504 = sshll.u32 [#allocation40], 4
      %s505 = int_to_ptr.vmem [resolvable:$true] %s504
      %510 = dma.hbm_to_vmem [thread:$0]  %s119, 1024, %s505, [#allocation39], 128, 128, 8
    $region241: #{link_pred_net_forward.1} parent=1 // pred_fallthru
      _
    // Predicated region
    $region242: #{link_pred_net_forward.1} parent=1 // pred_check
      _
    $region243: #{link_pred_net_forward.1} parent=1 // pred_check_branch
      %512 = sbr.rel (0) target = $region245
    $region244: #{link_pred_net_forward.1} parent=1 // pred_region
      _
    $region245: #{link_pred_net_forward.1} parent=1 // pred_fallthru
      _
    // Predicated region
    $region246: #{link_pred_net_forward.1} parent=1 // pred_check
      _
    $region247: #{link_pred_net_forward.1} parent=1 // pred_check_branch
      %514 = sbr.rel (0) target = $region249
    $region248: #{link_pred_net_forward.1} parent=1 // pred_region
      _
    $region249: #{link_pred_net_forward.1} parent=1 // pred_fallthru
      _
    // Predicated region
    $region250: #{link_pred_net_forward.1} parent=1 // pred_check
      _
    $region251: #{link_pred_net_forward.1} parent=1 // pred_check_branch
      %516 = sbr.rel (0) target = $region253
    $region252: #{link_pred_net_forward.1} parent=1 // pred_region
      %s518 = ssub.s32 1280, 1280
      %519 = vsyncadd [#allocation42], %s518
      %s520 = sshll.u32 [#allocation41], 4
      %s521 = int_to_ptr.vmem [resolvable:$true] %s520
      %526 = dma.hbm_to_vmem [thread:$0]  %s125, 1280, %s521, [#allocation42], 128, 128, 8
    $region253: #{link_pred_net_forward.1} parent=1 // pred_fallthru
      _
    // Predicated region
    $region254: #{link_pred_net_forward.1} parent=1 // pred_check
      _
    $region255: #{link_pred_net_forward.1} parent=1 // pred_check_branch
      %528 = sbr.rel (0) target = $region257
    $region256: #{link_pred_net_forward.1} parent=1 // pred_region
      _
    $region257: #{link_pred_net_forward.1} parent=1 // pred_fallthru
      _
    // Predicated region
    $region258: #{link_pred_net_forward.1} parent=1 // pred_check
      _
    $region259: #{link_pred_net_forward.1} parent=1 // pred_check_branch
      %530 = sbr.rel (0) target = $region261
    $region260: #{link_pred_net_forward.1} parent=1 // pred_region
      _
    $region261: #{link_pred_net_forward.1} parent=1 // pred_fallthru
      _
    // Predicated region
    $region262: #{link_pred_net_forward.1} parent=1 // pred_check
      _
    $region263: #{link_pred_net_forward.1} parent=1 // pred_check_branch
      %532 = sbr.rel (0) target = $region265
    $region264: #{link_pred_net_forward.1} parent=1 // pred_region
      %s534 = ssub.s32 1536, 1536
      %535 = vsyncadd [#allocation42], %s534
      %s536 = sshll.u32 [#allocation43], 4
      %s537 = int_to_ptr.vmem [resolvable:$true] %s536
      %542 = dma.hbm_to_vmem [thread:$0]  %s131, 1536, %s537, [#allocation42], 128, 128, 8
    $region265: #{link_pred_net_forward.1} parent=1 // pred_fallthru
      _
    // Predicated region
    $region266: #{link_pred_net_forward.1} parent=1 // pred_check
      _
    $region267: #{link_pred_net_forward.1} parent=1 // pred_check_branch
      %544 = sbr.rel (0) target = $region269
    $region268: #{link_pred_net_forward.1} parent=1 // pred_region
      _
    $region269: #{link_pred_net_forward.1} parent=1 // pred_fallthru
      _
    // Predicated region
    $region270: #{link_pred_net_forward.1} parent=1 // pred_check
      _
    $region271: #{link_pred_net_forward.1} parent=1 // pred_check_branch
      %546 = sbr.rel (0) target = $region273
    $region272: #{link_pred_net_forward.1} parent=1 // pred_region
      _
    $region273: #{link_pred_net_forward.1} parent=1 // pred_fallthru
      _
    // Predicated region
    $region274: #{link_pred_net_forward.1} parent=1 // pred_check
      _
    $region275: #{link_pred_net_forward.1} parent=1 // pred_check_branch
      %548 = sbr.rel (0) target = $region277
    $region276: #{link_pred_net_forward.1} parent=1 // pred_region
      _
    $region277: #{link_pred_net_forward.1} parent=1 // pred_fallthru
      _
    // Predicated region
    $region278: #{link_pred_net_forward.1} parent=1 // pred_check
      _
    $region279: #{link_pred_net_forward.1} parent=1 // pred_check_branch
      %550 = sbr.rel (0) target = $region281
    $region280: #{link_pred_net_forward.1} parent=1 // pred_region
      _
    $region281: #{link_pred_net_forward.1} parent=1 // pred_fallthru
      _
    // Predicated region
    $region282: #{link_pred_net_forward.1} parent=1 // pred_check
      _
    $region283: #{link_pred_net_forward.1} parent=1 // pred_check_branch
      %552 = sbr.rel (0) target = $region285
    $region284: #{link_pred_net_forward.1} parent=1 // pred_region
      _
    $region285: #{link_pred_net_forward.1} parent=1 // pred_fallthru
      _
    // Predicated region
    $region286: #{link_pred_net_forward.1} parent=1 // pred_check
      _
    $region287: #{link_pred_net_forward.1} parent=1 // pred_check_branch
      %554 = sbr.rel (0) target = $region289
    $region288: #{link_pred_net_forward.1} parent=1 // pred_region
      %555 = dma.done [#allocation3], 256
    $region289: #{link_pred_net_forward.1} parent=1 // pred_fallthru
      _
    // Predicated region
    $region290: #{link_pred_net_forward.1} parent=1 // pred_check
      _
    $region291: #{link_pred_net_forward.1} parent=1 // pred_check_branch
      %557 = sbr.rel (0) target = $region293
    $region292: #{link_pred_net_forward.1} parent=1 // pred_region
      %558 = dma.done [#allocation6], 64
    $region293: #{link_pred_net_forward.1} parent=1 // pred_fallthru
      _
    // Predicated region
    $region294: #{link_pred_net_forward.1} parent=1 // pred_check
      _
    $region295: #{link_pred_net_forward.1} parent=1 // pred_check_branch
      %560 = sbr.rel (0) target = $region297
    $region296: #{link_pred_net_forward.1} parent=1 // pred_region
      %561 = dma.done [#allocation6], 16
    $region297: #{link_pred_net_forward.1} parent=1 // pred_fallthru
      _
    // Predicated region
    $region298: #{link_pred_net_forward.1} parent=1 // pred_check
      _
    $region299: #{link_pred_net_forward.1} parent=1 // pred_check_branch
      %563 = sbr.rel (0) target = $region301
    $region300: #{link_pred_net_forward.1} parent=1 // pred_region
      %564 = dma.done [#allocation9], 512
    $region301: #{link_pred_net_forward.1} parent=1 // pred_fallthru
      _
    // Predicated region
    $region302: #{link_pred_net_forward.1} parent=1 // pred_check
      _
    $region303: #{link_pred_net_forward.1} parent=1 // pred_check_branch
      %566 = sbr.rel (0) target = $region305
    $region304: #{link_pred_net_forward.1} parent=1 // pred_region
      %567 = dma.done [#allocation9], 16
    $region305: #{link_pred_net_forward.1} parent=1 // pred_fallthru
      _
    // Predicated region
    $region306: #{link_pred_net_forward.1} parent=1 // pred_check
      _
    $region307: #{link_pred_net_forward.1} parent=1 // pred_check_branch
      %569 = sbr.rel (0) target = $region309
    $region308: #{link_pred_net_forward.1} parent=1 // pred_region
      %570 = dma.done [#allocation12], 512
    $region309: #{link_pred_net_forward.1} parent=1 // pred_fallthru
      _
    // Predicated region
    $region310: #{link_pred_net_forward.1} parent=1 // pred_check
      _
    $region311: #{link_pred_net_forward.1} parent=1 // pred_check_branch
      %572 = sbr.rel (0) target = $region313
    $region312: #{link_pred_net_forward.1} parent=1 // pred_region
      %573 = dma.done [#allocation12], 16
    $region313: #{link_pred_net_forward.1} parent=1 // pred_fallthru
      _
    // Predicated region
    $region314: #{link_pred_net_forward.1} parent=1 // pred_check
      _
    $region315: #{link_pred_net_forward.1} parent=1 // pred_check_branch
      %575 = sbr.rel (0) target = $region317
    $region316: #{link_pred_net_forward.1} parent=1 // pred_region
      %576 = dma.done [#allocation15], 768
    $region317: #{link_pred_net_forward.1} parent=1 // pred_fallthru
      _
    // Predicated region
    $region318: #{link_pred_net_forward.1} parent=1 // pred_check
      _
    $region319: #{link_pred_net_forward.1} parent=1 // pred_check_branch
      %578 = sbr.rel (0) target = $region321
    $region320: #{link_pred_net_forward.1} parent=1 // pred_region
      %579 = dma.done [#allocation15], 16
    $region321: #{link_pred_net_forward.1} parent=1 // pred_fallthru
      _
    // Predicated region
    $region322: #{link_pred_net_forward.1} parent=1 // pred_check
      _
    $region323: #{link_pred_net_forward.1} parent=1 // pred_check_branch
      %581 = sbr.rel (0) target = $region325
    $region324: #{link_pred_net_forward.1} parent=1 // pred_region
      %582 = dma.done [#allocation18], 1024
    $region325: #{link_pred_net_forward.1} parent=1 // pred_fallthru
      _
    // Predicated region
    $region326: #{link_pred_net_forward.1} parent=1 // pred_check
      _
    $region327: #{link_pred_net_forward.1} parent=1 // pred_check_branch
      %584 = sbr.rel (0) target = $region329
    $region328: #{link_pred_net_forward.1} parent=1 // pred_region
      %585 = dma.done [#allocation18], 16
    $region329: #{link_pred_net_forward.1} parent=1 // pred_fallthru
      _
    // Predicated region
    $region330: #{link_pred_net_forward.1} parent=1 // pred_check
      _
    $region331: #{link_pred_net_forward.1} parent=1 // pred_check_branch
      %587 = sbr.rel (0) target = $region333
    $region332: #{link_pred_net_forward.1} parent=1 // pred_region
      %588 = dma.done [#allocation21], 1024
    $region333: #{link_pred_net_forward.1} parent=1 // pred_fallthru
      _
    // Predicated region
    $region334: #{link_pred_net_forward.1} parent=1 // pred_check
      _
    $region335: #{link_pred_net_forward.1} parent=1 // pred_check_branch
      %590 = sbr.rel (0) target = $region337
    $region336: #{link_pred_net_forward.1} parent=1 // pred_region
      %591 = dma.done [#allocation21], 16
    $region337: #{link_pred_net_forward.1} parent=1 // pred_fallthru
      _
    // Predicated region
    $region338: #{link_pred_net_forward.1} parent=1 // pred_check
      _
    $region339: #{link_pred_net_forward.1} parent=1 // pred_check_branch
      %593 = sbr.rel (0) target = $region341
    $region340: #{link_pred_net_forward.1} parent=1 // pred_region
      %594 = dma.done [#allocation24], 1280
    $region341: #{link_pred_net_forward.1} parent=1 // pred_fallthru
      _
    // Predicated region
    $region342: #{link_pred_net_forward.1} parent=1 // pred_check
      _
    $region343: #{link_pred_net_forward.1} parent=1 // pred_check_branch
      %596 = sbr.rel (0) target = $region345
    $region344: #{link_pred_net_forward.1} parent=1 // pred_region
      %597 = dma.done [#allocation24], 16
    $region345: #{link_pred_net_forward.1} parent=1 // pred_fallthru
      _
    // Predicated region
    $region346: #{link_pred_net_forward.1} parent=1 // pred_check
      _
    $region347: #{link_pred_net_forward.1} parent=1 // pred_check_branch
      %599 = sbr.rel (0) target = $region349
    $region348: #{link_pred_net_forward.1} parent=1 // pred_region
      %600 = dma.done [#allocation27], 1536
    $region349: #{link_pred_net_forward.1} parent=1 // pred_fallthru
      _
    // Predicated region
    $region350: #{link_pred_net_forward.1} parent=1 // pred_check
      _
    $region351: #{link_pred_net_forward.1} parent=1 // pred_check_branch
      %602 = sbr.rel (0) target = $region353
    $region352: #{link_pred_net_forward.1} parent=1 // pred_region
      %603 = dma.done [#allocation27], 16
    $region353: #{link_pred_net_forward.1} parent=1 // pred_fallthru
      _
    // Predicated region
    $region354: #{link_pred_net_forward.1} parent=1 // pred_check
      _
    $region355: #{link_pred_net_forward.1} parent=1 // pred_check_branch
      %605 = sbr.rel (0) target = $region357
    $region356: #{link_pred_net_forward.1} parent=1 // pred_region
      %606 = dma.done [#allocation30], 1536
    $region357: #{link_pred_net_forward.1} parent=1 // pred_fallthru
      _
    // Predicated region
    $region358: #{link_pred_net_forward.1} parent=1 // pred_check
      _
    $region359: #{link_pred_net_forward.1} parent=1 // pred_check_branch
      %608 = sbr.rel (0) target = $region361
    $region360: #{link_pred_net_forward.1} parent=1 // pred_region
      %609 = dma.done [#allocation30], 16
    $region361: #{link_pred_net_forward.1} parent=1 // pred_fallthru
      _
    // Predicated region
    $region362: #{link_pred_net_forward.1} parent=1 // pred_check
      _
    $region363: #{link_pred_net_forward.1} parent=1 // pred_check_branch
      %611 = sbr.rel (0) target = $region365
    $region364: #{link_pred_net_forward.1} parent=1 // pred_region
      %612 = dma.done [#allocation33], 1664
    $region365: #{link_pred_net_forward.1} parent=1 // pred_fallthru
      _
    // Predicated region
    $region366: #{link_pred_net_forward.1} parent=1 // pred_check
      _
    $region367: #{link_pred_net_forward.1} parent=1 // pred_check_branch
      %614 = sbr.rel (0) target = $region369
    $region368: #{link_pred_net_forward.1} parent=1 // pred_region
      %615 = dma.done [#allocation33], 16
    $region369: #{link_pred_net_forward.1} parent=1 // pred_fallthru
      _
    // Predicated region
    $region370: #{link_pred_net_forward.1} parent=1 // pred_check
      _
    $region371: #{link_pred_net_forward.1} parent=1 // pred_check_branch
      %617 = sbr.rel (0) target = $region373
    $region372: #{link_pred_net_forward.1} parent=1 // pred_region
      %618 = dma.done [#allocation36], 4096
    $region373: #{link_pred_net_forward.1} parent=1 // pred_fallthru
      _
    // Predicated region
    $region374: #{link_pred_net_forward.1} parent=1 // pred_check
      _
    $region375: #{link_pred_net_forward.1} parent=1 // pred_check_branch
      %620 = sbr.rel (0) target = $region377
    $region376: #{link_pred_net_forward.1} parent=1 // pred_region
      %621 = dma.done [#allocation36], 512
    $region377: #{link_pred_net_forward.1} parent=1 // pred_fallthru
      _
    // Predicated region
    $region378: #{link_pred_net_forward.1} parent=1 // pred_check
      _
    $region379: #{link_pred_net_forward.1} parent=1 // pred_check_branch
      %623 = sbr.rel (0) target = $region381
    $region380: #{link_pred_net_forward.1} parent=1 // pred_region
      %624 = dma.done [#allocation39], 768
    $region381: #{link_pred_net_forward.1} parent=1 // pred_fallthru
      _
    // Predicated region
    $region382: #{link_pred_net_forward.1} parent=1 // pred_check
      _
    $region383: #{link_pred_net_forward.1} parent=1 // pred_check_branch
      %626 = sbr.rel (0) target = $region385
    $region384: #{link_pred_net_forward.1} parent=1 // pred_region
      %627 = dma.done [#allocation39], 1024
    $region385: #{link_pred_net_forward.1} parent=1 // pred_fallthru
      _
    // Predicated region
    $region386: #{link_pred_net_forward.1} parent=1 // pred_check
      _
    $region387: #{link_pred_net_forward.1} parent=1 // pred_check_branch
      %629 = sbr.rel (0) target = $region389
    $region388: #{link_pred_net_forward.1} parent=1 // pred_region
      %630 = dma.done [#allocation42], 1280
    $region389: #{link_pred_net_forward.1} parent=1 // pred_fallthru
      _
    // Predicated region
    $region390: #{link_pred_net_forward.1} parent=1 // pred_check
      _
    $region391: #{link_pred_net_forward.1} parent=1 // pred_check_branch
      %632 = sbr.rel (0) target = $region393
    $region392: #{link_pred_net_forward.1} parent=1 // pred_region
      %633 = dma.done [#allocation42], 1536
    $region393: #{link_pred_net_forward.1} parent=1 // pred_fallthru
      _
    %v634 = vld [vmem:[%s5] sm:$0xff]
    %v635 = vld [vmem:[%s5 + $0x8] sm:$0xff]
    %v636 = vld [vmem:[%s5 + $0x10] sm:$0xff]
    %v637 = vld [vmem:[%s5 + $0x18] sm:$0xff]
    %v638 = vld [vmem:[%s1] sm:$0xff]
    %v639 = vld [vmem:[%s1 + $0x8] sm:$0xff]
    %v640 = vld [vmem:[%s1 + $0x10] sm:$0xff]
    %v641 = vld [vmem:[%s1 + $0x18] sm:$0xff]
    %v642 = vld [vmem:[%s1 + $0x20] sm:$0xff]
    %v643 = vld [vmem:[%s1 + $0x28] sm:$0xff]
    %v644 = vld [vmem:[%s1 + $0x30] sm:$0xff]
    %v645 = vld [vmem:[%s1 + $0x38] sm:$0xff]
    %v646 = vld [vmem:[%s1 + $0x40] sm:$0xff]
    %v647 = vld [vmem:[%s1 + $0x48] sm:$0xff]
    %v648 = vld [vmem:[%s1 + $0x50] sm:$0xff]
    %v649 = vld [vmem:[%s1 + $0x58] sm:$0xff]
    %v650 = vld [vmem:[%s1 + $0x60] sm:$0xff]
    %v651 = vld [vmem:[%s1 + $0x68] sm:$0xff]
    %v652 = vld [vmem:[%s1 + $0x70] sm:$0xff]
    %v653 = vld [vmem:[%s1 + $0x78] sm:$0xff]
    %v654 = vld [vmem:[%s7] sm:$0xff]
    %v655 = vld [vmem:[%s7 + $0x8] sm:$0xff]
    %v656 = vld [vmem:[%s7 + $0x10] sm:$0xff]
    %v657 = vld [vmem:[%s7 + $0x18] sm:$0xff]
    %v658 = vld [vmem:[%s7 + $0x20] sm:$0xff]
    %v659 = vld [vmem:[%s7 + $0x28] sm:$0xff]
    %v660 = vld [vmem:[%s7 + $0x30] sm:$0xff]
    %v661 = vld [vmem:[%s7 + $0x38] sm:$0xff]
    %v662 = vld [vmem:[%s7 + $0x40] sm:$0xff]
    %v663 = vld [vmem:[%s7 + $0x48] sm:$0xff]
    %v664 = vld [vmem:[%s7 + $0x50] sm:$0xff]
    %v665 = vld [vmem:[%s7 + $0x58] sm:$0xff]
    %v666 = vld [vmem:[%s7 + $0x60] sm:$0xff]
    %v667 = vld [vmem:[%s7 + $0x68] sm:$0xff]
    %v668 = vld [vmem:[%s7 + $0x70] sm:$0xff]
    %v669 = vld [vmem:[%s7 + $0x78] sm:$0xff]
    %v670 = vld [vmem:[%s7 + $0x80] sm:$0xff]
    %v671 = vld [vmem:[%s7 + $0x88] sm:$0xff]
    %v672 = vld [vmem:[%s7 + $0x90] sm:$0xff]
    %v673 = vld [vmem:[%s7 + $0x98] sm:$0xff]
    %v674 = vld [vmem:[%s7 + $0xa0] sm:$0xff]
    %v675 = vld [vmem:[%s7 + $0xa8] sm:$0xff]
    %v676 = vld [vmem:[%s7 + $0xb0] sm:$0xff]
    %v677 = vld [vmem:[%s7 + $0xb8] sm:$0xff]
    %v678 = vld [vmem:[%s7 + $0xc0] sm:$0xff]
    %v679 = vld [vmem:[%s7 + $0xc8] sm:$0xff]
    %v680 = vld [vmem:[%s7 + $0xd0] sm:$0xff]
    %v681 = vld [vmem:[%s7 + $0xd8] sm:$0xff]
    %v682 = vld [vmem:[%s7 + $0xe0] sm:$0xff]
    %v683 = vld [vmem:[%s7 + $0xe8] sm:$0xff]
    %v684 = vld [vmem:[%s7 + $0xf0] sm:$0xff]
    %v685 = vld [vmem:[%s7 + $0xf8] sm:$0xff]
    %v686 = vld [vmem:[%s7 + $0x100] sm:$0xff]
    %v687 = vld [vmem:[%s7 + $0x108] sm:$0xff]
    %v688 = vld [vmem:[%s7 + $0x110] sm:$0xff]
    %v689 = vld [vmem:[%s7 + $0x118] sm:$0xff]
    %v690 = vld [vmem:[%s7 + $0x120] sm:$0xff]
    %v691 = vld [vmem:[%s7 + $0x128] sm:$0xff]
    %v692 = vld [vmem:[%s7 + $0x130] sm:$0xff]
    %v693 = vld [vmem:[%s7 + $0x138] sm:$0xff]
    %v694 = vld [vmem:[%s7 + $0x140] sm:$0xff]
    %v695 = vld [vmem:[%s7 + $0x148] sm:$0xff]
    %v696 = vld [vmem:[%s7 + $0x150] sm:$0xff]
    %v697 = vld [vmem:[%s7 + $0x158] sm:$0xff]
    %v698 = vld [vmem:[%s7 + $0x160] sm:$0xff]
    %v699 = vld [vmem:[%s7 + $0x168] sm:$0xff]
    %v700 = vld [vmem:[%s7 + $0x170] sm:$0xff]
    %v701 = vld [vmem:[%s7 + $0x178] sm:$0xff]
    %v702 = vld [vmem:[%s7 + $0x180] sm:$0xff]
    %v703 = vld [vmem:[%s7 + $0x188] sm:$0xff]
    %v704 = vld [vmem:[%s7 + $0x190] sm:$0xff]
    %v705 = vld [vmem:[%s7 + $0x198] sm:$0xff]
    %v706 = vld [vmem:[%s7 + $0x1a0] sm:$0xff]
    %v707 = vld [vmem:[%s7 + $0x1a8] sm:$0xff]
    %v708 = vld [vmem:[%s7 + $0x1b0] sm:$0xff]
    %v709 = vld [vmem:[%s7 + $0x1b8] sm:$0xff]
    %v710 = vld [vmem:[%s7 + $0x1c0] sm:$0xff]
    %v711 = vld [vmem:[%s7 + $0x1c8] sm:$0xff]
    %v712 = vld [vmem:[%s7 + $0x1d0] sm:$0xff]
    %v713 = vld [vmem:[%s7 + $0x1d8] sm:$0xff]
    %v714 = vld [vmem:[%s7 + $0x1e0] sm:$0xff]
    %v715 = vld [vmem:[%s7 + $0x1e8] sm:$0xff]
    %v716 = vld [vmem:[%s7 + $0x1f0] sm:$0xff]
    %v717 = vld [vmem:[%s7 + $0x1f8] sm:$0xff]
    %718 = vmatprep.subr.mxu0 0.0
    %719 = vmatpush1.msra.mxu0 %v654
    %720 = vmatprep.subr.mxu0 0.0
    %721 = vmatpush1.msra.mxu0 %v655
    %722 = vmatprep.subr.mxu0 0.0
    %723 = vmatpush1.msra.mxu0 %v656
    %724 = vmatprep.subr.mxu0 0.0
    %725 = vmatpush1.msra.mxu0 %v657
    %726 = vmatprep.subr.mxu0 0.0
    %727 = vmatpush1.msra.mxu0 %v658
    %728 = vmatprep.subr.mxu0 0.0
    %729 = vmatpush1.msra.mxu0 %v659
    %730 = vmatprep.subr.mxu0 0.0
    %731 = vmatpush1.msra.mxu0 %v660
    %732 = vmatprep.subr.mxu0 0.0
    %733 = vmatpush1.msra.mxu0 %v661
    %734 = vmatprep.subr.mxu0 0.0
    %735 = vmatpush1.msra.mxu0 %v662
    %736 = vmatprep.subr.mxu0 0.0
    %737 = vmatpush1.msra.mxu0 %v663
    %738 = vmatprep.subr.mxu0 0.0
    %739 = vmatpush1.msra.mxu0 %v664
    %740 = vmatprep.subr.mxu0 0.0
    %741 = vmatpush1.msra.mxu0 %v665
    %742 = vmatprep.subr.mxu0 0.0
    %743 = vmatpush1.msra.mxu0 %v666
    %744 = vmatprep.subr.mxu0 0.0
    %745 = vmatpush1.msra.mxu0 %v667
    %746 = vmatprep.subr.mxu0 0.0
    %747 = vmatpush1.msra.mxu0 %v668
    %748 = vmatprep.subr.mxu0 0.0
    %749 = vmatpush1.msra.mxu0 %v669
    %750 = vmatprep.subr.mxu0 0.0
    %751 = vmatpush1.msra.mxu0 %v670
    %752 = vmatprep.subr.mxu0 0.0
    %753 = vmatpush1.msra.mxu0 %v671
    %754 = vmatprep.subr.mxu0 0.0
    %755 = vmatpush1.msra.mxu0 %v672
    %756 = vmatprep.subr.mxu0 0.0
    %757 = vmatpush1.msra.mxu0 %v673
    %758 = vmatprep.subr.mxu0 0.0
    %759 = vmatpush1.msra.mxu0 %v674
    %760 = vmatprep.subr.mxu0 0.0
    %761 = vmatpush1.msra.mxu0 %v675
    %762 = vmatprep.subr.mxu0 0.0
    %763 = vmatpush1.msra.mxu0 %v676
    %764 = vmatprep.subr.mxu0 0.0
    %765 = vmatpush1.msra.mxu0 %v677
    %766 = vmatprep.subr.mxu0 0.0
    %767 = vmatpush1.msra.mxu0 %v678
    %768 = vmatprep.subr.mxu0 0.0
    %769 = vmatpush1.msra.mxu0 %v679
    %770 = vmatprep.subr.mxu0 0.0
    %771 = vmatpush1.msra.mxu0 %v680
    %772 = vmatprep.subr.mxu0 0.0
    %773 = vmatpush1.msra.mxu0 %v681
    %774 = vmatprep.subr.mxu0 0.0
    %775 = vmatpush1.msra.mxu0 %v682
    %776 = vmatprep.subr.mxu0 0.0
    %777 = vmatpush1.msra.mxu0 %v683
    %778 = vmatprep.subr.mxu0 0.0
    %779 = vmatpush1.msra.mxu0 %v684
    %780 = vmatprep.subr.mxu0 0.0
    %781 = vmatpush1.msra.mxu0 %v685
    %782 = vmatprep.mubr.f32.mxu0 %v639
    %783 = vmatmul.mubr.f32.gmra.mrb[0].mxu0 %v638
    %v784 = vpop.f32.mrb[0].mxu0
    %v785 = vadd.f32 0.0, %v784
    %v786 = vpop.f32.mrb[0].mxu0
    %787 = vmatprep.mubr.f32.mxu0 %v643
    %788 = vmatmul.mubr.f32.gmra.mrb[0].mxu0 %v642
    %v789 = vpop.f32.mrb[0].mxu0
    %v790 = vadd.f32 0.0, %v789
    %v791 = vpop.f32.mrb[0].mxu0
    %792 = vmatprep.mubr.f32.mxu0 %v647
    %793 = vmatmul.mubr.f32.gmra.mrb[0].mxu0 %v646
    %v794 = vpop.f32.mrb[0].mxu0
    %v795 = vadd.f32 0.0, %v794
    %v796 = vpop.f32.mrb[0].mxu0
    %797 = vmatprep.mubr.f32.mxu0 %v651
    %798 = vmatmul.mubr.f32.gmra.mrb[0].mxu0 %v650
    %v799 = vpop.f32.mrb[0].mxu0
    %v800 = vadd.f32 0.0, %v799
    %v801 = vpop.f32.mrb[0].mxu0
    %802 = vdwg.mxu0
    %803 = vmatprep.subr.mxu0 0.0
    %804 = vmatpush1.msra.mxu0 %v686
    %805 = vmatprep.subr.mxu0 0.0
    %806 = vmatpush1.msra.mxu0 %v687
    %807 = vmatprep.subr.mxu0 0.0
    %808 = vmatpush1.msra.mxu0 %v688
    %809 = vmatprep.subr.mxu0 0.0
    %810 = vmatpush1.msra.mxu0 %v689
    %811 = vmatprep.subr.mxu0 0.0
    %812 = vmatpush1.msra.mxu0 %v690
    %813 = vmatprep.subr.mxu0 0.0
    %814 = vmatpush1.msra.mxu0 %v691
    %815 = vmatprep.subr.mxu0 0.0
    %816 = vmatpush1.msra.mxu0 %v692
    %817 = vmatprep.subr.mxu0 0.0
    %818 = vmatpush1.msra.mxu0 %v693
    %819 = vmatprep.subr.mxu0 0.0
    %820 = vmatpush1.msra.mxu0 %v694
    %821 = vmatprep.subr.mxu0 0.0
    %822 = vmatpush1.msra.mxu0 %v695
    %823 = vmatprep.subr.mxu0 0.0
    %824 = vmatpush1.msra.mxu0 %v696
    %825 = vmatprep.subr.mxu0 0.0
    %826 = vmatpush1.msra.mxu0 %v697
    %827 = vmatprep.subr.mxu0 0.0
    %828 = vmatpush1.msra.mxu0 %v698
    %829 = vmatprep.subr.mxu0 0.0
    %830 = vmatpush1.msra.mxu0 %v699
    %831 = vmatprep.subr.mxu0 0.0
    %832 = vmatpush1.msra.mxu0 %v700
    %833 = vmatprep.subr.mxu0 0.0
    %834 = vmatpush1.msra.mxu0 %v701
    %835 = vmatprep.subr.mxu0 0.0
    %836 = vmatpush1.msra.mxu0 %v702
    %837 = vmatprep.subr.mxu0 0.0
    %838 = vmatpush1.msra.mxu0 %v703
    %839 = vmatprep.subr.mxu0 0.0
    %840 = vmatpush1.msra.mxu0 %v704
    %841 = vmatprep.subr.mxu0 0.0
    %842 = vmatpush1.msra.mxu0 %v705
    %843 = vmatprep.subr.mxu0 0.0
    %844 = vmatpush1.msra.mxu0 %v706
    %845 = vmatprep.subr.mxu0 0.0
    %846 = vmatpush1.msra.mxu0 %v707
    %847 = vmatprep.subr.mxu0 0.0
    %848 = vmatpush1.msra.mxu0 %v708
    %849 = vmatprep.subr.mxu0 0.0
    %850 = vmatpush1.msra.mxu0 %v709
    %851 = vmatprep.subr.mxu0 0.0
    %852 = vmatpush1.msra.mxu0 %v710
    %853 = vmatprep.subr.mxu0 0.0
    %854 = vmatpush1.msra.mxu0 %v711
    %855 = vmatprep.subr.mxu0 0.0
    %856 = vmatpush1.msra.mxu0 %v712
    %857 = vmatprep.subr.mxu0 0.0
    %858 = vmatpush1.msra.mxu0 %v713
    %859 = vmatprep.subr.mxu0 0.0
    %860 = vmatpush1.msra.mxu0 %v714
    %861 = vmatprep.subr.mxu0 0.0
    %862 = vmatpush1.msra.mxu0 %v715
    %863 = vmatprep.subr.mxu0 0.0
    %864 = vmatpush1.msra.mxu0 %v716
    %865 = vmatprep.subr.mxu0 0.0
    %866 = vmatpush1.msra.mxu0 %v717
    %867 = vmatprep.mubr.f32.mxu0 %v641
    %868 = vmatmul.mubr.f32.gmra.mrb[0].mxu0 %v640
    %v869 = vpop.f32.mrb[0].mxu0
    %v870 = vadd.f32 %v785, %v869
    %v871 = vpop.f32.mrb[0].mxu0
    %872 = vmatprep.mubr.f32.mxu0 %v645
    %873 = vmatmul.mubr.f32.gmra.mrb[0].mxu0 %v644
    %v874 = vpop.f32.mrb[0].mxu0
    %v875 = vadd.f32 %v790, %v874
    %v876 = vpop.f32.mrb[0].mxu0
    %877 = vmatprep.mubr.f32.mxu0 %v649
    %878 = vmatmul.mubr.f32.gmra.mrb[0].mxu0 %v648
    %v879 = vpop.f32.mrb[0].mxu0
    %v880 = vadd.f32 %v795, %v879
    %v881 = vpop.f32.mrb[0].mxu0
    %882 = vmatprep.mubr.f32.mxu0 %v653
    %883 = vmatmul.mubr.f32.gmra.mrb[0].mxu0 %v652
    %v884 = vpop.f32.mrb[0].mxu0
    %v885 = vadd.f32 %v800, %v884
    %v886 = vpop.f32.mrb[0].mxu0
    %887 = vdwg.mxu0
    %v888 = vmax.f32 %v870, 0.0
    %v889 = vmax.f32 %v875, 0.0
    %v890 = vmax.f32 %v880, 0.0
    %v891 = vmax.f32 %v885, 0.0
    %v892 = vld [vmem:[%s9] sm:$0x1]
    %v893 = vld [vmem:[%s11] sm:$0x1]
    %vm894 = vcmask 130048
    %v895 = vsel %vm894, %v888, 0.0
    %v896 = vsel %vm894, %v889, 0.0
    %v897 = vadd.f32 %v895, %v896
    %v898 = vsel %vm894, %v890, 0.0
    %v899 = vadd.f32 %v897, %v898
    %v900 = vsel %vm894, %v891, 0.0
    %v901 = vadd.f32 %v899, %v900
    %v902 = vrot.slane %v901, 4
    %v903 = vadd.f32 %v901, %v902
    %v904 = vrot.slane %v903, 2
    %v905 = vadd.f32 %v903, %v904
    %v906 = vrot.slane %v905, 1
    %v907 = vadd.f32 %v905, %v906
    %v908 = vrcp.pop 32.0
    %v909 = vmul.f32 %v907, %v908
    %v910 = vsub.f32 %v888, %v909
    %v911 = vsub.f32 %v889, %v909
    %v912 = vsub.f32 %v890, %v909
    %v913 = vsub.f32 %v891, %v909
    %v914 = vmul.f32 %v910, %v910
    %v915 = vmul.f32 %v911, %v911
    %v916 = vmul.f32 %v912, %v912
    %v917 = vmul.f32 %v913, %v913
    %v918 = vsel %vm894, %v914, 0.0
    %v919 = vsel %vm894, %v915, 0.0
    %v920 = vadd.f32 %v918, %v919
    %v921 = vsel %vm894, %v916, 0.0
    %v922 = vadd.f32 %v920, %v921
    %v923 = vsel %vm894, %v917, 0.0
    %v924 = vadd.f32 %v922, %v923
    %v925 = vrot.slane %v924, 4
    %v926 = vadd.f32 %v924, %v925
    %v927 = vrot.slane %v926, 2
    %v928 = vadd.f32 %v926, %v927
    %v929 = vrot.slane %v928, 1
    %v930 = vadd.f32 %v928, %v929
    %v931 = vmul.f32 %v930, %v908
    %v932 = vadd.f32 %v931, 1e-05
    %v933 = vrsqrt.pop %v932
    %v934 = vmul.f32 %v910, %v933
    %v935 = vmul.f32 %v911, %v933
    %v936 = vmul.f32 %v912, %v933
    %v937 = vmul.f32 %v913, %v933
    %v939 = vlaneseq
    %v940 = vshrl.u32 %v939, 7
    %v941 = vsub.s32 0, %v940
    %v942 = vrot.slane %v892, %v941
    %v944 = vmul.f32 %v934, %v942
    %v945 = vmul.f32 %v935, %v942
    %v946 = vmul.f32 %v936, %v942
    %v947 = vmul.f32 %v937, %v942
    %v949 = vlaneseq
    %v950 = vshrl.u32 %v949, 7
    %v951 = vsub.s32 0, %v950
    %v952 = vrot.slane %v893, %v951
    %v954 = vadd.f32 %v944, %v952
    %v955 = vadd.f32 %v945, %v952
    %v956 = vadd.f32 %v946, %v952
    %v957 = vadd.f32 %v947, %v952
    %v958 = vld [vmem:[%s3] sm:$0xff]
    %v959 = vld [vmem:[%s3 + $0x8] sm:$0xff]
    %v960 = vld [vmem:[%s3 + $0x10] sm:$0xff]
    %v961 = vld [vmem:[%s3 + $0x18] sm:$0xff]
    %vm962 = vcmask 261120
    %v964 = vsel %vm962, %v634, 0
    %v967 = vsel %vm962, %v635, 0
    %v970 = vsel %vm962, %v636, 0
    %v973 = vsel %vm962, %v637, 0
    %975 = vmatprep.subr.mxu0 0.0
    %976 = vmatpush1.msra.mxu0 %v954
    %977 = vmatprep.subr.mxu0 0.0
    %978 = vmatpush1.msra.mxu0 %v955
    %979 = vmatprep.subr.mxu0 0.0
    %980 = vmatpush1.msra.mxu0 %v956
    %981 = vmatprep.subr.mxu0 0.0
    %982 = vmatpush1.msra.mxu0 %v957
    %983 = vmatprep.subr.mxu0 0.0
    %984 = vmatpush1.msra.mxu0 0.0
    %985 = vmatprep.subr.mxu0 0.0
    %986 = vmatpush1.msra.mxu0 0.0
    %987 = vmatprep.subr.mxu0 0.0
    %988 = vmatpush1.msra.mxu0 0.0
    %989 = vmatprep.subr.mxu0 0.0
    %990 = vmatpush1.msra.mxu0 0.0
    %991 = vmatprep.subr.mxu0 0.0
    %992 = vmatpush1.msra.mxu0 0.0
    %993 = vmatprep.subr.mxu0 0.0
    %994 = vmatpush1.msra.mxu0 0.0
    %995 = vmatprep.subr.mxu0 0.0
    %996 = vmatpush1.msra.mxu0 0.0
    %997 = vmatprep.subr.mxu0 0.0
    %998 = vmatpush1.msra.mxu0 0.0
    %999 = vmatprep.subr.mxu0 0.0
    %1000 = vmatpush1.msra.mxu0 0.0
    %1001 = vmatprep.subr.mxu0 0.0
    %1002 = vmatpush1.msra.mxu0 0.0
    %1003 = vmatprep.subr.mxu0 0.0
    %1004 = vmatpush1.msra.mxu0 0.0
    %1005 = vmatprep.subr.mxu0 0.0
    %1006 = vmatpush1.msra.mxu0 0.0
    %1007 = vmatprep.subr.mxu0 0.0
    %1008 = vmatpush1.msra.mxu0 0.0
    %1009 = vmatprep.subr.mxu0 0.0
    %1010 = vmatpush1.msra.mxu0 0.0
    %1011 = vmatprep.subr.mxu0 0.0
    %1012 = vmatpush1.msra.mxu0 0.0
    %1013 = vmatprep.subr.mxu0 0.0
    %1014 = vmatpush1.msra.mxu0 0.0
    %1015 = vmatprep.subr.mxu0 0.0
    %1016 = vmatpush1.msra.mxu0 0.0
    %1017 = vmatprep.subr.mxu0 0.0
    %1018 = vmatpush1.msra.mxu0 0.0
    %1019 = vmatprep.subr.mxu0 0.0
    %1020 = vmatpush1.msra.mxu0 0.0
    %1021 = vmatprep.subr.mxu0 0.0
    %1022 = vmatpush1.msra.mxu0 0.0
    %1023 = vmatprep.subr.mxu0 0.0
    %1024 = vmatpush1.msra.mxu0 0.0
    %1025 = vmatprep.subr.mxu0 0.0
    %1026 = vmatpush1.msra.mxu0 0.0
    %1027 = vmatprep.subr.mxu0 0.0
    %1028 = vmatpush1.msra.mxu0 0.0
    %1029 = vmatprep.subr.mxu0 0.0
    %1030 = vmatpush1.msra.mxu0 0.0
    %1031 = vmatprep.subr.mxu0 0.0
    %1032 = vmatpush1.msra.mxu0 0.0
    %1033 = vmatprep.subr.mxu0 0.0
    %1034 = vmatpush1.msra.mxu0 0.0
    %1035 = vmatprep.subr.mxu0 0.0
    %1036 = vmatpush1.msra.mxu0 0.0
    %1037 = vmatprep.subr.mxu0 0.0
    %1038 = vmatpush1.msra.mxu0 0.0
    %1039 = vmatprep.mubr.f32.mxu0 0.0
    %1040 = vmatmul.mubr.f32.gmra.mrb[0].mxu0 %v964
    %v1041 = vpop.f32.mrb[0].mxu0
    %v1042 = vadd.f32 0.0, %v1041
    %v1043 = vpop.f32.mrb[0].mxu0
    %1044 = vmatprep.mubr.f32.mxu0 0.0
    %1045 = vmatmul.mubr.f32.gmra.mrb[0].mxu0 %v967
    %v1046 = vpop.f32.mrb[0].mxu0
    %v1047 = vadd.f32 0.0, %v1046
    %v1048 = vpop.f32.mrb[0].mxu0
    %1049 = vmatprep.mubr.f32.mxu0 0.0
    %1050 = vmatmul.mubr.f32.gmra.mrb[0].mxu0 %v970
    %v1051 = vpop.f32.mrb[0].mxu0
    %v1052 = vadd.f32 0.0, %v1051
    %v1053 = vpop.f32.mrb[0].mxu0
    %1054 = vmatprep.mubr.f32.mxu0 0.0
    %1055 = vmatmul.mubr.f32.gmra.mrb[0].mxu0 %v973
    %v1056 = vpop.f32.mrb[0].mxu0
    %v1057 = vadd.f32 0.0, %v1056
    %v1058 = vpop.f32.mrb[0].mxu0
    %1059 = vdwg.mxu0
    %1060 = vmatprep.subr.mxu0 0.0
    %1061 = vmatpush1.msra.mxu0 %v958
    %1062 = vmatprep.subr.mxu0 0.0
    %1063 = vmatpush1.msra.mxu0 %v959
    %1064 = vmatprep.subr.mxu0 0.0
    %1065 = vmatpush1.msra.mxu0 %v960
    %1066 = vmatprep.subr.mxu0 0.0
    %1067 = vmatpush1.msra.mxu0 %v961
    %1068 = vmatprep.subr.mxu0 0.0
    %1069 = vmatpush1.msra.mxu0 0.0
    %1070 = vmatprep.subr.mxu0 0.0
    %1071 = vmatpush1.msra.mxu0 0.0
    %1072 = vmatprep.subr.mxu0 0.0
    %1073 = vmatpush1.msra.mxu0 0.0
    %1074 = vmatprep.subr.mxu0 0.0
    %1075 = vmatpush1.msra.mxu0 0.0
    %1076 = vmatprep.subr.mxu0 0.0
    %1077 = vmatpush1.msra.mxu0 0.0
    %1078 = vmatprep.subr.mxu0 0.0
    %1079 = vmatpush1.msra.mxu0 0.0
    %1080 = vmatprep.subr.mxu0 0.0
    %1081 = vmatpush1.msra.mxu0 0.0
    %1082 = vmatprep.subr.mxu0 0.0
    %1083 = vmatpush1.msra.mxu0 0.0
    %1084 = vmatprep.subr.mxu0 0.0
    %1085 = vmatpush1.msra.mxu0 0.0
    %1086 = vmatprep.subr.mxu0 0.0
    %1087 = vmatpush1.msra.mxu0 0.0
    %1088 = vmatprep.subr.mxu0 0.0
    %1089 = vmatpush1.msra.mxu0 0.0
    %1090 = vmatprep.subr.mxu0 0.0
    %1091 = vmatpush1.msra.mxu0 0.0
    %1092 = vmatprep.subr.mxu0 0.0
    %1093 = vmatpush1.msra.mxu0 0.0
    %1094 = vmatprep.subr.mxu0 0.0
    %1095 = vmatpush1.msra.mxu0 0.0
    %1096 = vmatprep.subr.mxu0 0.0
    %1097 = vmatpush1.msra.mxu0 0.0
    %1098 = vmatprep.subr.mxu0 0.0
    %1099 = vmatpush1.msra.mxu0 0.0
    %1100 = vmatprep.subr.mxu0 0.0
    %1101 = vmatpush1.msra.mxu0 0.0
    %1102 = vmatprep.subr.mxu0 0.0
    %1103 = vmatpush1.msra.mxu0 0.0
    %1104 = vmatprep.subr.mxu0 0.0
    %1105 = vmatpush1.msra.mxu0 0.0
    %1106 = vmatprep.subr.mxu0 0.0
    %1107 = vmatpush1.msra.mxu0 0.0
    %1108 = vmatprep.subr.mxu0 0.0
    %1109 = vmatpush1.msra.mxu0 0.0
    %1110 = vmatprep.subr.mxu0 0.0
    %1111 = vmatpush1.msra.mxu0 0.0
    %1112 = vmatprep.subr.mxu0 0.0
    %1113 = vmatpush1.msra.mxu0 0.0
    %1114 = vmatprep.subr.mxu0 0.0
    %1115 = vmatpush1.msra.mxu0 0.0
    %1116 = vmatprep.subr.mxu0 0.0
    %1117 = vmatpush1.msra.mxu0 0.0
    %1118 = vmatprep.subr.mxu0 0.0
    %1119 = vmatpush1.msra.mxu0 0.0
    %1120 = vmatprep.subr.mxu0 0.0
    %1121 = vmatpush1.msra.mxu0 0.0
    %1122 = vmatprep.subr.mxu0 0.0
    %1123 = vmatpush1.msra.mxu0 0.0
    %1124 = vmatprep.mubr.f32.mxu0 0.0
    %1125 = vmatmul.mubr.f32.gmra.mrb[0].mxu0 %v964
    %v1126 = vpop.f32.mrb[0].mxu0
    %v1127 = vadd.f32 0.0, %v1126
    %v1128 = vpop.f32.mrb[0].mxu0
    %1129 = vmatprep.mubr.f32.mxu0 0.0
    %1130 = vmatmul.mubr.f32.gmra.mrb[0].mxu0 %v967
    %v1131 = vpop.f32.mrb[0].mxu0
    %v1132 = vadd.f32 0.0, %v1131
    %v1133 = vpop.f32.mrb[0].mxu0
    %1134 = vmatprep.mubr.f32.mxu0 0.0
    %1135 = vmatmul.mubr.f32.gmra.mrb[0].mxu0 %v970
    %v1136 = vpop.f32.mrb[0].mxu0
    %v1137 = vadd.f32 0.0, %v1136
    %v1138 = vpop.f32.mrb[0].mxu0
    %1139 = vmatprep.mubr.f32.mxu0 0.0
    %1140 = vmatmul.mubr.f32.gmra.mrb[0].mxu0 %v973
    %v1141 = vpop.f32.mrb[0].mxu0
    %v1142 = vadd.f32 0.0, %v1141
    %v1143 = vpop.f32.mrb[0].mxu0
    %1144 = vdwg.mxu0
    %v1145 = vld [vmem:[#allocation2] sm:$0xff]
    %v1146 = vld [vmem:[#allocation2 + $0x8] sm:$0xff]
    %v1147 = vld [vmem:[#allocation5] sm:$0xf]
    %vm1148 = vcmask 31744
    %v1150 = vsel %vm1148, %v1127, 0
    %v1153 = vsel %vm1148, %v1132, 0
    %v1156 = vsel %vm1148, %v1137, 0
    %v1159 = vsel %vm1148, %v1142, 0
    %vm1161 = vcmask 1043456
    %v1163 = vsel %vm1161, %v1147, 0
    %1165 = vmatprep.subr.mxu0 0.0
    %1166 = vmatpush1.msra.mxu0 %v1163
    %1167 = vmatprep.subr.mxu0 0.0
    %1168 = vmatpush1.msra.mxu0 0.0
    %1169 = vmatprep.subr.mxu0 0.0
    %1170 = vmatpush1.msra.mxu0 0.0
    %1171 = vmatprep.subr.mxu0 0.0
    %1172 = vmatpush1.msra.mxu0 0.0
    %1173 = vmatprep.subr.mxu0 0.0
    %1174 = vmatpush1.msra.mxu0 0.0
    %1175 = vmatprep.subr.mxu0 0.0
    %1176 = vmatpush1.msra.mxu0 0.0
    %1177 = vmatprep.subr.mxu0 0.0
    %1178 = vmatpush1.msra.mxu0 0.0
    %1179 = vmatprep.subr.mxu0 0.0
    %1180 = vmatpush1.msra.mxu0 0.0
    %1181 = vmatprep.subr.mxu0 0.0
    %1182 = vmatpush1.msra.mxu0 0.0
    %1183 = vmatprep.subr.mxu0 0.0
    %1184 = vmatpush1.msra.mxu0 0.0
    %1185 = vmatprep.subr.mxu0 0.0
    %1186 = vmatpush1.msra.mxu0 0.0
    %1187 = vmatprep.subr.mxu0 0.0
    %1188 = vmatpush1.msra.mxu0 0.0
    %1189 = vmatprep.subr.mxu0 0.0
    %1190 = vmatpush1.msra.mxu0 0.0
    %1191 = vmatprep.subr.mxu0 0.0
    %1192 = vmatpush1.msra.mxu0 0.0
    %1193 = vmatprep.subr.mxu0 0.0
    %1194 = vmatpush1.msra.mxu0 0.0
    %1195 = vmatprep.subr.mxu0 0.0
    %1196 = vmatpush1.msra.mxu0 0.0
    %1197 = vmatprep.subr.mxu0 0.0
    %1198 = vmatpush1.msra.mxu0 0.0
    %1199 = vmatprep.subr.mxu0 0.0
    %1200 = vmatpush1.msra.mxu0 0.0
    %1201 = vmatprep.subr.mxu0 0.0
    %1202 = vmatpush1.msra.mxu0 0.0
    %1203 = vmatprep.subr.mxu0 0.0
    %1204 = vmatpush1.msra.mxu0 0.0
    %1205 = vmatprep.subr.mxu0 0.0
    %1206 = vmatpush1.msra.mxu0 0.0
    %1207 = vmatprep.subr.mxu0 0.0
    %1208 = vmatpush1.msra.mxu0 0.0
    %1209 = vmatprep.subr.mxu0 0.0
    %1210 = vmatpush1.msra.mxu0 0.0
    %1211 = vmatprep.subr.mxu0 0.0
    %1212 = vmatpush1.msra.mxu0 0.0
    %1213 = vmatprep.subr.mxu0 0.0
    %1214 = vmatpush1.msra.mxu0 0.0
    %1215 = vmatprep.subr.mxu0 0.0
    %1216 = vmatpush1.msra.mxu0 0.0
    %1217 = vmatprep.subr.mxu0 0.0
    %1218 = vmatpush1.msra.mxu0 0.0
    %1219 = vmatprep.subr.mxu0 0.0
    %1220 = vmatpush1.msra.mxu0 0.0
    %1221 = vmatprep.subr.mxu0 0.0
    %1222 = vmatpush1.msra.mxu0 0.0
    %1223 = vmatprep.subr.mxu0 0.0
    %1224 = vmatpush1.msra.mxu0 0.0
    %1225 = vmatprep.subr.mxu0 0.0
    %1226 = vmatpush1.msra.mxu0 0.0
    %1227 = vmatprep.subr.mxu0 0.0
    %1228 = vmatpush1.msra.mxu0 0.0
    %1229 = vmatprep.mubr.f32.mxu0 0.0
    %1230 = vmatmul.mubr.f32.gmra.mrb[0].mxu0 %v1150
    %v1231 = vpop.f32.mrb[0].mxu0
    %v1232 = vadd.f32 0.0, %v1231
    %v1233 = vpop.f32.mrb[0].mxu0
    %1234 = vmatprep.mubr.f32.mxu0 0.0
    %1235 = vmatmul.mubr.f32.gmra.mrb[0].mxu0 %v1153
    %v1236 = vpop.f32.mrb[0].mxu0
    %v1237 = vadd.f32 0.0, %v1236
    %v1238 = vpop.f32.mrb[0].mxu0
    %1239 = vmatprep.mubr.f32.mxu0 0.0
    %1240 = vmatmul.mubr.f32.gmra.mrb[0].mxu0 %v1156
    %v1241 = vpop.f32.mrb[0].mxu0
    %v1242 = vadd.f32 0.0, %v1241
    %v1243 = vpop.f32.mrb[0].mxu0
    %1244 = vmatprep.mubr.f32.mxu0 0.0
    %1245 = vmatmul.mubr.f32.gmra.mrb[0].mxu0 %v1159
    %v1246 = vpop.f32.mrb[0].mxu0
    %v1247 = vadd.f32 0.0, %v1246
    %v1248 = vpop.f32.mrb[0].mxu0
    %1249 = vdwg.mxu0
    %v1251 = vsel %vm894, %v1042, 0
    %v1254 = vsel %vm894, %v1047, 0
    %v1257 = vsel %vm894, %v1052, 0
    %v1260 = vsel %vm894, %v1057, 0
    %1262 = vmatprep.subr.mxu0 0.0
    %1263 = vmatpush1.msra.mxu0 %v1145
    %1264 = vmatprep.subr.mxu0 0.0
    %1265 = vmatpush1.msra.mxu0 %v1146
    %1266 = vmatprep.subr.mxu0 0.0
    %1267 = vmatpush1.msra.mxu0 0.0
    %1268 = vmatprep.subr.mxu0 0.0
    %1269 = vmatpush1.msra.mxu0 0.0
    %1270 = vmatprep.subr.mxu0 0.0
    %1271 = vmatpush1.msra.mxu0 0.0
    %1272 = vmatprep.subr.mxu0 0.0
    %1273 = vmatpush1.msra.mxu0 0.0
    %1274 = vmatprep.subr.mxu0 0.0
    %1275 = vmatpush1.msra.mxu0 0.0
    %1276 = vmatprep.subr.mxu0 0.0
    %1277 = vmatpush1.msra.mxu0 0.0
    %1278 = vmatprep.subr.mxu0 0.0
    %1279 = vmatpush1.msra.mxu0 0.0
    %1280 = vmatprep.subr.mxu0 0.0
    %1281 = vmatpush1.msra.mxu0 0.0
    %1282 = vmatprep.subr.mxu0 0.0
    %1283 = vmatpush1.msra.mxu0 0.0
    %1284 = vmatprep.subr.mxu0 0.0
    %1285 = vmatpush1.msra.mxu0 0.0
    %1286 = vmatprep.subr.mxu0 0.0
    %1287 = vmatpush1.msra.mxu0 0.0
    %1288 = vmatprep.subr.mxu0 0.0
    %1289 = vmatpush1.msra.mxu0 0.0
    %1290 = vmatprep.subr.mxu0 0.0
    %1291 = vmatpush1.msra.mxu0 0.0
    %1292 = vmatprep.subr.mxu0 0.0
    %1293 = vmatpush1.msra.mxu0 0.0
    %1294 = vmatprep.subr.mxu0 0.0
    %1295 = vmatpush1.msra.mxu0 0.0
    %1296 = vmatprep.subr.mxu0 0.0
    %1297 = vmatpush1.msra.mxu0 0.0
    %1298 = vmatprep.subr.mxu0 0.0
    %1299 = vmatpush1.msra.mxu0 0.0
    %1300 = vmatprep.subr.mxu0 0.0
    %1301 = vmatpush1.msra.mxu0 0.0
    %1302 = vmatprep.subr.mxu0 0.0
    %1303 = vmatpush1.msra.mxu0 0.0
    %1304 = vmatprep.subr.mxu0 0.0
    %1305 = vmatpush1.msra.mxu0 0.0
    %1306 = vmatprep.subr.mxu0 0.0
    %1307 = vmatpush1.msra.mxu0 0.0
    %1308 = vmatprep.subr.mxu0 0.0
    %1309 = vmatpush1.msra.mxu0 0.0
    %1310 = vmatprep.subr.mxu0 0.0
    %1311 = vmatpush1.msra.mxu0 0.0
    %1312 = vmatprep.subr.mxu0 0.0
    %1313 = vmatpush1.msra.mxu0 0.0
    %1314 = vmatprep.subr.mxu0 0.0
    %1315 = vmatpush1.msra.mxu0 0.0
    %1316 = vmatprep.subr.mxu0 0.0
    %1317 = vmatpush1.msra.mxu0 0.0
    %1318 = vmatprep.subr.mxu0 0.0
    %1319 = vmatpush1.msra.mxu0 0.0
    %1320 = vmatprep.subr.mxu0 0.0
    %1321 = vmatpush1.msra.mxu0 0.0
    %1322 = vmatprep.subr.mxu0 0.0
    %1323 = vmatpush1.msra.mxu0 0.0
    %1324 = vmatprep.subr.mxu0 0.0
    %1325 = vmatpush1.msra.mxu0 0.0
    %1326 = vmatprep.mubr.f32.mxu0 0.0
    %1327 = vmatmul.mubr.f32.gmra.mrb[0].mxu0 %v1251
    %v1328 = vpop.f32.mrb[0].mxu0
    %v1329 = vadd.f32 %v1232, %v1328
    %v1330 = vpop.f32.mrb[0].mxu0
    %1331 = vmatprep.mubr.f32.mxu0 0.0
    %1332 = vmatmul.mubr.f32.gmra.mrb[0].mxu0 %v1254
    %v1333 = vpop.f32.mrb[0].mxu0
    %v1334 = vadd.f32 %v1237, %v1333
    %v1335 = vpop.f32.mrb[0].mxu0
    %1336 = vmatprep.mubr.f32.mxu0 0.0
    %1337 = vmatmul.mubr.f32.gmra.mrb[0].mxu0 %v1257
    %v1338 = vpop.f32.mrb[0].mxu0
    %v1339 = vadd.f32 %v1242, %v1338
    %v1340 = vpop.f32.mrb[0].mxu0
    %1341 = vmatprep.mubr.f32.mxu0 0.0
    %1342 = vmatmul.mubr.f32.gmra.mrb[0].mxu0 %v1260
    %v1343 = vpop.f32.mrb[0].mxu0
    %v1344 = vadd.f32 %v1247, %v1343
    %v1345 = vpop.f32.mrb[0].mxu0
    %1346 = vdwg.mxu0
    %v1347 = vld [vmem:[#allocation7] sm:$0x1]
    %v1349 = vlaneseq
    %v1350 = vshrl.u32 %v1349, 7
    %v1351 = vsub.s32 0, %v1350
    %v1352 = vrot.slane %v1347, %v1351
    %v1354 = vadd.f32 %v1329, %v1352
    %v1355 = vadd.f32 %v1334, %v1352
    %v1356 = vadd.f32 %v1339, %v1352
    %v1357 = vadd.f32 %v1344, %v1352
    %v1358 = vld [vmem:[%s19] sm:$0x1]
    %v1359 = vld [vmem:[%s21] sm:$0x1]
    %v1360 = vsel %vm962, %v1354, 0.0
    %v1361 = vsel %vm962, %v1355, 0.0
    %v1362 = vadd.f32 %v1360, %v1361
    %v1363 = vsel %vm962, %v1356, 0.0
    %v1364 = vadd.f32 %v1362, %v1363
    %v1365 = vsel %vm962, %v1357, 0.0
    %v1366 = vadd.f32 %v1364, %v1365
    %v1367 = vrot.slane %v1366, 4
    %v1368 = vadd.f32 %v1366, %v1367
    %v1369 = vrot.slane %v1368, 2
    %v1370 = vadd.f32 %v1368, %v1369
    %v1371 = vrot.slane %v1370, 1
    %v1372 = vadd.f32 %v1370, %v1371
    %v1373 = vmul.f32 %v1372, %v908
    %v1374 = vsub.f32 %v1354, %v1373
    %v1375 = vsub.f32 %v1355, %v1373
    %v1376 = vsub.f32 %v1356, %v1373
    %v1377 = vsub.f32 %v1357, %v1373
    %v1378 = vmul.f32 %v1374, %v1374
    %v1379 = vmul.f32 %v1375, %v1375
    %v1380 = vmul.f32 %v1376, %v1376
    %v1381 = vmul.f32 %v1377, %v1377
    %v1382 = vsel %vm962, %v1378, 0.0
    %v1383 = vsel %vm962, %v1379, 0.0
    %v1384 = vadd.f32 %v1382, %v1383
    %v1385 = vsel %vm962, %v1380, 0.0
    %v1386 = vadd.f32 %v1384, %v1385
    %v1387 = vsel %vm962, %v1381, 0.0
    %v1388 = vadd.f32 %v1386, %v1387
    %v1389 = vrot.slane %v1388, 4
    %v1390 = vadd.f32 %v1388, %v1389
    %v1391 = vrot.slane %v1390, 2
    %v1392 = vadd.f32 %v1390, %v1391
    %v1393 = vrot.slane %v1392, 1
    %v1394 = vadd.f32 %v1392, %v1393
    %v1395 = vmul.f32 %v1394, %v908
    %v1396 = vadd.f32 %v1395, 1e-05
    %v1397 = vrsqrt.pop %v1396
    %v1398 = vmul.f32 %v1374, %v1397
    %v1399 = vmul.f32 %v1375, %v1397
    %v1400 = vmul.f32 %v1376, %v1397
    %v1401 = vmul.f32 %v1377, %v1397
    %v1403 = vlaneseq
    %v1404 = vshrl.u32 %v1403, 7
    %v1405 = vsub.s32 0, %v1404
    %v1406 = vrot.slane %v1358, %v1405
    %v1408 = vmul.f32 %v1398, %v1406
    %v1409 = vmul.f32 %v1399, %v1406
    %v1410 = vmul.f32 %v1400, %v1406
    %v1411 = vmul.f32 %v1401, %v1406
    %v1413 = vlaneseq
    %v1414 = vshrl.u32 %v1413, 7
    %v1415 = vsub.s32 0, %v1414
    %v1416 = vrot.slane %v1359, %v1415
    %v1418 = vadd.f32 %v1408, %v1416
    %v1419 = vadd.f32 %v1409, %v1416
    %v1420 = vadd.f32 %v1410, %v1416
    %v1421 = vadd.f32 %v1411, %v1416
    %v1422 = vmax.f32 %v1418, 0.0
    %v1423 = vmax.f32 %v1419, 0.0
    %v1424 = vmax.f32 %v1420, 0.0
    %v1425 = vmax.f32 %v1421, 0.0
    %1426 = vmatprep.subr.mxu0 0.0
    %1427 = vmatpush1.msra.mxu0 %v1422
    %1428 = vmatprep.subr.mxu0 0.0
    %1429 = vmatpush1.msra.mxu0 %v1423
    %1430 = vmatprep.subr.mxu0 0.0
    %1431 = vmatpush1.msra.mxu0 %v1424
    %1432 = vmatprep.subr.mxu0 0.0
    %1433 = vmatpush1.msra.mxu0 %v1425
    %1434 = vmatprep.subr.mxu0 0.0
    %1435 = vmatpush1.msra.mxu0 0.0
    %1436 = vmatprep.subr.mxu0 0.0
    %1437 = vmatpush1.msra.mxu0 0.0
    %1438 = vmatprep.subr.mxu0 0.0
    %1439 = vmatpush1.msra.mxu0 0.0
    %1440 = vmatprep.subr.mxu0 0.0
    %1441 = vmatpush1.msra.mxu0 0.0
    %1442 = vmatprep.subr.mxu0 0.0
    %1443 = vmatpush1.msra.mxu0 0.0
    %1444 = vmatprep.subr.mxu0 0.0
    %1445 = vmatpush1.msra.mxu0 0.0
    %1446 = vmatprep.subr.mxu0 0.0
    %1447 = vmatpush1.msra.mxu0 0.0
    %1448 = vmatprep.subr.mxu0 0.0
    %1449 = vmatpush1.msra.mxu0 0.0
    %1450 = vmatprep.subr.mxu0 0.0
    %1451 = vmatpush1.msra.mxu0 0.0
    %1452 = vmatprep.subr.mxu0 0.0
    %1453 = vmatpush1.msra.mxu0 0.0
    %1454 = vmatprep.subr.mxu0 0.0
    %1455 = vmatpush1.msra.mxu0 0.0
    %1456 = vmatprep.subr.mxu0 0.0
    %1457 = vmatpush1.msra.mxu0 0.0
    %1458 = vmatprep.subr.mxu0 0.0
    %1459 = vmatpush1.msra.mxu0 0.0
    %1460 = vmatprep.subr.mxu0 0.0
    %1461 = vmatpush1.msra.mxu0 0.0
    %1462 = vmatprep.subr.mxu0 0.0
    %1463 = vmatpush1.msra.mxu0 0.0
    %1464 = vmatprep.subr.mxu0 0.0
    %1465 = vmatpush1.msra.mxu0 0.0
    %1466 = vmatprep.subr.mxu0 0.0
    %1467 = vmatpush1.msra.mxu0 0.0
    %1468 = vmatprep.subr.mxu0 0.0
    %1469 = vmatpush1.msra.mxu0 0.0
    %1470 = vmatprep.subr.mxu0 0.0
    %1471 = vmatpush1.msra.mxu0 0.0
    %1472 = vmatprep.subr.mxu0 0.0
    %1473 = vmatpush1.msra.mxu0 0.0
    %1474 = vmatprep.subr.mxu0 0.0
    %1475 = vmatpush1.msra.mxu0 0.0
    %1476 = vmatprep.subr.mxu0 0.0
    %1477 = vmatpush1.msra.mxu0 0.0
    %1478 = vmatprep.subr.mxu0 0.0
    %1479 = vmatpush1.msra.mxu0 0.0
    %1480 = vmatprep.subr.mxu0 0.0
    %1481 = vmatpush1.msra.mxu0 0.0
    %1482 = vmatprep.subr.mxu0 0.0
    %1483 = vmatpush1.msra.mxu0 0.0
    %1484 = vmatprep.subr.mxu0 0.0
    %1485 = vmatpush1.msra.mxu0 0.0
    %1486 = vmatprep.subr.mxu0 0.0
    %1487 = vmatpush1.msra.mxu0 0.0
    %1488 = vmatprep.subr.mxu0 0.0
    %1489 = vmatpush1.msra.mxu0 0.0
    %1490 = vmatprep.mubr.f32.mxu0 0.0
    %1491 = vmatmul.mubr.f32.gmra.mrb[0].mxu0 %v964
    %v1492 = vpop.f32.mrb[0].mxu0
    %v1493 = vadd.f32 0.0, %v1492
    %v1494 = vpop.f32.mrb[0].mxu0
    %1495 = vmatprep.mubr.f32.mxu0 0.0
    %1496 = vmatmul.mubr.f32.gmra.mrb[0].mxu0 %v967
    %v1497 = vpop.f32.mrb[0].mxu0
    %v1498 = vadd.f32 0.0, %v1497
    %v1499 = vpop.f32.mrb[0].mxu0
    %1500 = vmatprep.mubr.f32.mxu0 0.0
    %1501 = vmatmul.mubr.f32.gmra.mrb[0].mxu0 %v970
    %v1502 = vpop.f32.mrb[0].mxu0
    %v1503 = vadd.f32 0.0, %v1502
    %v1504 = vpop.f32.mrb[0].mxu0
    %1505 = vmatprep.mubr.f32.mxu0 0.0
    %1506 = vmatmul.mubr.f32.gmra.mrb[0].mxu0 %v973
    %v1507 = vpop.f32.mrb[0].mxu0
    %v1508 = vadd.f32 0.0, %v1507
    %v1509 = vpop.f32.mrb[0].mxu0
    %1510 = vdwg.mxu0
    %v1511 = vld [vmem:[#allocation8] sm:$0xff]
    %v1512 = vld [vmem:[#allocation8 + $0x8] sm:$0xff]
    %v1513 = vld [vmem:[#allocation8 + $0x10] sm:$0xff]
    %v1514 = vld [vmem:[#allocation8 + $0x18] sm:$0xff]
    %v1515 = vld [vmem:[#allocation10] sm:$0x1]
    %v1517 = vlaneseq
    %v1518 = vshrl.u32 %v1517, 7
    %v1519 = vsub.s32 0, %v1518
    %v1520 = vrot.slane %v1515, %v1519
    %v1523 = vsel %vm962, %v1493, 0
    %v1526 = vsel %vm962, %v1498, 0
    %v1529 = vsel %vm962, %v1503, 0
    %v1532 = vsel %vm962, %v1508, 0
    %1534 = vmatprep.subr.mxu0 0.0
    %1535 = vmatpush1.msra.mxu0 %v1511
    %1536 = vmatprep.subr.mxu0 0.0
    %1537 = vmatpush1.msra.mxu0 %v1512
    %1538 = vmatprep.subr.mxu0 0.0
    %1539 = vmatpush1.msra.mxu0 %v1513
    %1540 = vmatprep.subr.mxu0 0.0
    %1541 = vmatpush1.msra.mxu0 %v1514
    %1542 = vmatprep.subr.mxu0 0.0
    %1543 = vmatpush1.msra.mxu0 0.0
    %1544 = vmatprep.subr.mxu0 0.0
    %1545 = vmatpush1.msra.mxu0 0.0
    %1546 = vmatprep.subr.mxu0 0.0
    %1547 = vmatpush1.msra.mxu0 0.0
    %1548 = vmatprep.subr.mxu0 0.0
    %1549 = vmatpush1.msra.mxu0 0.0
    %1550 = vmatprep.subr.mxu0 0.0
    %1551 = vmatpush1.msra.mxu0 0.0
    %1552 = vmatprep.subr.mxu0 0.0
    %1553 = vmatpush1.msra.mxu0 0.0
    %1554 = vmatprep.subr.mxu0 0.0
    %1555 = vmatpush1.msra.mxu0 0.0
    %1556 = vmatprep.subr.mxu0 0.0
    %1557 = vmatpush1.msra.mxu0 0.0
    %1558 = vmatprep.subr.mxu0 0.0
    %1559 = vmatpush1.msra.mxu0 0.0
    %1560 = vmatprep.subr.mxu0 0.0
    %1561 = vmatpush1.msra.mxu0 0.0
    %1562 = vmatprep.subr.mxu0 0.0
    %1563 = vmatpush1.msra.mxu0 0.0
    %1564 = vmatprep.subr.mxu0 0.0
    %1565 = vmatpush1.msra.mxu0 0.0
    %1566 = vmatprep.subr.mxu0 0.0
    %1567 = vmatpush1.msra.mxu0 0.0
    %1568 = vmatprep.subr.mxu0 0.0
    %1569 = vmatpush1.msra.mxu0 0.0
    %1570 = vmatprep.subr.mxu0 0.0
    %1571 = vmatpush1.msra.mxu0 0.0
    %1572 = vmatprep.subr.mxu0 0.0
    %1573 = vmatpush1.msra.mxu0 0.0
    %1574 = vmatprep.subr.mxu0 0.0
    %1575 = vmatpush1.msra.mxu0 0.0
    %1576 = vmatprep.subr.mxu0 0.0
    %1577 = vmatpush1.msra.mxu0 0.0
    %1578 = vmatprep.subr.mxu0 0.0
    %1579 = vmatpush1.msra.mxu0 0.0
    %1580 = vmatprep.subr.mxu0 0.0
    %1581 = vmatpush1.msra.mxu0 0.0
    %1582 = vmatprep.subr.mxu0 0.0
    %1583 = vmatpush1.msra.mxu0 0.0
    %1584 = vmatprep.subr.mxu0 0.0
    %1585 = vmatpush1.msra.mxu0 0.0
    %1586 = vmatprep.subr.mxu0 0.0
    %1587 = vmatpush1.msra.mxu0 0.0
    %1588 = vmatprep.subr.mxu0 0.0
    %1589 = vmatpush1.msra.mxu0 0.0
    %1590 = vmatprep.subr.mxu0 0.0
    %1591 = vmatpush1.msra.mxu0 0.0
    %1592 = vmatprep.subr.mxu0 0.0
    %1593 = vmatpush1.msra.mxu0 0.0
    %1594 = vmatprep.subr.mxu0 0.0
    %1595 = vmatpush1.msra.mxu0 0.0
    %1596 = vmatprep.subr.mxu0 0.0
    %1597 = vmatpush1.msra.mxu0 0.0
    %1598 = vmatprep.mubr.f32.mxu0 0.0
    %1599 = vmatmul.mubr.f32.gmra.mrb[0].mxu0 %v1523
    %v1600 = vpop.f32.mrb[0].mxu0
    %v1601 = vadd.f32 %v1520, %v1600
    %v1602 = vpop.f32.mrb[0].mxu0
    %1603 = vmatprep.mubr.f32.mxu0 0.0
    %1604 = vmatmul.mubr.f32.gmra.mrb[0].mxu0 %v1526
    %v1605 = vpop.f32.mrb[0].mxu0
    %v1606 = vadd.f32 %v1520, %v1605
    %v1607 = vpop.f32.mrb[0].mxu0
    %1608 = vmatprep.mubr.f32.mxu0 0.0
    %1609 = vmatmul.mubr.f32.gmra.mrb[0].mxu0 %v1529
    %v1610 = vpop.f32.mrb[0].mxu0
    %v1611 = vadd.f32 %v1520, %v1610
    %v1612 = vpop.f32.mrb[0].mxu0
    %1613 = vmatprep.mubr.f32.mxu0 0.0
    %1614 = vmatmul.mubr.f32.gmra.mrb[0].mxu0 %v1532
    %v1615 = vpop.f32.mrb[0].mxu0
    %v1616 = vadd.f32 %v1520, %v1615
    %v1617 = vpop.f32.mrb[0].mxu0
    %1618 = vdwg.mxu0
    %v1619 = vld [vmem:[%s27] sm:$0x1]
    %v1620 = vld [vmem:[%s29] sm:$0x1]
    %v1621 = vsel %vm962, %v1601, 0.0
    %v1622 = vsel %vm962, %v1606, 0.0
    %v1623 = vadd.f32 %v1621, %v1622
    %v1624 = vsel %vm962, %v1611, 0.0
    %v1625 = vadd.f32 %v1623, %v1624
    %v1626 = vsel %vm962, %v1616, 0.0
    %v1627 = vadd.f32 %v1625, %v1626
    %v1628 = vrot.slane %v1627, 4
    %v1629 = vadd.f32 %v1627, %v1628
    %v1630 = vrot.slane %v1629, 2
    %v1631 = vadd.f32 %v1629, %v1630
    %v1632 = vrot.slane %v1631, 1
    %v1633 = vadd.f32 %v1631, %v1632
    %v1634 = vmul.f32 %v1633, %v908
    %v1635 = vsub.f32 %v1601, %v1634
    %v1636 = vsub.f32 %v1606, %v1634
    %v1637 = vsub.f32 %v1611, %v1634
    %v1638 = vsub.f32 %v1616, %v1634
    %v1639 = vmul.f32 %v1635, %v1635
    %v1640 = vmul.f32 %v1636, %v1636
    %v1641 = vmul.f32 %v1637, %v1637
    %v1642 = vmul.f32 %v1638, %v1638
    %v1643 = vsel %vm962, %v1639, 0.0
    %v1644 = vsel %vm962, %v1640, 0.0
    %v1645 = vadd.f32 %v1643, %v1644
    %v1646 = vsel %vm962, %v1641, 0.0
    %v1647 = vadd.f32 %v1645, %v1646
    %v1648 = vsel %vm962, %v1642, 0.0
    %v1649 = vadd.f32 %v1647, %v1648
    %v1650 = vrot.slane %v1649, 4
    %v1651 = vadd.f32 %v1649, %v1650
    %v1652 = vrot.slane %v1651, 2
    %v1653 = vadd.f32 %v1651, %v1652
    %v1654 = vrot.slane %v1653, 1
    %v1655 = vadd.f32 %v1653, %v1654
    %v1656 = vmul.f32 %v1655, %v908
    %v1657 = vadd.f32 %v1656, 1e-05
    %v1658 = vrsqrt.pop %v1657
    %v1659 = vmul.f32 %v1635, %v1658
    %v1660 = vmul.f32 %v1636, %v1658
    %v1661 = vmul.f32 %v1637, %v1658
    %v1662 = vmul.f32 %v1638, %v1658
    %v1664 = vlaneseq
    %v1665 = vshrl.u32 %v1664, 7
    %v1666 = vsub.s32 0, %v1665
    %v1667 = vrot.slane %v1619, %v1666
    %v1669 = vmul.f32 %v1659, %v1667
    %v1670 = vmul.f32 %v1660, %v1667
    %v1671 = vmul.f32 %v1661, %v1667
    %v1672 = vmul.f32 %v1662, %v1667
    %v1674 = vlaneseq
    %v1675 = vshrl.u32 %v1674, 7
    %v1676 = vsub.s32 0, %v1675
    %v1677 = vrot.slane %v1620, %v1676
    %v1679 = vadd.f32 %v1669, %v1677
    %v1680 = vadd.f32 %v1670, %v1677
    %v1681 = vadd.f32 %v1671, %v1677
    %v1682 = vadd.f32 %v1672, %v1677
    %v1683 = vmax.f32 %v1679, 0.0
    %v1684 = vmax.f32 %v1680, 0.0
    %v1685 = vmax.f32 %v1681, 0.0
    %v1686 = vmax.f32 %v1682, 0.0
    %1687 = vmatprep.subr.mxu0 0.0
    %1688 = vmatpush1.msra.mxu0 %v1683
    %1689 = vmatprep.subr.mxu0 0.0
    %1690 = vmatpush1.msra.mxu0 %v1684
    %1691 = vmatprep.subr.mxu0 0.0
    %1692 = vmatpush1.msra.mxu0 %v1685
    %1693 = vmatprep.subr.mxu0 0.0
    %1694 = vmatpush1.msra.mxu0 %v1686
    %1695 = vmatprep.subr.mxu0 0.0
    %1696 = vmatpush1.msra.mxu0 0.0
    %1697 = vmatprep.subr.mxu0 0.0
    %1698 = vmatpush1.msra.mxu0 0.0
    %1699 = vmatprep.subr.mxu0 0.0
    %1700 = vmatpush1.msra.mxu0 0.0
    %1701 = vmatprep.subr.mxu0 0.0
    %1702 = vmatpush1.msra.mxu0 0.0
    %1703 = vmatprep.subr.mxu0 0.0
    %1704 = vmatpush1.msra.mxu0 0.0
    %1705 = vmatprep.subr.mxu0 0.0
    %1706 = vmatpush1.msra.mxu0 0.0
    %1707 = vmatprep.subr.mxu0 0.0
    %1708 = vmatpush1.msra.mxu0 0.0
    %1709 = vmatprep.subr.mxu0 0.0
    %1710 = vmatpush1.msra.mxu0 0.0
    %1711 = vmatprep.subr.mxu0 0.0
    %1712 = vmatpush1.msra.mxu0 0.0
    %1713 = vmatprep.subr.mxu0 0.0
    %1714 = vmatpush1.msra.mxu0 0.0
    %1715 = vmatprep.subr.mxu0 0.0
    %1716 = vmatpush1.msra.mxu0 0.0
    %1717 = vmatprep.subr.mxu0 0.0
    %1718 = vmatpush1.msra.mxu0 0.0
    %1719 = vmatprep.subr.mxu0 0.0
    %1720 = vmatpush1.msra.mxu0 0.0
    %1721 = vmatprep.subr.mxu0 0.0
    %1722 = vmatpush1.msra.mxu0 0.0
    %1723 = vmatprep.subr.mxu0 0.0
    %1724 = vmatpush1.msra.mxu0 0.0
    %1725 = vmatprep.subr.mxu0 0.0
    %1726 = vmatpush1.msra.mxu0 0.0
    %1727 = vmatprep.subr.mxu0 0.0
    %1728 = vmatpush1.msra.mxu0 0.0
    %1729 = vmatprep.subr.mxu0 0.0
    %1730 = vmatpush1.msra.mxu0 0.0
    %1731 = vmatprep.subr.mxu0 0.0
    %1732 = vmatpush1.msra.mxu0 0.0
    %1733 = vmatprep.subr.mxu0 0.0
    %1734 = vmatpush1.msra.mxu0 0.0
    %1735 = vmatprep.subr.mxu0 0.0
    %1736 = vmatpush1.msra.mxu0 0.0
    %1737 = vmatprep.subr.mxu0 0.0
    %1738 = vmatpush1.msra.mxu0 0.0
    %1739 = vmatprep.subr.mxu0 0.0
    %1740 = vmatpush1.msra.mxu0 0.0
    %1741 = vmatprep.subr.mxu0 0.0
    %1742 = vmatpush1.msra.mxu0 0.0
    %1743 = vmatprep.subr.mxu0 0.0
    %1744 = vmatpush1.msra.mxu0 0.0
    %1745 = vmatprep.subr.mxu0 0.0
    %1746 = vmatpush1.msra.mxu0 0.0
    %1747 = vmatprep.subr.mxu0 0.0
    %1748 = vmatpush1.msra.mxu0 0.0
    %1749 = vmatprep.subr.mxu0 0.0
    %1750 = vmatpush1.msra.mxu0 0.0
    %1751 = vmatprep.mubr.f32.mxu0 0.0
    %1752 = vmatmul.mubr.f32.gmra.mrb[0].mxu0 %v964
    %v1753 = vpop.f32.mrb[0].mxu0
    %v1754 = vadd.f32 0.0, %v1753
    %v1755 = vpop.f32.mrb[0].mxu0
    %1756 = vmatprep.mubr.f32.mxu0 0.0
    %1757 = vmatmul.mubr.f32.gmra.mrb[0].mxu0 %v967
    %v1758 = vpop.f32.mrb[0].mxu0
    %v1759 = vadd.f32 0.0, %v1758
    %v1760 = vpop.f32.mrb[0].mxu0
    %1761 = vmatprep.mubr.f32.mxu0 0.0
    %1762 = vmatmul.mubr.f32.gmra.mrb[0].mxu0 %v970
    %v1763 = vpop.f32.mrb[0].mxu0
    %v1764 = vadd.f32 0.0, %v1763
    %v1765 = vpop.f32.mrb[0].mxu0
    %1766 = vmatprep.mubr.f32.mxu0 0.0
    %1767 = vmatmul.mubr.f32.gmra.mrb[0].mxu0 %v973
    %v1768 = vpop.f32.mrb[0].mxu0
    %v1769 = vadd.f32 0.0, %v1768
    %v1770 = vpop.f32.mrb[0].mxu0
    %1771 = vdwg.mxu0
    %v1772 = vld [vmem:[#allocation11] sm:$0xff]
    %v1773 = vld [vmem:[#allocation11 + $0x8] sm:$0xff]
    %v1774 = vld [vmem:[#allocation11 + $0x10] sm:$0xff]
    %v1775 = vld [vmem:[#allocation11 + $0x18] sm:$0xff]
    %v1776 = vld [vmem:[#allocation13] sm:$0x1]
    %v1778 = vlaneseq
    %v1779 = vshrl.u32 %v1778, 7
    %v1780 = vsub.s32 0, %v1779
    %v1781 = vrot.slane %v1776, %v1780
    %v1784 = vsel %vm962, %v1754, 0
    %v1787 = vsel %vm962, %v1759, 0
    %v1790 = vsel %vm962, %v1764, 0
    %v1793 = vsel %vm962, %v1769, 0
    %1795 = vmatprep.subr.mxu0 0.0
    %1796 = vmatpush1.msra.mxu0 %v1772
    %1797 = vmatprep.subr.mxu0 0.0
    %1798 = vmatpush1.msra.mxu0 %v1773
    %1799 = vmatprep.subr.mxu0 0.0
    %1800 = vmatpush1.msra.mxu0 %v1774
    %1801 = vmatprep.subr.mxu0 0.0
    %1802 = vmatpush1.msra.mxu0 %v1775
    %1803 = vmatprep.subr.mxu0 0.0
    %1804 = vmatpush1.msra.mxu0 0.0
    %1805 = vmatprep.subr.mxu0 0.0
    %1806 = vmatpush1.msra.mxu0 0.0
    %1807 = vmatprep.subr.mxu0 0.0
    %1808 = vmatpush1.msra.mxu0 0.0
    %1809 = vmatprep.subr.mxu0 0.0
    %1810 = vmatpush1.msra.mxu0 0.0
    %1811 = vmatprep.subr.mxu0 0.0
    %1812 = vmatpush1.msra.mxu0 0.0
    %1813 = vmatprep.subr.mxu0 0.0
    %1814 = vmatpush1.msra.mxu0 0.0
    %1815 = vmatprep.subr.mxu0 0.0
    %1816 = vmatpush1.msra.mxu0 0.0
    %1817 = vmatprep.subr.mxu0 0.0
    %1818 = vmatpush1.msra.mxu0 0.0
    %1819 = vmatprep.subr.mxu0 0.0
    %1820 = vmatpush1.msra.mxu0 0.0
    %1821 = vmatprep.subr.mxu0 0.0
    %1822 = vmatpush1.msra.mxu0 0.0
    %1823 = vmatprep.subr.mxu0 0.0
    %1824 = vmatpush1.msra.mxu0 0.0
    %1825 = vmatprep.subr.mxu0 0.0
    %1826 = vmatpush1.msra.mxu0 0.0
    %1827 = vmatprep.subr.mxu0 0.0
    %1828 = vmatpush1.msra.mxu0 0.0
    %1829 = vmatprep.subr.mxu0 0.0
    %1830 = vmatpush1.msra.mxu0 0.0
    %1831 = vmatprep.subr.mxu0 0.0
    %1832 = vmatpush1.msra.mxu0 0.0
    %1833 = vmatprep.subr.mxu0 0.0
    %1834 = vmatpush1.msra.mxu0 0.0
    %1835 = vmatprep.subr.mxu0 0.0
    %1836 = vmatpush1.msra.mxu0 0.0
    %1837 = vmatprep.subr.mxu0 0.0
    %1838 = vmatpush1.msra.mxu0 0.0
    %1839 = vmatprep.subr.mxu0 0.0
    %1840 = vmatpush1.msra.mxu0 0.0
    %1841 = vmatprep.subr.mxu0 0.0
    %1842 = vmatpush1.msra.mxu0 0.0
    %1843 = vmatprep.subr.mxu0 0.0
    %1844 = vmatpush1.msra.mxu0 0.0
    %1845 = vmatprep.subr.mxu0 0.0
    %1846 = vmatpush1.msra.mxu0 0.0
    %1847 = vmatprep.subr.mxu0 0.0
    %1848 = vmatpush1.msra.mxu0 0.0
    %1849 = vmatprep.subr.mxu0 0.0
    %1850 = vmatpush1.msra.mxu0 0.0
    %1851 = vmatprep.subr.mxu0 0.0
    %1852 = vmatpush1.msra.mxu0 0.0
    %1853 = vmatprep.subr.mxu0 0.0
    %1854 = vmatpush1.msra.mxu0 0.0
    %1855 = vmatprep.subr.mxu0 0.0
    %1856 = vmatpush1.msra.mxu0 0.0
    %1857 = vmatprep.subr.mxu0 0.0
    %1858 = vmatpush1.msra.mxu0 0.0
    %1859 = vmatprep.mubr.f32.mxu0 0.0
    %1860 = vmatmul.mubr.f32.gmra.mrb[0].mxu0 %v1784
    %v1861 = vpop.f32.mrb[0].mxu0
    %v1862 = vadd.f32 %v1781, %v1861
    %v1863 = vpop.f32.mrb[0].mxu0
    %1864 = vmatprep.mubr.f32.mxu0 0.0
    %1865 = vmatmul.mubr.f32.gmra.mrb[0].mxu0 %v1787
    %v1866 = vpop.f32.mrb[0].mxu0
    %v1867 = vadd.f32 %v1781, %v1866
    %v1868 = vpop.f32.mrb[0].mxu0
    %1869 = vmatprep.mubr.f32.mxu0 0.0
    %1870 = vmatmul.mubr.f32.gmra.mrb[0].mxu0 %v1790
    %v1871 = vpop.f32.mrb[0].mxu0
    %v1872 = vadd.f32 %v1781, %v1871
    %v1873 = vpop.f32.mrb[0].mxu0
    %1874 = vmatprep.mubr.f32.mxu0 0.0
    %1875 = vmatmul.mubr.f32.gmra.mrb[0].mxu0 %v1793
    %v1876 = vpop.f32.mrb[0].mxu0
    %v1877 = vadd.f32 %v1781, %v1876
    %v1878 = vpop.f32.mrb[0].mxu0
    %1879 = vdwg.mxu0
    %v1880 = vld [vmem:[%s35] sm:$0x1]
    %v1881 = vld [vmem:[%s37] sm:$0x1]
    %vm1882 = vcmask 392192
    %v1883 = vsel %vm1882, %v1862, 0.0
    %v1884 = vsel %vm1882, %v1867, 0.0
    %v1885 = vadd.f32 %v1883, %v1884
    %v1886 = vsel %vm1882, %v1872, 0.0
    %v1887 = vadd.f32 %v1885, %v1886
    %v1888 = vsel %vm1882, %v1877, 0.0
    %v1889 = vadd.f32 %v1887, %v1888
    %v1890 = vrot.slane %v1889, 4
    %v1891 = vadd.f32 %v1889, %v1890
    %v1892 = vrot.slane %v1891, 2
    %v1893 = vadd.f32 %v1891, %v1892
    %v1894 = vrot.slane %v1893, 1
    %v1895 = vadd.f32 %v1893, %v1894
    %v1896 = vmul.f32 %v1895, %v908
    %v1897 = vsub.f32 %v1862, %v1896
    %v1898 = vsub.f32 %v1867, %v1896
    %v1899 = vsub.f32 %v1872, %v1896
    %v1900 = vsub.f32 %v1877, %v1896
    %v1901 = vmul.f32 %v1897, %v1897
    %v1902 = vmul.f32 %v1898, %v1898
    %v1903 = vmul.f32 %v1899, %v1899
    %v1904 = vmul.f32 %v1900, %v1900
    %v1905 = vsel %vm1882, %v1901, 0.0
    %v1906 = vsel %vm1882, %v1902, 0.0
    %v1907 = vadd.f32 %v1905, %v1906
    %v1908 = vsel %vm1882, %v1903, 0.0
    %v1909 = vadd.f32 %v1907, %v1908
    %v1910 = vsel %vm1882, %v1904, 0.0
    %v1911 = vadd.f32 %v1909, %v1910
    %v1912 = vrot.slane %v1911, 4
    %v1913 = vadd.f32 %v1911, %v1912
    %v1914 = vrot.slane %v1913, 2
    %v1915 = vadd.f32 %v1913, %v1914
    %v1916 = vrot.slane %v1915, 1
    %v1917 = vadd.f32 %v1915, %v1916
    %v1918 = vmul.f32 %v1917, %v908
    %v1919 = vadd.f32 %v1918, 1e-05
    %v1920 = vrsqrt.pop %v1919
    %v1921 = vmul.f32 %v1897, %v1920
    %v1922 = vmul.f32 %v1898, %v1920
    %v1923 = vmul.f32 %v1899, %v1920
    %v1924 = vmul.f32 %v1900, %v1920
    %v1926 = vlaneseq
    %v1927 = vshrl.u32 %v1926, 7
    %v1928 = vsub.s32 0, %v1927
    %v1929 = vrot.slane %v1880, %v1928
    %v1931 = vmul.f32 %v1921, %v1929
    %v1932 = vmul.f32 %v1922, %v1929
    %v1933 = vmul.f32 %v1923, %v1929
    %v1934 = vmul.f32 %v1924, %v1929
    %v1936 = vlaneseq
    %v1937 = vshrl.u32 %v1936, 7
    %v1938 = vsub.s32 0, %v1937
    %v1939 = vrot.slane %v1881, %v1938
    %v1941 = vadd.f32 %v1931, %v1939
    %v1942 = vadd.f32 %v1932, %v1939
    %v1943 = vadd.f32 %v1933, %v1939
    %v1944 = vadd.f32 %v1934, %v1939
    %v1945 = vld [vmem:[#allocation37] sm:$0xff]
    %v1946 = vld [vmem:[#allocation37 + $0x8] sm:$0xff]
    %v1947 = vld [vmem:[#allocation37 + $0x10] sm:$0xff]
    %v1948 = vld [vmem:[#allocation37 + $0x18] sm:$0xff]
    %v1950 = vsel %vm962, %v1683, 0
    %v1953 = vsel %vm962, %v1684, 0
    %v1956 = vsel %vm962, %v1685, 0
    %v1959 = vsel %vm962, %v1686, 0
    %1961 = vmatprep.subr.mxu0 0.0
    %1962 = vmatpush1.msra.mxu0 %v1945
    %1963 = vmatprep.subr.mxu0 0.0
    %1964 = vmatpush1.msra.mxu0 %v1946
    %1965 = vmatprep.subr.mxu0 0.0
    %1966 = vmatpush1.msra.mxu0 %v1947
    %1967 = vmatprep.subr.mxu0 0.0
    %1968 = vmatpush1.msra.mxu0 %v1948
    %1969 = vmatprep.subr.mxu0 0.0
    %1970 = vmatpush1.msra.mxu0 0.0
    %1971 = vmatprep.subr.mxu0 0.0
    %1972 = vmatpush1.msra.mxu0 0.0
    %1973 = vmatprep.subr.mxu0 0.0
    %1974 = vmatpush1.msra.mxu0 0.0
    %1975 = vmatprep.subr.mxu0 0.0
    %1976 = vmatpush1.msra.mxu0 0.0
    %1977 = vmatprep.subr.mxu0 0.0
    %1978 = vmatpush1.msra.mxu0 0.0
    %1979 = vmatprep.subr.mxu0 0.0
    %1980 = vmatpush1.msra.mxu0 0.0
    %1981 = vmatprep.subr.mxu0 0.0
    %1982 = vmatpush1.msra.mxu0 0.0
    %1983 = vmatprep.subr.mxu0 0.0
    %1984 = vmatpush1.msra.mxu0 0.0
    %1985 = vmatprep.subr.mxu0 0.0
    %1986 = vmatpush1.msra.mxu0 0.0
    %1987 = vmatprep.subr.mxu0 0.0
    %1988 = vmatpush1.msra.mxu0 0.0
    %1989 = vmatprep.subr.mxu0 0.0
    %1990 = vmatpush1.msra.mxu0 0.0
    %1991 = vmatprep.subr.mxu0 0.0
    %1992 = vmatpush1.msra.mxu0 0.0
    %1993 = vmatprep.subr.mxu0 0.0
    %1994 = vmatpush1.msra.mxu0 0.0
    %1995 = vmatprep.subr.mxu0 0.0
    %1996 = vmatpush1.msra.mxu0 0.0
    %1997 = vmatprep.subr.mxu0 0.0
    %1998 = vmatpush1.msra.mxu0 0.0
    %1999 = vmatprep.subr.mxu0 0.0
    %2000 = vmatpush1.msra.mxu0 0.0
    %2001 = vmatprep.subr.mxu0 0.0
    %2002 = vmatpush1.msra.mxu0 0.0
    %2003 = vmatprep.subr.mxu0 0.0
    %2004 = vmatpush1.msra.mxu0 0.0
    %2005 = vmatprep.subr.mxu0 0.0
    %2006 = vmatpush1.msra.mxu0 0.0
    %2007 = vmatprep.subr.mxu0 0.0
    %2008 = vmatpush1.msra.mxu0 0.0
    %2009 = vmatprep.subr.mxu0 0.0
    %2010 = vmatpush1.msra.mxu0 0.0
    %2011 = vmatprep.subr.mxu0 0.0
    %2012 = vmatpush1.msra.mxu0 0.0
    %2013 = vmatprep.subr.mxu0 0.0
    %2014 = vmatpush1.msra.mxu0 0.0
    %2015 = vmatprep.subr.mxu0 0.0
    %2016 = vmatpush1.msra.mxu0 0.0
    %2017 = vmatprep.subr.mxu0 0.0
    %2018 = vmatpush1.msra.mxu0 0.0
    %2019 = vmatprep.subr.mxu0 0.0
    %2020 = vmatpush1.msra.mxu0 0.0
    %2021 = vmatprep.subr.mxu0 0.0
    %2022 = vmatpush1.msra.mxu0 0.0
    %2023 = vmatprep.subr.mxu0 0.0
    %2024 = vmatpush1.msra.mxu0 0.0
    %2025 = vmatprep.mubr.f32.mxu0 0.0
    %2026 = vmatmul.mubr.f32.gmra.mrb[0].mxu0 %v1950
    %v2027 = vpop.f32.mrb[0].mxu0
    %v2028 = vadd.f32 0.0, %v2027
    %v2029 = vpop.f32.mrb[0].mxu0
    %2030 = vmatprep.mubr.f32.mxu0 0.0
    %2031 = vmatmul.mubr.f32.gmra.mrb[0].mxu0 %v1953
    %v2032 = vpop.f32.mrb[0].mxu0
    %v2033 = vadd.f32 0.0, %v2032
    %v2034 = vpop.f32.mrb[0].mxu0
    %2035 = vmatprep.mubr.f32.mxu0 0.0
    %2036 = vmatmul.mubr.f32.gmra.mrb[0].mxu0 %v1956
    %v2037 = vpop.f32.mrb[0].mxu0
    %v2038 = vadd.f32 0.0, %v2037
    %v2039 = vpop.f32.mrb[0].mxu0
    %2040 = vmatprep.mubr.f32.mxu0 0.0
    %2041 = vmatmul.mubr.f32.gmra.mrb[0].mxu0 %v1959
    %v2042 = vpop.f32.mrb[0].mxu0
    %v2043 = vadd.f32 0.0, %v2042
    %v2044 = vpop.f32.mrb[0].mxu0
    %2045 = vdwg.mxu0
    %v2046 = vld [vmem:[%s109] sm:$0x1]
    %v2047 = vld [vmem:[%s111] sm:$0x1]
    %v2048 = vsel %vm1882, %v2028, 0.0
    %v2049 = vsel %vm1882, %v2033, 0.0
    %v2050 = vadd.f32 %v2048, %v2049
    %v2051 = vsel %vm1882, %v2038, 0.0
    %v2052 = vadd.f32 %v2050, %v2051
    %v2053 = vsel %vm1882, %v2043, 0.0
    %v2054 = vadd.f32 %v2052, %v2053
    %v2055 = vrot.slane %v2054, 4
    %v2056 = vadd.f32 %v2054, %v2055
    %v2057 = vrot.slane %v2056, 2
    %v2058 = vadd.f32 %v2056, %v2057
    %v2059 = vrot.slane %v2058, 1
    %v2060 = vadd.f32 %v2058, %v2059
    %v2061 = vmul.f32 %v2060, %v908
    %v2062 = vsub.f32 %v2028, %v2061
    %v2063 = vsub.f32 %v2033, %v2061
    %v2064 = vsub.f32 %v2038, %v2061
    %v2065 = vsub.f32 %v2043, %v2061
    %v2066 = vmul.f32 %v2062, %v2062
    %v2067 = vmul.f32 %v2063, %v2063
    %v2068 = vmul.f32 %v2064, %v2064
    %v2069 = vmul.f32 %v2065, %v2065
    %v2070 = vsel %vm1882, %v2066, 0.0
    %v2071 = vsel %vm1882, %v2067, 0.0
    %v2072 = vadd.f32 %v2070, %v2071
    %v2073 = vsel %vm1882, %v2068, 0.0
    %v2074 = vadd.f32 %v2072, %v2073
    %v2075 = vsel %vm1882, %v2069, 0.0
    %v2076 = vadd.f32 %v2074, %v2075
    %v2077 = vrot.slane %v2076, 4
    %v2078 = vadd.f32 %v2076, %v2077
    %v2079 = vrot.slane %v2078, 2
    %v2080 = vadd.f32 %v2078, %v2079
    %v2081 = vrot.slane %v2080, 1
    %v2082 = vadd.f32 %v2080, %v2081
    %v2083 = vmul.f32 %v2082, %v908
    %v2084 = vadd.f32 %v2083, 1e-05
    %v2085 = vrsqrt.pop %v2084
    %v2086 = vmul.f32 %v2062, %v2085
    %v2087 = vmul.f32 %v2063, %v2085
    %v2088 = vmul.f32 %v2064, %v2085
    %v2089 = vmul.f32 %v2065, %v2085
    %v2091 = vlaneseq
    %v2092 = vshrl.u32 %v2091, 7
    %v2093 = vsub.s32 0, %v2092
    %v2094 = vrot.slane %v2046, %v2093
    %v2096 = vmul.f32 %v2086, %v2094
    %v2097 = vmul.f32 %v2087, %v2094
    %v2098 = vmul.f32 %v2088, %v2094
    %v2099 = vmul.f32 %v2089, %v2094
    %v2101 = vlaneseq
    %v2102 = vshrl.u32 %v2101, 7
    %v2103 = vsub.s32 0, %v2102
    %v2104 = vrot.slane %v2047, %v2103
    %v2106 = vadd.f32 %v2096, %v2104
    %v2107 = vadd.f32 %v2097, %v2104
    %v2108 = vadd.f32 %v2098, %v2104
    %v2109 = vadd.f32 %v2099, %v2104
    %v2110 = vadd.f32 %v1941, %v2106
    %v2111 = vadd.f32 %v1942, %v2107
    %v2112 = vadd.f32 %v1943, %v2108
    %v2113 = vadd.f32 %v1944, %v2109
    %v2114 = vmax.f32 %v2110, 0.0
    %v2115 = vmax.f32 %v2111, 0.0
    %v2116 = vmax.f32 %v2112, 0.0
    %v2117 = vmax.f32 %v2113, 0.0
    %2118 = vmatprep.subr.mxu0 0.0
    %2119 = vmatpush1.msra.mxu0 %v2114
    %2120 = vmatprep.subr.mxu0 0.0
    %2121 = vmatpush1.msra.mxu0 %v2115
    %2122 = vmatprep.subr.mxu0 0.0
    %2123 = vmatpush1.msra.mxu0 %v2116
    %2124 = vmatprep.subr.mxu0 0.0
    %2125 = vmatpush1.msra.mxu0 %v2117
    %2126 = vmatprep.subr.mxu0 0.0
    %2127 = vmatpush1.msra.mxu0 0.0
    %2128 = vmatprep.subr.mxu0 0.0
    %2129 = vmatpush1.msra.mxu0 0.0
    %2130 = vmatprep.subr.mxu0 0.0
    %2131 = vmatpush1.msra.mxu0 0.0
    %2132 = vmatprep.subr.mxu0 0.0
    %2133 = vmatpush1.msra.mxu0 0.0
    %2134 = vmatprep.subr.mxu0 0.0
    %2135 = vmatpush1.msra.mxu0 0.0
    %2136 = vmatprep.subr.mxu0 0.0
    %2137 = vmatpush1.msra.mxu0 0.0
    %2138 = vmatprep.subr.mxu0 0.0
    %2139 = vmatpush1.msra.mxu0 0.0
    %2140 = vmatprep.subr.mxu0 0.0
    %2141 = vmatpush1.msra.mxu0 0.0
    %2142 = vmatprep.subr.mxu0 0.0
    %2143 = vmatpush1.msra.mxu0 0.0
    %2144 = vmatprep.subr.mxu0 0.0
    %2145 = vmatpush1.msra.mxu0 0.0
    %2146 = vmatprep.subr.mxu0 0.0
    %2147 = vmatpush1.msra.mxu0 0.0
    %2148 = vmatprep.subr.mxu0 0.0
    %2149 = vmatpush1.msra.mxu0 0.0
    %2150 = vmatprep.subr.mxu0 0.0
    %2151 = vmatpush1.msra.mxu0 0.0
    %2152 = vmatprep.subr.mxu0 0.0
    %2153 = vmatpush1.msra.mxu0 0.0
    %2154 = vmatprep.subr.mxu0 0.0
    %2155 = vmatpush1.msra.mxu0 0.0
    %2156 = vmatprep.subr.mxu0 0.0
    %2157 = vmatpush1.msra.mxu0 0.0
    %2158 = vmatprep.subr.mxu0 0.0
    %2159 = vmatpush1.msra.mxu0 0.0
    %2160 = vmatprep.subr.mxu0 0.0
    %2161 = vmatpush1.msra.mxu0 0.0
    %2162 = vmatprep.subr.mxu0 0.0
    %2163 = vmatpush1.msra.mxu0 0.0
    %2164 = vmatprep.subr.mxu0 0.0
    %2165 = vmatpush1.msra.mxu0 0.0
    %2166 = vmatprep.subr.mxu0 0.0
    %2167 = vmatpush1.msra.mxu0 0.0
    %2168 = vmatprep.subr.mxu0 0.0
    %2169 = vmatpush1.msra.mxu0 0.0
    %2170 = vmatprep.subr.mxu0 0.0
    %2171 = vmatpush1.msra.mxu0 0.0
    %2172 = vmatprep.subr.mxu0 0.0
    %2173 = vmatpush1.msra.mxu0 0.0
    %2174 = vmatprep.subr.mxu0 0.0
    %2175 = vmatpush1.msra.mxu0 0.0
    %2176 = vmatprep.subr.mxu0 0.0
    %2177 = vmatpush1.msra.mxu0 0.0
    %2178 = vmatprep.subr.mxu0 0.0
    %2179 = vmatpush1.msra.mxu0 0.0
    %2180 = vmatprep.subr.mxu0 0.0
    %2181 = vmatpush1.msra.mxu0 0.0
    %2182 = vmatprep.mubr.f32.mxu0 0.0
    %2183 = vmatmul.mubr.f32.gmra.mrb[0].mxu0 %v964
    %v2184 = vpop.f32.mrb[0].mxu0
    %v2185 = vadd.f32 0.0, %v2184
    %v2186 = vpop.f32.mrb[0].mxu0
    %2187 = vmatprep.mubr.f32.mxu0 0.0
    %2188 = vmatmul.mubr.f32.gmra.mrb[0].mxu0 %v967
    %v2189 = vpop.f32.mrb[0].mxu0
    %v2190 = vadd.f32 0.0, %v2189
    %v2191 = vpop.f32.mrb[0].mxu0
    %2192 = vmatprep.mubr.f32.mxu0 0.0
    %2193 = vmatmul.mubr.f32.gmra.mrb[0].mxu0 %v970
    %v2194 = vpop.f32.mrb[0].mxu0
    %v2195 = vadd.f32 0.0, %v2194
    %v2196 = vpop.f32.mrb[0].mxu0
    %2197 = vmatprep.mubr.f32.mxu0 0.0
    %2198 = vmatmul.mubr.f32.gmra.mrb[0].mxu0 %v973
    %v2199 = vpop.f32.mrb[0].mxu0
    %v2200 = vadd.f32 0.0, %v2199
    %v2201 = vpop.f32.mrb[0].mxu0
    %2202 = vdwg.mxu0
    %v2203 = vld [vmem:[#allocation14] sm:$0xff]
    %v2204 = vld [vmem:[#allocation14 + $0x8] sm:$0xff]
    %v2205 = vld [vmem:[#allocation14 + $0x10] sm:$0xff]
    %v2206 = vld [vmem:[#allocation14 + $0x18] sm:$0xff]
    %v2207 = vld [vmem:[#allocation14 + $0x20] sm:$0xff]
    %v2208 = vld [vmem:[#allocation14 + $0x28] sm:$0xff]
    %v2209 = vld [vmem:[#allocation16] sm:$0x1]
    %v2211 = vlaneseq
    %v2212 = vshrl.u32 %v2211, 7
    %v2213 = vsub.s32 0, %v2212
    %v2214 = vrot.slane %v2209, %v2213
    %v2217 = vsel %vm1882, %v2185, 0
    %v2220 = vsel %vm1882, %v2190, 0
    %v2223 = vsel %vm1882, %v2195, 0
    %v2226 = vsel %vm1882, %v2200, 0
    %2228 = vmatprep.subr.mxu0 0.0
    %2229 = vmatpush1.msra.mxu0 %v2203
    %2230 = vmatprep.subr.mxu0 0.0
    %2231 = vmatpush1.msra.mxu0 %v2204
    %2232 = vmatprep.subr.mxu0 0.0
    %2233 = vmatpush1.msra.mxu0 %v2205
    %2234 = vmatprep.subr.mxu0 0.0
    %2235 = vmatpush1.msra.mxu0 %v2206
    %2236 = vmatprep.subr.mxu0 0.0
    %2237 = vmatpush1.msra.mxu0 %v2207
    %2238 = vmatprep.subr.mxu0 0.0
    %2239 = vmatpush1.msra.mxu0 %v2208
    %2240 = vmatprep.subr.mxu0 0.0
    %2241 = vmatpush1.msra.mxu0 0.0
    %2242 = vmatprep.subr.mxu0 0.0
    %2243 = vmatpush1.msra.mxu0 0.0
    %2244 = vmatprep.subr.mxu0 0.0
    %2245 = vmatpush1.msra.mxu0 0.0
    %2246 = vmatprep.subr.mxu0 0.0
    %2247 = vmatpush1.msra.mxu0 0.0
    %2248 = vmatprep.subr.mxu0 0.0
    %2249 = vmatpush1.msra.mxu0 0.0
    %2250 = vmatprep.subr.mxu0 0.0
    %2251 = vmatpush1.msra.mxu0 0.0
    %2252 = vmatprep.subr.mxu0 0.0
    %2253 = vmatpush1.msra.mxu0 0.0
    %2254 = vmatprep.subr.mxu0 0.0
    %2255 = vmatpush1.msra.mxu0 0.0
    %2256 = vmatprep.subr.mxu0 0.0
    %2257 = vmatpush1.msra.mxu0 0.0
    %2258 = vmatprep.subr.mxu0 0.0
    %2259 = vmatpush1.msra.mxu0 0.0
    %2260 = vmatprep.subr.mxu0 0.0
    %2261 = vmatpush1.msra.mxu0 0.0
    %2262 = vmatprep.subr.mxu0 0.0
    %2263 = vmatpush1.msra.mxu0 0.0
    %2264 = vmatprep.subr.mxu0 0.0
    %2265 = vmatpush1.msra.mxu0 0.0
    %2266 = vmatprep.subr.mxu0 0.0
    %2267 = vmatpush1.msra.mxu0 0.0
    %2268 = vmatprep.subr.mxu0 0.0
    %2269 = vmatpush1.msra.mxu0 0.0
    %2270 = vmatprep.subr.mxu0 0.0
    %2271 = vmatpush1.msra.mxu0 0.0
    %2272 = vmatprep.subr.mxu0 0.0
    %2273 = vmatpush1.msra.mxu0 0.0
    %2274 = vmatprep.subr.mxu0 0.0
    %2275 = vmatpush1.msra.mxu0 0.0
    %2276 = vmatprep.subr.mxu0 0.0
    %2277 = vmatpush1.msra.mxu0 0.0
    %2278 = vmatprep.subr.mxu0 0.0
    %2279 = vmatpush1.msra.mxu0 0.0
    %2280 = vmatprep.subr.mxu0 0.0
    %2281 = vmatpush1.msra.mxu0 0.0
    %2282 = vmatprep.subr.mxu0 0.0
    %2283 = vmatpush1.msra.mxu0 0.0
    %2284 = vmatprep.subr.mxu0 0.0
    %2285 = vmatpush1.msra.mxu0 0.0
    %2286 = vmatprep.subr.mxu0 0.0
    %2287 = vmatpush1.msra.mxu0 0.0
    %2288 = vmatprep.subr.mxu0 0.0
    %2289 = vmatpush1.msra.mxu0 0.0
    %2290 = vmatprep.subr.mxu0 0.0
    %2291 = vmatpush1.msra.mxu0 0.0
    %2292 = vmatprep.mubr.f32.mxu0 0.0
    %2293 = vmatmul.mubr.f32.gmra.mrb[0].mxu0 %v2217
    %v2294 = vpop.f32.mrb[0].mxu0
    %v2295 = vadd.f32 %v2214, %v2294
    %v2296 = vpop.f32.mrb[0].mxu0
    %2297 = vmatprep.mubr.f32.mxu0 0.0
    %2298 = vmatmul.mubr.f32.gmra.mrb[0].mxu0 %v2220
    %v2299 = vpop.f32.mrb[0].mxu0
    %v2300 = vadd.f32 %v2214, %v2299
    %v2301 = vpop.f32.mrb[0].mxu0
    %2302 = vmatprep.mubr.f32.mxu0 0.0
    %2303 = vmatmul.mubr.f32.gmra.mrb[0].mxu0 %v2223
    %v2304 = vpop.f32.mrb[0].mxu0
    %v2305 = vadd.f32 %v2214, %v2304
    %v2306 = vpop.f32.mrb[0].mxu0
    %2307 = vmatprep.mubr.f32.mxu0 0.0
    %2308 = vmatmul.mubr.f32.gmra.mrb[0].mxu0 %v2226
    %v2309 = vpop.f32.mrb[0].mxu0
    %v2310 = vadd.f32 %v2214, %v2309
    %v2311 = vpop.f32.mrb[0].mxu0
    %2312 = vdwg.mxu0
    %v2313 = vld [vmem:[%s43] sm:$0x1]
    %v2314 = vld [vmem:[%s45] sm:$0x1]
    %vm2315 = vcmask 523264
    %v2316 = vsel %vm2315, %v2295, 0.0
    %v2317 = vsel %vm2315, %v2300, 0.0
    %v2318 = vadd.f32 %v2316, %v2317
    %v2319 = vsel %vm2315, %v2305, 0.0
    %v2320 = vadd.f32 %v2318, %v2319
    %v2321 = vsel %vm2315, %v2310, 0.0
    %v2322 = vadd.f32 %v2320, %v2321
    %v2323 = vrot.slane %v2322, 4
    %v2324 = vadd.f32 %v2322, %v2323
    %v2325 = vrot.slane %v2324, 2
    %v2326 = vadd.f32 %v2324, %v2325
    %v2327 = vrot.slane %v2326, 1
    %v2328 = vadd.f32 %v2326, %v2327
    %v2329 = vmul.f32 %v2328, %v908
    %v2330 = vsub.f32 %v2295, %v2329
    %v2331 = vsub.f32 %v2300, %v2329
    %v2332 = vsub.f32 %v2305, %v2329
    %v2333 = vsub.f32 %v2310, %v2329
    %v2334 = vmul.f32 %v2330, %v2330
    %v2335 = vmul.f32 %v2331, %v2331
    %v2336 = vmul.f32 %v2332, %v2332
    %v2337 = vmul.f32 %v2333, %v2333
    %v2338 = vsel %vm2315, %v2334, 0.0
    %v2339 = vsel %vm2315, %v2335, 0.0
    %v2340 = vadd.f32 %v2338, %v2339
    %v2341 = vsel %vm2315, %v2336, 0.0
    %v2342 = vadd.f32 %v2340, %v2341
    %v2343 = vsel %vm2315, %v2337, 0.0
    %v2344 = vadd.f32 %v2342, %v2343
    %v2345 = vrot.slane %v2344, 4
    %v2346 = vadd.f32 %v2344, %v2345
    %v2347 = vrot.slane %v2346, 2
    %v2348 = vadd.f32 %v2346, %v2347
    %v2349 = vrot.slane %v2348, 1
    %v2350 = vadd.f32 %v2348, %v2349
    %v2351 = vmul.f32 %v2350, %v908
    %v2352 = vadd.f32 %v2351, 1e-05
    %v2353 = vrsqrt.pop %v2352
    %v2354 = vmul.f32 %v2330, %v2353
    %v2355 = vmul.f32 %v2331, %v2353
    %v2356 = vmul.f32 %v2332, %v2353
    %v2357 = vmul.f32 %v2333, %v2353
    %v2359 = vlaneseq
    %v2360 = vshrl.u32 %v2359, 7
    %v2361 = vsub.s32 0, %v2360
    %v2362 = vrot.slane %v2313, %v2361
    %v2364 = vmul.f32 %v2354, %v2362
    %v2365 = vmul.f32 %v2355, %v2362
    %v2366 = vmul.f32 %v2356, %v2362
    %v2367 = vmul.f32 %v2357, %v2362
    %v2369 = vlaneseq
    %v2370 = vshrl.u32 %v2369, 7
    %v2371 = vsub.s32 0, %v2370
    %v2372 = vrot.slane %v2314, %v2371
    %v2374 = vadd.f32 %v2364, %v2372
    %v2375 = vadd.f32 %v2365, %v2372
    %v2376 = vadd.f32 %v2366, %v2372
    %v2377 = vadd.f32 %v2367, %v2372
    %v2378 = vld [vmem:[#allocation38] sm:$0xff]
    %v2379 = vld [vmem:[#allocation38 + $0x8] sm:$0xff]
    %v2380 = vld [vmem:[#allocation38 + $0x10] sm:$0xff]
    %v2381 = vld [vmem:[#allocation38 + $0x18] sm:$0xff]
    %v2382 = vld [vmem:[#allocation38 + $0x20] sm:$0xff]
    %v2383 = vld [vmem:[#allocation38 + $0x28] sm:$0xff]
    %v2385 = vsel %vm1882, %v2114, 0
    %v2388 = vsel %vm1882, %v2115, 0
    %v2391 = vsel %vm1882, %v2116, 0
    %v2394 = vsel %vm1882, %v2117, 0
    %2396 = vmatprep.subr.mxu0 0.0
    %2397 = vmatpush1.msra.mxu0 %v2378
    %2398 = vmatprep.subr.mxu0 0.0
    %2399 = vmatpush1.msra.mxu0 %v2379
    %2400 = vmatprep.subr.mxu0 0.0
    %2401 = vmatpush1.msra.mxu0 %v2380
    %2402 = vmatprep.subr.mxu0 0.0
    %2403 = vmatpush1.msra.mxu0 %v2381
    %2404 = vmatprep.subr.mxu0 0.0
    %2405 = vmatpush1.msra.mxu0 %v2382
    %2406 = vmatprep.subr.mxu0 0.0
    %2407 = vmatpush1.msra.mxu0 %v2383
    %2408 = vmatprep.subr.mxu0 0.0
    %2409 = vmatpush1.msra.mxu0 0.0
    %2410 = vmatprep.subr.mxu0 0.0
    %2411 = vmatpush1.msra.mxu0 0.0
    %2412 = vmatprep.subr.mxu0 0.0
    %2413 = vmatpush1.msra.mxu0 0.0
    %2414 = vmatprep.subr.mxu0 0.0
    %2415 = vmatpush1.msra.mxu0 0.0
    %2416 = vmatprep.subr.mxu0 0.0
    %2417 = vmatpush1.msra.mxu0 0.0
    %2418 = vmatprep.subr.mxu0 0.0
    %2419 = vmatpush1.msra.mxu0 0.0
    %2420 = vmatprep.subr.mxu0 0.0
    %2421 = vmatpush1.msra.mxu0 0.0
    %2422 = vmatprep.subr.mxu0 0.0
    %2423 = vmatpush1.msra.mxu0 0.0
    %2424 = vmatprep.subr.mxu0 0.0
    %2425 = vmatpush1.msra.mxu0 0.0
    %2426 = vmatprep.subr.mxu0 0.0
    %2427 = vmatpush1.msra.mxu0 0.0
    %2428 = vmatprep.subr.mxu0 0.0
    %2429 = vmatpush1.msra.mxu0 0.0
    %2430 = vmatprep.subr.mxu0 0.0
    %2431 = vmatpush1.msra.mxu0 0.0
    %2432 = vmatprep.subr.mxu0 0.0
    %2433 = vmatpush1.msra.mxu0 0.0
    %2434 = vmatprep.subr.mxu0 0.0
    %2435 = vmatpush1.msra.mxu0 0.0
    %2436 = vmatprep.subr.mxu0 0.0
    %2437 = vmatpush1.msra.mxu0 0.0
    %2438 = vmatprep.subr.mxu0 0.0
    %2439 = vmatpush1.msra.mxu0 0.0
    %2440 = vmatprep.subr.mxu0 0.0
    %2441 = vmatpush1.msra.mxu0 0.0
    %2442 = vmatprep.subr.mxu0 0.0
    %2443 = vmatpush1.msra.mxu0 0.0
    %2444 = vmatprep.subr.mxu0 0.0
    %2445 = vmatpush1.msra.mxu0 0.0
    %2446 = vmatprep.subr.mxu0 0.0
    %2447 = vmatpush1.msra.mxu0 0.0
    %2448 = vmatprep.subr.mxu0 0.0
    %2449 = vmatpush1.msra.mxu0 0.0
    %2450 = vmatprep.subr.mxu0 0.0
    %2451 = vmatpush1.msra.mxu0 0.0
    %2452 = vmatprep.subr.mxu0 0.0
    %2453 = vmatpush1.msra.mxu0 0.0
    %2454 = vmatprep.subr.mxu0 0.0
    %2455 = vmatpush1.msra.mxu0 0.0
    %2456 = vmatprep.subr.mxu0 0.0
    %2457 = vmatpush1.msra.mxu0 0.0
    %2458 = vmatprep.subr.mxu0 0.0
    %2459 = vmatpush1.msra.mxu0 0.0
    %2460 = vmatprep.mubr.f32.mxu0 0.0
    %2461 = vmatmul.mubr.f32.gmra.mrb[0].mxu0 %v2385
    %v2462 = vpop.f32.mrb[0].mxu0
    %v2463 = vadd.f32 0.0, %v2462
    %v2464 = vpop.f32.mrb[0].mxu0
    %2465 = vmatprep.mubr.f32.mxu0 0.0
    %2466 = vmatmul.mubr.f32.gmra.mrb[0].mxu0 %v2388
    %v2467 = vpop.f32.mrb[0].mxu0
    %v2468 = vadd.f32 0.0, %v2467
    %v2469 = vpop.f32.mrb[0].mxu0
    %2470 = vmatprep.mubr.f32.mxu0 0.0
    %2471 = vmatmul.mubr.f32.gmra.mrb[0].mxu0 %v2391
    %v2472 = vpop.f32.mrb[0].mxu0
    %v2473 = vadd.f32 0.0, %v2472
    %v2474 = vpop.f32.mrb[0].mxu0
    %2475 = vmatprep.mubr.f32.mxu0 0.0
    %2476 = vmatmul.mubr.f32.gmra.mrb[0].mxu0 %v2394
    %v2477 = vpop.f32.mrb[0].mxu0
    %v2478 = vadd.f32 0.0, %v2477
    %v2479 = vpop.f32.mrb[0].mxu0
    %2480 = vdwg.mxu0
    %v2481 = vld [vmem:[%s115] sm:$0x1]
    %v2482 = vld [vmem:[%s117] sm:$0x1]
    %v2483 = vsel %vm2315, %v2463, 0.0
    %v2484 = vsel %vm2315, %v2468, 0.0
    %v2485 = vadd.f32 %v2483, %v2484
    %v2486 = vsel %vm2315, %v2473, 0.0
    %v2487 = vadd.f32 %v2485, %v2486
    %v2488 = vsel %vm2315, %v2478, 0.0
    %v2489 = vadd.f32 %v2487, %v2488
    %v2490 = vrot.slane %v2489, 4
    %v2491 = vadd.f32 %v2489, %v2490
    %v2492 = vrot.slane %v2491, 2
    %v2493 = vadd.f32 %v2491, %v2492
    %v2494 = vrot.slane %v2493, 1
    %v2495 = vadd.f32 %v2493, %v2494
    %v2496 = vmul.f32 %v2495, %v908
    %v2497 = vsub.f32 %v2463, %v2496
    %v2498 = vsub.f32 %v2468, %v2496
    %v2499 = vsub.f32 %v2473, %v2496
    %v2500 = vsub.f32 %v2478, %v2496
    %v2501 = vmul.f32 %v2497, %v2497
    %v2502 = vmul.f32 %v2498, %v2498
    %v2503 = vmul.f32 %v2499, %v2499
    %v2504 = vmul.f32 %v2500, %v2500
    %v2505 = vsel %vm2315, %v2501, 0.0
    %v2506 = vsel %vm2315, %v2502, 0.0
    %v2507 = vadd.f32 %v2505, %v2506
    %v2508 = vsel %vm2315, %v2503, 0.0
    %v2509 = vadd.f32 %v2507, %v2508
    %v2510 = vsel %vm2315, %v2504, 0.0
    %v2511 = vadd.f32 %v2509, %v2510
    %v2512 = vrot.slane %v2511, 4
    %v2513 = vadd.f32 %v2511, %v2512
    %v2514 = vrot.slane %v2513, 2
    %v2515 = vadd.f32 %v2513, %v2514
    %v2516 = vrot.slane %v2515, 1
    %v2517 = vadd.f32 %v2515, %v2516
    %v2518 = vmul.f32 %v2517, %v908
    %v2519 = vadd.f32 %v2518, 1e-05
    %v2520 = vrsqrt.pop %v2519
    %v2521 = vmul.f32 %v2497, %v2520
    %v2522 = vmul.f32 %v2498, %v2520
    %v2523 = vmul.f32 %v2499, %v2520
    %v2524 = vmul.f32 %v2500, %v2520
    %v2526 = vlaneseq
    %v2527 = vshrl.u32 %v2526, 7
    %v2528 = vsub.s32 0, %v2527
    %v2529 = vrot.slane %v2481, %v2528
    %v2531 = vmul.f32 %v2521, %v2529
    %v2532 = vmul.f32 %v2522, %v2529
    %v2533 = vmul.f32 %v2523, %v2529
    %v2534 = vmul.f32 %v2524, %v2529
    %v2536 = vlaneseq
    %v2537 = vshrl.u32 %v2536, 7
    %v2538 = vsub.s32 0, %v2537
    %v2539 = vrot.slane %v2482, %v2538
    %v2541 = vadd.f32 %v2531, %v2539
    %v2542 = vadd.f32 %v2532, %v2539
    %v2543 = vadd.f32 %v2533, %v2539
    %v2544 = vadd.f32 %v2534, %v2539
    %v2545 = vadd.f32 %v2374, %v2541
    %v2546 = vadd.f32 %v2375, %v2542
    %v2547 = vadd.f32 %v2376, %v2543
    %v2548 = vadd.f32 %v2377, %v2544
    %v2549 = vmax.f32 %v2545, 0.0
    %v2550 = vmax.f32 %v2546, 0.0
    %v2551 = vmax.f32 %v2547, 0.0
    %v2552 = vmax.f32 %v2548, 0.0
    %2553 = vmatprep.subr.mxu0 0.0
    %2554 = vmatpush1.msra.mxu0 %v2549
    %2555 = vmatprep.subr.mxu0 0.0
    %2556 = vmatpush1.msra.mxu0 %v2550
    %2557 = vmatprep.subr.mxu0 0.0
    %2558 = vmatpush1.msra.mxu0 %v2551
    %2559 = vmatprep.subr.mxu0 0.0
    %2560 = vmatpush1.msra.mxu0 %v2552
    %2561 = vmatprep.subr.mxu0 0.0
    %2562 = vmatpush1.msra.mxu0 0.0
    %2563 = vmatprep.subr.mxu0 0.0
    %2564 = vmatpush1.msra.mxu0 0.0
    %2565 = vmatprep.subr.mxu0 0.0
    %2566 = vmatpush1.msra.mxu0 0.0
    %2567 = vmatprep.subr.mxu0 0.0
    %2568 = vmatpush1.msra.mxu0 0.0
    %2569 = vmatprep.subr.mxu0 0.0
    %2570 = vmatpush1.msra.mxu0 0.0
    %2571 = vmatprep.subr.mxu0 0.0
    %2572 = vmatpush1.msra.mxu0 0.0
    %2573 = vmatprep.subr.mxu0 0.0
    %2574 = vmatpush1.msra.mxu0 0.0
    %2575 = vmatprep.subr.mxu0 0.0
    %2576 = vmatpush1.msra.mxu0 0.0
    %2577 = vmatprep.subr.mxu0 0.0
    %2578 = vmatpush1.msra.mxu0 0.0
    %2579 = vmatprep.subr.mxu0 0.0
    %2580 = vmatpush1.msra.mxu0 0.0
    %2581 = vmatprep.subr.mxu0 0.0
    %2582 = vmatpush1.msra.mxu0 0.0
    %2583 = vmatprep.subr.mxu0 0.0
    %2584 = vmatpush1.msra.mxu0 0.0
    %2585 = vmatprep.subr.mxu0 0.0
    %2586 = vmatpush1.msra.mxu0 0.0
    %2587 = vmatprep.subr.mxu0 0.0
    %2588 = vmatpush1.msra.mxu0 0.0
    %2589 = vmatprep.subr.mxu0 0.0
    %2590 = vmatpush1.msra.mxu0 0.0
    %2591 = vmatprep.subr.mxu0 0.0
    %2592 = vmatpush1.msra.mxu0 0.0
    %2593 = vmatprep.subr.mxu0 0.0
    %2594 = vmatpush1.msra.mxu0 0.0
    %2595 = vmatprep.subr.mxu0 0.0
    %2596 = vmatpush1.msra.mxu0 0.0
    %2597 = vmatprep.subr.mxu0 0.0
    %2598 = vmatpush1.msra.mxu0 0.0
    %2599 = vmatprep.subr.mxu0 0.0
    %2600 = vmatpush1.msra.mxu0 0.0
    %2601 = vmatprep.subr.mxu0 0.0
    %2602 = vmatpush1.msra.mxu0 0.0
    %2603 = vmatprep.subr.mxu0 0.0
    %2604 = vmatpush1.msra.mxu0 0.0
    %2605 = vmatprep.subr.mxu0 0.0
    %2606 = vmatpush1.msra.mxu0 0.0
    %2607 = vmatprep.subr.mxu0 0.0
    %2608 = vmatpush1.msra.mxu0 0.0
    %2609 = vmatprep.subr.mxu0 0.0
    %2610 = vmatpush1.msra.mxu0 0.0
    %2611 = vmatprep.subr.mxu0 0.0
    %2612 = vmatpush1.msra.mxu0 0.0
    %2613 = vmatprep.subr.mxu0 0.0
    %2614 = vmatpush1.msra.mxu0 0.0
    %2615 = vmatprep.subr.mxu0 0.0
    %2616 = vmatpush1.msra.mxu0 0.0
    %2617 = vmatprep.mubr.f32.mxu0 0.0
    %2618 = vmatmul.mubr.f32.gmra.mrb[0].mxu0 %v964
    %v2619 = vpop.f32.mrb[0].mxu0
    %v2620 = vadd.f32 0.0, %v2619
    %v2621 = vpop.f32.mrb[0].mxu0
    %2622 = vmatprep.mubr.f32.mxu0 0.0
    %2623 = vmatmul.mubr.f32.gmra.mrb[0].mxu0 %v967
    %v2624 = vpop.f32.mrb[0].mxu0
    %v2625 = vadd.f32 0.0, %v2624
    %v2626 = vpop.f32.mrb[0].mxu0
    %2627 = vmatprep.mubr.f32.mxu0 0.0
    %2628 = vmatmul.mubr.f32.gmra.mrb[0].mxu0 %v970
    %v2629 = vpop.f32.mrb[0].mxu0
    %v2630 = vadd.f32 0.0, %v2629
    %v2631 = vpop.f32.mrb[0].mxu0
    %2632 = vmatprep.mubr.f32.mxu0 0.0
    %2633 = vmatmul.mubr.f32.gmra.mrb[0].mxu0 %v973
    %v2634 = vpop.f32.mrb[0].mxu0
    %v2635 = vadd.f32 0.0, %v2634
    %v2636 = vpop.f32.mrb[0].mxu0
    %2637 = vdwg.mxu0
    %v2638 = vld [vmem:[#allocation17] sm:$0xff]
    %v2639 = vld [vmem:[#allocation17 + $0x8] sm:$0xff]
    %v2640 = vld [vmem:[#allocation17 + $0x10] sm:$0xff]
    %v2641 = vld [vmem:[#allocation17 + $0x18] sm:$0xff]
    %v2642 = vld [vmem:[#allocation17 + $0x20] sm:$0xff]
    %v2643 = vld [vmem:[#allocation17 + $0x28] sm:$0xff]
    %v2644 = vld [vmem:[#allocation17 + $0x30] sm:$0xff]
    %v2645 = vld [vmem:[#allocation17 + $0x38] sm:$0xff]
    %v2646 = vld [vmem:[#allocation19] sm:$0x1]
    %v2648 = vlaneseq
    %v2649 = vshrl.u32 %v2648, 7
    %v2650 = vsub.s32 0, %v2649
    %v2651 = vrot.slane %v2646, %v2650
    %v2654 = vsel %vm2315, %v2620, 0
    %v2657 = vsel %vm2315, %v2625, 0
    %v2660 = vsel %vm2315, %v2630, 0
    %v2663 = vsel %vm2315, %v2635, 0
    %2665 = vmatprep.subr.mxu0 0.0
    %2666 = vmatpush1.msra.mxu0 %v2638
    %2667 = vmatprep.subr.mxu0 0.0
    %2668 = vmatpush1.msra.mxu0 %v2639
    %2669 = vmatprep.subr.mxu0 0.0
    %2670 = vmatpush1.msra.mxu0 %v2640
    %2671 = vmatprep.subr.mxu0 0.0
    %2672 = vmatpush1.msra.mxu0 %v2641
    %2673 = vmatprep.subr.mxu0 0.0
    %2674 = vmatpush1.msra.mxu0 %v2642
    %2675 = vmatprep.subr.mxu0 0.0
    %2676 = vmatpush1.msra.mxu0 %v2643
    %2677 = vmatprep.subr.mxu0 0.0
    %2678 = vmatpush1.msra.mxu0 %v2644
    %2679 = vmatprep.subr.mxu0 0.0
    %2680 = vmatpush1.msra.mxu0 %v2645
    %2681 = vmatprep.subr.mxu0 0.0
    %2682 = vmatpush1.msra.mxu0 0.0
    %2683 = vmatprep.subr.mxu0 0.0
    %2684 = vmatpush1.msra.mxu0 0.0
    %2685 = vmatprep.subr.mxu0 0.0
    %2686 = vmatpush1.msra.mxu0 0.0
    %2687 = vmatprep.subr.mxu0 0.0
    %2688 = vmatpush1.msra.mxu0 0.0
    %2689 = vmatprep.subr.mxu0 0.0
    %2690 = vmatpush1.msra.mxu0 0.0
    %2691 = vmatprep.subr.mxu0 0.0
    %2692 = vmatpush1.msra.mxu0 0.0
    %2693 = vmatprep.subr.mxu0 0.0
    %2694 = vmatpush1.msra.mxu0 0.0
    %2695 = vmatprep.subr.mxu0 0.0
    %2696 = vmatpush1.msra.mxu0 0.0
    %2697 = vmatprep.subr.mxu0 0.0
    %2698 = vmatpush1.msra.mxu0 0.0
    %2699 = vmatprep.subr.mxu0 0.0
    %2700 = vmatpush1.msra.mxu0 0.0
    %2701 = vmatprep.subr.mxu0 0.0
    %2702 = vmatpush1.msra.mxu0 0.0
    %2703 = vmatprep.subr.mxu0 0.0
    %2704 = vmatpush1.msra.mxu0 0.0
    %2705 = vmatprep.subr.mxu0 0.0
    %2706 = vmatpush1.msra.mxu0 0.0
    %2707 = vmatprep.subr.mxu0 0.0
    %2708 = vmatpush1.msra.mxu0 0.0
    %2709 = vmatprep.subr.mxu0 0.0
    %2710 = vmatpush1.msra.mxu0 0.0
    %2711 = vmatprep.subr.mxu0 0.0
    %2712 = vmatpush1.msra.mxu0 0.0
    %2713 = vmatprep.subr.mxu0 0.0
    %2714 = vmatpush1.msra.mxu0 0.0
    %2715 = vmatprep.subr.mxu0 0.0
    %2716 = vmatpush1.msra.mxu0 0.0
    %2717 = vmatprep.subr.mxu0 0.0
    %2718 = vmatpush1.msra.mxu0 0.0
    %2719 = vmatprep.subr.mxu0 0.0
    %2720 = vmatpush1.msra.mxu0 0.0
    %2721 = vmatprep.subr.mxu0 0.0
    %2722 = vmatpush1.msra.mxu0 0.0
    %2723 = vmatprep.subr.mxu0 0.0
    %2724 = vmatpush1.msra.mxu0 0.0
    %2725 = vmatprep.subr.mxu0 0.0
    %2726 = vmatpush1.msra.mxu0 0.0
    %2727 = vmatprep.subr.mxu0 0.0
    %2728 = vmatpush1.msra.mxu0 0.0
    %2729 = vmatprep.mubr.f32.mxu0 0.0
    %2730 = vmatmul.mubr.f32.gmra.mrb[0].mxu0 %v2654
    %v2731 = vpop.f32.mrb[0].mxu0
    %v2732 = vadd.f32 %v2651, %v2731
    %v2733 = vpop.f32.mrb[0].mxu0
    %2734 = vmatprep.mubr.f32.mxu0 0.0
    %2735 = vmatmul.mubr.f32.gmra.mrb[0].mxu0 %v2657
    %v2736 = vpop.f32.mrb[0].mxu0
    %v2737 = vadd.f32 %v2651, %v2736
    %v2738 = vpop.f32.mrb[0].mxu0
    %2739 = vmatprep.mubr.f32.mxu0 0.0
    %2740 = vmatmul.mubr.f32.gmra.mrb[0].mxu0 %v2660
    %v2741 = vpop.f32.mrb[0].mxu0
    %v2742 = vadd.f32 %v2651, %v2741
    %v2743 = vpop.f32.mrb[0].mxu0
    %2744 = vmatprep.mubr.f32.mxu0 0.0
    %2745 = vmatmul.mubr.f32.gmra.mrb[0].mxu0 %v2663
    %v2746 = vpop.f32.mrb[0].mxu0
    %v2747 = vadd.f32 %v2651, %v2746
    %v2748 = vpop.f32.mrb[0].mxu0
    %2749 = vdwg.mxu0
    %v2750 = vld [vmem:[%s51] sm:$0x1]
    %v2751 = vld [vmem:[%s53] sm:$0x1]
    %v2752 = vsel %vm2315, %v2732, 0.0
    %v2753 = vsel %vm2315, %v2737, 0.0
    %v2754 = vadd.f32 %v2752, %v2753
    %v2755 = vsel %vm2315, %v2742, 0.0
    %v2756 = vadd.f32 %v2754, %v2755
    %v2757 = vsel %vm2315, %v2747, 0.0
    %v2758 = vadd.f32 %v2756, %v2757
    %v2759 = vrot.slane %v2758, 4
    %v2760 = vadd.f32 %v2758, %v2759
    %v2761 = vrot.slane %v2760, 2
    %v2762 = vadd.f32 %v2760, %v2761
    %v2763 = vrot.slane %v2762, 1
    %v2764 = vadd.f32 %v2762, %v2763
    %v2765 = vmul.f32 %v2764, %v908
    %v2766 = vsub.f32 %v2732, %v2765
    %v2767 = vsub.f32 %v2737, %v2765
    %v2768 = vsub.f32 %v2742, %v2765
    %v2769 = vsub.f32 %v2747, %v2765
    %v2770 = vmul.f32 %v2766, %v2766
    %v2771 = vmul.f32 %v2767, %v2767
    %v2772 = vmul.f32 %v2768, %v2768
    %v2773 = vmul.f32 %v2769, %v2769
    %v2774 = vsel %vm2315, %v2770, 0.0
    %v2775 = vsel %vm2315, %v2771, 0.0
    %v2776 = vadd.f32 %v2774, %v2775
    %v2777 = vsel %vm2315, %v2772, 0.0
    %v2778 = vadd.f32 %v2776, %v2777
    %v2779 = vsel %vm2315, %v2773, 0.0
    %v2780 = vadd.f32 %v2778, %v2779
    %v2781 = vrot.slane %v2780, 4
    %v2782 = vadd.f32 %v2780, %v2781
    %v2783 = vrot.slane %v2782, 2
    %v2784 = vadd.f32 %v2782, %v2783
    %v2785 = vrot.slane %v2784, 1
    %v2786 = vadd.f32 %v2784, %v2785
    %v2787 = vmul.f32 %v2786, %v908
    %v2788 = vadd.f32 %v2787, 1e-05
    %v2789 = vrsqrt.pop %v2788
    %v2790 = vmul.f32 %v2766, %v2789
    %v2791 = vmul.f32 %v2767, %v2789
    %v2792 = vmul.f32 %v2768, %v2789
    %v2793 = vmul.f32 %v2769, %v2789
    %v2795 = vlaneseq
    %v2796 = vshrl.u32 %v2795, 7
    %v2797 = vsub.s32 0, %v2796
    %v2798 = vrot.slane %v2750, %v2797
    %v2800 = vmul.f32 %v2790, %v2798
    %v2801 = vmul.f32 %v2791, %v2798
    %v2802 = vmul.f32 %v2792, %v2798
    %v2803 = vmul.f32 %v2793, %v2798
    %v2805 = vlaneseq
    %v2806 = vshrl.u32 %v2805, 7
    %v2807 = vsub.s32 0, %v2806
    %v2808 = vrot.slane %v2751, %v2807
    %v2810 = vadd.f32 %v2800, %v2808
    %v2811 = vadd.f32 %v2801, %v2808
    %v2812 = vadd.f32 %v2802, %v2808
    %v2813 = vadd.f32 %v2803, %v2808
    %v2814 = vadd.f32 %v2810, %v2549
    %v2815 = vadd.f32 %v2811, %v2550
    %v2816 = vadd.f32 %v2812, %v2551
    %v2817 = vadd.f32 %v2813, %v2552
    %v2818 = vmax.f32 %v2814, 0.0
    %v2819 = vmax.f32 %v2815, 0.0
    %v2820 = vmax.f32 %v2816, 0.0
    %v2821 = vmax.f32 %v2817, 0.0
    %2822 = vmatprep.subr.mxu0 0.0
    %2823 = vmatpush1.msra.mxu0 %v2818
    %2824 = vmatprep.subr.mxu0 0.0
    %2825 = vmatpush1.msra.mxu0 %v2819
    %2826 = vmatprep.subr.mxu0 0.0
    %2827 = vmatpush1.msra.mxu0 %v2820
    %2828 = vmatprep.subr.mxu0 0.0
    %2829 = vmatpush1.msra.mxu0 %v2821
    %2830 = vmatprep.subr.mxu0 0.0
    %2831 = vmatpush1.msra.mxu0 0.0
    %2832 = vmatprep.subr.mxu0 0.0
    %2833 = vmatpush1.msra.mxu0 0.0
    %2834 = vmatprep.subr.mxu0 0.0
    %2835 = vmatpush1.msra.mxu0 0.0
    %2836 = vmatprep.subr.mxu0 0.0
    %2837 = vmatpush1.msra.mxu0 0.0
    %2838 = vmatprep.subr.mxu0 0.0
    %2839 = vmatpush1.msra.mxu0 0.0
    %2840 = vmatprep.subr.mxu0 0.0
    %2841 = vmatpush1.msra.mxu0 0.0
    %2842 = vmatprep.subr.mxu0 0.0
    %2843 = vmatpush1.msra.mxu0 0.0
    %2844 = vmatprep.subr.mxu0 0.0
    %2845 = vmatpush1.msra.mxu0 0.0
    %2846 = vmatprep.subr.mxu0 0.0
    %2847 = vmatpush1.msra.mxu0 0.0
    %2848 = vmatprep.subr.mxu0 0.0
    %2849 = vmatpush1.msra.mxu0 0.0
    %2850 = vmatprep.subr.mxu0 0.0
    %2851 = vmatpush1.msra.mxu0 0.0
    %2852 = vmatprep.subr.mxu0 0.0
    %2853 = vmatpush1.msra.mxu0 0.0
    %2854 = vmatprep.subr.mxu0 0.0
    %2855 = vmatpush1.msra.mxu0 0.0
    %2856 = vmatprep.subr.mxu0 0.0
    %2857 = vmatpush1.msra.mxu0 0.0
    %2858 = vmatprep.subr.mxu0 0.0
    %2859 = vmatpush1.msra.mxu0 0.0
    %2860 = vmatprep.subr.mxu0 0.0
    %2861 = vmatpush1.msra.mxu0 0.0
    %2862 = vmatprep.subr.mxu0 0.0
    %2863 = vmatpush1.msra.mxu0 0.0
    %2864 = vmatprep.subr.mxu0 0.0
    %2865 = vmatpush1.msra.mxu0 0.0
    %2866 = vmatprep.subr.mxu0 0.0
    %2867 = vmatpush1.msra.mxu0 0.0
    %2868 = vmatprep.subr.mxu0 0.0
    %2869 = vmatpush1.msra.mxu0 0.0
    %2870 = vmatprep.subr.mxu0 0.0
    %2871 = vmatpush1.msra.mxu0 0.0
    %2872 = vmatprep.subr.mxu0 0.0
    %2873 = vmatpush1.msra.mxu0 0.0
    %2874 = vmatprep.subr.mxu0 0.0
    %2875 = vmatpush1.msra.mxu0 0.0
    %2876 = vmatprep.subr.mxu0 0.0
    %2877 = vmatpush1.msra.mxu0 0.0
    %2878 = vmatprep.subr.mxu0 0.0
    %2879 = vmatpush1.msra.mxu0 0.0
    %2880 = vmatprep.subr.mxu0 0.0
    %2881 = vmatpush1.msra.mxu0 0.0
    %2882 = vmatprep.subr.mxu0 0.0
    %2883 = vmatpush1.msra.mxu0 0.0
    %2884 = vmatprep.subr.mxu0 0.0
    %2885 = vmatpush1.msra.mxu0 0.0
    %2886 = vmatprep.mubr.f32.mxu0 0.0
    %2887 = vmatmul.mubr.f32.gmra.mrb[0].mxu0 %v964
    %v2888 = vpop.f32.mrb[0].mxu0
    %v2889 = vadd.f32 0.0, %v2888
    %v2890 = vpop.f32.mrb[0].mxu0
    %2891 = vmatprep.mubr.f32.mxu0 0.0
    %2892 = vmatmul.mubr.f32.gmra.mrb[0].mxu0 %v967
    %v2893 = vpop.f32.mrb[0].mxu0
    %v2894 = vadd.f32 0.0, %v2893
    %v2895 = vpop.f32.mrb[0].mxu0
    %2896 = vmatprep.mubr.f32.mxu0 0.0
    %2897 = vmatmul.mubr.f32.gmra.mrb[0].mxu0 %v970
    %v2898 = vpop.f32.mrb[0].mxu0
    %v2899 = vadd.f32 0.0, %v2898
    %v2900 = vpop.f32.mrb[0].mxu0
    %2901 = vmatprep.mubr.f32.mxu0 0.0
    %2902 = vmatmul.mubr.f32.gmra.mrb[0].mxu0 %v973
    %v2903 = vpop.f32.mrb[0].mxu0
    %v2904 = vadd.f32 0.0, %v2903
    %v2905 = vpop.f32.mrb[0].mxu0
    %2906 = vdwg.mxu0
    %v2907 = vld [vmem:[#allocation20] sm:$0xff]
    %v2908 = vld [vmem:[#allocation20 + $0x8] sm:$0xff]
    %v2909 = vld [vmem:[#allocation20 + $0x10] sm:$0xff]
    %v2910 = vld [vmem:[#allocation20 + $0x18] sm:$0xff]
    %v2911 = vld [vmem:[#allocation20 + $0x20] sm:$0xff]
    %v2912 = vld [vmem:[#allocation20 + $0x28] sm:$0xff]
    %v2913 = vld [vmem:[#allocation20 + $0x30] sm:$0xff]
    %v2914 = vld [vmem:[#allocation20 + $0x38] sm:$0xff]
    %v2915 = vld [vmem:[#allocation22] sm:$0x1]
    %v2917 = vlaneseq
    %v2918 = vshrl.u32 %v2917, 7
    %v2919 = vsub.s32 0, %v2918
    %v2920 = vrot.slane %v2915, %v2919
    %v2923 = vsel %vm2315, %v2889, 0
    %v2926 = vsel %vm2315, %v2894, 0
    %v2929 = vsel %vm2315, %v2899, 0
    %v2932 = vsel %vm2315, %v2904, 0
    %2934 = vmatprep.subr.mxu0 0.0
    %2935 = vmatpush1.msra.mxu0 %v2907
    %2936 = vmatprep.subr.mxu0 0.0
    %2937 = vmatpush1.msra.mxu0 %v2908
    %2938 = vmatprep.subr.mxu0 0.0
    %2939 = vmatpush1.msra.mxu0 %v2909
    %2940 = vmatprep.subr.mxu0 0.0
    %2941 = vmatpush1.msra.mxu0 %v2910
    %2942 = vmatprep.subr.mxu0 0.0
    %2943 = vmatpush1.msra.mxu0 %v2911
    %2944 = vmatprep.subr.mxu0 0.0
    %2945 = vmatpush1.msra.mxu0 %v2912
    %2946 = vmatprep.subr.mxu0 0.0
    %2947 = vmatpush1.msra.mxu0 %v2913
    %2948 = vmatprep.subr.mxu0 0.0
    %2949 = vmatpush1.msra.mxu0 %v2914
    %2950 = vmatprep.subr.mxu0 0.0
    %2951 = vmatpush1.msra.mxu0 0.0
    %2952 = vmatprep.subr.mxu0 0.0
    %2953 = vmatpush1.msra.mxu0 0.0
    %2954 = vmatprep.subr.mxu0 0.0
    %2955 = vmatpush1.msra.mxu0 0.0
    %2956 = vmatprep.subr.mxu0 0.0
    %2957 = vmatpush1.msra.mxu0 0.0
    %2958 = vmatprep.subr.mxu0 0.0
    %2959 = vmatpush1.msra.mxu0 0.0
    %2960 = vmatprep.subr.mxu0 0.0
    %2961 = vmatpush1.msra.mxu0 0.0
    %2962 = vmatprep.subr.mxu0 0.0
    %2963 = vmatpush1.msra.mxu0 0.0
    %2964 = vmatprep.subr.mxu0 0.0
    %2965 = vmatpush1.msra.mxu0 0.0
    %2966 = vmatprep.subr.mxu0 0.0
    %2967 = vmatpush1.msra.mxu0 0.0
    %2968 = vmatprep.subr.mxu0 0.0
    %2969 = vmatpush1.msra.mxu0 0.0
    %2970 = vmatprep.subr.mxu0 0.0
    %2971 = vmatpush1.msra.mxu0 0.0
    %2972 = vmatprep.subr.mxu0 0.0
    %2973 = vmatpush1.msra.mxu0 0.0
    %2974 = vmatprep.subr.mxu0 0.0
    %2975 = vmatpush1.msra.mxu0 0.0
    %2976 = vmatprep.subr.mxu0 0.0
    %2977 = vmatpush1.msra.mxu0 0.0
    %2978 = vmatprep.subr.mxu0 0.0
    %2979 = vmatpush1.msra.mxu0 0.0
    %2980 = vmatprep.subr.mxu0 0.0
    %2981 = vmatpush1.msra.mxu0 0.0
    %2982 = vmatprep.subr.mxu0 0.0
    %2983 = vmatpush1.msra.mxu0 0.0
    %2984 = vmatprep.subr.mxu0 0.0
    %2985 = vmatpush1.msra.mxu0 0.0
    %2986 = vmatprep.subr.mxu0 0.0
    %2987 = vmatpush1.msra.mxu0 0.0
    %2988 = vmatprep.subr.mxu0 0.0
    %2989 = vmatpush1.msra.mxu0 0.0
    %2990 = vmatprep.subr.mxu0 0.0
    %2991 = vmatpush1.msra.mxu0 0.0
    %2992 = vmatprep.subr.mxu0 0.0
    %2993 = vmatpush1.msra.mxu0 0.0
    %2994 = vmatprep.subr.mxu0 0.0
    %2995 = vmatpush1.msra.mxu0 0.0
    %2996 = vmatprep.subr.mxu0 0.0
    %2997 = vmatpush1.msra.mxu0 0.0
    %2998 = vmatprep.mubr.f32.mxu0 0.0
    %2999 = vmatmul.mubr.f32.gmra.mrb[0].mxu0 %v2923
    %v3000 = vpop.f32.mrb[0].mxu0
    %v3001 = vadd.f32 %v2920, %v3000
    %v3002 = vpop.f32.mrb[0].mxu0
    %3003 = vmatprep.mubr.f32.mxu0 0.0
    %3004 = vmatmul.mubr.f32.gmra.mrb[0].mxu0 %v2926
    %v3005 = vpop.f32.mrb[0].mxu0
    %v3006 = vadd.f32 %v2920, %v3005
    %v3007 = vpop.f32.mrb[0].mxu0
    %3008 = vmatprep.mubr.f32.mxu0 0.0
    %3009 = vmatmul.mubr.f32.gmra.mrb[0].mxu0 %v2929
    %v3010 = vpop.f32.mrb[0].mxu0
    %v3011 = vadd.f32 %v2920, %v3010
    %v3012 = vpop.f32.mrb[0].mxu0
    %3013 = vmatprep.mubr.f32.mxu0 0.0
    %3014 = vmatmul.mubr.f32.gmra.mrb[0].mxu0 %v2932
    %v3015 = vpop.f32.mrb[0].mxu0
    %v3016 = vadd.f32 %v2920, %v3015
    %v3017 = vpop.f32.mrb[0].mxu0
    %3018 = vdwg.mxu0
    %v3019 = vld [vmem:[%s59] sm:$0x1]
    %v3020 = vld [vmem:[%s61] sm:$0x1]
    %vm3021 = vcmask 654336
    %v3022 = vsel %vm3021, %v3001, 0.0
    %v3023 = vsel %vm3021, %v3006, 0.0
    %v3024 = vadd.f32 %v3022, %v3023
    %v3025 = vsel %vm3021, %v3011, 0.0
    %v3026 = vadd.f32 %v3024, %v3025
    %v3027 = vsel %vm3021, %v3016, 0.0
    %v3028 = vadd.f32 %v3026, %v3027
    %v3029 = vrot.slane %v3028, 4
    %v3030 = vadd.f32 %v3028, %v3029
    %v3031 = vrot.slane %v3030, 2
    %v3032 = vadd.f32 %v3030, %v3031
    %v3033 = vrot.slane %v3032, 1
    %v3034 = vadd.f32 %v3032, %v3033
    %v3035 = vmul.f32 %v3034, %v908
    %v3036 = vsub.f32 %v3001, %v3035
    %v3037 = vsub.f32 %v3006, %v3035
    %v3038 = vsub.f32 %v3011, %v3035
    %v3039 = vsub.f32 %v3016, %v3035
    %v3040 = vmul.f32 %v3036, %v3036
    %v3041 = vmul.f32 %v3037, %v3037
    %v3042 = vmul.f32 %v3038, %v3038
    %v3043 = vmul.f32 %v3039, %v3039
    %v3044 = vsel %vm3021, %v3040, 0.0
    %v3045 = vsel %vm3021, %v3041, 0.0
    %v3046 = vadd.f32 %v3044, %v3045
    %v3047 = vsel %vm3021, %v3042, 0.0
    %v3048 = vadd.f32 %v3046, %v3047
    %v3049 = vsel %vm3021, %v3043, 0.0
    %v3050 = vadd.f32 %v3048, %v3049
    %v3051 = vrot.slane %v3050, 4
    %v3052 = vadd.f32 %v3050, %v3051
    %v3053 = vrot.slane %v3052, 2
    %v3054 = vadd.f32 %v3052, %v3053
    %v3055 = vrot.slane %v3054, 1
    %v3056 = vadd.f32 %v3054, %v3055
    %v3057 = vmul.f32 %v3056, %v908
    %v3058 = vadd.f32 %v3057, 1e-05
    %v3059 = vrsqrt.pop %v3058
    %v3060 = vmul.f32 %v3036, %v3059
    %v3061 = vmul.f32 %v3037, %v3059
    %v3062 = vmul.f32 %v3038, %v3059
    %v3063 = vmul.f32 %v3039, %v3059
    %v3065 = vlaneseq
    %v3066 = vshrl.u32 %v3065, 7
    %v3067 = vsub.s32 0, %v3066
    %v3068 = vrot.slane %v3019, %v3067
    %v3070 = vmul.f32 %v3060, %v3068
    %v3071 = vmul.f32 %v3061, %v3068
    %v3072 = vmul.f32 %v3062, %v3068
    %v3073 = vmul.f32 %v3063, %v3068
    %v3075 = vlaneseq
    %v3076 = vshrl.u32 %v3075, 7
    %v3077 = vsub.s32 0, %v3076
    %v3078 = vrot.slane %v3020, %v3077
    %v3080 = vadd.f32 %v3070, %v3078
    %v3081 = vadd.f32 %v3071, %v3078
    %v3082 = vadd.f32 %v3072, %v3078
    %v3083 = vadd.f32 %v3073, %v3078
    %v3084 = vld [vmem:[#allocation40] sm:$0xff]
    %v3085 = vld [vmem:[#allocation40 + $0x8] sm:$0xff]
    %v3086 = vld [vmem:[#allocation40 + $0x10] sm:$0xff]
    %v3087 = vld [vmem:[#allocation40 + $0x18] sm:$0xff]
    %v3088 = vld [vmem:[#allocation40 + $0x20] sm:$0xff]
    %v3089 = vld [vmem:[#allocation40 + $0x28] sm:$0xff]
    %v3090 = vld [vmem:[#allocation40 + $0x30] sm:$0xff]
    %v3091 = vld [vmem:[#allocation40 + $0x38] sm:$0xff]
    %v3093 = vsel %vm2315, %v2818, 0
    %v3096 = vsel %vm2315, %v2819, 0
    %v3099 = vsel %vm2315, %v2820, 0
    %v3102 = vsel %vm2315, %v2821, 0
    %3104 = vmatprep.subr.mxu0 0.0
    %3105 = vmatpush1.msra.mxu0 %v3084
    %3106 = vmatprep.subr.mxu0 0.0
    %3107 = vmatpush1.msra.mxu0 %v3085
    %3108 = vmatprep.subr.mxu0 0.0
    %3109 = vmatpush1.msra.mxu0 %v3086
    %3110 = vmatprep.subr.mxu0 0.0
    %3111 = vmatpush1.msra.mxu0 %v3087
    %3112 = vmatprep.subr.mxu0 0.0
    %3113 = vmatpush1.msra.mxu0 %v3088
    %3114 = vmatprep.subr.mxu0 0.0
    %3115 = vmatpush1.msra.mxu0 %v3089
    %3116 = vmatprep.subr.mxu0 0.0
    %3117 = vmatpush1.msra.mxu0 %v3090
    %3118 = vmatprep.subr.mxu0 0.0
    %3119 = vmatpush1.msra.mxu0 %v3091
    %3120 = vmatprep.subr.mxu0 0.0
    %3121 = vmatpush1.msra.mxu0 0.0
    %3122 = vmatprep.subr.mxu0 0.0
    %3123 = vmatpush1.msra.mxu0 0.0
    %3124 = vmatprep.subr.mxu0 0.0
    %3125 = vmatpush1.msra.mxu0 0.0
    %3126 = vmatprep.subr.mxu0 0.0
    %3127 = vmatpush1.msra.mxu0 0.0
    %3128 = vmatprep.subr.mxu0 0.0
    %3129 = vmatpush1.msra.mxu0 0.0
    %3130 = vmatprep.subr.mxu0 0.0
    %3131 = vmatpush1.msra.mxu0 0.0
    %3132 = vmatprep.subr.mxu0 0.0
    %3133 = vmatpush1.msra.mxu0 0.0
    %3134 = vmatprep.subr.mxu0 0.0
    %3135 = vmatpush1.msra.mxu0 0.0
    %3136 = vmatprep.subr.mxu0 0.0
    %3137 = vmatpush1.msra.mxu0 0.0
    %3138 = vmatprep.subr.mxu0 0.0
    %3139 = vmatpush1.msra.mxu0 0.0
    %3140 = vmatprep.subr.mxu0 0.0
    %3141 = vmatpush1.msra.mxu0 0.0
    %3142 = vmatprep.subr.mxu0 0.0
    %3143 = vmatpush1.msra.mxu0 0.0
    %3144 = vmatprep.subr.mxu0 0.0
    %3145 = vmatpush1.msra.mxu0 0.0
    %3146 = vmatprep.subr.mxu0 0.0
    %3147 = vmatpush1.msra.mxu0 0.0
    %3148 = vmatprep.subr.mxu0 0.0
    %3149 = vmatpush1.msra.mxu0 0.0
    %3150 = vmatprep.subr.mxu0 0.0
    %3151 = vmatpush1.msra.mxu0 0.0
    %3152 = vmatprep.subr.mxu0 0.0
    %3153 = vmatpush1.msra.mxu0 0.0
    %3154 = vmatprep.subr.mxu0 0.0
    %3155 = vmatpush1.msra.mxu0 0.0
    %3156 = vmatprep.subr.mxu0 0.0
    %3157 = vmatpush1.msra.mxu0 0.0
    %3158 = vmatprep.subr.mxu0 0.0
    %3159 = vmatpush1.msra.mxu0 0.0
    %3160 = vmatprep.subr.mxu0 0.0
    %3161 = vmatpush1.msra.mxu0 0.0
    %3162 = vmatprep.subr.mxu0 0.0
    %3163 = vmatpush1.msra.mxu0 0.0
    %3164 = vmatprep.subr.mxu0 0.0
    %3165 = vmatpush1.msra.mxu0 0.0
    %3166 = vmatprep.subr.mxu0 0.0
    %3167 = vmatpush1.msra.mxu0 0.0
    %3168 = vmatprep.mubr.f32.mxu0 0.0
    %3169 = vmatmul.mubr.f32.gmra.mrb[0].mxu0 %v3093
    %v3170 = vpop.f32.mrb[0].mxu0
    %v3171 = vadd.f32 0.0, %v3170
    %v3172 = vpop.f32.mrb[0].mxu0
    %3173 = vmatprep.mubr.f32.mxu0 0.0
    %3174 = vmatmul.mubr.f32.gmra.mrb[0].mxu0 %v3096
    %v3175 = vpop.f32.mrb[0].mxu0
    %v3176 = vadd.f32 0.0, %v3175
    %v3177 = vpop.f32.mrb[0].mxu0
    %3178 = vmatprep.mubr.f32.mxu0 0.0
    %3179 = vmatmul.mubr.f32.gmra.mrb[0].mxu0 %v3099
    %v3180 = vpop.f32.mrb[0].mxu0
    %v3181 = vadd.f32 0.0, %v3180
    %v3182 = vpop.f32.mrb[0].mxu0
    %3183 = vmatprep.mubr.f32.mxu0 0.0
    %3184 = vmatmul.mubr.f32.gmra.mrb[0].mxu0 %v3102
    %v3185 = vpop.f32.mrb[0].mxu0
    %v3186 = vadd.f32 0.0, %v3185
    %v3187 = vpop.f32.mrb[0].mxu0
    %3188 = vdwg.mxu0
    %v3189 = vld [vmem:[%s121] sm:$0x1]
    %v3190 = vld [vmem:[%s123] sm:$0x1]
    %v3191 = vsel %vm3021, %v3171, 0.0
    %v3192 = vsel %vm3021, %v3176, 0.0
    %v3193 = vadd.f32 %v3191, %v3192
    %v3194 = vsel %vm3021, %v3181, 0.0
    %v3195 = vadd.f32 %v3193, %v3194
    %v3196 = vsel %vm3021, %v3186, 0.0
    %v3197 = vadd.f32 %v3195, %v3196
    %v3198 = vrot.slane %v3197, 4
    %v3199 = vadd.f32 %v3197, %v3198
    %v3200 = vrot.slane %v3199, 2
    %v3201 = vadd.f32 %v3199, %v3200
    %v3202 = vrot.slane %v3201, 1
    %v3203 = vadd.f32 %v3201, %v3202
    %v3204 = vmul.f32 %v3203, %v908
    %v3205 = vsub.f32 %v3171, %v3204
    %v3206 = vsub.f32 %v3176, %v3204
    %v3207 = vsub.f32 %v3181, %v3204
    %v3208 = vsub.f32 %v3186, %v3204
    %v3209 = vmul.f32 %v3205, %v3205
    %v3210 = vmul.f32 %v3206, %v3206
    %v3211 = vmul.f32 %v3207, %v3207
    %v3212 = vmul.f32 %v3208, %v3208
    %v3213 = vsel %vm3021, %v3209, 0.0
    %v3214 = vsel %vm3021, %v3210, 0.0
    %v3215 = vadd.f32 %v3213, %v3214
    %v3216 = vsel %vm3021, %v3211, 0.0
    %v3217 = vadd.f32 %v3215, %v3216
    %v3218 = vsel %vm3021, %v3212, 0.0
    %v3219 = vadd.f32 %v3217, %v3218
    %v3220 = vrot.slane %v3219, 4
    %v3221 = vadd.f32 %v3219, %v3220
    %v3222 = vrot.slane %v3221, 2
    %v3223 = vadd.f32 %v3221, %v3222
    %v3224 = vrot.slane %v3223, 1
    %v3225 = vadd.f32 %v3223, %v3224
    %v3226 = vmul.f32 %v3225, %v908
    %v3227 = vadd.f32 %v3226, 1e-05
    %v3228 = vrsqrt.pop %v3227
    %v3229 = vmul.f32 %v3205, %v3228
    %v3230 = vmul.f32 %v3206, %v3228
    %v3231 = vmul.f32 %v3207, %v3228
    %v3232 = vmul.f32 %v3208, %v3228
    %v3234 = vlaneseq
    %v3235 = vshrl.u32 %v3234, 7
    %v3236 = vsub.s32 0, %v3235
    %v3237 = vrot.slane %v3189, %v3236
    %v3239 = vmul.f32 %v3229, %v3237
    %v3240 = vmul.f32 %v3230, %v3237
    %v3241 = vmul.f32 %v3231, %v3237
    %v3242 = vmul.f32 %v3232, %v3237
    %v3244 = vlaneseq
    %v3245 = vshrl.u32 %v3244, 7
    %v3246 = vsub.s32 0, %v3245
    %v3247 = vrot.slane %v3190, %v3246
    %v3249 = vadd.f32 %v3239, %v3247
    %v3250 = vadd.f32 %v3240, %v3247
    %v3251 = vadd.f32 %v3241, %v3247
    %v3252 = vadd.f32 %v3242, %v3247
    %v3253 = vadd.f32 %v3080, %v3249
    %v3254 = vadd.f32 %v3081, %v3250
    %v3255 = vadd.f32 %v3082, %v3251
    %v3256 = vadd.f32 %v3083, %v3252
    %v3257 = vmax.f32 %v3253, 0.0
    %v3258 = vmax.f32 %v3254, 0.0
    %v3259 = vmax.f32 %v3255, 0.0
    %v3260 = vmax.f32 %v3256, 0.0
    %3261 = vmatprep.subr.mxu0 0.0
    %3262 = vmatpush1.msra.mxu0 %v3257
    %3263 = vmatprep.subr.mxu0 0.0
    %3264 = vmatpush1.msra.mxu0 %v3258
    %3265 = vmatprep.subr.mxu0 0.0
    %3266 = vmatpush1.msra.mxu0 %v3259
    %3267 = vmatprep.subr.mxu0 0.0
    %3268 = vmatpush1.msra.mxu0 %v3260
    %3269 = vmatprep.subr.mxu0 0.0
    %3270 = vmatpush1.msra.mxu0 0.0
    %3271 = vmatprep.subr.mxu0 0.0
    %3272 = vmatpush1.msra.mxu0 0.0
    %3273 = vmatprep.subr.mxu0 0.0
    %3274 = vmatpush1.msra.mxu0 0.0
    %3275 = vmatprep.subr.mxu0 0.0
    %3276 = vmatpush1.msra.mxu0 0.0
    %3277 = vmatprep.subr.mxu0 0.0
    %3278 = vmatpush1.msra.mxu0 0.0
    %3279 = vmatprep.subr.mxu0 0.0
    %3280 = vmatpush1.msra.mxu0 0.0
    %3281 = vmatprep.subr.mxu0 0.0
    %3282 = vmatpush1.msra.mxu0 0.0
    %3283 = vmatprep.subr.mxu0 0.0
    %3284 = vmatpush1.msra.mxu0 0.0
    %3285 = vmatprep.subr.mxu0 0.0
    %3286 = vmatpush1.msra.mxu0 0.0
    %3287 = vmatprep.subr.mxu0 0.0
    %3288 = vmatpush1.msra.mxu0 0.0
    %3289 = vmatprep.subr.mxu0 0.0
    %3290 = vmatpush1.msra.mxu0 0.0
    %3291 = vmatprep.subr.mxu0 0.0
    %3292 = vmatpush1.msra.mxu0 0.0
    %3293 = vmatprep.subr.mxu0 0.0
    %3294 = vmatpush1.msra.mxu0 0.0
    %3295 = vmatprep.subr.mxu0 0.0
    %3296 = vmatpush1.msra.mxu0 0.0
    %3297 = vmatprep.subr.mxu0 0.0
    %3298 = vmatpush1.msra.mxu0 0.0
    %3299 = vmatprep.subr.mxu0 0.0
    %3300 = vmatpush1.msra.mxu0 0.0
    %3301 = vmatprep.subr.mxu0 0.0
    %3302 = vmatpush1.msra.mxu0 0.0
    %3303 = vmatprep.subr.mxu0 0.0
    %3304 = vmatpush1.msra.mxu0 0.0
    %3305 = vmatprep.subr.mxu0 0.0
    %3306 = vmatpush1.msra.mxu0 0.0
    %3307 = vmatprep.subr.mxu0 0.0
    %3308 = vmatpush1.msra.mxu0 0.0
    %3309 = vmatprep.subr.mxu0 0.0
    %3310 = vmatpush1.msra.mxu0 0.0
    %3311 = vmatprep.subr.mxu0 0.0
    %3312 = vmatpush1.msra.mxu0 0.0
    %3313 = vmatprep.subr.mxu0 0.0
    %3314 = vmatpush1.msra.mxu0 0.0
    %3315 = vmatprep.subr.mxu0 0.0
    %3316 = vmatpush1.msra.mxu0 0.0
    %3317 = vmatprep.subr.mxu0 0.0
    %3318 = vmatpush1.msra.mxu0 0.0
    %3319 = vmatprep.subr.mxu0 0.0
    %3320 = vmatpush1.msra.mxu0 0.0
    %3321 = vmatprep.subr.mxu0 0.0
    %3322 = vmatpush1.msra.mxu0 0.0
    %3323 = vmatprep.subr.mxu0 0.0
    %3324 = vmatpush1.msra.mxu0 0.0
    %3325 = vmatprep.mubr.f32.mxu0 0.0
    %3326 = vmatmul.mubr.f32.gmra.mrb[0].mxu0 %v964
    %v3327 = vpop.f32.mrb[0].mxu0
    %v3328 = vadd.f32 0.0, %v3327
    %v3329 = vpop.f32.mrb[0].mxu0
    %3330 = vmatprep.mubr.f32.mxu0 0.0
    %3331 = vmatmul.mubr.f32.gmra.mrb[0].mxu0 %v967
    %v3332 = vpop.f32.mrb[0].mxu0
    %v3333 = vadd.f32 0.0, %v3332
    %v3334 = vpop.f32.mrb[0].mxu0
    %3335 = vmatprep.mubr.f32.mxu0 0.0
    %3336 = vmatmul.mubr.f32.gmra.mrb[0].mxu0 %v970
    %v3337 = vpop.f32.mrb[0].mxu0
    %v3338 = vadd.f32 0.0, %v3337
    %v3339 = vpop.f32.mrb[0].mxu0
    %3340 = vmatprep.mubr.f32.mxu0 0.0
    %3341 = vmatmul.mubr.f32.gmra.mrb[0].mxu0 %v973
    %v3342 = vpop.f32.mrb[0].mxu0
    %v3343 = vadd.f32 0.0, %v3342
    %v3344 = vpop.f32.mrb[0].mxu0
    %3345 = vdwg.mxu0
    %v3346 = vld [vmem:[#allocation23] sm:$0xff]
    %v3347 = vld [vmem:[#allocation23 + $0x8] sm:$0xff]
    %v3348 = vld [vmem:[#allocation23 + $0x10] sm:$0xff]
    %v3349 = vld [vmem:[#allocation23 + $0x18] sm:$0xff]
    %v3350 = vld [vmem:[#allocation23 + $0x20] sm:$0xff]
    %v3351 = vld [vmem:[#allocation23 + $0x28] sm:$0xff]
    %v3352 = vld [vmem:[#allocation23 + $0x30] sm:$0xff]
    %v3353 = vld [vmem:[#allocation23 + $0x38] sm:$0xff]
    %v3354 = vld [vmem:[#allocation23 + $0x40] sm:$0xff]
    %v3355 = vld [vmem:[#allocation23 + $0x48] sm:$0xff]
    %v3356 = vld [vmem:[#allocation25] sm:$0x1]
    %v3358 = vlaneseq
    %v3359 = vshrl.u32 %v3358, 7
    %v3360 = vsub.s32 0, %v3359
    %v3361 = vrot.slane %v3356, %v3360
    %v3364 = vsel %vm3021, %v3328, 0
    %v3367 = vsel %vm3021, %v3333, 0
    %v3370 = vsel %vm3021, %v3338, 0
    %v3373 = vsel %vm3021, %v3343, 0
    %3375 = vmatprep.subr.mxu0 0.0
    %3376 = vmatpush1.msra.mxu0 %v3346
    %3377 = vmatprep.subr.mxu0 0.0
    %3378 = vmatpush1.msra.mxu0 %v3347
    %3379 = vmatprep.subr.mxu0 0.0
    %3380 = vmatpush1.msra.mxu0 %v3348
    %3381 = vmatprep.subr.mxu0 0.0
    %3382 = vmatpush1.msra.mxu0 %v3349
    %3383 = vmatprep.subr.mxu0 0.0
    %3384 = vmatpush1.msra.mxu0 %v3350
    %3385 = vmatprep.subr.mxu0 0.0
    %3386 = vmatpush1.msra.mxu0 %v3351
    %3387 = vmatprep.subr.mxu0 0.0
    %3388 = vmatpush1.msra.mxu0 %v3352
    %3389 = vmatprep.subr.mxu0 0.0
    %3390 = vmatpush1.msra.mxu0 %v3353
    %3391 = vmatprep.subr.mxu0 0.0
    %3392 = vmatpush1.msra.mxu0 %v3354
    %3393 = vmatprep.subr.mxu0 0.0
    %3394 = vmatpush1.msra.mxu0 %v3355
    %3395 = vmatprep.subr.mxu0 0.0
    %3396 = vmatpush1.msra.mxu0 0.0
    %3397 = vmatprep.subr.mxu0 0.0
    %3398 = vmatpush1.msra.mxu0 0.0
    %3399 = vmatprep.subr.mxu0 0.0
    %3400 = vmatpush1.msra.mxu0 0.0
    %3401 = vmatprep.subr.mxu0 0.0
    %3402 = vmatpush1.msra.mxu0 0.0
    %3403 = vmatprep.subr.mxu0 0.0
    %3404 = vmatpush1.msra.mxu0 0.0
    %3405 = vmatprep.subr.mxu0 0.0
    %3406 = vmatpush1.msra.mxu0 0.0
    %3407 = vmatprep.subr.mxu0 0.0
    %3408 = vmatpush1.msra.mxu0 0.0
    %3409 = vmatprep.subr.mxu0 0.0
    %3410 = vmatpush1.msra.mxu0 0.0
    %3411 = vmatprep.subr.mxu0 0.0
    %3412 = vmatpush1.msra.mxu0 0.0
    %3413 = vmatprep.subr.mxu0 0.0
    %3414 = vmatpush1.msra.mxu0 0.0
    %3415 = vmatprep.subr.mxu0 0.0
    %3416 = vmatpush1.msra.mxu0 0.0
    %3417 = vmatprep.subr.mxu0 0.0
    %3418 = vmatpush1.msra.mxu0 0.0
    %3419 = vmatprep.subr.mxu0 0.0
    %3420 = vmatpush1.msra.mxu0 0.0
    %3421 = vmatprep.subr.mxu0 0.0
    %3422 = vmatpush1.msra.mxu0 0.0
    %3423 = vmatprep.subr.mxu0 0.0
    %3424 = vmatpush1.msra.mxu0 0.0
    %3425 = vmatprep.subr.mxu0 0.0
    %3426 = vmatpush1.msra.mxu0 0.0
    %3427 = vmatprep.subr.mxu0 0.0
    %3428 = vmatpush1.msra.mxu0 0.0
    %3429 = vmatprep.subr.mxu0 0.0
    %3430 = vmatpush1.msra.mxu0 0.0
    %3431 = vmatprep.subr.mxu0 0.0
    %3432 = vmatpush1.msra.mxu0 0.0
    %3433 = vmatprep.subr.mxu0 0.0
    %3434 = vmatpush1.msra.mxu0 0.0
    %3435 = vmatprep.subr.mxu0 0.0
    %3436 = vmatpush1.msra.mxu0 0.0
    %3437 = vmatprep.subr.mxu0 0.0
    %3438 = vmatpush1.msra.mxu0 0.0
    %3439 = vmatprep.mubr.f32.mxu0 0.0
    %3440 = vmatmul.mubr.f32.gmra.mrb[0].mxu0 %v3364
    %v3441 = vpop.f32.mrb[0].mxu0
    %v3442 = vadd.f32 %v3361, %v3441
    %v3443 = vpop.f32.mrb[0].mxu0
    %3444 = vmatprep.mubr.f32.mxu0 0.0
    %3445 = vmatmul.mubr.f32.gmra.mrb[0].mxu0 %v3367
    %v3446 = vpop.f32.mrb[0].mxu0
    %v3447 = vadd.f32 %v3361, %v3446
    %v3448 = vpop.f32.mrb[0].mxu0
    %3449 = vmatprep.mubr.f32.mxu0 0.0
    %3450 = vmatmul.mubr.f32.gmra.mrb[0].mxu0 %v3370
    %v3451 = vpop.f32.mrb[0].mxu0
    %v3452 = vadd.f32 %v3361, %v3451
    %v3453 = vpop.f32.mrb[0].mxu0
    %3454 = vmatprep.mubr.f32.mxu0 0.0
    %3455 = vmatmul.mubr.f32.gmra.mrb[0].mxu0 %v3373
    %v3456 = vpop.f32.mrb[0].mxu0
    %v3457 = vadd.f32 %v3361, %v3456
    %v3458 = vpop.f32.mrb[0].mxu0
    %3459 = vdwg.mxu0
    %v3460 = vld [vmem:[%s67] sm:$0x1]
    %v3461 = vld [vmem:[%s69] sm:$0x1]
    %vm3462 = vcmask 785408
    %v3463 = vsel %vm3462, %v3442, 0.0
    %v3464 = vsel %vm3462, %v3447, 0.0
    %v3465 = vadd.f32 %v3463, %v3464
    %v3466 = vsel %vm3462, %v3452, 0.0
    %v3467 = vadd.f32 %v3465, %v3466
    %v3468 = vsel %vm3462, %v3457, 0.0
    %v3469 = vadd.f32 %v3467, %v3468
    %v3470 = vrot.slane %v3469, 4
    %v3471 = vadd.f32 %v3469, %v3470
    %v3472 = vrot.slane %v3471, 2
    %v3473 = vadd.f32 %v3471, %v3472
    %v3474 = vrot.slane %v3473, 1
    %v3475 = vadd.f32 %v3473, %v3474
    %v3476 = vmul.f32 %v3475, %v908
    %v3477 = vsub.f32 %v3442, %v3476
    %v3478 = vsub.f32 %v3447, %v3476
    %v3479 = vsub.f32 %v3452, %v3476
    %v3480 = vsub.f32 %v3457, %v3476
    %v3481 = vmul.f32 %v3477, %v3477
    %v3482 = vmul.f32 %v3478, %v3478
    %v3483 = vmul.f32 %v3479, %v3479
    %v3484 = vmul.f32 %v3480, %v3480
    %v3485 = vsel %vm3462, %v3481, 0.0
    %v3486 = vsel %vm3462, %v3482, 0.0
    %v3487 = vadd.f32 %v3485, %v3486
    %v3488 = vsel %vm3462, %v3483, 0.0
    %v3489 = vadd.f32 %v3487, %v3488
    %v3490 = vsel %vm3462, %v3484, 0.0
    %v3491 = vadd.f32 %v3489, %v3490
    %v3492 = vrot.slane %v3491, 4
    %v3493 = vadd.f32 %v3491, %v3492
    %v3494 = vrot.slane %v3493, 2
    %v3495 = vadd.f32 %v3493, %v3494
    %v3496 = vrot.slane %v3495, 1
    %v3497 = vadd.f32 %v3495, %v3496
    %v3498 = vmul.f32 %v3497, %v908
    %v3499 = vadd.f32 %v3498, 1e-05
    %v3500 = vrsqrt.pop %v3499
    %v3501 = vmul.f32 %v3477, %v3500
    %v3502 = vmul.f32 %v3478, %v3500
    %v3503 = vmul.f32 %v3479, %v3500
    %v3504 = vmul.f32 %v3480, %v3500
    %v3506 = vlaneseq
    %v3507 = vshrl.u32 %v3506, 7
    %v3508 = vsub.s32 0, %v3507
    %v3509 = vrot.slane %v3460, %v3508
    %v3511 = vmul.f32 %v3501, %v3509
    %v3512 = vmul.f32 %v3502, %v3509
    %v3513 = vmul.f32 %v3503, %v3509
    %v3514 = vmul.f32 %v3504, %v3509
    %v3516 = vlaneseq
    %v3517 = vshrl.u32 %v3516, 7
    %v3518 = vsub.s32 0, %v3517
    %v3519 = vrot.slane %v3461, %v3518
    %v3521 = vadd.f32 %v3511, %v3519
    %v3522 = vadd.f32 %v3512, %v3519
    %v3523 = vadd.f32 %v3513, %v3519
    %v3524 = vadd.f32 %v3514, %v3519
    %v3525 = vld [vmem:[#allocation41] sm:$0xff]
    %v3526 = vld [vmem:[#allocation41 + $0x8] sm:$0xff]
    %v3527 = vld [vmem:[#allocation41 + $0x10] sm:$0xff]
    %v3528 = vld [vmem:[#allocation41 + $0x18] sm:$0xff]
    %v3529 = vld [vmem:[#allocation41 + $0x20] sm:$0xff]
    %v3530 = vld [vmem:[#allocation41 + $0x28] sm:$0xff]
    %v3531 = vld [vmem:[#allocation41 + $0x30] sm:$0xff]
    %v3532 = vld [vmem:[#allocation41 + $0x38] sm:$0xff]
    %v3533 = vld [vmem:[#allocation41 + $0x40] sm:$0xff]
    %v3534 = vld [vmem:[#allocation41 + $0x48] sm:$0xff]
    %v3536 = vsel %vm3021, %v3257, 0
    %v3539 = vsel %vm3021, %v3258, 0
    %v3542 = vsel %vm3021, %v3259, 0
    %v3545 = vsel %vm3021, %v3260, 0
    %3547 = vmatprep.subr.mxu0 0.0
    %3548 = vmatpush1.msra.mxu0 %v3525
    %3549 = vmatprep.subr.mxu0 0.0
    %3550 = vmatpush1.msra.mxu0 %v3526
    %3551 = vmatprep.subr.mxu0 0.0
    %3552 = vmatpush1.msra.mxu0 %v3527
    %3553 = vmatprep.subr.mxu0 0.0
    %3554 = vmatpush1.msra.mxu0 %v3528
    %3555 = vmatprep.subr.mxu0 0.0
    %3556 = vmatpush1.msra.mxu0 %v3529
    %3557 = vmatprep.subr.mxu0 0.0
    %3558 = vmatpush1.msra.mxu0 %v3530
    %3559 = vmatprep.subr.mxu0 0.0
    %3560 = vmatpush1.msra.mxu0 %v3531
    %3561 = vmatprep.subr.mxu0 0.0
    %3562 = vmatpush1.msra.mxu0 %v3532
    %3563 = vmatprep.subr.mxu0 0.0
    %3564 = vmatpush1.msra.mxu0 %v3533
    %3565 = vmatprep.subr.mxu0 0.0
    %3566 = vmatpush1.msra.mxu0 %v3534
    %3567 = vmatprep.subr.mxu0 0.0
    %3568 = vmatpush1.msra.mxu0 0.0
    %3569 = vmatprep.subr.mxu0 0.0
    %3570 = vmatpush1.msra.mxu0 0.0
    %3571 = vmatprep.subr.mxu0 0.0
    %3572 = vmatpush1.msra.mxu0 0.0
    %3573 = vmatprep.subr.mxu0 0.0
    %3574 = vmatpush1.msra.mxu0 0.0
    %3575 = vmatprep.subr.mxu0 0.0
    %3576 = vmatpush1.msra.mxu0 0.0
    %3577 = vmatprep.subr.mxu0 0.0
    %3578 = vmatpush1.msra.mxu0 0.0
    %3579 = vmatprep.subr.mxu0 0.0
    %3580 = vmatpush1.msra.mxu0 0.0
    %3581 = vmatprep.subr.mxu0 0.0
    %3582 = vmatpush1.msra.mxu0 0.0
    %3583 = vmatprep.subr.mxu0 0.0
    %3584 = vmatpush1.msra.mxu0 0.0
    %3585 = vmatprep.subr.mxu0 0.0
    %3586 = vmatpush1.msra.mxu0 0.0
    %3587 = vmatprep.subr.mxu0 0.0
    %3588 = vmatpush1.msra.mxu0 0.0
    %3589 = vmatprep.subr.mxu0 0.0
    %3590 = vmatpush1.msra.mxu0 0.0
    %3591 = vmatprep.subr.mxu0 0.0
    %3592 = vmatpush1.msra.mxu0 0.0
    %3593 = vmatprep.subr.mxu0 0.0
    %3594 = vmatpush1.msra.mxu0 0.0
    %3595 = vmatprep.subr.mxu0 0.0
    %3596 = vmatpush1.msra.mxu0 0.0
    %3597 = vmatprep.subr.mxu0 0.0
    %3598 = vmatpush1.msra.mxu0 0.0
    %3599 = vmatprep.subr.mxu0 0.0
    %3600 = vmatpush1.msra.mxu0 0.0
    %3601 = vmatprep.subr.mxu0 0.0
    %3602 = vmatpush1.msra.mxu0 0.0
    %3603 = vmatprep.subr.mxu0 0.0
    %3604 = vmatpush1.msra.mxu0 0.0
    %3605 = vmatprep.subr.mxu0 0.0
    %3606 = vmatpush1.msra.mxu0 0.0
    %3607 = vmatprep.subr.mxu0 0.0
    %3608 = vmatpush1.msra.mxu0 0.0
    %3609 = vmatprep.subr.mxu0 0.0
    %3610 = vmatpush1.msra.mxu0 0.0
    %3611 = vmatprep.mubr.f32.mxu0 0.0
    %3612 = vmatmul.mubr.f32.gmra.mrb[0].mxu0 %v3536
    %v3613 = vpop.f32.mrb[0].mxu0
    %v3614 = vadd.f32 0.0, %v3613
    %v3615 = vpop.f32.mrb[0].mxu0
    %3616 = vmatprep.mubr.f32.mxu0 0.0
    %3617 = vmatmul.mubr.f32.gmra.mrb[0].mxu0 %v3539
    %v3618 = vpop.f32.mrb[0].mxu0
    %v3619 = vadd.f32 0.0, %v3618
    %v3620 = vpop.f32.mrb[0].mxu0
    %3621 = vmatprep.mubr.f32.mxu0 0.0
    %3622 = vmatmul.mubr.f32.gmra.mrb[0].mxu0 %v3542
    %v3623 = vpop.f32.mrb[0].mxu0
    %v3624 = vadd.f32 0.0, %v3623
    %v3625 = vpop.f32.mrb[0].mxu0
    %3626 = vmatprep.mubr.f32.mxu0 0.0
    %3627 = vmatmul.mubr.f32.gmra.mrb[0].mxu0 %v3545
    %v3628 = vpop.f32.mrb[0].mxu0
    %v3629 = vadd.f32 0.0, %v3628
    %v3630 = vpop.f32.mrb[0].mxu0
    %3631 = vdwg.mxu0
    %v3632 = vld [vmem:[%s127] sm:$0x1]
    %v3633 = vld [vmem:[%s129] sm:$0x1]
    %v3634 = vsel %vm3462, %v3614, 0.0
    %v3635 = vsel %vm3462, %v3619, 0.0
    %v3636 = vadd.f32 %v3634, %v3635
    %v3637 = vsel %vm3462, %v3624, 0.0
    %v3638 = vadd.f32 %v3636, %v3637
    %v3639 = vsel %vm3462, %v3629, 0.0
    %v3640 = vadd.f32 %v3638, %v3639
    %v3641 = vrot.slane %v3640, 4
    %v3642 = vadd.f32 %v3640, %v3641
    %v3643 = vrot.slane %v3642, 2
    %v3644 = vadd.f32 %v3642, %v3643
    %v3645 = vrot.slane %v3644, 1
    %v3646 = vadd.f32 %v3644, %v3645
    %v3647 = vmul.f32 %v3646, %v908
    %v3648 = vsub.f32 %v3614, %v3647
    %v3649 = vsub.f32 %v3619, %v3647
    %v3650 = vsub.f32 %v3624, %v3647
    %v3651 = vsub.f32 %v3629, %v3647
    %v3652 = vmul.f32 %v3648, %v3648
    %v3653 = vmul.f32 %v3649, %v3649
    %v3654 = vmul.f32 %v3650, %v3650
    %v3655 = vmul.f32 %v3651, %v3651
    %v3656 = vsel %vm3462, %v3652, 0.0
    %v3657 = vsel %vm3462, %v3653, 0.0
    %v3658 = vadd.f32 %v3656, %v3657
    %v3659 = vsel %vm3462, %v3654, 0.0
    %v3660 = vadd.f32 %v3658, %v3659
    %v3661 = vsel %vm3462, %v3655, 0.0
    %v3662 = vadd.f32 %v3660, %v3661
    %v3663 = vrot.slane %v3662, 4
    %v3664 = vadd.f32 %v3662, %v3663
    %v3665 = vrot.slane %v3664, 2
    %v3666 = vadd.f32 %v3664, %v3665
    %v3667 = vrot.slane %v3666, 1
    %v3668 = vadd.f32 %v3666, %v3667
    %v3669 = vmul.f32 %v3668, %v908
    %v3670 = vadd.f32 %v3669, 1e-05
    %v3671 = vrsqrt.pop %v3670
    %v3672 = vmul.f32 %v3648, %v3671
    %v3673 = vmul.f32 %v3649, %v3671
    %v3674 = vmul.f32 %v3650, %v3671
    %v3675 = vmul.f32 %v3651, %v3671
    %v3677 = vlaneseq
    %v3678 = vshrl.u32 %v3677, 7
    %v3679 = vsub.s32 0, %v3678
    %v3680 = vrot.slane %v3632, %v3679
    %v3682 = vmul.f32 %v3672, %v3680
    %v3683 = vmul.f32 %v3673, %v3680
    %v3684 = vmul.f32 %v3674, %v3680
    %v3685 = vmul.f32 %v3675, %v3680
    %v3687 = vlaneseq
    %v3688 = vshrl.u32 %v3687, 7
    %v3689 = vsub.s32 0, %v3688
    %v3690 = vrot.slane %v3633, %v3689
    %v3692 = vadd.f32 %v3682, %v3690
    %v3693 = vadd.f32 %v3683, %v3690
    %v3694 = vadd.f32 %v3684, %v3690
    %v3695 = vadd.f32 %v3685, %v3690
    %v3696 = vadd.f32 %v3521, %v3692
    %v3697 = vadd.f32 %v3522, %v3693
    %v3698 = vadd.f32 %v3523, %v3694
    %v3699 = vadd.f32 %v3524, %v3695
    %v3700 = vmax.f32 %v3696, 0.0
    %v3701 = vmax.f32 %v3697, 0.0
    %v3702 = vmax.f32 %v3698, 0.0
    %v3703 = vmax.f32 %v3699, 0.0
    %3704 = vmatprep.subr.mxu0 0.0
    %3705 = vmatpush1.msra.mxu0 %v3700
    %3706 = vmatprep.subr.mxu0 0.0
    %3707 = vmatpush1.msra.mxu0 %v3701
    %3708 = vmatprep.subr.mxu0 0.0
    %3709 = vmatpush1.msra.mxu0 %v3702
    %3710 = vmatprep.subr.mxu0 0.0
    %3711 = vmatpush1.msra.mxu0 %v3703
    %3712 = vmatprep.subr.mxu0 0.0
    %3713 = vmatpush1.msra.mxu0 0.0
    %3714 = vmatprep.subr.mxu0 0.0
    %3715 = vmatpush1.msra.mxu0 0.0
    %3716 = vmatprep.subr.mxu0 0.0
    %3717 = vmatpush1.msra.mxu0 0.0
    %3718 = vmatprep.subr.mxu0 0.0
    %3719 = vmatpush1.msra.mxu0 0.0
    %3720 = vmatprep.subr.mxu0 0.0
    %3721 = vmatpush1.msra.mxu0 0.0
    %3722 = vmatprep.subr.mxu0 0.0
    %3723 = vmatpush1.msra.mxu0 0.0
    %3724 = vmatprep.subr.mxu0 0.0
    %3725 = vmatpush1.msra.mxu0 0.0
    %3726 = vmatprep.subr.mxu0 0.0
    %3727 = vmatpush1.msra.mxu0 0.0
    %3728 = vmatprep.subr.mxu0 0.0
    %3729 = vmatpush1.msra.mxu0 0.0
    %3730 = vmatprep.subr.mxu0 0.0
    %3731 = vmatpush1.msra.mxu0 0.0
    %3732 = vmatprep.subr.mxu0 0.0
    %3733 = vmatpush1.msra.mxu0 0.0
    %3734 = vmatprep.subr.mxu0 0.0
    %3735 = vmatpush1.msra.mxu0 0.0
    %3736 = vmatprep.subr.mxu0 0.0
    %3737 = vmatpush1.msra.mxu0 0.0
    %3738 = vmatprep.subr.mxu0 0.0
    %3739 = vmatpush1.msra.mxu0 0.0
    %3740 = vmatprep.subr.mxu0 0.0
    %3741 = vmatpush1.msra.mxu0 0.0
    %3742 = vmatprep.subr.mxu0 0.0
    %3743 = vmatpush1.msra.mxu0 0.0
    %3744 = vmatprep.subr.mxu0 0.0
    %3745 = vmatpush1.msra.mxu0 0.0
    %3746 = vmatprep.subr.mxu0 0.0
    %3747 = vmatpush1.msra.mxu0 0.0
    %3748 = vmatprep.subr.mxu0 0.0
    %3749 = vmatpush1.msra.mxu0 0.0
    %3750 = vmatprep.subr.mxu0 0.0
    %3751 = vmatpush1.msra.mxu0 0.0
    %3752 = vmatprep.subr.mxu0 0.0
    %3753 = vmatpush1.msra.mxu0 0.0
    %3754 = vmatprep.subr.mxu0 0.0
    %3755 = vmatpush1.msra.mxu0 0.0
    %3756 = vmatprep.subr.mxu0 0.0
    %3757 = vmatpush1.msra.mxu0 0.0
    %3758 = vmatprep.subr.mxu0 0.0
    %3759 = vmatpush1.msra.mxu0 0.0
    %3760 = vmatprep.subr.mxu0 0.0
    %3761 = vmatpush1.msra.mxu0 0.0
    %3762 = vmatprep.subr.mxu0 0.0
    %3763 = vmatpush1.msra.mxu0 0.0
    %3764 = vmatprep.subr.mxu0 0.0
    %3765 = vmatpush1.msra.mxu0 0.0
    %3766 = vmatprep.subr.mxu0 0.0
    %3767 = vmatpush1.msra.mxu0 0.0
    %3768 = vmatprep.mubr.f32.mxu0 0.0
    %3769 = vmatmul.mubr.f32.gmra.mrb[0].mxu0 %v964
    %v3770 = vpop.f32.mrb[0].mxu0
    %v3771 = vadd.f32 0.0, %v3770
    %v3772 = vpop.f32.mrb[0].mxu0
    %3773 = vmatprep.mubr.f32.mxu0 0.0
    %3774 = vmatmul.mubr.f32.gmra.mrb[0].mxu0 %v967
    %v3775 = vpop.f32.mrb[0].mxu0
    %v3776 = vadd.f32 0.0, %v3775
    %v3777 = vpop.f32.mrb[0].mxu0
    %3778 = vmatprep.mubr.f32.mxu0 0.0
    %3779 = vmatmul.mubr.f32.gmra.mrb[0].mxu0 %v970
    %v3780 = vpop.f32.mrb[0].mxu0
    %v3781 = vadd.f32 0.0, %v3780
    %v3782 = vpop.f32.mrb[0].mxu0
    %3783 = vmatprep.mubr.f32.mxu0 0.0
    %3784 = vmatmul.mubr.f32.gmra.mrb[0].mxu0 %v973
    %v3785 = vpop.f32.mrb[0].mxu0
    %v3786 = vadd.f32 0.0, %v3785
    %v3787 = vpop.f32.mrb[0].mxu0
    %3788 = vdwg.mxu0
    %v3789 = vld [vmem:[#allocation26] sm:$0xff]
    %v3790 = vld [vmem:[#allocation26 + $0x8] sm:$0xff]
    %v3791 = vld [vmem:[#allocation26 + $0x10] sm:$0xff]
    %v3792 = vld [vmem:[#allocation26 + $0x18] sm:$0xff]
    %v3793 = vld [vmem:[#allocation26 + $0x20] sm:$0xff]
    %v3794 = vld [vmem:[#allocation26 + $0x28] sm:$0xff]
    %v3795 = vld [vmem:[#allocation26 + $0x30] sm:$0xff]
    %v3796 = vld [vmem:[#allocation26 + $0x38] sm:$0xff]
    %v3797 = vld [vmem:[#allocation26 + $0x40] sm:$0xff]
    %v3798 = vld [vmem:[#allocation26 + $0x48] sm:$0xff]
    %v3799 = vld [vmem:[#allocation26 + $0x50] sm:$0xff]
    %v3800 = vld [vmem:[#allocation26 + $0x58] sm:$0xff]
    %v3801 = vld [vmem:[#allocation28] sm:$0x1]
    %v3803 = vlaneseq
    %v3804 = vshrl.u32 %v3803, 7
    %v3805 = vsub.s32 0, %v3804
    %v3806 = vrot.slane %v3801, %v3805
    %v3809 = vsel %vm3462, %v3771, 0
    %v3812 = vsel %vm3462, %v3776, 0
    %v3815 = vsel %vm3462, %v3781, 0
    %v3818 = vsel %vm3462, %v3786, 0
    %3820 = vmatprep.subr.mxu0 0.0
    %3821 = vmatpush1.msra.mxu0 %v3789
    %3822 = vmatprep.subr.mxu0 0.0
    %3823 = vmatpush1.msra.mxu0 %v3790
    %3824 = vmatprep.subr.mxu0 0.0
    %3825 = vmatpush1.msra.mxu0 %v3791
    %3826 = vmatprep.subr.mxu0 0.0
    %3827 = vmatpush1.msra.mxu0 %v3792
    %3828 = vmatprep.subr.mxu0 0.0
    %3829 = vmatpush1.msra.mxu0 %v3793
    %3830 = vmatprep.subr.mxu0 0.0
    %3831 = vmatpush1.msra.mxu0 %v3794
    %3832 = vmatprep.subr.mxu0 0.0
    %3833 = vmatpush1.msra.mxu0 %v3795
    %3834 = vmatprep.subr.mxu0 0.0
    %3835 = vmatpush1.msra.mxu0 %v3796
    %3836 = vmatprep.subr.mxu0 0.0
    %3837 = vmatpush1.msra.mxu0 %v3797
    %3838 = vmatprep.subr.mxu0 0.0
    %3839 = vmatpush1.msra.mxu0 %v3798
    %3840 = vmatprep.subr.mxu0 0.0
    %3841 = vmatpush1.msra.mxu0 %v3799
    %3842 = vmatprep.subr.mxu0 0.0
    %3843 = vmatpush1.msra.mxu0 %v3800
    %3844 = vmatprep.subr.mxu0 0.0
    %3845 = vmatpush1.msra.mxu0 0.0
    %3846 = vmatprep.subr.mxu0 0.0
    %3847 = vmatpush1.msra.mxu0 0.0
    %3848 = vmatprep.subr.mxu0 0.0
    %3849 = vmatpush1.msra.mxu0 0.0
    %3850 = vmatprep.subr.mxu0 0.0
    %3851 = vmatpush1.msra.mxu0 0.0
    %3852 = vmatprep.subr.mxu0 0.0
    %3853 = vmatpush1.msra.mxu0 0.0
    %3854 = vmatprep.subr.mxu0 0.0
    %3855 = vmatpush1.msra.mxu0 0.0
    %3856 = vmatprep.subr.mxu0 0.0
    %3857 = vmatpush1.msra.mxu0 0.0
    %3858 = vmatprep.subr.mxu0 0.0
    %3859 = vmatpush1.msra.mxu0 0.0
    %3860 = vmatprep.subr.mxu0 0.0
    %3861 = vmatpush1.msra.mxu0 0.0
    %3862 = vmatprep.subr.mxu0 0.0
    %3863 = vmatpush1.msra.mxu0 0.0
    %3864 = vmatprep.subr.mxu0 0.0
    %3865 = vmatpush1.msra.mxu0 0.0
    %3866 = vmatprep.subr.mxu0 0.0
    %3867 = vmatpush1.msra.mxu0 0.0
    %3868 = vmatprep.subr.mxu0 0.0
    %3869 = vmatpush1.msra.mxu0 0.0
    %3870 = vmatprep.subr.mxu0 0.0
    %3871 = vmatpush1.msra.mxu0 0.0
    %3872 = vmatprep.subr.mxu0 0.0
    %3873 = vmatpush1.msra.mxu0 0.0
    %3874 = vmatprep.subr.mxu0 0.0
    %3875 = vmatpush1.msra.mxu0 0.0
    %3876 = vmatprep.subr.mxu0 0.0
    %3877 = vmatpush1.msra.mxu0 0.0
    %3878 = vmatprep.subr.mxu0 0.0
    %3879 = vmatpush1.msra.mxu0 0.0
    %3880 = vmatprep.subr.mxu0 0.0
    %3881 = vmatpush1.msra.mxu0 0.0
    %3882 = vmatprep.subr.mxu0 0.0
    %3883 = vmatpush1.msra.mxu0 0.0
    %3884 = vmatprep.mubr.f32.mxu0 0.0
    %3885 = vmatmul.mubr.f32.gmra.mrb[0].mxu0 %v3809
    %v3886 = vpop.f32.mrb[0].mxu0
    %v3887 = vadd.f32 %v3806, %v3886
    %v3888 = vpop.f32.mrb[0].mxu0
    %3889 = vmatprep.mubr.f32.mxu0 0.0
    %3890 = vmatmul.mubr.f32.gmra.mrb[0].mxu0 %v3812
    %v3891 = vpop.f32.mrb[0].mxu0
    %v3892 = vadd.f32 %v3806, %v3891
    %v3893 = vpop.f32.mrb[0].mxu0
    %3894 = vmatprep.mubr.f32.mxu0 0.0
    %3895 = vmatmul.mubr.f32.gmra.mrb[0].mxu0 %v3815
    %v3896 = vpop.f32.mrb[0].mxu0
    %v3897 = vadd.f32 %v3806, %v3896
    %v3898 = vpop.f32.mrb[0].mxu0
    %3899 = vmatprep.mubr.f32.mxu0 0.0
    %3900 = vmatmul.mubr.f32.gmra.mrb[0].mxu0 %v3818
    %v3901 = vpop.f32.mrb[0].mxu0
    %v3902 = vadd.f32 %v3806, %v3901
    %v3903 = vpop.f32.mrb[0].mxu0
    %3904 = vdwg.mxu0
    %v3905 = vld [vmem:[%s75] sm:$0x1]
    %v3906 = vld [vmem:[%s77] sm:$0x1]
    %v3907 = vsel %vm3462, %v3887, 0.0
    %v3908 = vsel %vm3462, %v3892, 0.0
    %v3909 = vadd.f32 %v3907, %v3908
    %v3910 = vsel %vm3462, %v3897, 0.0
    %v3911 = vadd.f32 %v3909, %v3910
    %v3912 = vsel %vm3462, %v3902, 0.0
    %v3913 = vadd.f32 %v3911, %v3912
    %v3914 = vrot.slane %v3913, 4
    %v3915 = vadd.f32 %v3913, %v3914
    %v3916 = vrot.slane %v3915, 2
    %v3917 = vadd.f32 %v3915, %v3916
    %v3918 = vrot.slane %v3917, 1
    %v3919 = vadd.f32 %v3917, %v3918
    %v3920 = vmul.f32 %v3919, %v908
    %v3921 = vsub.f32 %v3887, %v3920
    %v3922 = vsub.f32 %v3892, %v3920
    %v3923 = vsub.f32 %v3897, %v3920
    %v3924 = vsub.f32 %v3902, %v3920
    %v3925 = vmul.f32 %v3921, %v3921
    %v3926 = vmul.f32 %v3922, %v3922
    %v3927 = vmul.f32 %v3923, %v3923
    %v3928 = vmul.f32 %v3924, %v3924
    %v3929 = vsel %vm3462, %v3925, 0.0
    %v3930 = vsel %vm3462, %v3926, 0.0
    %v3931 = vadd.f32 %v3929, %v3930
    %v3932 = vsel %vm3462, %v3927, 0.0
    %v3933 = vadd.f32 %v3931, %v3932
    %v3934 = vsel %vm3462, %v3928, 0.0
    %v3935 = vadd.f32 %v3933, %v3934
    %v3936 = vrot.slane %v3935, 4
    %v3937 = vadd.f32 %v3935, %v3936
    %v3938 = vrot.slane %v3937, 2
    %v3939 = vadd.f32 %v3937, %v3938
    %v3940 = vrot.slane %v3939, 1
    %v3941 = vadd.f32 %v3939, %v3940
    %v3942 = vmul.f32 %v3941, %v908
    %v3943 = vadd.f32 %v3942, 1e-05
    %v3944 = vrsqrt.pop %v3943
    %v3945 = vmul.f32 %v3921, %v3944
    %v3946 = vmul.f32 %v3922, %v3944
    %v3947 = vmul.f32 %v3923, %v3944
    %v3948 = vmul.f32 %v3924, %v3944
    %v3950 = vlaneseq
    %v3951 = vshrl.u32 %v3950, 7
    %v3952 = vsub.s32 0, %v3951
    %v3953 = vrot.slane %v3905, %v3952
    %v3955 = vmul.f32 %v3945, %v3953
    %v3956 = vmul.f32 %v3946, %v3953
    %v3957 = vmul.f32 %v3947, %v3953
    %v3958 = vmul.f32 %v3948, %v3953
    %v3960 = vlaneseq
    %v3961 = vshrl.u32 %v3960, 7
    %v3962 = vsub.s32 0, %v3961
    %v3963 = vrot.slane %v3906, %v3962
    %v3965 = vadd.f32 %v3955, %v3963
    %v3966 = vadd.f32 %v3956, %v3963
    %v3967 = vadd.f32 %v3957, %v3963
    %v3968 = vadd.f32 %v3958, %v3963
    %v3969 = vadd.f32 %v3965, %v3700
    %v3970 = vadd.f32 %v3966, %v3701
    %v3971 = vadd.f32 %v3967, %v3702
    %v3972 = vadd.f32 %v3968, %v3703
    %v3973 = vmax.f32 %v3969, 0.0
    %v3974 = vmax.f32 %v3970, 0.0
    %v3975 = vmax.f32 %v3971, 0.0
    %v3976 = vmax.f32 %v3972, 0.0
    %3977 = vmatprep.subr.mxu0 0.0
    %3978 = vmatpush1.msra.mxu0 %v3973
    %3979 = vmatprep.subr.mxu0 0.0
    %3980 = vmatpush1.msra.mxu0 %v3974
    %3981 = vmatprep.subr.mxu0 0.0
    %3982 = vmatpush1.msra.mxu0 %v3975
    %3983 = vmatprep.subr.mxu0 0.0
    %3984 = vmatpush1.msra.mxu0 %v3976
    %3985 = vmatprep.subr.mxu0 0.0
    %3986 = vmatpush1.msra.mxu0 0.0
    %3987 = vmatprep.subr.mxu0 0.0
    %3988 = vmatpush1.msra.mxu0 0.0
    %3989 = vmatprep.subr.mxu0 0.0
    %3990 = vmatpush1.msra.mxu0 0.0
    %3991 = vmatprep.subr.mxu0 0.0
    %3992 = vmatpush1.msra.mxu0 0.0
    %3993 = vmatprep.subr.mxu0 0.0
    %3994 = vmatpush1.msra.mxu0 0.0
    %3995 = vmatprep.subr.mxu0 0.0
    %3996 = vmatpush1.msra.mxu0 0.0
    %3997 = vmatprep.subr.mxu0 0.0
    %3998 = vmatpush1.msra.mxu0 0.0
    %3999 = vmatprep.subr.mxu0 0.0
    %4000 = vmatpush1.msra.mxu0 0.0
    %4001 = vmatprep.subr.mxu0 0.0
    %4002 = vmatpush1.msra.mxu0 0.0
    %4003 = vmatprep.subr.mxu0 0.0
    %4004 = vmatpush1.msra.mxu0 0.0
    %4005 = vmatprep.subr.mxu0 0.0
    %4006 = vmatpush1.msra.mxu0 0.0
    %4007 = vmatprep.subr.mxu0 0.0
    %4008 = vmatpush1.msra.mxu0 0.0
    %4009 = vmatprep.subr.mxu0 0.0
    %4010 = vmatpush1.msra.mxu0 0.0
    %4011 = vmatprep.subr.mxu0 0.0
    %4012 = vmatpush1.msra.mxu0 0.0
    %4013 = vmatprep.subr.mxu0 0.0
    %4014 = vmatpush1.msra.mxu0 0.0
    %4015 = vmatprep.subr.mxu0 0.0
    %4016 = vmatpush1.msra.mxu0 0.0
    %4017 = vmatprep.subr.mxu0 0.0
    %4018 = vmatpush1.msra.mxu0 0.0
    %4019 = vmatprep.subr.mxu0 0.0
    %4020 = vmatpush1.msra.mxu0 0.0
    %4021 = vmatprep.subr.mxu0 0.0
    %4022 = vmatpush1.msra.mxu0 0.0
    %4023 = vmatprep.subr.mxu0 0.0
    %4024 = vmatpush1.msra.mxu0 0.0
    %4025 = vmatprep.subr.mxu0 0.0
    %4026 = vmatpush1.msra.mxu0 0.0
    %4027 = vmatprep.subr.mxu0 0.0
    %4028 = vmatpush1.msra.mxu0 0.0
    %4029 = vmatprep.subr.mxu0 0.0
    %4030 = vmatpush1.msra.mxu0 0.0
    %4031 = vmatprep.subr.mxu0 0.0
    %4032 = vmatpush1.msra.mxu0 0.0
    %4033 = vmatprep.subr.mxu0 0.0
    %4034 = vmatpush1.msra.mxu0 0.0
    %4035 = vmatprep.subr.mxu0 0.0
    %4036 = vmatpush1.msra.mxu0 0.0
    %4037 = vmatprep.subr.mxu0 0.0
    %4038 = vmatpush1.msra.mxu0 0.0
    %4039 = vmatprep.subr.mxu0 0.0
    %4040 = vmatpush1.msra.mxu0 0.0
    %4041 = vmatprep.mubr.f32.mxu0 0.0
    %4042 = vmatmul.mubr.f32.gmra.mrb[0].mxu0 %v964
    %v4043 = vpop.f32.mrb[0].mxu0
    %v4044 = vadd.f32 0.0, %v4043
    %v4045 = vpop.f32.mrb[0].mxu0
    %4046 = vmatprep.mubr.f32.mxu0 0.0
    %4047 = vmatmul.mubr.f32.gmra.mrb[0].mxu0 %v967
    %v4048 = vpop.f32.mrb[0].mxu0
    %v4049 = vadd.f32 0.0, %v4048
    %v4050 = vpop.f32.mrb[0].mxu0
    %4051 = vmatprep.mubr.f32.mxu0 0.0
    %4052 = vmatmul.mubr.f32.gmra.mrb[0].mxu0 %v970
    %v4053 = vpop.f32.mrb[0].mxu0
    %v4054 = vadd.f32 0.0, %v4053
    %v4055 = vpop.f32.mrb[0].mxu0
    %4056 = vmatprep.mubr.f32.mxu0 0.0
    %4057 = vmatmul.mubr.f32.gmra.mrb[0].mxu0 %v973
    %v4058 = vpop.f32.mrb[0].mxu0
    %v4059 = vadd.f32 0.0, %v4058
    %v4060 = vpop.f32.mrb[0].mxu0
    %4061 = vdwg.mxu0
    %v4062 = vld [vmem:[#allocation29] sm:$0xff]
    %v4063 = vld [vmem:[#allocation29 + $0x8] sm:$0xff]
    %v4064 = vld [vmem:[#allocation29 + $0x10] sm:$0xff]
    %v4065 = vld [vmem:[#allocation29 + $0x18] sm:$0xff]
    %v4066 = vld [vmem:[#allocation29 + $0x20] sm:$0xff]
    %v4067 = vld [vmem:[#allocation29 + $0x28] sm:$0xff]
    %v4068 = vld [vmem:[#allocation29 + $0x30] sm:$0xff]
    %v4069 = vld [vmem:[#allocation29 + $0x38] sm:$0xff]
    %v4070 = vld [vmem:[#allocation29 + $0x40] sm:$0xff]
    %v4071 = vld [vmem:[#allocation29 + $0x48] sm:$0xff]
    %v4072 = vld [vmem:[#allocation29 + $0x50] sm:$0xff]
    %v4073 = vld [vmem:[#allocation29 + $0x58] sm:$0xff]
    %v4074 = vld [vmem:[#allocation31] sm:$0x1]
    %v4076 = vlaneseq
    %v4077 = vshrl.u32 %v4076, 7
    %v4078 = vsub.s32 0, %v4077
    %v4079 = vrot.slane %v4074, %v4078
    %v4082 = vsel %vm3462, %v4044, 0
    %v4085 = vsel %vm3462, %v4049, 0
    %v4088 = vsel %vm3462, %v4054, 0
    %v4091 = vsel %vm3462, %v4059, 0
    %4093 = vmatprep.subr.mxu0 0.0
    %4094 = vmatpush1.msra.mxu0 %v4062
    %4095 = vmatprep.subr.mxu0 0.0
    %4096 = vmatpush1.msra.mxu0 %v4063
    %4097 = vmatprep.subr.mxu0 0.0
    %4098 = vmatpush1.msra.mxu0 %v4064
    %4099 = vmatprep.subr.mxu0 0.0
    %4100 = vmatpush1.msra.mxu0 %v4065
    %4101 = vmatprep.subr.mxu0 0.0
    %4102 = vmatpush1.msra.mxu0 %v4066
    %4103 = vmatprep.subr.mxu0 0.0
    %4104 = vmatpush1.msra.mxu0 %v4067
    %4105 = vmatprep.subr.mxu0 0.0
    %4106 = vmatpush1.msra.mxu0 %v4068
    %4107 = vmatprep.subr.mxu0 0.0
    %4108 = vmatpush1.msra.mxu0 %v4069
    %4109 = vmatprep.subr.mxu0 0.0
    %4110 = vmatpush1.msra.mxu0 %v4070
    %4111 = vmatprep.subr.mxu0 0.0
    %4112 = vmatpush1.msra.mxu0 %v4071
    %4113 = vmatprep.subr.mxu0 0.0
    %4114 = vmatpush1.msra.mxu0 %v4072
    %4115 = vmatprep.subr.mxu0 0.0
    %4116 = vmatpush1.msra.mxu0 %v4073
    %4117 = vmatprep.subr.mxu0 0.0
    %4118 = vmatpush1.msra.mxu0 0.0
    %4119 = vmatprep.subr.mxu0 0.0
    %4120 = vmatpush1.msra.mxu0 0.0
    %4121 = vmatprep.subr.mxu0 0.0
    %4122 = vmatpush1.msra.mxu0 0.0
    %4123 = vmatprep.subr.mxu0 0.0
    %4124 = vmatpush1.msra.mxu0 0.0
    %4125 = vmatprep.subr.mxu0 0.0
    %4126 = vmatpush1.msra.mxu0 0.0
    %4127 = vmatprep.subr.mxu0 0.0
    %4128 = vmatpush1.msra.mxu0 0.0
    %4129 = vmatprep.subr.mxu0 0.0
    %4130 = vmatpush1.msra.mxu0 0.0
    %4131 = vmatprep.subr.mxu0 0.0
    %4132 = vmatpush1.msra.mxu0 0.0
    %4133 = vmatprep.subr.mxu0 0.0
    %4134 = vmatpush1.msra.mxu0 0.0
    %4135 = vmatprep.subr.mxu0 0.0
    %4136 = vmatpush1.msra.mxu0 0.0
    %4137 = vmatprep.subr.mxu0 0.0
    %4138 = vmatpush1.msra.mxu0 0.0
    %4139 = vmatprep.subr.mxu0 0.0
    %4140 = vmatpush1.msra.mxu0 0.0
    %4141 = vmatprep.subr.mxu0 0.0
    %4142 = vmatpush1.msra.mxu0 0.0
    %4143 = vmatprep.subr.mxu0 0.0
    %4144 = vmatpush1.msra.mxu0 0.0
    %4145 = vmatprep.subr.mxu0 0.0
    %4146 = vmatpush1.msra.mxu0 0.0
    %4147 = vmatprep.subr.mxu0 0.0
    %4148 = vmatpush1.msra.mxu0 0.0
    %4149 = vmatprep.subr.mxu0 0.0
    %4150 = vmatpush1.msra.mxu0 0.0
    %4151 = vmatprep.subr.mxu0 0.0
    %4152 = vmatpush1.msra.mxu0 0.0
    %4153 = vmatprep.subr.mxu0 0.0
    %4154 = vmatpush1.msra.mxu0 0.0
    %4155 = vmatprep.subr.mxu0 0.0
    %4156 = vmatpush1.msra.mxu0 0.0
    %4157 = vmatprep.mubr.f32.mxu0 0.0
    %4158 = vmatmul.mubr.f32.gmra.mrb[0].mxu0 %v4082
    %v4159 = vpop.f32.mrb[0].mxu0
    %v4160 = vadd.f32 %v4079, %v4159
    %v4161 = vpop.f32.mrb[0].mxu0
    %4162 = vmatprep.mubr.f32.mxu0 0.0
    %4163 = vmatmul.mubr.f32.gmra.mrb[0].mxu0 %v4085
    %v4164 = vpop.f32.mrb[0].mxu0
    %v4165 = vadd.f32 %v4079, %v4164
    %v4166 = vpop.f32.mrb[0].mxu0
    %4167 = vmatprep.mubr.f32.mxu0 0.0
    %4168 = vmatmul.mubr.f32.gmra.mrb[0].mxu0 %v4088
    %v4169 = vpop.f32.mrb[0].mxu0
    %v4170 = vadd.f32 %v4079, %v4169
    %v4171 = vpop.f32.mrb[0].mxu0
    %4172 = vmatprep.mubr.f32.mxu0 0.0
    %4173 = vmatmul.mubr.f32.gmra.mrb[0].mxu0 %v4091
    %v4174 = vpop.f32.mrb[0].mxu0
    %v4175 = vadd.f32 %v4079, %v4174
    %v4176 = vpop.f32.mrb[0].mxu0
    %4177 = vdwg.mxu0
    %v4178 = vld [vmem:[%s83] sm:$0x1]
    %v4179 = vld [vmem:[%s85] sm:$0x1]
    %vm4180 = vcmask 834560
    %v4181 = vsel %vm4180, %v4160, 0.0
    %v4182 = vsel %vm4180, %v4165, 0.0
    %v4183 = vadd.f32 %v4181, %v4182
    %v4184 = vsel %vm4180, %v4170, 0.0
    %v4185 = vadd.f32 %v4183, %v4184
    %v4186 = vsel %vm4180, %v4175, 0.0
    %v4187 = vadd.f32 %v4185, %v4186
    %v4188 = vrot.slane %v4187, 4
    %v4189 = vadd.f32 %v4187, %v4188
    %v4190 = vrot.slane %v4189, 2
    %v4191 = vadd.f32 %v4189, %v4190
    %v4192 = vrot.slane %v4191, 1
    %v4193 = vadd.f32 %v4191, %v4192
    %v4194 = vmul.f32 %v4193, %v908
    %v4195 = vsub.f32 %v4160, %v4194
    %v4196 = vsub.f32 %v4165, %v4194
    %v4197 = vsub.f32 %v4170, %v4194
    %v4198 = vsub.f32 %v4175, %v4194
    %v4199 = vmul.f32 %v4195, %v4195
    %v4200 = vmul.f32 %v4196, %v4196
    %v4201 = vmul.f32 %v4197, %v4197
    %v4202 = vmul.f32 %v4198, %v4198
    %v4203 = vsel %vm4180, %v4199, 0.0
    %v4204 = vsel %vm4180, %v4200, 0.0
    %v4205 = vadd.f32 %v4203, %v4204
    %v4206 = vsel %vm4180, %v4201, 0.0
    %v4207 = vadd.f32 %v4205, %v4206
    %v4208 = vsel %vm4180, %v4202, 0.0
    %v4209 = vadd.f32 %v4207, %v4208
    %v4210 = vrot.slane %v4209, 4
    %v4211 = vadd.f32 %v4209, %v4210
    %v4212 = vrot.slane %v4211, 2
    %v4213 = vadd.f32 %v4211, %v4212
    %v4214 = vrot.slane %v4213, 1
    %v4215 = vadd.f32 %v4213, %v4214
    %v4216 = vmul.f32 %v4215, %v908
    %v4217 = vadd.f32 %v4216, 1e-05
    %v4218 = vrsqrt.pop %v4217
    %v4219 = vmul.f32 %v4195, %v4218
    %v4220 = vmul.f32 %v4196, %v4218
    %v4221 = vmul.f32 %v4197, %v4218
    %v4222 = vmul.f32 %v4198, %v4218
    %v4224 = vlaneseq
    %v4225 = vshrl.u32 %v4224, 7
    %v4226 = vsub.s32 0, %v4225
    %v4227 = vrot.slane %v4178, %v4226
    %v4229 = vmul.f32 %v4219, %v4227
    %v4230 = vmul.f32 %v4220, %v4227
    %v4231 = vmul.f32 %v4221, %v4227
    %v4232 = vmul.f32 %v4222, %v4227
    %v4234 = vlaneseq
    %v4235 = vshrl.u32 %v4234, 7
    %v4236 = vsub.s32 0, %v4235
    %v4237 = vrot.slane %v4179, %v4236
    %v4239 = vadd.f32 %v4229, %v4237
    %v4240 = vadd.f32 %v4230, %v4237
    %v4241 = vadd.f32 %v4231, %v4237
    %v4242 = vadd.f32 %v4232, %v4237
    %v4243 = vld [vmem:[#allocation43] sm:$0xff]
    %v4244 = vld [vmem:[#allocation43 + $0x8] sm:$0xff]
    %v4245 = vld [vmem:[#allocation43 + $0x10] sm:$0xff]
    %v4246 = vld [vmem:[#allocation43 + $0x18] sm:$0xff]
    %v4247 = vld [vmem:[#allocation43 + $0x20] sm:$0xff]
    %v4248 = vld [vmem:[#allocation43 + $0x28] sm:$0xff]
    %v4249 = vld [vmem:[#allocation43 + $0x30] sm:$0xff]
    %v4250 = vld [vmem:[#allocation43 + $0x38] sm:$0xff]
    %v4251 = vld [vmem:[#allocation43 + $0x40] sm:$0xff]
    %v4252 = vld [vmem:[#allocation43 + $0x48] sm:$0xff]
    %v4253 = vld [vmem:[#allocation43 + $0x50] sm:$0xff]
    %v4254 = vld [vmem:[#allocation43 + $0x58] sm:$0xff]
    %v4256 = vsel %vm3462, %v3973, 0
    %v4259 = vsel %vm3462, %v3974, 0
    %v4262 = vsel %vm3462, %v3975, 0
    %v4265 = vsel %vm3462, %v3976, 0
    %4267 = vmatprep.subr.mxu0 0.0
    %4268 = vmatpush1.msra.mxu0 %v4243
    %4269 = vmatprep.subr.mxu0 0.0
    %4270 = vmatpush1.msra.mxu0 %v4244
    %4271 = vmatprep.subr.mxu0 0.0
    %4272 = vmatpush1.msra.mxu0 %v4245
    %4273 = vmatprep.subr.mxu0 0.0
    %4274 = vmatpush1.msra.mxu0 %v4246
    %4275 = vmatprep.subr.mxu0 0.0
    %4276 = vmatpush1.msra.mxu0 %v4247
    %4277 = vmatprep.subr.mxu0 0.0
    %4278 = vmatpush1.msra.mxu0 %v4248
    %4279 = vmatprep.subr.mxu0 0.0
    %4280 = vmatpush1.msra.mxu0 %v4249
    %4281 = vmatprep.subr.mxu0 0.0
    %4282 = vmatpush1.msra.mxu0 %v4250
    %4283 = vmatprep.subr.mxu0 0.0
    %4284 = vmatpush1.msra.mxu0 %v4251
    %4285 = vmatprep.subr.mxu0 0.0
    %4286 = vmatpush1.msra.mxu0 %v4252
    %4287 = vmatprep.subr.mxu0 0.0
    %4288 = vmatpush1.msra.mxu0 %v4253
    %4289 = vmatprep.subr.mxu0 0.0
    %4290 = vmatpush1.msra.mxu0 %v4254
    %4291 = vmatprep.subr.mxu0 0.0
    %4292 = vmatpush1.msra.mxu0 0.0
    %4293 = vmatprep.subr.mxu0 0.0
    %4294 = vmatpush1.msra.mxu0 0.0
    %4295 = vmatprep.subr.mxu0 0.0
    %4296 = vmatpush1.msra.mxu0 0.0
    %4297 = vmatprep.subr.mxu0 0.0
    %4298 = vmatpush1.msra.mxu0 0.0
    %4299 = vmatprep.subr.mxu0 0.0
    %4300 = vmatpush1.msra.mxu0 0.0
    %4301 = vmatprep.subr.mxu0 0.0
    %4302 = vmatpush1.msra.mxu0 0.0
    %4303 = vmatprep.subr.mxu0 0.0
    %4304 = vmatpush1.msra.mxu0 0.0
    %4305 = vmatprep.subr.mxu0 0.0
    %4306 = vmatpush1.msra.mxu0 0.0
    %4307 = vmatprep.subr.mxu0 0.0
    %4308 = vmatpush1.msra.mxu0 0.0
    %4309 = vmatprep.subr.mxu0 0.0
    %4310 = vmatpush1.msra.mxu0 0.0
    %4311 = vmatprep.subr.mxu0 0.0
    %4312 = vmatpush1.msra.mxu0 0.0
    %4313 = vmatprep.subr.mxu0 0.0
    %4314 = vmatpush1.msra.mxu0 0.0
    %4315 = vmatprep.subr.mxu0 0.0
    %4316 = vmatpush1.msra.mxu0 0.0
    %4317 = vmatprep.subr.mxu0 0.0
    %4318 = vmatpush1.msra.mxu0 0.0
    %4319 = vmatprep.subr.mxu0 0.0
    %4320 = vmatpush1.msra.mxu0 0.0
    %4321 = vmatprep.subr.mxu0 0.0
    %4322 = vmatpush1.msra.mxu0 0.0
    %4323 = vmatprep.subr.mxu0 0.0
    %4324 = vmatpush1.msra.mxu0 0.0
    %4325 = vmatprep.subr.mxu0 0.0
    %4326 = vmatpush1.msra.mxu0 0.0
    %4327 = vmatprep.subr.mxu0 0.0
    %4328 = vmatpush1.msra.mxu0 0.0
    %4329 = vmatprep.subr.mxu0 0.0
    %4330 = vmatpush1.msra.mxu0 0.0
    %4331 = vmatprep.mubr.f32.mxu0 0.0
    %4332 = vmatmul.mubr.f32.gmra.mrb[0].mxu0 %v4256
    %v4333 = vpop.f32.mrb[0].mxu0
    %v4334 = vadd.f32 0.0, %v4333
    %v4335 = vpop.f32.mrb[0].mxu0
    %4336 = vmatprep.mubr.f32.mxu0 0.0
    %4337 = vmatmul.mubr.f32.gmra.mrb[0].mxu0 %v4259
    %v4338 = vpop.f32.mrb[0].mxu0
    %v4339 = vadd.f32 0.0, %v4338
    %v4340 = vpop.f32.mrb[0].mxu0
    %4341 = vmatprep.mubr.f32.mxu0 0.0
    %4342 = vmatmul.mubr.f32.gmra.mrb[0].mxu0 %v4262
    %v4343 = vpop.f32.mrb[0].mxu0
    %v4344 = vadd.f32 0.0, %v4343
    %v4345 = vpop.f32.mrb[0].mxu0
    %4346 = vmatprep.mubr.f32.mxu0 0.0
    %4347 = vmatmul.mubr.f32.gmra.mrb[0].mxu0 %v4265
    %v4348 = vpop.f32.mrb[0].mxu0
    %v4349 = vadd.f32 0.0, %v4348
    %v4350 = vpop.f32.mrb[0].mxu0
    %4351 = vdwg.mxu0
    %v4352 = vld [vmem:[%s133] sm:$0x1]
    %v4353 = vld [vmem:[%s135] sm:$0x1]
    %v4354 = vsel %vm4180, %v4334, 0.0
    %v4355 = vsel %vm4180, %v4339, 0.0
    %v4356 = vadd.f32 %v4354, %v4355
    %v4357 = vsel %vm4180, %v4344, 0.0
    %v4358 = vadd.f32 %v4356, %v4357
    %v4359 = vsel %vm4180, %v4349, 0.0
    %v4360 = vadd.f32 %v4358, %v4359
    %v4361 = vrot.slane %v4360, 4
    %v4362 = vadd.f32 %v4360, %v4361
    %v4363 = vrot.slane %v4362, 2
    %v4364 = vadd.f32 %v4362, %v4363
    %v4365 = vrot.slane %v4364, 1
    %v4366 = vadd.f32 %v4364, %v4365
    %v4367 = vmul.f32 %v4366, %v908
    %v4368 = vsub.f32 %v4334, %v4367
    %v4369 = vsub.f32 %v4339, %v4367
    %v4370 = vsub.f32 %v4344, %v4367
    %v4371 = vsub.f32 %v4349, %v4367
    %v4372 = vmul.f32 %v4368, %v4368
    %v4373 = vmul.f32 %v4369, %v4369
    %v4374 = vmul.f32 %v4370, %v4370
    %v4375 = vmul.f32 %v4371, %v4371
    %v4376 = vsel %vm4180, %v4372, 0.0
    %v4377 = vsel %vm4180, %v4373, 0.0
    %v4378 = vadd.f32 %v4376, %v4377
    %v4379 = vsel %vm4180, %v4374, 0.0
    %v4380 = vadd.f32 %v4378, %v4379
    %v4381 = vsel %vm4180, %v4375, 0.0
    %v4382 = vadd.f32 %v4380, %v4381
    %v4383 = vrot.slane %v4382, 4
    %v4384 = vadd.f32 %v4382, %v4383
    %v4385 = vrot.slane %v4384, 2
    %v4386 = vadd.f32 %v4384, %v4385
    %v4387 = vrot.slane %v4386, 1
    %v4388 = vadd.f32 %v4386, %v4387
    %v4389 = vmul.f32 %v4388, %v908
    %v4390 = vadd.f32 %v4389, 1e-05
    %v4391 = vrsqrt.pop %v4390
    %v4392 = vmul.f32 %v4368, %v4391
    %v4393 = vmul.f32 %v4369, %v4391
    %v4394 = vmul.f32 %v4370, %v4391
    %v4395 = vmul.f32 %v4371, %v4391
    %v4397 = vlaneseq
    %v4398 = vshrl.u32 %v4397, 7
    %v4399 = vsub.s32 0, %v4398
    %v4400 = vrot.slane %v4352, %v4399
    %v4402 = vmul.f32 %v4392, %v4400
    %v4403 = vmul.f32 %v4393, %v4400
    %v4404 = vmul.f32 %v4394, %v4400
    %v4405 = vmul.f32 %v4395, %v4400
    %v4407 = vlaneseq
    %v4408 = vshrl.u32 %v4407, 7
    %v4409 = vsub.s32 0, %v4408
    %v4410 = vrot.slane %v4353, %v4409
    %v4412 = vadd.f32 %v4402, %v4410
    %v4413 = vadd.f32 %v4403, %v4410
    %v4414 = vadd.f32 %v4404, %v4410
    %v4415 = vadd.f32 %v4405, %v4410
    %v4416 = vadd.f32 %v4239, %v4412
    %v4417 = vadd.f32 %v4240, %v4413
    %v4418 = vadd.f32 %v4241, %v4414
    %v4419 = vadd.f32 %v4242, %v4415
    %v4420 = vmax.f32 %v4416, 0.0
    %v4421 = vmax.f32 %v4417, 0.0
    %v4422 = vmax.f32 %v4418, 0.0
    %v4423 = vmax.f32 %v4419, 0.0
    %4424 = vmatprep.subr.mxu0 0.0
    %4425 = vmatpush1.msra.mxu0 %v4420
    %4426 = vmatprep.subr.mxu0 0.0
    %4427 = vmatpush1.msra.mxu0 %v4421
    %4428 = vmatprep.subr.mxu0 0.0
    %4429 = vmatpush1.msra.mxu0 %v4422
    %4430 = vmatprep.subr.mxu0 0.0
    %4431 = vmatpush1.msra.mxu0 %v4423
    %4432 = vmatprep.subr.mxu0 0.0
    %4433 = vmatpush1.msra.mxu0 0.0
    %4434 = vmatprep.subr.mxu0 0.0
    %4435 = vmatpush1.msra.mxu0 0.0
    %4436 = vmatprep.subr.mxu0 0.0
    %4437 = vmatpush1.msra.mxu0 0.0
    %4438 = vmatprep.subr.mxu0 0.0
    %4439 = vmatpush1.msra.mxu0 0.0
    %4440 = vmatprep.subr.mxu0 0.0
    %4441 = vmatpush1.msra.mxu0 0.0
    %4442 = vmatprep.subr.mxu0 0.0
    %4443 = vmatpush1.msra.mxu0 0.0
    %4444 = vmatprep.subr.mxu0 0.0
    %4445 = vmatpush1.msra.mxu0 0.0
    %4446 = vmatprep.subr.mxu0 0.0
    %4447 = vmatpush1.msra.mxu0 0.0
    %4448 = vmatprep.subr.mxu0 0.0
    %4449 = vmatpush1.msra.mxu0 0.0
    %4450 = vmatprep.subr.mxu0 0.0
    %4451 = vmatpush1.msra.mxu0 0.0
    %4452 = vmatprep.subr.mxu0 0.0
    %4453 = vmatpush1.msra.mxu0 0.0
    %4454 = vmatprep.subr.mxu0 0.0
    %4455 = vmatpush1.msra.mxu0 0.0
    %4456 = vmatprep.subr.mxu0 0.0
    %4457 = vmatpush1.msra.mxu0 0.0
    %4458 = vmatprep.subr.mxu0 0.0
    %4459 = vmatpush1.msra.mxu0 0.0
    %4460 = vmatprep.subr.mxu0 0.0
    %4461 = vmatpush1.msra.mxu0 0.0
    %4462 = vmatprep.subr.mxu0 0.0
    %4463 = vmatpush1.msra.mxu0 0.0
    %4464 = vmatprep.subr.mxu0 0.0
    %4465 = vmatpush1.msra.mxu0 0.0
    %4466 = vmatprep.subr.mxu0 0.0
    %4467 = vmatpush1.msra.mxu0 0.0
    %4468 = vmatprep.subr.mxu0 0.0
    %4469 = vmatpush1.msra.mxu0 0.0
    %4470 = vmatprep.subr.mxu0 0.0
    %4471 = vmatpush1.msra.mxu0 0.0
    %4472 = vmatprep.subr.mxu0 0.0
    %4473 = vmatpush1.msra.mxu0 0.0
    %4474 = vmatprep.subr.mxu0 0.0
    %4475 = vmatpush1.msra.mxu0 0.0
    %4476 = vmatprep.subr.mxu0 0.0
    %4477 = vmatpush1.msra.mxu0 0.0
    %4478 = vmatprep.subr.mxu0 0.0
    %4479 = vmatpush1.msra.mxu0 0.0
    %4480 = vmatprep.subr.mxu0 0.0
    %4481 = vmatpush1.msra.mxu0 0.0
    %4482 = vmatprep.subr.mxu0 0.0
    %4483 = vmatpush1.msra.mxu0 0.0
    %4484 = vmatprep.subr.mxu0 0.0
    %4485 = vmatpush1.msra.mxu0 0.0
    %4486 = vmatprep.subr.mxu0 0.0
    %4487 = vmatpush1.msra.mxu0 0.0
    %4488 = vmatprep.mubr.f32.mxu0 0.0
    %4489 = vmatmul.mubr.f32.gmra.mrb[0].mxu0 %v964
    %v4490 = vpop.f32.mrb[0].mxu0
    %v4491 = vadd.f32 0.0, %v4490
    %v4492 = vpop.f32.mrb[0].mxu0
    %4493 = vmatprep.mubr.f32.mxu0 0.0
    %4494 = vmatmul.mubr.f32.gmra.mrb[0].mxu0 %v967
    %v4495 = vpop.f32.mrb[0].mxu0
    %v4496 = vadd.f32 0.0, %v4495
    %v4497 = vpop.f32.mrb[0].mxu0
    %4498 = vmatprep.mubr.f32.mxu0 0.0
    %4499 = vmatmul.mubr.f32.gmra.mrb[0].mxu0 %v970
    %v4500 = vpop.f32.mrb[0].mxu0
    %v4501 = vadd.f32 0.0, %v4500
    %v4502 = vpop.f32.mrb[0].mxu0
    %4503 = vmatprep.mubr.f32.mxu0 0.0
    %4504 = vmatmul.mubr.f32.gmra.mrb[0].mxu0 %v973
    %v4505 = vpop.f32.mrb[0].mxu0
    %v4506 = vadd.f32 0.0, %v4505
    %v4507 = vpop.f32.mrb[0].mxu0
    %4508 = vdwg.mxu0
    %v4509 = vld [vmem:[#allocation32] sm:$0xff]
    %v4510 = vld [vmem:[#allocation32 + $0x8] sm:$0xff]
    %v4511 = vld [vmem:[#allocation32 + $0x10] sm:$0xff]
    %v4512 = vld [vmem:[#allocation32 + $0x18] sm:$0xff]
    %v4513 = vld [vmem:[#allocation32 + $0x20] sm:$0xff]
    %v4514 = vld [vmem:[#allocation32 + $0x28] sm:$0xff]
    %v4515 = vld [vmem:[#allocation32 + $0x30] sm:$0xff]
    %v4516 = vld [vmem:[#allocation32 + $0x38] sm:$0xff]
    %v4517 = vld [vmem:[#allocation32 + $0x40] sm:$0xff]
    %v4518 = vld [vmem:[#allocation32 + $0x48] sm:$0xff]
    %v4519 = vld [vmem:[#allocation32 + $0x50] sm:$0xff]
    %v4520 = vld [vmem:[#allocation32 + $0x58] sm:$0xff]
    %v4521 = vld [vmem:[#allocation32 + $0x60] sm:$0x3f]
    %v4522 = vld [vmem:[#allocation34] sm:$0x1]
    %v4524 = vlaneseq
    %v4525 = vshrl.u32 %v4524, 7
    %v4526 = vsub.s32 0, %v4525
    %v4527 = vrot.slane %v4522, %v4526
    %v4530 = vsel %vm4180, %v4491, 0
    %v4533 = vsel %vm4180, %v4496, 0
    %v4536 = vsel %vm4180, %v4501, 0
    %v4539 = vsel %vm4180, %v4506, 0
    %vm4541 = vcmask 1045504
    %v4543 = vsel %vm4541, %v4521, 0
    %4545 = vmatprep.subr.mxu0 0.0
    %4546 = vmatpush1.msra.mxu0 %v4509
    %4547 = vmatprep.subr.mxu0 0.0
    %4548 = vmatpush1.msra.mxu0 %v4510
    %4549 = vmatprep.subr.mxu0 0.0
    %4550 = vmatpush1.msra.mxu0 %v4511
    %4551 = vmatprep.subr.mxu0 0.0
    %4552 = vmatpush1.msra.mxu0 %v4512
    %4553 = vmatprep.subr.mxu0 0.0
    %4554 = vmatpush1.msra.mxu0 %v4513
    %4555 = vmatprep.subr.mxu0 0.0
    %4556 = vmatpush1.msra.mxu0 %v4514
    %4557 = vmatprep.subr.mxu0 0.0
    %4558 = vmatpush1.msra.mxu0 %v4515
    %4559 = vmatprep.subr.mxu0 0.0
    %4560 = vmatpush1.msra.mxu0 %v4516
    %4561 = vmatprep.subr.mxu0 0.0
    %4562 = vmatpush1.msra.mxu0 %v4517
    %4563 = vmatprep.subr.mxu0 0.0
    %4564 = vmatpush1.msra.mxu0 %v4518
    %4565 = vmatprep.subr.mxu0 0.0
    %4566 = vmatpush1.msra.mxu0 %v4519
    %4567 = vmatprep.subr.mxu0 0.0
    %4568 = vmatpush1.msra.mxu0 %v4520
    %4569 = vmatprep.subr.mxu0 0.0
    %4570 = vmatpush1.msra.mxu0 %v4543
    %4571 = vmatprep.subr.mxu0 0.0
    %4572 = vmatpush1.msra.mxu0 0.0
    %4573 = vmatprep.subr.mxu0 0.0
    %4574 = vmatpush1.msra.mxu0 0.0
    %4575 = vmatprep.subr.mxu0 0.0
    %4576 = vmatpush1.msra.mxu0 0.0
    %4577 = vmatprep.subr.mxu0 0.0
    %4578 = vmatpush1.msra.mxu0 0.0
    %4579 = vmatprep.subr.mxu0 0.0
    %4580 = vmatpush1.msra.mxu0 0.0
    %4581 = vmatprep.subr.mxu0 0.0
    %4582 = vmatpush1.msra.mxu0 0.0
    %4583 = vmatprep.subr.mxu0 0.0
    %4584 = vmatpush1.msra.mxu0 0.0
    %4585 = vmatprep.subr.mxu0 0.0
    %4586 = vmatpush1.msra.mxu0 0.0
    %4587 = vmatprep.subr.mxu0 0.0
    %4588 = vmatpush1.msra.mxu0 0.0
    %4589 = vmatprep.subr.mxu0 0.0
    %4590 = vmatpush1.msra.mxu0 0.0
    %4591 = vmatprep.subr.mxu0 0.0
    %4592 = vmatpush1.msra.mxu0 0.0
    %4593 = vmatprep.subr.mxu0 0.0
    %4594 = vmatpush1.msra.mxu0 0.0
    %4595 = vmatprep.subr.mxu0 0.0
    %4596 = vmatpush1.msra.mxu0 0.0
    %4597 = vmatprep.subr.mxu0 0.0
    %4598 = vmatpush1.msra.mxu0 0.0
    %4599 = vmatprep.subr.mxu0 0.0
    %4600 = vmatpush1.msra.mxu0 0.0
    %4601 = vmatprep.subr.mxu0 0.0
    %4602 = vmatpush1.msra.mxu0 0.0
    %4603 = vmatprep.subr.mxu0 0.0
    %4604 = vmatpush1.msra.mxu0 0.0
    %4605 = vmatprep.subr.mxu0 0.0
    %4606 = vmatpush1.msra.mxu0 0.0
    %4607 = vmatprep.subr.mxu0 0.0
    %4608 = vmatpush1.msra.mxu0 0.0
    %4609 = vmatprep.mubr.f32.mxu0 0.0
    %4610 = vmatmul.mubr.f32.gmra.mrb[0].mxu0 %v4530
    %v4611 = vpop.f32.mrb[0].mxu0
    %v4612 = vadd.f32 %v4527, %v4611
    %v4613 = vpop.f32.mrb[0].mxu0
    %4614 = vmatprep.mubr.f32.mxu0 0.0
    %4615 = vmatmul.mubr.f32.gmra.mrb[0].mxu0 %v4533
    %v4616 = vpop.f32.mrb[0].mxu0
    %v4617 = vadd.f32 %v4527, %v4616
    %v4618 = vpop.f32.mrb[0].mxu0
    %4619 = vmatprep.mubr.f32.mxu0 0.0
    %4620 = vmatmul.mubr.f32.gmra.mrb[0].mxu0 %v4536
    %v4621 = vpop.f32.mrb[0].mxu0
    %v4622 = vadd.f32 %v4527, %v4621
    %v4623 = vpop.f32.mrb[0].mxu0
    %4624 = vmatprep.mubr.f32.mxu0 0.0
    %4625 = vmatmul.mubr.f32.gmra.mrb[0].mxu0 %v4539
    %v4626 = vpop.f32.mrb[0].mxu0
    %v4627 = vadd.f32 %v4527, %v4626
    %v4628 = vpop.f32.mrb[0].mxu0
    %4629 = vdwg.mxu0
    %v4630 = vld [vmem:[%s91] sm:$0x1]
    %v4631 = vld [vmem:[%s93] sm:$0x1]
    %v4632 = vadd.f32 %v4612, %v4617
    %v4633 = vadd.f32 %v4632, %v4622
    %v4634 = vadd.f32 %v4633, %v4627
    %v4635 = vrot.slane %v4634, 4
    %v4636 = vadd.f32 %v4634, %v4635
    %v4637 = vrot.slane %v4636, 2
    %v4638 = vadd.f32 %v4636, %v4637
    %v4639 = vrot.slane %v4638, 1
    %v4640 = vadd.f32 %v4638, %v4639
    %v4641 = vmul.f32 %v4640, %v908
    %v4642 = vsub.f32 %v4612, %v4641
    %v4643 = vsub.f32 %v4617, %v4641
    %v4644 = vsub.f32 %v4622, %v4641
    %v4645 = vsub.f32 %v4627, %v4641
    %v4646 = vmul.f32 %v4642, %v4642
    %v4647 = vmul.f32 %v4643, %v4643
    %v4648 = vmul.f32 %v4644, %v4644
    %v4649 = vmul.f32 %v4645, %v4645
    %v4650 = vadd.f32 %v4646, %v4647
    %v4651 = vadd.f32 %v4650, %v4648
    %v4652 = vadd.f32 %v4651, %v4649
    %v4653 = vrot.slane %v4652, 4
    %v4654 = vadd.f32 %v4652, %v4653
    %v4655 = vrot.slane %v4654, 2
    %v4656 = vadd.f32 %v4654, %v4655
    %v4657 = vrot.slane %v4656, 1
    %v4658 = vadd.f32 %v4656, %v4657
    %v4659 = vmul.f32 %v4658, %v908
    %v4660 = vadd.f32 %v4659, 1e-05
    %v4661 = vrsqrt.pop %v4660
    %v4662 = vmul.f32 %v4642, %v4661
    %v4663 = vmul.f32 %v4643, %v4661
    %v4664 = vmul.f32 %v4644, %v4661
    %v4665 = vmul.f32 %v4645, %v4661
    %v4667 = vlaneseq
    %v4668 = vshrl.u32 %v4667, 7
    %v4669 = vsub.s32 0, %v4668
    %v4670 = vrot.slane %v4630, %v4669
    %v4672 = vmul.f32 %v4662, %v4670
    %v4673 = vmul.f32 %v4663, %v4670
    %v4674 = vmul.f32 %v4664, %v4670
    %v4675 = vmul.f32 %v4665, %v4670
    %v4677 = vlaneseq
    %v4678 = vshrl.u32 %v4677, 7
    %v4679 = vsub.s32 0, %v4678
    %v4680 = vrot.slane %v4631, %v4679
    %v4682 = vadd.f32 %v4672, %v4680
    %v4683 = vadd.f32 %v4673, %v4680
    %v4684 = vadd.f32 %v4674, %v4680
    %v4685 = vadd.f32 %v4675, %v4680
    %v4686 = vld [vmem:[%s137] sm:$0xff]
    %v4687 = vld [vmem:[%s137 + $0x8] sm:$0xff]
    %v4688 = vld [vmem:[%s137 + $0x10] sm:$0xff]
    %v4689 = vld [vmem:[%s137 + $0x18] sm:$0xff]
    %v4690 = vld [vmem:[%s137 + $0x20] sm:$0xff]
    %v4691 = vld [vmem:[%s137 + $0x28] sm:$0xff]
    %v4692 = vld [vmem:[%s137 + $0x30] sm:$0xff]
    %v4693 = vld [vmem:[%s137 + $0x38] sm:$0xff]
    %v4694 = vld [vmem:[%s137 + $0x40] sm:$0xff]
    %v4695 = vld [vmem:[%s137 + $0x48] sm:$0xff]
    %v4696 = vld [vmem:[%s137 + $0x50] sm:$0xff]
    %v4697 = vld [vmem:[%s137 + $0x58] sm:$0xff]
    %v4698 = vld [vmem:[%s137 + $0x60] sm:$0x3f]
    %v4700 = vsel %vm4180, %v4420, 0
    %v4703 = vsel %vm4180, %v4421, 0
    %v4706 = vsel %vm4180, %v4422, 0
    %v4709 = vsel %vm4180, %v4423, 0
    %v4712 = vsel %vm4541, %v4698, 0
    %4714 = vmatprep.subr.mxu0 0.0
    %4715 = vmatpush1.msra.mxu0 %v4686
    %4716 = vmatprep.subr.mxu0 0.0
    %4717 = vmatpush1.msra.mxu0 %v4687
    %4718 = vmatprep.subr.mxu0 0.0
    %4719 = vmatpush1.msra.mxu0 %v4688
    %4720 = vmatprep.subr.mxu0 0.0
    %4721 = vmatpush1.msra.mxu0 %v4689
    %4722 = vmatprep.subr.mxu0 0.0
    %4723 = vmatpush1.msra.mxu0 %v4690
    %4724 = vmatprep.subr.mxu0 0.0
    %4725 = vmatpush1.msra.mxu0 %v4691
    %4726 = vmatprep.subr.mxu0 0.0
    %4727 = vmatpush1.msra.mxu0 %v4692
    %4728 = vmatprep.subr.mxu0 0.0
    %4729 = vmatpush1.msra.mxu0 %v4693
    %4730 = vmatprep.subr.mxu0 0.0
    %4731 = vmatpush1.msra.mxu0 %v4694
    %4732 = vmatprep.subr.mxu0 0.0
    %4733 = vmatpush1.msra.mxu0 %v4695
    %4734 = vmatprep.subr.mxu0 0.0
    %4735 = vmatpush1.msra.mxu0 %v4696
    %4736 = vmatprep.subr.mxu0 0.0
    %4737 = vmatpush1.msra.mxu0 %v4697
    %4738 = vmatprep.subr.mxu0 0.0
    %4739 = vmatpush1.msra.mxu0 %v4712
    %4740 = vmatprep.subr.mxu0 0.0
    %4741 = vmatpush1.msra.mxu0 0.0
    %4742 = vmatprep.subr.mxu0 0.0
    %4743 = vmatpush1.msra.mxu0 0.0
    %4744 = vmatprep.subr.mxu0 0.0
    %4745 = vmatpush1.msra.mxu0 0.0
    %4746 = vmatprep.subr.mxu0 0.0
    %4747 = vmatpush1.msra.mxu0 0.0
    %4748 = vmatprep.subr.mxu0 0.0
    %4749 = vmatpush1.msra.mxu0 0.0
    %4750 = vmatprep.subr.mxu0 0.0
    %4751 = vmatpush1.msra.mxu0 0.0
    %4752 = vmatprep.subr.mxu0 0.0
    %4753 = vmatpush1.msra.mxu0 0.0
    %4754 = vmatprep.subr.mxu0 0.0
    %4755 = vmatpush1.msra.mxu0 0.0
    %4756 = vmatprep.subr.mxu0 0.0
    %4757 = vmatpush1.msra.mxu0 0.0
    %4758 = vmatprep.subr.mxu0 0.0
    %4759 = vmatpush1.msra.mxu0 0.0
    %4760 = vmatprep.subr.mxu0 0.0
    %4761 = vmatpush1.msra.mxu0 0.0
    %4762 = vmatprep.subr.mxu0 0.0
    %4763 = vmatpush1.msra.mxu0 0.0
    %4764 = vmatprep.subr.mxu0 0.0
    %4765 = vmatpush1.msra.mxu0 0.0
    %4766 = vmatprep.subr.mxu0 0.0
    %4767 = vmatpush1.msra.mxu0 0.0
    %4768 = vmatprep.subr.mxu0 0.0
    %4769 = vmatpush1.msra.mxu0 0.0
    %4770 = vmatprep.subr.mxu0 0.0
    %4771 = vmatpush1.msra.mxu0 0.0
    %4772 = vmatprep.subr.mxu0 0.0
    %4773 = vmatpush1.msra.mxu0 0.0
    %4774 = vmatprep.subr.mxu0 0.0
    %4775 = vmatpush1.msra.mxu0 0.0
    %4776 = vmatprep.subr.mxu0 0.0
    %4777 = vmatpush1.msra.mxu0 0.0
    %4778 = vmatprep.mubr.f32.mxu0 0.0
    %4779 = vmatmul.mubr.f32.gmra.mrb[0].mxu0 %v4700
    %v4780 = vpop.f32.mrb[0].mxu0
    %v4781 = vadd.f32 0.0, %v4780
    %v4782 = vpop.f32.mrb[0].mxu0
    %4783 = vmatprep.mubr.f32.mxu0 0.0
    %4784 = vmatmul.mubr.f32.gmra.mrb[0].mxu0 %v4703
    %v4785 = vpop.f32.mrb[0].mxu0
    %v4786 = vadd.f32 0.0, %v4785
    %v4787 = vpop.f32.mrb[0].mxu0
    %4788 = vmatprep.mubr.f32.mxu0 0.0
    %4789 = vmatmul.mubr.f32.gmra.mrb[0].mxu0 %v4706
    %v4790 = vpop.f32.mrb[0].mxu0
    %v4791 = vadd.f32 0.0, %v4790
    %v4792 = vpop.f32.mrb[0].mxu0
    %4793 = vmatprep.mubr.f32.mxu0 0.0
    %4794 = vmatmul.mubr.f32.gmra.mrb[0].mxu0 %v4709
    %v4795 = vpop.f32.mrb[0].mxu0
    %v4796 = vadd.f32 0.0, %v4795
    %v4797 = vpop.f32.mrb[0].mxu0
    %4798 = vdwg.mxu0
    %v4799 = vld [vmem:[%s139] sm:$0x1]
    %v4800 = vld [vmem:[%s141] sm:$0x1]
    %v4801 = vadd.f32 %v4781, %v4786
    %v4802 = vadd.f32 %v4801, %v4791
    %v4803 = vadd.f32 %v4802, %v4796
    %v4804 = vrot.slane %v4803, 4
    %v4805 = vadd.f32 %v4803, %v4804
    %v4806 = vrot.slane %v4805, 2
    %v4807 = vadd.f32 %v4805, %v4806
    %v4808 = vrot.slane %v4807, 1
    %v4809 = vadd.f32 %v4807, %v4808
    %v4810 = vmul.f32 %v4809, %v908
    %v4811 = vsub.f32 %v4781, %v4810
    %v4812 = vsub.f32 %v4786, %v4810
    %v4813 = vsub.f32 %v4791, %v4810
    %v4814 = vsub.f32 %v4796, %v4810
    %v4815 = vmul.f32 %v4811, %v4811
    %v4816 = vmul.f32 %v4812, %v4812
    %v4817 = vmul.f32 %v4813, %v4813
    %v4818 = vmul.f32 %v4814, %v4814
    %v4819 = vadd.f32 %v4815, %v4816
    %v4820 = vadd.f32 %v4819, %v4817
    %v4821 = vadd.f32 %v4820, %v4818
    %v4822 = vrot.slane %v4821, 4
    %v4823 = vadd.f32 %v4821, %v4822
    %v4824 = vrot.slane %v4823, 2
    %v4825 = vadd.f32 %v4823, %v4824
    %v4826 = vrot.slane %v4825, 1
    %v4827 = vadd.f32 %v4825, %v4826
    %v4828 = vmul.f32 %v4827, %v908
    %v4829 = vadd.f32 %v4828, 1e-05
    %v4830 = vrsqrt.pop %v4829
    %v4831 = vmul.f32 %v4811, %v4830
    %v4832 = vmul.f32 %v4812, %v4830
    %v4833 = vmul.f32 %v4813, %v4830
    %v4834 = vmul.f32 %v4814, %v4830
    %v4836 = vlaneseq
    %v4837 = vshrl.u32 %v4836, 7
    %v4838 = vsub.s32 0, %v4837
    %v4839 = vrot.slane %v4799, %v4838
    %v4841 = vmul.f32 %v4831, %v4839
    %v4842 = vmul.f32 %v4832, %v4839
    %v4843 = vmul.f32 %v4833, %v4839
    %v4844 = vmul.f32 %v4834, %v4839
    %v4846 = vlaneseq
    %v4847 = vshrl.u32 %v4846, 7
    %v4848 = vsub.s32 0, %v4847
    %v4849 = vrot.slane %v4800, %v4848
    %v4851 = vadd.f32 %v4841, %v4849
    %v4852 = vadd.f32 %v4842, %v4849
    %v4853 = vadd.f32 %v4843, %v4849
    %v4854 = vadd.f32 %v4844, %v4849
    %v4855 = vadd.f32 %v4682, %v4851
    %v4856 = vadd.f32 %v4683, %v4852
    %v4857 = vadd.f32 %v4684, %v4853
    %v4858 = vadd.f32 %v4685, %v4854
    %v4859 = vmax.f32 %v4855, 0.0
    %v4860 = vmax.f32 %v4856, 0.0
    %v4861 = vmax.f32 %v4857, 0.0
    %v4862 = vmax.f32 %v4858, 0.0
    %4863 = vmatprep.subr.mxu0 0.0
    %4864 = vmatpush1.msra.mxu0 %v4859
    %4865 = vmatprep.subr.mxu0 0.0
    %4866 = vmatpush1.msra.mxu0 %v4860
    %4867 = vmatprep.subr.mxu0 0.0
    %4868 = vmatpush1.msra.mxu0 %v4861
    %4869 = vmatprep.subr.mxu0 0.0
    %4870 = vmatpush1.msra.mxu0 %v4862
    %4871 = vmatprep.subr.mxu0 0.0
    %4872 = vmatpush1.msra.mxu0 0.0
    %4873 = vmatprep.subr.mxu0 0.0
    %4874 = vmatpush1.msra.mxu0 0.0
    %4875 = vmatprep.subr.mxu0 0.0
    %4876 = vmatpush1.msra.mxu0 0.0
    %4877 = vmatprep.subr.mxu0 0.0
    %4878 = vmatpush1.msra.mxu0 0.0
    %4879 = vmatprep.subr.mxu0 0.0
    %4880 = vmatpush1.msra.mxu0 0.0
    %4881 = vmatprep.subr.mxu0 0.0
    %4882 = vmatpush1.msra.mxu0 0.0
    %4883 = vmatprep.subr.mxu0 0.0
    %4884 = vmatpush1.msra.mxu0 0.0
    %4885 = vmatprep.subr.mxu0 0.0
    %4886 = vmatpush1.msra.mxu0 0.0
    %4887 = vmatprep.subr.mxu0 0.0
    %4888 = vmatpush1.msra.mxu0 0.0
    %4889 = vmatprep.subr.mxu0 0.0
    %4890 = vmatpush1.msra.mxu0 0.0
    %4891 = vmatprep.subr.mxu0 0.0
    %4892 = vmatpush1.msra.mxu0 0.0
    %4893 = vmatprep.subr.mxu0 0.0
    %4894 = vmatpush1.msra.mxu0 0.0
    %4895 = vmatprep.subr.mxu0 0.0
    %4896 = vmatpush1.msra.mxu0 0.0
    %4897 = vmatprep.subr.mxu0 0.0
    %4898 = vmatpush1.msra.mxu0 0.0
    %4899 = vmatprep.subr.mxu0 0.0
    %4900 = vmatpush1.msra.mxu0 0.0
    %4901 = vmatprep.subr.mxu0 0.0
    %4902 = vmatpush1.msra.mxu0 0.0
    %4903 = vmatprep.subr.mxu0 0.0
    %4904 = vmatpush1.msra.mxu0 0.0
    %4905 = vmatprep.subr.mxu0 0.0
    %4906 = vmatpush1.msra.mxu0 0.0
    %4907 = vmatprep.subr.mxu0 0.0
    %4908 = vmatpush1.msra.mxu0 0.0
    %4909 = vmatprep.subr.mxu0 0.0
    %4910 = vmatpush1.msra.mxu0 0.0
    %4911 = vmatprep.subr.mxu0 0.0
    %4912 = vmatpush1.msra.mxu0 0.0
    %4913 = vmatprep.subr.mxu0 0.0
    %4914 = vmatpush1.msra.mxu0 0.0
    %4915 = vmatprep.subr.mxu0 0.0
    %4916 = vmatpush1.msra.mxu0 0.0
    %4917 = vmatprep.subr.mxu0 0.0
    %4918 = vmatpush1.msra.mxu0 0.0
    %4919 = vmatprep.subr.mxu0 0.0
    %4920 = vmatpush1.msra.mxu0 0.0
    %4921 = vmatprep.subr.mxu0 0.0
    %4922 = vmatpush1.msra.mxu0 0.0
    %4923 = vmatprep.subr.mxu0 0.0
    %4924 = vmatpush1.msra.mxu0 0.0
    %4925 = vmatprep.subr.mxu0 0.0
    %4926 = vmatpush1.msra.mxu0 0.0
    %4927 = vmatprep.mubr.f32.mxu0 0.0
    %4928 = vmatmul.mubr.f32.gmra.mrb[0].mxu0 %v964
    %v4929 = vpop.f32.mrb[0].mxu0
    %v4930 = vadd.f32 0.0, %v4929
    %v4931 = vpop.f32.mrb[0].mxu0
    %4932 = vmatprep.mubr.f32.mxu0 0.0
    %4933 = vmatmul.mubr.f32.gmra.mrb[0].mxu0 %v967
    %v4934 = vpop.f32.mrb[0].mxu0
    %v4935 = vadd.f32 0.0, %v4934
    %v4936 = vpop.f32.mrb[0].mxu0
    %4937 = vmatprep.mubr.f32.mxu0 0.0
    %4938 = vmatmul.mubr.f32.gmra.mrb[0].mxu0 %v970
    %v4939 = vpop.f32.mrb[0].mxu0
    %v4940 = vadd.f32 0.0, %v4939
    %v4941 = vpop.f32.mrb[0].mxu0
    %4942 = vmatprep.mubr.f32.mxu0 0.0
    %4943 = vmatmul.mubr.f32.gmra.mrb[0].mxu0 %v973
    %v4944 = vpop.f32.mrb[0].mxu0
    %v4945 = vadd.f32 0.0, %v4944
    %v4946 = vpop.f32.mrb[0].mxu0
    %4947 = vdwg.mxu0
    %v4948 = vld [vmem:[%s95] sm:$0xff]
    %v4949 = vld [vmem:[%s95 + $0x8] sm:$0xff]
    %v4950 = vld [vmem:[%s95 + $0x10] sm:$0xff]
    %v4951 = vld [vmem:[%s95 + $0x18] sm:$0xff]
    %v4952 = vld [vmem:[%s95 + $0x20] sm:$0xff]
    %v4953 = vld [vmem:[%s95 + $0x28] sm:$0xff]
    %v4954 = vld [vmem:[%s95 + $0x30] sm:$0xff]
    %v4955 = vld [vmem:[%s95 + $0x38] sm:$0xff]
    %v4956 = vld [vmem:[%s95 + $0x40] sm:$0xff]
    %v4957 = vld [vmem:[%s95 + $0x48] sm:$0xff]
    %v4958 = vld [vmem:[%s95 + $0x50] sm:$0xff]
    %v4959 = vld [vmem:[%s95 + $0x58] sm:$0xff]
    %v4960 = vld [vmem:[%s95 + $0x60] sm:$0xff]
    %v4961 = vld [vmem:[%s95 + $0x68] sm:$0xff]
    %v4962 = vld [vmem:[%s95 + $0x70] sm:$0xff]
    %v4963 = vld [vmem:[%s95 + $0x78] sm:$0xff]
    %v4964 = vld [vmem:[%s97] sm:$0x1]
    %v4966 = vlaneseq
    %v4967 = vshrl.u32 %v4966, 7
    %v4968 = vsub.s32 0, %v4967
    %v4969 = vrot.slane %v4964, %v4968
    %4971 = vmatprep.subr.mxu0 0.0
    %4972 = vmatpush1.msra.mxu0 %v4948
    %4973 = vmatprep.subr.mxu0 0.0
    %4974 = vmatpush1.msra.mxu0 %v4949
    %4975 = vmatprep.subr.mxu0 0.0
    %4976 = vmatpush1.msra.mxu0 %v4950
    %4977 = vmatprep.subr.mxu0 0.0
    %4978 = vmatpush1.msra.mxu0 %v4951
    %4979 = vmatprep.subr.mxu0 0.0
    %4980 = vmatpush1.msra.mxu0 %v4952
    %4981 = vmatprep.subr.mxu0 0.0
    %4982 = vmatpush1.msra.mxu0 %v4953
    %4983 = vmatprep.subr.mxu0 0.0
    %4984 = vmatpush1.msra.mxu0 %v4954
    %4985 = vmatprep.subr.mxu0 0.0
    %4986 = vmatpush1.msra.mxu0 %v4955
    %4987 = vmatprep.subr.mxu0 0.0
    %4988 = vmatpush1.msra.mxu0 %v4956
    %4989 = vmatprep.subr.mxu0 0.0
    %4990 = vmatpush1.msra.mxu0 %v4957
    %4991 = vmatprep.subr.mxu0 0.0
    %4992 = vmatpush1.msra.mxu0 %v4958
    %4993 = vmatprep.subr.mxu0 0.0
    %4994 = vmatpush1.msra.mxu0 %v4959
    %4995 = vmatprep.subr.mxu0 0.0
    %4996 = vmatpush1.msra.mxu0 %v4960
    %4997 = vmatprep.subr.mxu0 0.0
    %4998 = vmatpush1.msra.mxu0 %v4961
    %4999 = vmatprep.subr.mxu0 0.0
    %5000 = vmatpush1.msra.mxu0 %v4962
    %5001 = vmatprep.subr.mxu0 0.0
    %5002 = vmatpush1.msra.mxu0 %v4963
    %5003 = vmatprep.subr.mxu0 0.0
    %5004 = vmatpush1.msra.mxu0 0.0
    %5005 = vmatprep.subr.mxu0 0.0
    %5006 = vmatpush1.msra.mxu0 0.0
    %5007 = vmatprep.subr.mxu0 0.0
    %5008 = vmatpush1.msra.mxu0 0.0
    %5009 = vmatprep.subr.mxu0 0.0
    %5010 = vmatpush1.msra.mxu0 0.0
    %5011 = vmatprep.subr.mxu0 0.0
    %5012 = vmatpush1.msra.mxu0 0.0
    %5013 = vmatprep.subr.mxu0 0.0
    %5014 = vmatpush1.msra.mxu0 0.0
    %5015 = vmatprep.subr.mxu0 0.0
    %5016 = vmatpush1.msra.mxu0 0.0
    %5017 = vmatprep.subr.mxu0 0.0
    %5018 = vmatpush1.msra.mxu0 0.0
    %5019 = vmatprep.subr.mxu0 0.0
    %5020 = vmatpush1.msra.mxu0 0.0
    %5021 = vmatprep.subr.mxu0 0.0
    %5022 = vmatpush1.msra.mxu0 0.0
    %5023 = vmatprep.subr.mxu0 0.0
    %5024 = vmatpush1.msra.mxu0 0.0
    %5025 = vmatprep.subr.mxu0 0.0
    %5026 = vmatpush1.msra.mxu0 0.0
    %5027 = vmatprep.subr.mxu0 0.0
    %5028 = vmatpush1.msra.mxu0 0.0
    %5029 = vmatprep.subr.mxu0 0.0
    %5030 = vmatpush1.msra.mxu0 0.0
    %5031 = vmatprep.subr.mxu0 0.0
    %5032 = vmatpush1.msra.mxu0 0.0
    %5033 = vmatprep.subr.mxu0 0.0
    %5034 = vmatpush1.msra.mxu0 0.0
    %5035 = vmatprep.mubr.f32.mxu0 0.0
    %5036 = vmatmul.mubr.f32.gmra.mrb[0].mxu0 %v4930
    %v5037 = vpop.f32.mrb[0].mxu0
    %v5038 = vadd.f32 %v4969, %v5037
    %v5039 = vpop.f32.mrb[0].mxu0
    %5040 = vmatprep.mubr.f32.mxu0 0.0
    %5041 = vmatmul.mubr.f32.gmra.mrb[0].mxu0 %v4935
    %v5042 = vpop.f32.mrb[0].mxu0
    %v5043 = vadd.f32 %v4969, %v5042
    %v5044 = vpop.f32.mrb[0].mxu0
    %5045 = vmatprep.mubr.f32.mxu0 0.0
    %5046 = vmatmul.mubr.f32.gmra.mrb[0].mxu0 %v4940
    %v5047 = vpop.f32.mrb[0].mxu0
    %v5048 = vadd.f32 %v4969, %v5047
    %v5049 = vpop.f32.mrb[0].mxu0
    %5050 = vmatprep.mubr.f32.mxu0 0.0
    %5051 = vmatmul.mubr.f32.gmra.mrb[0].mxu0 %v4945
    %v5052 = vpop.f32.mrb[0].mxu0
    %v5053 = vadd.f32 %v4969, %v5052
    %v5054 = vpop.f32.mrb[0].mxu0
    %5055 = vdwg.mxu0
    %v5056 = vld [vmem:[%s99] sm:$0x1]
    %v5057 = vld [vmem:[%s101] sm:$0x1]
    %v5058 = vadd.f32 %v5038, %v5043
    %v5059 = vadd.f32 %v5058, %v5048
    %v5060 = vadd.f32 %v5059, %v5053
    %v5061 = vrot.slane %v5060, 4
    %v5062 = vadd.f32 %v5060, %v5061
    %v5063 = vrot.slane %v5062, 2
    %v5064 = vadd.f32 %v5062, %v5063
    %v5065 = vrot.slane %v5064, 1
    %v5066 = vadd.f32 %v5064, %v5065
    %v5067 = vmul.f32 %v5066, %v908
    %v5068 = vsub.f32 %v5038, %v5067
    %v5069 = vsub.f32 %v5043, %v5067
    %v5070 = vsub.f32 %v5048, %v5067
    %v5071 = vsub.f32 %v5053, %v5067
    %v5072 = vmul.f32 %v5068, %v5068
    %v5073 = vmul.f32 %v5069, %v5069
    %v5074 = vmul.f32 %v5070, %v5070
    %v5075 = vmul.f32 %v5071, %v5071
    %v5076 = vadd.f32 %v5072, %v5073
    %v5077 = vadd.f32 %v5076, %v5074
    %v5078 = vadd.f32 %v5077, %v5075
    %v5079 = vrot.slane %v5078, 4
    %v5080 = vadd.f32 %v5078, %v5079
    %v5081 = vrot.slane %v5080, 2
    %v5082 = vadd.f32 %v5080, %v5081
    %v5083 = vrot.slane %v5082, 1
    %v5084 = vadd.f32 %v5082, %v5083
    %v5085 = vmul.f32 %v5084, %v908
    %v5086 = vadd.f32 %v5085, 1e-05
    %v5087 = vrsqrt.pop %v5086
    %v5088 = vmul.f32 %v5068, %v5087
    %v5089 = vmul.f32 %v5069, %v5087
    %v5090 = vmul.f32 %v5070, %v5087
    %v5091 = vmul.f32 %v5071, %v5087
    %v5093 = vlaneseq
    %v5094 = vshrl.u32 %v5093, 7
    %v5095 = vsub.s32 0, %v5094
    %v5096 = vrot.slane %v5056, %v5095
    %v5098 = vmul.f32 %v5088, %v5096
    %v5099 = vmul.f32 %v5089, %v5096
    %v5100 = vmul.f32 %v5090, %v5096
    %v5101 = vmul.f32 %v5091, %v5096
    %v5103 = vlaneseq
    %v5104 = vshrl.u32 %v5103, 7
    %v5105 = vsub.s32 0, %v5104
    %v5106 = vrot.slane %v5057, %v5105
    %v5108 = vadd.f32 %v5098, %v5106
    %v5109 = vadd.f32 %v5099, %v5106
    %v5110 = vadd.f32 %v5100, %v5106
    %v5111 = vadd.f32 %v5101, %v5106
    %v5112 = vadd.f32 %v5108, %v4859
    %v5113 = vadd.f32 %v5109, %v4860
    %v5114 = vadd.f32 %v5110, %v4861
    %v5115 = vadd.f32 %v5111, %v4862
    %v5116 = vmax.f32 %v5112, 0.0
    %v5117 = vmax.f32 %v5113, 0.0
    %v5118 = vmax.f32 %v5114, 0.0
    %v5119 = vmax.f32 %v5115, 0.0
    %5120 = vmatprep.subr.mxu0 0.0
    %5121 = vmatpush1.msra.mxu0 %v5116
    %5122 = vmatprep.subr.mxu0 0.0
    %5123 = vmatpush1.msra.mxu0 %v5117
    %5124 = vmatprep.subr.mxu0 0.0
    %5125 = vmatpush1.msra.mxu0 %v5118
    %5126 = vmatprep.subr.mxu0 0.0
    %5127 = vmatpush1.msra.mxu0 %v5119
    %5128 = vmatprep.subr.mxu0 0.0
    %5129 = vmatpush1.msra.mxu0 0.0
    %5130 = vmatprep.subr.mxu0 0.0
    %5131 = vmatpush1.msra.mxu0 0.0
    %5132 = vmatprep.subr.mxu0 0.0
    %5133 = vmatpush1.msra.mxu0 0.0
    %5134 = vmatprep.subr.mxu0 0.0
    %5135 = vmatpush1.msra.mxu0 0.0
    %5136 = vmatprep.subr.mxu0 0.0
    %5137 = vmatpush1.msra.mxu0 0.0
    %5138 = vmatprep.subr.mxu0 0.0
    %5139 = vmatpush1.msra.mxu0 0.0
    %5140 = vmatprep.subr.mxu0 0.0
    %5141 = vmatpush1.msra.mxu0 0.0
    %5142 = vmatprep.subr.mxu0 0.0
    %5143 = vmatpush1.msra.mxu0 0.0
    %5144 = vmatprep.subr.mxu0 0.0
    %5145 = vmatpush1.msra.mxu0 0.0
    %5146 = vmatprep.subr.mxu0 0.0
    %5147 = vmatpush1.msra.mxu0 0.0
    %5148 = vmatprep.subr.mxu0 0.0
    %5149 = vmatpush1.msra.mxu0 0.0
    %5150 = vmatprep.subr.mxu0 0.0
    %5151 = vmatpush1.msra.mxu0 0.0
    %5152 = vmatprep.subr.mxu0 0.0
    %5153 = vmatpush1.msra.mxu0 0.0
    %5154 = vmatprep.subr.mxu0 0.0
    %5155 = vmatpush1.msra.mxu0 0.0
    %5156 = vmatprep.subr.mxu0 0.0
    %5157 = vmatpush1.msra.mxu0 0.0
    %5158 = vmatprep.subr.mxu0 0.0
    %5159 = vmatpush1.msra.mxu0 0.0
    %5160 = vmatprep.subr.mxu0 0.0
    %5161 = vmatpush1.msra.mxu0 0.0
    %5162 = vmatprep.subr.mxu0 0.0
    %5163 = vmatpush1.msra.mxu0 0.0
    %5164 = vmatprep.subr.mxu0 0.0
    %5165 = vmatpush1.msra.mxu0 0.0
    %5166 = vmatprep.subr.mxu0 0.0
    %5167 = vmatpush1.msra.mxu0 0.0
    %5168 = vmatprep.subr.mxu0 0.0
    %5169 = vmatpush1.msra.mxu0 0.0
    %5170 = vmatprep.subr.mxu0 0.0
    %5171 = vmatpush1.msra.mxu0 0.0
    %5172 = vmatprep.subr.mxu0 0.0
    %5173 = vmatpush1.msra.mxu0 0.0
    %5174 = vmatprep.subr.mxu0 0.0
    %5175 = vmatpush1.msra.mxu0 0.0
    %5176 = vmatprep.subr.mxu0 0.0
    %5177 = vmatpush1.msra.mxu0 0.0
    %5178 = vmatprep.subr.mxu0 0.0
    %5179 = vmatpush1.msra.mxu0 0.0
    %5180 = vmatprep.subr.mxu0 0.0
    %5181 = vmatpush1.msra.mxu0 0.0
    %5182 = vmatprep.subr.mxu0 0.0
    %5183 = vmatpush1.msra.mxu0 0.0
    %5184 = vmatprep.mubr.f32.mxu0 0.0
    %5185 = vmatmul.mubr.f32.gmra.mrb[0].mxu0 %v964
    %v5186 = vpop.f32.mrb[0].mxu0
    %v5187 = vadd.f32 0.0, %v5186
    %v5188 = vpop.f32.mrb[0].mxu0
    %5189 = vmatprep.mubr.f32.mxu0 0.0
    %5190 = vmatmul.mubr.f32.gmra.mrb[0].mxu0 %v967
    %v5191 = vpop.f32.mrb[0].mxu0
    %v5192 = vadd.f32 0.0, %v5191
    %v5193 = vpop.f32.mrb[0].mxu0
    %5194 = vmatprep.mubr.f32.mxu0 0.0
    %5195 = vmatmul.mubr.f32.gmra.mrb[0].mxu0 %v970
    %v5196 = vpop.f32.mrb[0].mxu0
    %v5197 = vadd.f32 0.0, %v5196
    %v5198 = vpop.f32.mrb[0].mxu0
    %5199 = vmatprep.mubr.f32.mxu0 0.0
    %5200 = vmatmul.mubr.f32.gmra.mrb[0].mxu0 %v973
    %v5201 = vpop.f32.mrb[0].mxu0
    %v5202 = vadd.f32 0.0, %v5201
    %v5203 = vpop.f32.mrb[0].mxu0
    %5204 = vdwg.mxu0
    %v5205 = vld [vmem:[#allocation35] sm:$0xff]
    %v5206 = vld [vmem:[#allocation35 + $0x8] sm:$0xff]
    %v5207 = vld [vmem:[#allocation35 + $0x10] sm:$0xff]
    %v5208 = vld [vmem:[#allocation35 + $0x18] sm:$0xff]
    %v5209 = vld [vmem:[#allocation35 + $0x20] sm:$0xff]
    %v5210 = vld [vmem:[#allocation35 + $0x28] sm:$0xff]
    %v5211 = vld [vmem:[#allocation35 + $0x30] sm:$0xff]
    %v5212 = vld [vmem:[#allocation35 + $0x38] sm:$0xff]
    %v5213 = vld [vmem:[#allocation35 + $0x40] sm:$0xff]
    %v5214 = vld [vmem:[#allocation35 + $0x48] sm:$0xff]
    %v5215 = vld [vmem:[#allocation35 + $0x50] sm:$0xff]
    %v5216 = vld [vmem:[#allocation35 + $0x58] sm:$0xff]
    %v5217 = vld [vmem:[#allocation35 + $0x60] sm:$0xff]
    %v5218 = vld [vmem:[#allocation35 + $0x68] sm:$0xff]
    %v5219 = vld [vmem:[#allocation35 + $0x70] sm:$0xff]
    %v5220 = vld [vmem:[#allocation35 + $0x78] sm:$0xff]
    %v5221 = vld [vmem:[#allocation35 + $0x80] sm:$0xff]
    %v5222 = vld [vmem:[#allocation35 + $0x88] sm:$0xff]
    %v5223 = vld [vmem:[#allocation35 + $0x90] sm:$0xff]
    %v5224 = vld [vmem:[#allocation35 + $0x98] sm:$0xff]
    %v5225 = vld [vmem:[#allocation35 + $0xa0] sm:$0xff]
    %v5226 = vld [vmem:[#allocation35 + $0xa8] sm:$0xff]
    %v5227 = vld [vmem:[#allocation35 + $0xb0] sm:$0xff]
    %v5228 = vld [vmem:[#allocation35 + $0xb8] sm:$0xff]
    %v5229 = vld [vmem:[#allocation35 + $0xc0] sm:$0xff]
    %v5230 = vld [vmem:[#allocation35 + $0xc8] sm:$0xff]
    %v5231 = vld [vmem:[#allocation35 + $0xd0] sm:$0xff]
    %v5232 = vld [vmem:[#allocation35 + $0xd8] sm:$0xff]
    %v5233 = vld [vmem:[#allocation35 + $0xe0] sm:$0xff]
    %v5234 = vld [vmem:[#allocation35 + $0xe8] sm:$0xff]
    %v5235 = vld [vmem:[#allocation35 + $0xf0] sm:$0xff]
    %v5236 = vld [vmem:[#allocation35 + $0xf8] sm:$0xff]
    %v5237 = vld [vmem:[%s105] sm:$0x3]
    %v5239 = vlaneseq
    %v5240 = vshrl.u32 %v5239, 7
    %v5241 = vsub.s32 0, %v5240
    %v5242 = vrot.slane %v5237, %v5241
    %v5243 = vlaneseq
    %v5244 = vshrl.u32 %v5243, 7
    %v5245 = vsub.s32 1, %v5244
    %v5246 = vrot.slane %v5237, %v5245
    %5249 = vmatprep.subr.mxu0 %v5206
    %5250 = vmatpush1.msra.mxu0 %v5205
    %5251 = vmatprep.subr.mxu0 %v5208
    %5252 = vmatpush1.msra.mxu0 %v5207
    %5253 = vmatprep.subr.mxu0 %v5210
    %5254 = vmatpush1.msra.mxu0 %v5209
    %5255 = vmatprep.subr.mxu0 %v5212
    %5256 = vmatpush1.msra.mxu0 %v5211
    %5257 = vmatprep.subr.mxu0 %v5214
    %5258 = vmatpush1.msra.mxu0 %v5213
    %5259 = vmatprep.subr.mxu0 %v5216
    %5260 = vmatpush1.msra.mxu0 %v5215
    %5261 = vmatprep.subr.mxu0 %v5218
    %5262 = vmatpush1.msra.mxu0 %v5217
    %5263 = vmatprep.subr.mxu0 %v5220
    %5264 = vmatpush1.msra.mxu0 %v5219
    %5265 = vmatprep.subr.mxu0 %v5222
    %5266 = vmatpush1.msra.mxu0 %v5221
    %5267 = vmatprep.subr.mxu0 %v5224
    %5268 = vmatpush1.msra.mxu0 %v5223
    %5269 = vmatprep.subr.mxu0 %v5226
    %5270 = vmatpush1.msra.mxu0 %v5225
    %5271 = vmatprep.subr.mxu0 %v5228
    %5272 = vmatpush1.msra.mxu0 %v5227
    %5273 = vmatprep.subr.mxu0 %v5230
    %5274 = vmatpush1.msra.mxu0 %v5229
    %5275 = vmatprep.subr.mxu0 %v5232
    %5276 = vmatpush1.msra.mxu0 %v5231
    %5277 = vmatprep.subr.mxu0 %v5234
    %5278 = vmatpush1.msra.mxu0 %v5233
    %5279 = vmatprep.subr.mxu0 %v5236
    %5280 = vmatpush1.msra.mxu0 %v5235
    %5281 = vmatprep.subr.mxu0 0.0
    %5282 = vmatpush1.msra.mxu0 0.0
    %5283 = vmatprep.subr.mxu0 0.0
    %5284 = vmatpush1.msra.mxu0 0.0
    %5285 = vmatprep.subr.mxu0 0.0
    %5286 = vmatpush1.msra.mxu0 0.0
    %5287 = vmatprep.subr.mxu0 0.0
    %5288 = vmatpush1.msra.mxu0 0.0
    %5289 = vmatprep.subr.mxu0 0.0
    %5290 = vmatpush1.msra.mxu0 0.0
    %5291 = vmatprep.subr.mxu0 0.0
    %5292 = vmatpush1.msra.mxu0 0.0
    %5293 = vmatprep.subr.mxu0 0.0
    %5294 = vmatpush1.msra.mxu0 0.0
    %5295 = vmatprep.subr.mxu0 0.0
    %5296 = vmatpush1.msra.mxu0 0.0
    %5297 = vmatprep.subr.mxu0 0.0
    %5298 = vmatpush1.msra.mxu0 0.0
    %5299 = vmatprep.subr.mxu0 0.0
    %5300 = vmatpush1.msra.mxu0 0.0
    %5301 = vmatprep.subr.mxu0 0.0
    %5302 = vmatpush1.msra.mxu0 0.0
    %5303 = vmatprep.subr.mxu0 0.0
    %5304 = vmatpush1.msra.mxu0 0.0
    %5305 = vmatprep.subr.mxu0 0.0
    %5306 = vmatpush1.msra.mxu0 0.0
    %5307 = vmatprep.subr.mxu0 0.0
    %5308 = vmatpush1.msra.mxu0 0.0
    %5309 = vmatprep.subr.mxu0 0.0
    %5310 = vmatpush1.msra.mxu0 0.0
    %5311 = vmatprep.subr.mxu0 0.0
    %5312 = vmatpush1.msra.mxu0 0.0
    %5313 = vmatprep.mubr.f32.mxu0 0.0
    %5314 = vmatmul.mubr.f32.gmra.mrb[0].mxu0 %v5187
    %v5315 = vpop.f32.mrb[0].mxu0
    %v5316 = vadd.f32 %v5242, %v5315
    %v5317 = vpop.f32.mrb[0].mxu0
    %v5318 = vadd.f32 %v5246, %v5317
    %5319 = vmatprep.mubr.f32.mxu0 0.0
    %5320 = vmatmul.mubr.f32.gmra.mrb[0].mxu0 %v5192
    %v5321 = vpop.f32.mrb[0].mxu0
    %v5322 = vadd.f32 %v5242, %v5321
    %v5323 = vpop.f32.mrb[0].mxu0
    %v5324 = vadd.f32 %v5246, %v5323
    %5325 = vmatprep.mubr.f32.mxu0 0.0
    %5326 = vmatmul.mubr.f32.gmra.mrb[0].mxu0 %v5197
    %v5327 = vpop.f32.mrb[0].mxu0
    %v5328 = vadd.f32 %v5242, %v5327
    %v5329 = vpop.f32.mrb[0].mxu0
    %v5330 = vadd.f32 %v5246, %v5329
    %5331 = vmatprep.mubr.f32.mxu0 0.0
    %5332 = vmatmul.mubr.f32.gmra.mrb[0].mxu0 %v5202
    %v5333 = vpop.f32.mrb[0].mxu0
    %v5334 = vadd.f32 %v5242, %v5333
    %v5335 = vpop.f32.mrb[0].mxu0
    %v5336 = vadd.f32 %v5246, %v5335
    %5337 = vdwg.mxu0
    %v5339 = vsel %vm894, %v5318, 0
    %v5342 = vsel %vm894, %v5324, 0
    %5344 = vmatprep.subr.mxu0 %v5339
    %5345 = vmatpush1.xpose.msra.mxu0 %v5316
    %5346 = vmatprep.subr.mxu0 %v5342
    %5347 = vmatpush1.xpose.msra.mxu0 %v5322
    %5348 = vmatprep.subr.mxu0 0.0
    %5349 = vmatpush1.xpose.msra.mxu0 0.0
    %5350 = vmatprep.subr.mxu0 0.0
    %5351 = vmatpush1.xpose.msra.mxu0 0.0
    %5352 = vmatprep.subr.mxu0 0.0
    %5353 = vmatpush1.xpose.msra.mxu0 0.0
    %5354 = vmatprep.subr.mxu0 0.0
    %5355 = vmatpush1.xpose.msra.mxu0 0.0
    %5356 = vmatprep.subr.mxu0 0.0
    %5357 = vmatpush1.xpose.msra.mxu0 0.0
    %5358 = vmatprep.subr.mxu0 0.0
    %5359 = vmatpush1.xpose.msra.mxu0 0.0
    %5360 = vmatprep.subr.mxu0 0.0
    %5361 = vmatpush1.xpose.msra.mxu0 0.0
    %5362 = vmatprep.subr.mxu0 0.0
    %5363 = vmatpush1.xpose.msra.mxu0 0.0
    %5364 = vmatprep.subr.mxu0 0.0
    %5365 = vmatpush1.xpose.msra.mxu0 0.0
    %5366 = vmatprep.subr.mxu0 0.0
    %5367 = vmatpush1.xpose.msra.mxu0 0.0
    %5368 = vmatprep.subr.mxu0 0.0
    %5369 = vmatpush1.xpose.msra.mxu0 0.0
    %5370 = vmatprep.subr.mxu0 0.0
    %5371 = vmatpush1.xpose.msra.mxu0 0.0
    %5372 = vmatprep.subr.mxu0 0.0
    %5373 = vmatpush1.xpose.msra.mxu0 0.0
    %5374 = vmatprep.subr.mxu0 0.0
    %5375 = vmatpush1.xpose.msra.mxu0 0.0
    %5376 = vmatprep.subr.mxu0 0.0
    %5377 = vmatpush1.xpose.msra.mxu0 0.0
    %5378 = vmatprep.subr.mxu0 0.0
    %5379 = vmatpush1.xpose.msra.mxu0 0.0
    %5380 = vmatprep.subr.mxu0 0.0
    %5381 = vmatpush1.xpose.msra.mxu0 0.0
    %5382 = vmatprep.subr.mxu0 0.0
    %5383 = vmatpush1.xpose.msra.mxu0 0.0
    %5384 = vmatprep.subr.mxu0 0.0
    %5385 = vmatpush1.xpose.msra.mxu0 0.0
    %5386 = vmatprep.subr.mxu0 0.0
    %5387 = vmatpush1.xpose.msra.mxu0 0.0
    %5388 = vmatprep.subr.mxu0 0.0
    %5389 = vmatpush1.xpose.msra.mxu0 0.0
    %5390 = vmatprep.subr.mxu0 0.0
    %5391 = vmatpush1.xpose.msra.mxu0 0.0
    %5392 = vmatprep.subr.mxu0 0.0
    %5393 = vmatpush1.xpose.msra.mxu0 0.0
    %5394 = vmatprep.subr.mxu0 0.0
    %5395 = vmatpush1.xpose.msra.mxu0 0.0
    %5396 = vmatprep.subr.mxu0 0.0
    %5397 = vmatpush1.xpose.msra.mxu0 0.0
    %5398 = vmatprep.subr.mxu0 0.0
    %5399 = vmatpush1.xpose.msra.mxu0 0.0
    %5400 = vmatprep.subr.mxu0 0.0
    %5401 = vmatpush1.xpose.msra.mxu0 0.0
    %5402 = vmatprep.subr.mxu0 0.0
    %5403 = vmatpush1.xpose.msra.mxu0 0.0
    %5404 = vmatprep.subr.mxu0 0.0
    %5405 = vmatpush1.xpose.msra.mxu0 0.0
    %5406 = vmatprep.subr.mxu0 0.0
    %5407 = vmatpush1.xpose.msra.mxu0 0.0
    %5408 = vmatprep.mubr.f32.mxu0 %v5339
    %5409 = vmatmul.mubr.f32.gmra.mrb[0].mxu0 %v5316
    %v5410 = vpop.f32.mrb[0].mxu0
    %v5411 = vadd.f32 0.0, %v5410
    %v5412 = vpop.f32.mrb[0].mxu0
    %5413 = vmatprep.mubr.f32.mxu0 %v5342
    %5414 = vmatmul.mubr.f32.gmra.mrb[0].mxu0 %v5322
    %v5415 = vpop.f32.mrb[0].mxu0
    %v5416 = vadd.f32 0.0, %v5415
    %v5417 = vpop.f32.mrb[0].mxu0
    %5418 = vdwg.mxu0
    %5419 = vst.msk [vmem:[#allocation44] sm:$0xff] %vm894, %v5411
    %5420 = vst.msk [vmem:[#allocation44 + $0x8] sm:$0xff] %vm894, %v5416
    %v5422 = vsel %vm894, %v5330, 0
    %v5425 = vsel %vm894, %v5336, 0
    %5427 = vmatprep.subr.mxu0 %v5422
    %5428 = vmatpush1.xpose.msra.mxu0 %v5328
    %5429 = vmatprep.subr.mxu0 %v5425
    %5430 = vmatpush1.xpose.msra.mxu0 %v5334
    %5431 = vmatprep.subr.mxu0 0.0
    %5432 = vmatpush1.xpose.msra.mxu0 0.0
    %5433 = vmatprep.subr.mxu0 0.0
    %5434 = vmatpush1.xpose.msra.mxu0 0.0
    %5435 = vmatprep.subr.mxu0 0.0
    %5436 = vmatpush1.xpose.msra.mxu0 0.0
    %5437 = vmatprep.subr.mxu0 0.0
    %5438 = vmatpush1.xpose.msra.mxu0 0.0
    %5439 = vmatprep.subr.mxu0 0.0
    %5440 = vmatpush1.xpose.msra.mxu0 0.0
    %5441 = vmatprep.subr.mxu0 0.0
    %5442 = vmatpush1.xpose.msra.mxu0 0.0
    %5443 = vmatprep.subr.mxu0 0.0
    %5444 = vmatpush1.xpose.msra.mxu0 0.0
    %5445 = vmatprep.subr.mxu0 0.0
    %5446 = vmatpush1.xpose.msra.mxu0 0.0
    %5447 = vmatprep.subr.mxu0 0.0
    %5448 = vmatpush1.xpose.msra.mxu0 0.0
    %5449 = vmatprep.subr.mxu0 0.0
    %5450 = vmatpush1.xpose.msra.mxu0 0.0
    %5451 = vmatprep.subr.mxu0 0.0
    %5452 = vmatpush1.xpose.msra.mxu0 0.0
    %5453 = vmatprep.subr.mxu0 0.0
    %5454 = vmatpush1.xpose.msra.mxu0 0.0
    %5455 = vmatprep.subr.mxu0 0.0
    %5456 = vmatpush1.xpose.msra.mxu0 0.0
    %5457 = vmatprep.subr.mxu0 0.0
    %5458 = vmatpush1.xpose.msra.mxu0 0.0
    %5459 = vmatprep.subr.mxu0 0.0
    %5460 = vmatpush1.xpose.msra.mxu0 0.0
    %5461 = vmatprep.subr.mxu0 0.0
    %5462 = vmatpush1.xpose.msra.mxu0 0.0
    %5463 = vmatprep.subr.mxu0 0.0
    %5464 = vmatpush1.xpose.msra.mxu0 0.0
    %5465 = vmatprep.subr.mxu0 0.0
    %5466 = vmatpush1.xpose.msra.mxu0 0.0
    %5467 = vmatprep.subr.mxu0 0.0
    %5468 = vmatpush1.xpose.msra.mxu0 0.0
    %5469 = vmatprep.subr.mxu0 0.0
    %5470 = vmatpush1.xpose.msra.mxu0 0.0
    %5471 = vmatprep.subr.mxu0 0.0
    %5472 = vmatpush1.xpose.msra.mxu0 0.0
    %5473 = vmatprep.subr.mxu0 0.0
    %5474 = vmatpush1.xpose.msra.mxu0 0.0
    %5475 = vmatprep.subr.mxu0 0.0
    %5476 = vmatpush1.xpose.msra.mxu0 0.0
    %5477 = vmatprep.subr.mxu0 0.0
    %5478 = vmatpush1.xpose.msra.mxu0 0.0
    %5479 = vmatprep.subr.mxu0 0.0
    %5480 = vmatpush1.xpose.msra.mxu0 0.0
    %5481 = vmatprep.subr.mxu0 0.0
    %5482 = vmatpush1.xpose.msra.mxu0 0.0
    %5483 = vmatprep.subr.mxu0 0.0
    %5484 = vmatpush1.xpose.msra.mxu0 0.0
    %5485 = vmatprep.subr.mxu0 0.0
    %5486 = vmatpush1.xpose.msra.mxu0 0.0
    %5487 = vmatprep.subr.mxu0 0.0
    %5488 = vmatpush1.xpose.msra.mxu0 0.0
    %5489 = vmatprep.subr.mxu0 0.0
    %5490 = vmatpush1.xpose.msra.mxu0 0.0
    %5491 = vmatprep.mubr.f32.mxu0 %v5422
    %5492 = vmatmul.mubr.f32.gmra.mrb[0].mxu0 %v5328
    %v5493 = vpop.f32.mrb[0].mxu0
    %v5494 = vadd.f32 0.0, %v5493
    %v5495 = vpop.f32.mrb[0].mxu0
    %5496 = vmatprep.mubr.f32.mxu0 %v5425
    %5497 = vmatmul.mubr.f32.gmra.mrb[0].mxu0 %v5334
    %v5498 = vpop.f32.mrb[0].mxu0
    %v5499 = vadd.f32 0.0, %v5498
    %v5500 = vpop.f32.mrb[0].mxu0
    %5501 = vdwg.mxu0
    %s5502 = scalar_lea.vmem [#allocation44], 16
    %5503 = vst.msk [vmem:[%s5502] sm:$0xff] %vm894, %v5494
    %5504 = vst.msk [vmem:[%s5502 + $0x8] sm:$0xff] %vm894, %v5499
    // Predicated region
    $region394: #{link_pred_net_forward.1} parent=1 // pred_check
      _
    $region395: #{link_pred_net_forward.1} parent=1 // pred_check_branch
      %5506 = sbr.rel (0) target = $region397
    $region396: #{link_pred_net_forward.1} parent=1 // pred_region
      %s5508 = ssub.s32 512, 512
      %5509 = vsyncadd [#allocation4], %s5508
      %s5510 = sshll.u32 [#allocation44], 4
      %s5511 = int_to_ptr.vmem [resolvable:$true] %s5510
      %5516 = dma.vmem_to_hbm [thread:$0]  %s5511, 512, %s143, [#allocation4], 128, 128, 8
    $region397: #{link_pred_net_forward.1} parent=1 // pred_fallthru
      _
    // Predicated region
    $region398: #{link_pred_net_forward.1} parent=1 // pred_check
      _
    $region399: #{link_pred_net_forward.1} parent=1 // pred_check_branch
      %5518 = sbr.rel (0) target = $region401
    $region400: #{link_pred_net_forward.1} parent=1 // pred_region
      %5519 = dma.done [#allocation4], 512
    $region401: #{link_pred_net_forward.1} parent=1 // pred_fallthru
      _
    %5520 = vsyncpa [#allocation3], 1
    %5521 = vsyncpa [#allocation6], 1
    %5522 = vsyncpa [#allocation9], 1
    %5523 = vsyncpa [#allocation12], 1
    %5524 = vsyncpa [#allocation15], 1
    %5525 = vsyncpa [#allocation18], 1
    %5526 = vsyncpa [#allocation21], 1
    %5527 = vsyncpa [#allocation24], 1
    %5528 = vsyncpa [#allocation27], 1
    %5529 = vsyncpa [#allocation30], 1
    %5530 = vsyncpa [#allocation33], 1
    %5531 = vsyncpa [#allocation36], 1
    %5532 = vsyncpa [#allocation39], 1
    %5533 = vsyncpa [#allocation42], 1
    %5534 = vsyncpa [#allocation4], 1

</llo_original>
